<compile_context>
chip_gen: v7x
topology: tpu7x:2x2x1
jax: 0.10.0
libtpu: 0.0.40
codegen_flags: <defaults>
</compile_context>

<pallas_src>
import math

import jax
import jax.numpy as jnp
from jax.experimental import pallas as pl
from jax.experimental.pallas import tpu as pltpu

BN_EPS = 1e-5
LANE = 128


def _round_up(x, m):
    return ((x + m - 1) // m) * m


def _row_tile(ho, wo, m_cap=1024):
    """Largest divisor of `ho` with th*wo <= m_cap and (when possible) >= 2
    row tiles per batch element."""
    divs = [d for d in range(1, ho + 1) if ho % d == 0]
    cands = [d for d in divs if d * wo <= m_cap] or [1]
    two = [d for d in cands if ho // d >= 2]
    if two:
        cands = two
    return max(cands)


# ---------------------------------------------------------------------------
# Pallas kernel: conv (folded-K or per-tap MXU matmuls) + BN bias
#                (+ fused 1x1 downsample) (+ residual) (+ ReLU)
# ---------------------------------------------------------------------------

def _make_conv_kernel(*, taps, stride, th, wo, cin, coutp, fold, relu,
                      res_c, has_down, down_tap_idx):
    s = stride
    m = th * wo

    def kernel(*refs):
        i = 0
        x_ref = refs[i]; i += 1          # (S2, Hh, Wh, Cin) stride-phase view, bf16
        w_ref = refs[i]; i += 1          # fold: (T*Cin, Coutp) else (T, Cin, Coutp)
        b_ref = refs[i]; i += 1          # (1, Coutp) f32 fused BN bias
        wd_ref = bd_ref = res_ref = None
        if has_down:
            wd_ref = refs[i]; i += 1     # (Cin, Coutp) bf16 downsample weight
            bd_ref = refs[i]; i += 1     # (1, Coutp) f32 downsample bias
        if res_c is not None:
            res_ref = refs[i]; i += 1    # (1, th, Wo, res_c) bf16 residual
        o_ref = refs[i]; i += 1          # (1, th, Wo, Coutp) bf16
        od_ref = refs[i] if has_down else None

        row0 = pl.program_id(1) * th

        # One (m, Cin) slice per conv tap out of the stride-phase view.
        pieces = []
        for (ki, kj) in taps:
            p = (ki % s) * s + (kj % s)
            a = x_ref[p, pl.ds(row0 + ki // s, th), pl.ds(kj // s, wo), :]
            pieces.append(a.reshape(m, cin))

        if fold:
            # Small Cin: fold all taps into the contraction dim -> ONE matmul
            # with K = T*Cin (accumulation happens on the MXU, not the VPU).
            lhs = pieces[0] if len(pieces) == 1 else jnp.concatenate(pieces, axis=-1)
            acc = jnp.dot(lhs, w_ref[...], preferred_element_type=jnp.float32)
        else:
            acc = jnp.dot(pieces[0], w_ref[0], preferred_element_type=jnp.float32)
            for t in range(1, len(pieces)):
                acc = acc + jnp.dot(pieces[t], w_ref[t],
                                    preferred_element_type=jnp.float32)

        acc = acc + b_ref[...]                       # BN scale already in weights
        if res_ref is not None:
            r = res_ref[...].reshape(m, res_c).astype(jnp.float32)
            if res_c < coutp:                        # zero-extend in VMEM, not HBM
                r = jnp.concatenate(
                    [r, jnp.zeros((m, coutp - res_c), jnp.float32)], axis=-1)
            acc = acc + r
        if relu:
            acc = jnp.maximum(acc, 0.0)
        o_ref[...] = acc.reshape(1, th, wo, coutp).astype(o_ref.dtype)

        if has_down:
            # Fused 1x1 stride-s downsample: reads exactly the (pad,pad) tap.
            d = jnp.dot(pieces[down_tap_idx], wd_ref[...],
                        preferred_element_type=jnp.float32)
            d = d + bd_ref[...]
            od_ref[...] = d.reshape(1, th, wo, coutp).astype(od_ref.dtype)

    return kernel


def conv_bn(x, w, bias, *, kh, kw, stride, pad, fold, relu=True,
            residual=None, down_w=None, down_bias=None):
    """Conv2d(bias=False) + fused BN (+ fused 1x1 downsample) (+res) (+ReLU).

    x:     (N, H, W, Cin) NHWC bf16 activations.
    w:     fold -> (kh*kw*Cin, Coutp) bf16, else (kh*kw, Cin, Coutp) bf16
           (BN scale folded in, channel dims zero-padded).
    bias:  (1, Coutp) f32 fused BN bias.
    residual: (N, Ho, Wo, Cres) bf16 or None (Cres <= Coutp, zero-extended
              inside the kernel).
    down_w/down_bias: fused 1x1/stride downsample (second output) or None.
    returns (N, Ho, Wo, Coutp) bf16, or a tuple (main, downsample).
    """
    N, H, W, Cin = x.shape
    Coutp = bias.shape[-1]
    s, T = stride, kh * kw
    Ho = (H + 2 * pad - kh) // s + 1
    Wo = (W + 2 * pad - kw) // s + 1

    # Zero-pad + stride-phase ("space-to-depth") decomposition: every conv tap
    # becomes a contiguous static slice inside the kernel (no im2col).
    Hp = _round_up(H + 2 * pad, s)
    Wp = _round_up(W + 2 * pad, s)
    xp = jnp.pad(x, ((0, 0), (pad, pad), (pad, pad), (0, 0)))
    if Hp != H + 2 * pad or Wp != W + 2 * pad:
        xp = jnp.pad(xp, ((0, 0), (0, Hp - (H + 2 * pad)),
                          (0, Wp - (W + 2 * pad)), (0, 0)))
    Hh, Wh = Hp // s, Wp // s
    if s == 1:
        xph = xp                                   # no extra copy for stride-1
    else:
        phases = [xp[:, pi::s, pj::s, :] for pi in range(s) for pj in range(s)]
        xph = jnp.stack(phases, axis=1).reshape(N * s * s, Hh, Wh, Cin)
    S2 = s * s
    assert Ho + (kh - 1) // s <= Hh and Wo + (kw - 1) // s <= Wh

    th = _row_tile(Ho, Wo)
    assert Ho % th == 0
    grid = (N, Ho // th)
    taps = tuple((ki, kj) for ki in range(kh) for kj in range(kw))
    has_down = down_w is not None
    if has_down:
        assert pad < kh and pad < kw, "fused downsample needs the (pad,pad) tap"
        down_tap_idx = taps.index((pad, pad))
    else:
        down_tap_idx = -1
    res_c = None if residual is None else residual.shape[-1]
    if residual is not None:
        assert residual.shape == (N, Ho, Wo, res_c) and res_c <= Coutp

    in_specs = [pl.BlockSpec((S2, Hh, Wh, Cin), lambda n, r: (n, 0, 0, 0))]
    args = [xph]
    if fold:
        in_specs.append(pl.BlockSpec((T * Cin, Coutp), lambda n, r: (0, 0)))
    else:
        in_specs.append(pl.BlockSpec((T, Cin, Coutp), lambda n, r: (0, 0, 0)))
    args.append(w)
    in_specs.append(pl.BlockSpec((1, Coutp), lambda n, r: (0, 0)))
    args.append(bias)
    if has_down:
        in_specs.append(pl.BlockSpec((Cin, Coutp), lambda n, r: (0, 0)))
        args.append(down_w)
        in_specs.append(pl.BlockSpec((1, Coutp), lambda n, r: (0, 0)))
        args.append(down_bias)
    if residual is not None:
        in_specs.append(pl.BlockSpec((1, th, Wo, res_c), lambda n, r: (n, r, 0, 0)))
        args.append(residual)

    out_block = pl.BlockSpec((1, th, Wo, Coutp), lambda n, r: (n, r, 0, 0))
    if has_down:
        out_shape = (jax.ShapeDtypeStruct((N, Ho, Wo, Coutp), jnp.bfloat16),
                     jax.ShapeDtypeStruct((N, Ho, Wo, Coutp), jnp.bfloat16))
        out_specs = (out_block, out_block)
    else:
        out_shape = jax.ShapeDtypeStruct((N, Ho, Wo, Coutp), jnp.bfloat16)
        out_specs = out_block

    # VMEM budget (double-buffered pipeline blocks + f32 epilogue temps).
    x_blk = S2 * Hh * Wh * Cin * 2
    w_bytes = int(w.size) * 2 + (int(down_w.size) * 2 if has_down else 0)
    out_blk = th * Wo * Coutp * 2 * (2 if has_down else 1)
    res_blk = th * Wo * res_c * 2 if residual is not None else 0
    vmem_est = (2 * (x_blk + out_blk + res_blk) + 2 * w_bytes
                + 4 * th * Wo * Coutp * 4 + (1 << 16))
    assert vmem_est < 24 * 1024 * 1024, (
        f"conv block needs ~{vmem_est} B VMEM; shrink the row tile / block input rows")
    vmem_limit = int(min(48 * 1024 * 1024, max(16 * 1024 * 1024, 4 * vmem_est)))

    out_elems = N * Ho * Wo * Coutp
    flops = 2 * N * Ho * Wo * T * Cin * Coutp
    bytes_accessed = (int(xph.size) * 2 + int(w.size) * 2 + int(bias.size) * 4
                      + out_elems * 2)
    if has_down:
        flops += 2 * N * Ho * Wo * Cin * Coutp
        bytes_accessed += int(down_w.size) * 2 + int(down_bias.size) * 4 + out_elems * 2
    if residual is not None:
        bytes_accessed += int(residual.size) * 2

    kernel = _make_conv_kernel(taps=taps, stride=s, th=th, wo=Wo, cin=Cin,
                               coutp=Coutp, fold=fold, relu=relu, res_c=res_c,
                               has_down=has_down, down_tap_idx=down_tap_idx)
    return pl.pallas_call(
        kernel,
        out_shape=out_shape,
        grid=grid,
        in_specs=in_specs,
        out_specs=out_specs,
        compiler_params=pltpu.CompilerParams(
            dimension_semantics=("parallel", "parallel"),
            vmem_limit_bytes=vmem_limit),
        cost_estimate=pl.CostEstimate(flops=int(flops), transcendentals=0,
                                      bytes_accessed=int(bytes_accessed)),
    )(*args)


# ---------------------------------------------------------------------------
# Parameters (mirror BasicBlock.__init__; BN scale folded, weights pre-packed)
# ---------------------------------------------------------------------------

def _conv_weight(key, cin, cout, k):
    n = k * k * cout
    return jax.random.normal(key, (cout, cin, k, k), jnp.float32) * math.sqrt(2.0 / n)


def _bn_scale_bias(c):
    gamma = jnp.ones((c,), jnp.float32)
    beta = jnp.zeros((c,), jnp.float32)
    running_mean = jnp.zeros((c,), jnp.float32)
    running_var = jnp.ones((c,), jnp.float32)
    scale = gamma / jnp.sqrt(running_var + BN_EPS)
    bias = beta - running_mean * scale
    return scale, bias


def _pad_bias(b, coutp):
    return jnp.pad(b, (0, coutp - b.shape[0])).reshape(1, coutp).astype(jnp.float32)


def _pack_conv(w, cin_phys, coutp, fold):
    """(Cout, Cin, kh, kw) -> (kh*kw, cin_phys, Coutp) bf16 (or K-folded 2-D)."""
    cout, cin, kh, kw = w.shape
    assert cin_phys >= cin and coutp >= cout
    wp = jnp.transpose(w, (2, 3, 1, 0)).reshape(kh * kw, cin, cout)
    wp = jnp.pad(wp, ((0, 0), (0, cin_phys - cin), (0, coutp - cout)))
    wp = wp.astype(jnp.bfloat16)
    if fold:
        wp = wp.reshape(kh * kw * cin_phys, coutp)
    return wp


def make_basic_block_params(key, inplanes, planes, stride=1, in_physical=None):
    """Mirrors BasicBlock.__init__ (expansion=1); downsample = 1x1 conv + BN
    when stride != 1 or inplanes != planes.  `in_physical` is the physical
    channel count of the incoming NHWC activation (>= inplanes; extra channels
    must be zero) -- use the previous block's padded count when chaining."""
    cin1 = inplanes if in_physical is None else int(in_physical)
    assert cin1 >= inplanes
    coutp = _round_up(planes, LANE)
    k1, k2, k3 = jax.random.split(key, 3)
    w1 = _conv_weight(k1, inplanes, planes, 3)
    w2 = _conv_weight(k2, planes, planes, 3)
    s1, b1 = _bn_scale_bias(planes)
    s2, b2 = _bn_scale_bias(planes)
    w1s = w1 * s1[:, None, None, None]      # fold BN scale into conv weights
    w2s = w2 * s2[:, None, None, None]
    fold1 = cin1 < LANE                     # fold taps into K only when Cin is small
    p = {
        "stride": stride, "inplanes": inplanes, "planes": planes,
        "coutp": coutp, "cin1": cin1, "conv1_fold": fold1,
        "conv1_w": _pack_conv(w1s, cin1, coutp, fold1), "conv1_b": _pad_bias(b1, coutp),
        "conv2_w": _pack_conv(w2s, coutp, coutp, False), "conv2_b": _pad_bias(b2, coutp),
    }
    raw = {"conv1_w_scaled": w1s, "conv1_bias": b1,
           "conv2_w_scaled": w2s, "conv2_bias": b2}
    if stride != 1 or inplanes != planes:
        wd = _conv_weight(k3, inplanes, planes, 1)
        sd, bd = _bn_scale_bias(planes)
        wds = wd * sd[:, None, None, None]
        p["down_w"] = _pack_conv(wds, cin1, coutp, True)   # (cin1, coutp)
        p["down_b"] = _pad_bias(bd, coutp)
        raw["down_w_scaled"] = wds
        raw["down_bias"] = bd
    p["_raw"] = raw
    return p


# ---------------------------------------------------------------------------
# Forward pass
# ---------------------------------------------------------------------------

def basic_block_apply(x_nhwc, p):
    """Padded-NHWC bf16 in -> padded-NHWC bf16 out (channels > planes are 0)."""
    assert x_nhwc.shape[-1] == p["cin1"]
    s = p["stride"]
    if "down_w" in p:
        out1, identity = conv_bn(
            x_nhwc, p["conv1_w"], p["conv1_b"], kh=3, kw=3, stride=s, pad=1,
            fold=p["conv1_fold"], relu=True,
            down_w=p["down_w"], down_bias=p["down_b"])
    else:
        out1 = conv_bn(x_nhwc, p["conv1_w"], p["conv1_b"], kh=3, kw=3, stride=s,
                       pad=1, fold=p["conv1_fold"], relu=True)
        identity = x_nhwc                      # unpadded; zero-extended in-kernel
    out = conv_bn(out1, p["conv2_w"], p["conv2_b"], kh=3, kw=3, stride=1, pad=1,
                  fold=False, relu=True, residual=identity)
    return out


def basic_block_forward(x_nchw, p):
    """Single block, NCHW f32 in / NCHW f32 out, like the PyTorch module."""
    x = jnp.transpose(x_nchw, (0, 2, 3, 1)).astype(jnp.bfloat16)
    out = basic_block_apply(x, p)[..., :p["planes"]].astype(jnp.float32)
    return jnp.transpose(out, (0, 3, 1, 2))


# ---------------------------------------------------------------------------
# Plain-JAX reference (same bf16 rounding points) for the correctness check
# ---------------------------------------------------------------------------

def _ref_conv(x, w, stride, pad):
    return jax.lax.conv_general_dilated(
        x, jnp.transpose(w, (2, 3, 1, 0)), (stride, stride),
        [(pad, pad), (pad, pad)], dimension_numbers=("NHWC", "HWIO", "NHWC"),
        precision=jax.lax.Precision.HIGHEST)


def basic_block_reference(x_nhwc_phys, p):
    """x_nhwc_phys: bf16 NHWC with >= inplanes channels (extras zero)."""
    b16 = lambda a: a.astype(jnp.bfloat16).astype(jnp.float32)
    raw, s, planes, inpl = p["_raw"], p["stride"], p["planes"], p["inplanes"]
    x = x_nhwc_phys[..., :inpl].astype(jnp.float32)
    out = b16(jnp.maximum(_ref_conv(x, b16(raw["conv1_w_scaled"]), s, 1)
                          + raw["conv1_bias"], 0.0))
    if "down_w_scaled" in raw:
        identity = b16(_ref_conv(x, b16(raw["down_w_scaled"]), s, 0)
                       + raw["down_bias"])
    else:
        identity = x_nhwc_phys[..., :planes].astype(jnp.float32)
    out = b16(jnp.maximum(_ref_conv(out, b16(raw["conv2_w_scaled"]), 1, 1)
                          + raw["conv2_bias"] + identity, 0.0))
    return out


# ---------------------------------------------------------------------------
# Demo
# ---------------------------------------------------------------------------

if __name__ == "__main__":
    key = jax.random.PRNGKey(0)
    kx, ka, kb = jax.random.split(key, 3)
    # batch=2, 16 channels, 16x16 spatial (NCHW, like the PyTorch module)
    x_nchw = jax.random.normal(kx, (2, 16, 16, 16), jnp.float32)

    # Identity block, and stride-2 / channel-expanding block with the standard
    # 1x1-conv+BN downsample.  block_b consumes block_a's channel-padded
    # NHWC bf16 output directly (no slice / pad between blocks).
    block_a = make_basic_block_params(ka, inplanes=16, planes=16, stride=1)
    block_b = make_basic_block_params(kb, inplanes=16, planes=32, stride=2,
                                      in_physical=block_a["coutp"])

    @jax.jit
    def net(x):
        xh = jnp.transpose(x, (0, 2, 3, 1)).astype(jnp.bfloat16)   # NHWC bf16
        h1 = basic_block_apply(xh, block_a)        # (2, 16, 16, 128) bf16
        h2 = basic_block_apply(h1, block_b)        # (2,  8,  8, 128) bf16
        # channel slice / f32 cast / NCHW only at the network boundary
        y1 = jnp.transpose(h1[..., :block_a["planes"]].astype(jnp.float32),
                           (0, 3, 1, 2))
        y2 = jnp.transpose(h2[..., :block_b["planes"]].astype(jnp.float32),
                           (0, 3, 1, 2))
        return h1, y1, y2

    h1, y1, y2 = jax.block_until_ready(net(x_nchw))
    assert y1.shape == (2, 16, 16, 16), y1.shape
    assert y2.shape == (2, 32, 8, 8), y2.shape
    assert bool(jnp.all(jnp.isfinite(y1))) and bool(jnp.all(jnp.isfinite(y2)))

    # per-block numerical check against plain JAX (bf16-consistent reference)
    x_nhwc = jnp.transpose(x_nchw, (0, 2, 3, 1)).astype(jnp.bfloat16)
    r1 = basic_block_reference(x_nhwc, block_a)    # (2, 16, 16, 16) f32
    r2 = basic_block_reference(h1, block_b)        # (2,  8,  8, 32) f32
    e1 = float(jnp.max(jnp.abs(jnp.transpose(r1, (0, 3, 1, 2)) - y1)))
    e2 = float(jnp.max(jnp.abs(jnp.transpose(r2, (0, 3, 1, 2)) - y2)))
    assert max(e1, e2) < 5e-2, (e1, e2)

    print("KERNEL_OK")
</pallas_src>

<mosaic_0001>
module attributes {stable_mosaic.version = 11 : i64} {
  func.func @kernel(%arg0: i32, %arg1: i32, %arg2: memref<1x18x18x16xbf16, #tpu.memory_space<vmem>>, %arg3: memref<144x128xbf16, #tpu.memory_space<vmem>>, %arg4: memref<1x128xf32, #tpu.memory_space<vmem>>, %arg5: memref<1x8x16x128xbf16, #tpu.memory_space<vmem>>) attributes {dimension_semantics = [#tpu.dimension_semantics<parallel>, #tpu.dimension_semantics<parallel>], iteration_bounds = array<i64: 2, 2>, scalar_prefetch = 0 : i64, scratch_operands = 0 : i64, tpu.core_type = #tpu.core_type<tc>, window_params = [{transform_indices = @transform_0, window_bounds = array<i64: 1, 18, 18, 16>}, {pipeline_mode = #tpu.pipeline_mode<synchronous>, transform_indices = @transform_1, window_bounds = array<i64: 144, 128>}, {pipeline_mode = #tpu.pipeline_mode<synchronous>, transform_indices = @transform_2, window_bounds = array<i64: 1, 128>}, {transform_indices = @transform_3, window_bounds = array<i64: 1, 8, 16, 128>}]} {
    %c8_i32 = arith.constant 8 : i32
    %0 = arith.muli %arg1, %c8_i32 : i32
    %c0_i32 = arith.constant 0 : i32
    %1 = arith.addi %0, %c0_i32 : i32
    %c0 = arith.constant 0 : index
    %2 = arith.index_cast %1 : i32 to index
    %c0_0 = arith.constant 0 : index
    %c0_1 = arith.constant 0 : index
    %3 = vector.load %arg2[%c0, %2, %c0_0, %c0_1] : memref<1x18x18x16xbf16, #tpu.memory_space<vmem>>, vector<1x8x16x16xbf16>
    %4 = vector.shape_cast %3 : vector<1x8x16x16xbf16> to vector<8x16x16xbf16>
    %5 = vector.shape_cast %4 : vector<8x16x16xbf16> to vector<128x16xbf16>
    %c0_i32_2 = arith.constant 0 : i32
    %6 = arith.addi %0, %c0_i32_2 : i32
    %c0_3 = arith.constant 0 : index
    %7 = arith.index_cast %6 : i32 to index
    %c1 = arith.constant 1 : index
    %c0_4 = arith.constant 0 : index
    %8 = vector.load %arg2[%c0_3, %7, %c1, %c0_4] : memref<1x18x18x16xbf16, #tpu.memory_space<vmem>>, vector<1x8x16x16xbf16>
    %9 = vector.shape_cast %8 : vector<1x8x16x16xbf16> to vector<8x16x16xbf16>
    %10 = vector.shape_cast %9 : vector<8x16x16xbf16> to vector<128x16xbf16>
    %c0_i32_5 = arith.constant 0 : i32
    %11 = arith.addi %0, %c0_i32_5 : i32
    %c0_6 = arith.constant 0 : index
    %12 = arith.index_cast %11 : i32 to index
    %c2 = arith.constant 2 : index
    %c0_7 = arith.constant 0 : index
    %13 = vector.load %arg2[%c0_6, %12, %c2, %c0_7] : memref<1x18x18x16xbf16, #tpu.memory_space<vmem>>, vector<1x8x16x16xbf16>
    %14 = vector.shape_cast %13 : vector<1x8x16x16xbf16> to vector<8x16x16xbf16>
    %15 = vector.shape_cast %14 : vector<8x16x16xbf16> to vector<128x16xbf16>
    %c1_i32 = arith.constant 1 : i32
    %16 = arith.addi %0, %c1_i32 : i32
    %c0_8 = arith.constant 0 : index
    %17 = arith.index_cast %16 : i32 to index
    %c0_9 = arith.constant 0 : index
    %c0_10 = arith.constant 0 : index
    %18 = vector.load %arg2[%c0_8, %17, %c0_9, %c0_10] : memref<1x18x18x16xbf16, #tpu.memory_space<vmem>>, vector<1x8x16x16xbf16>
    %19 = vector.shape_cast %18 : vector<1x8x16x16xbf16> to vector<8x16x16xbf16>
    %20 = vector.shape_cast %19 : vector<8x16x16xbf16> to vector<128x16xbf16>
    %c1_i32_11 = arith.constant 1 : i32
    %21 = arith.addi %0, %c1_i32_11 : i32
    %c0_12 = arith.constant 0 : index
    %22 = arith.index_cast %21 : i32 to index
    %c1_13 = arith.constant 1 : index
    %c0_14 = arith.constant 0 : index
    %23 = vector.load %arg2[%c0_12, %22, %c1_13, %c0_14] : memref<1x18x18x16xbf16, #tpu.memory_space<vmem>>, vector<1x8x16x16xbf16>
    %24 = vector.shape_cast %23 : vector<1x8x16x16xbf16> to vector<8x16x16xbf16>
    %25 = vector.shape_cast %24 : vector<8x16x16xbf16> to vector<128x16xbf16>
    %c1_i32_15 = arith.constant 1 : i32
    %26 = arith.addi %0, %c1_i32_15 : i32
    %c0_16 = arith.constant 0 : index
    %27 = arith.index_cast %26 : i32 to index
    %c2_17 = arith.constant 2 : index
    %c0_18 = arith.constant 0 : index
    %28 = vector.load %arg2[%c0_16, %27, %c2_17, %c0_18] : memref<1x18x18x16xbf16, #tpu.memory_space<vmem>>, vector<1x8x16x16xbf16>
    %29 = vector.shape_cast %28 : vector<1x8x16x16xbf16> to vector<8x16x16xbf16>
    %30 = vector.shape_cast %29 : vector<8x16x16xbf16> to vector<128x16xbf16>
    %c2_i32 = arith.constant 2 : i32
    %31 = arith.addi %0, %c2_i32 : i32
    %c0_19 = arith.constant 0 : index
    %32 = arith.index_cast %31 : i32 to index
    %c0_20 = arith.constant 0 : index
    %c0_21 = arith.constant 0 : index
    %33 = vector.load %arg2[%c0_19, %32, %c0_20, %c0_21] : memref<1x18x18x16xbf16, #tpu.memory_space<vmem>>, vector<1x8x16x16xbf16>
    %34 = vector.shape_cast %33 : vector<1x8x16x16xbf16> to vector<8x16x16xbf16>
    %35 = vector.shape_cast %34 : vector<8x16x16xbf16> to vector<128x16xbf16>
    %c2_i32_22 = arith.constant 2 : i32
    %36 = arith.addi %0, %c2_i32_22 : i32
    %c0_23 = arith.constant 0 : index
    %37 = arith.index_cast %36 : i32 to index
    %c1_24 = arith.constant 1 : index
    %c0_25 = arith.constant 0 : index
    %38 = vector.load %arg2[%c0_23, %37, %c1_24, %c0_25] : memref<1x18x18x16xbf16, #tpu.memory_space<vmem>>, vector<1x8x16x16xbf16>
    %39 = vector.shape_cast %38 : vector<1x8x16x16xbf16> to vector<8x16x16xbf16>
    %40 = vector.shape_cast %39 : vector<8x16x16xbf16> to vector<128x16xbf16>
    %c2_i32_26 = arith.constant 2 : i32
    %41 = arith.addi %0, %c2_i32_26 : i32
    %c0_27 = arith.constant 0 : index
    %42 = arith.index_cast %41 : i32 to index
    %c2_28 = arith.constant 2 : index
    %c0_29 = arith.constant 0 : index
    %43 = vector.load %arg2[%c0_27, %42, %c2_28, %c0_29] : memref<1x18x18x16xbf16, #tpu.memory_space<vmem>>, vector<1x8x16x16xbf16>
    %44 = vector.shape_cast %43 : vector<1x8x16x16xbf16> to vector<8x16x16xbf16>
    %45 = vector.shape_cast %44 : vector<8x16x16xbf16> to vector<128x16xbf16>
    %46 = tpu.concatenate %5, %10, %15, %20, %25, %30, %35, %40, %45 in 1 : vector<128x16xbf16>, vector<128x16xbf16>, vector<128x16xbf16>, vector<128x16xbf16>, vector<128x16xbf16>, vector<128x16xbf16>, vector<128x16xbf16>, vector<128x16xbf16>, vector<128x16xbf16> -> vector<128x144xbf16>
    %c0_30 = arith.constant 0 : index
    %c0_31 = arith.constant 0 : index
    %47 = vector.load %arg3[%c0_30, %c0_31] : memref<144x128xbf16, #tpu.memory_space<vmem>>, vector<144x128xbf16>
    %cst = arith.constant dense<0.000000e+00> : vector<128x128xf32>
    %48 = tpu.matmul %46, %47, %cst {dimension_numbers = #tpu.dot_dimension_numbers<[1], [0], [0], [1], [0, 0, 1, 1], [], []>} : vector<128x144xbf16>, vector<144x128xbf16>, vector<128x128xf32> -> vector<128x128xf32>
    %c0_32 = arith.constant 0 : index
    %c0_33 = arith.constant 0 : index
    %49 = vector.load %arg4[%c0_32, %c0_33] : memref<1x128xf32, #tpu.memory_space<vmem>>, vector<1x128xf32>
    %50 = vector.broadcast %49 : vector<1x128xf32> to vector<128x128xf32>
    %51 = arith.addf %48, %50 : vector<128x128xf32>
    %cst_34 = arith.constant 0.000000e+00 : f32
    %52 = vector.broadcast %cst_34 : f32 to vector<128x128xf32>
    %53 = arith.maximumf %51, %52 : vector<128x128xf32>
    %54 = vector.shape_cast %53 : vector<128x128xf32> to vector<1x8x16x128xf32>
    %55 = arith.truncf %54 : vector<1x8x16x128xf32> to vector<1x8x16x128xbf16>
    %c0_35 = arith.constant 0 : index
    %c0_36 = arith.constant 0 : index
    %c0_37 = arith.constant 0 : index
    %c0_38 = arith.constant 0 : index
    %56 = vector.load %arg5[%c0_35, %c0_36, %c0_37, %c0_38] : memref<1x8x16x128xbf16, #tpu.memory_space<vmem>>, vector<1x8x16x128xbf16>
    tpu.vector_store %arg5[%c0_35, %c0_36, %c0_37, %c0_38], %55 {strides = array<i32>} : memref<1x8x16x128xbf16, #tpu.memory_space<vmem>>, vector<1x8x16x128xbf16>,
    return
  }
  func.func @transform_0(%arg0: i32, %arg1: i32) -> (i32, i32, i32, i32) {
    %c0_i32 = arith.constant 0 : i32
    %c0_i32_0 = arith.constant 0 : i32
    %c0_i32_1 = arith.constant 0 : i32
    %c0_i32_2 = arith.constant 0 : i32
    return %arg0, %c0_i32, %c0_i32_0, %c0_i32_1 : i32, i32, i32, i32
  }
  func.func @transform_1(%arg0: i32, %arg1: i32) -> (i32, i32) {
    %c0_i32 = arith.constant 0 : i32
    %c0_i32_0 = arith.constant 0 : i32
    %c0_i32_1 = arith.constant 0 : i32
    return %c0_i32, %c0_i32_0 : i32, i32
  }
  func.func @transform_2(%arg0: i32, %arg1: i32) -> (i32, i32) {
    %c0_i32 = arith.constant 0 : i32
    %c0_i32_0 = arith.constant 0 : i32
    %c0_i32_1 = arith.constant 0 : i32
    return %c0_i32, %c0_i32_0 : i32, i32
  }
  func.func @transform_3(%arg0: i32, %arg1: i32) -> (i32, i32, i32, i32) {
    %c0_i32 = arith.constant 0 : i32
    %c0_i32_0 = arith.constant 0 : i32
    %c0_i32_1 = arith.constant 0 : i32
    return %arg0, %arg1, %c0_i32, %c0_i32_0 : i32, i32, i32, i32
  }
}

module attributes {stable_mosaic.version = 11 : i64} {
  func.func @kernel(%arg0: i32, %arg1: i32, %arg2: memref<1x18x18x128xbf16, #tpu.memory_space<vmem>>, %arg3: memref<9x128x128xbf16, #tpu.memory_space<vmem>>, %arg4: memref<1x128xf32, #tpu.memory_space<vmem>>, %arg5: memref<1x8x16x16xbf16, #tpu.memory_space<vmem>>, %arg6: memref<1x8x16x128xbf16, #tpu.memory_space<vmem>>) attributes {dimension_semantics = [#tpu.dimension_semantics<parallel>, #tpu.dimension_semantics<parallel>], iteration_bounds = array<i64: 2, 2>, scalar_prefetch = 0 : i64, scratch_operands = 0 : i64, tpu.core_type = #tpu.core_type<tc>, window_params = [{transform_indices = @transform_0, window_bounds = array<i64: 1, 18, 18, 128>}, {pipeline_mode = #tpu.pipeline_mode<synchronous>, transform_indices = @transform_1, window_bounds = array<i64: 9, 128, 128>}, {pipeline_mode = #tpu.pipeline_mode<synchronous>, transform_indices = @transform_2, window_bounds = array<i64: 1, 128>}, {transform_indices = @transform_3, window_bounds = array<i64: 1, 8, 16, 16>}, {transform_indices = @transform_4, window_bounds = array<i64: 1, 8, 16, 128>}]} {
    %c8_i32 = arith.constant 8 : i32
    %0 = arith.muli %arg1, %c8_i32 : i32
    %c0_i32 = arith.constant 0 : i32
    %1 = arith.addi %0, %c0_i32 : i32
    %c0 = arith.constant 0 : index
    %2 = arith.index_cast %1 : i32 to index
    %c0_0 = arith.constant 0 : index
    %c0_1 = arith.constant 0 : index
    %3 = vector.load %arg2[%c0, %2, %c0_0, %c0_1] : memref<1x18x18x128xbf16, #tpu.memory_space<vmem>>, vector<1x8x16x128xbf16>
    %4 = vector.shape_cast %3 : vector<1x8x16x128xbf16> to vector<8x16x128xbf16>
    %5 = vector.shape_cast %4 : vector<8x16x128xbf16> to vector<128x128xbf16>
    %c0_i32_2 = arith.constant 0 : i32
    %6 = arith.addi %0, %c0_i32_2 : i32
    %c0_3 = arith.constant 0 : index
    %7 = arith.index_cast %6 : i32 to index
    %c1 = arith.constant 1 : index
    %c0_4 = arith.constant 0 : index
    %8 = vector.load %arg2[%c0_3, %7, %c1, %c0_4] : memref<1x18x18x128xbf16, #tpu.memory_space<vmem>>, vector<1x8x16x128xbf16>
    %9 = vector.shape_cast %8 : vector<1x8x16x128xbf16> to vector<8x16x128xbf16>
    %10 = vector.shape_cast %9 : vector<8x16x128xbf16> to vector<128x128xbf16>
    %c0_i32_5 = arith.constant 0 : i32
    %11 = arith.addi %0, %c0_i32_5 : i32
    %c0_6 = arith.constant 0 : index
    %12 = arith.index_cast %11 : i32 to index
    %c2 = arith.constant 2 : index
    %c0_7 = arith.constant 0 : index
    %13 = vector.load %arg2[%c0_6, %12, %c2, %c0_7] : memref<1x18x18x128xbf16, #tpu.memory_space<vmem>>, vector<1x8x16x128xbf16>
    %14 = vector.shape_cast %13 : vector<1x8x16x128xbf16> to vector<8x16x128xbf16>
    %15 = vector.shape_cast %14 : vector<8x16x128xbf16> to vector<128x128xbf16>
    %c1_i32 = arith.constant 1 : i32
    %16 = arith.addi %0, %c1_i32 : i32
    %c0_8 = arith.constant 0 : index
    %17 = arith.index_cast %16 : i32 to index
    %c0_9 = arith.constant 0 : index
    %c0_10 = arith.constant 0 : index
    %18 = vector.load %arg2[%c0_8, %17, %c0_9, %c0_10] : memref<1x18x18x128xbf16, #tpu.memory_space<vmem>>, vector<1x8x16x128xbf16>
    %19 = vector.shape_cast %18 : vector<1x8x16x128xbf16> to vector<8x16x128xbf16>
    %20 = vector.shape_cast %19 : vector<8x16x128xbf16> to vector<128x128xbf16>
    %c1_i32_11 = arith.constant 1 : i32
    %21 = arith.addi %0, %c1_i32_11 : i32
    %c0_12 = arith.constant 0 : index
    %22 = arith.index_cast %21 : i32 to index
    %c1_13 = arith.constant 1 : index
    %c0_14 = arith.constant 0 : index
    %23 = vector.load %arg2[%c0_12, %22, %c1_13, %c0_14] : memref<1x18x18x128xbf16, #tpu.memory_space<vmem>>, vector<1x8x16x128xbf16>
    %24 = vector.shape_cast %23 : vector<1x8x16x128xbf16> to vector<8x16x128xbf16>
    %25 = vector.shape_cast %24 : vector<8x16x128xbf16> to vector<128x128xbf16>
    %c1_i32_15 = arith.constant 1 : i32
    %26 = arith.addi %0, %c1_i32_15 : i32
    %c0_16 = arith.constant 0 : index
    %27 = arith.index_cast %26 : i32 to index
    %c2_17 = arith.constant 2 : index
    %c0_18 = arith.constant 0 : index
    %28 = vector.load %arg2[%c0_16, %27, %c2_17, %c0_18] : memref<1x18x18x128xbf16, #tpu.memory_space<vmem>>, vector<1x8x16x128xbf16>
    %29 = vector.shape_cast %28 : vector<1x8x16x128xbf16> to vector<8x16x128xbf16>
    %30 = vector.shape_cast %29 : vector<8x16x128xbf16> to vector<128x128xbf16>
    %c2_i32 = arith.constant 2 : i32
    %31 = arith.addi %0, %c2_i32 : i32
    %c0_19 = arith.constant 0 : index
    %32 = arith.index_cast %31 : i32 to index
    %c0_20 = arith.constant 0 : index
    %c0_21 = arith.constant 0 : index
    %33 = vector.load %arg2[%c0_19, %32, %c0_20, %c0_21] : memref<1x18x18x128xbf16, #tpu.memory_space<vmem>>, vector<1x8x16x128xbf16>
    %34 = vector.shape_cast %33 : vector<1x8x16x128xbf16> to vector<8x16x128xbf16>
    %35 = vector.shape_cast %34 : vector<8x16x128xbf16> to vector<128x128xbf16>
    %c2_i32_22 = arith.constant 2 : i32
    %36 = arith.addi %0, %c2_i32_22 : i32
    %c0_23 = arith.constant 0 : index
    %37 = arith.index_cast %36 : i32 to index
    %c1_24 = arith.constant 1 : index
    %c0_25 = arith.constant 0 : index
    %38 = vector.load %arg2[%c0_23, %37, %c1_24, %c0_25] : memref<1x18x18x128xbf16, #tpu.memory_space<vmem>>, vector<1x8x16x128xbf16>
    %39 = vector.shape_cast %38 : vector<1x8x16x128xbf16> to vector<8x16x128xbf16>
    %40 = vector.shape_cast %39 : vector<8x16x128xbf16> to vector<128x128xbf16>
    %c2_i32_26 = arith.constant 2 : i32
    %41 = arith.addi %0, %c2_i32_26 : i32
    %c0_27 = arith.constant 0 : index
    %42 = arith.index_cast %41 : i32 to index
    %c2_28 = arith.constant 2 : index
    %c0_29 = arith.constant 0 : index
    %43 = vector.load %arg2[%c0_27, %42, %c2_28, %c0_29] : memref<1x18x18x128xbf16, #tpu.memory_space<vmem>>, vector<1x8x16x128xbf16>
    %44 = vector.shape_cast %43 : vector<1x8x16x128xbf16> to vector<8x16x128xbf16>
    %45 = vector.shape_cast %44 : vector<8x16x128xbf16> to vector<128x128xbf16>
    %c0_30 = arith.constant 0 : index
    %c0_31 = arith.constant 0 : index
    %c0_32 = arith.constant 0 : index
    %46 = vector.load %arg3[%c0_30, %c0_31, %c0_32] : memref<9x128x128xbf16, #tpu.memory_space<vmem>>, vector<1x128x128xbf16>
    %47 = vector.shape_cast %46 : vector<1x128x128xbf16> to vector<128x128xbf16>
    %cst = arith.constant dense<0.000000e+00> : vector<128x128xf32>
    %48 = tpu.matmul %5, %47, %cst {dimension_numbers = #tpu.dot_dimension_numbers<[1], [0], [0], [1], [0, 0, 1, 1], [], []>} : vector<128x128xbf16>, vector<128x128xbf16>, vector<128x128xf32> -> vector<128x128xf32>
    %c1_33 = arith.constant 1 : index
    %c0_34 = arith.constant 0 : index
    %c0_35 = arith.constant 0 : index
    %49 = vector.load %arg3[%c1_33, %c0_34, %c0_35] : memref<9x128x128xbf16, #tpu.memory_space<vmem>>, vector<1x128x128xbf16>
    %50 = vector.shape_cast %49 : vector<1x128x128xbf16> to vector<128x128xbf16>
    %cst_36 = arith.constant dense<0.000000e+00> : vector<128x128xf32>
    %51 = tpu.matmul %10, %50, %cst_36 {dimension_numbers = #tpu.dot_dimension_numbers<[1], [0], [0], [1], [0, 0, 1, 1], [], []>} : vector<128x128xbf16>, vector<128x128xbf16>, vector<128x128xf32> -> vector<128x128xf32>
    %52 = arith.addf %48, %51 : vector<128x128xf32>
    %c2_37 = arith.constant 2 : index
    %c0_38 = arith.constant 0 : index
    %c0_39 = arith.constant 0 : index
    %53 = vector.load %arg3[%c2_37, %c0_38, %c0_39] : memref<9x128x128xbf16, #tpu.memory_space<vmem>>, vector<1x128x128xbf16>
    %54 = vector.shape_cast %53 : vector<1x128x128xbf16> to vector<128x128xbf16>
    %cst_40 = arith.constant dense<0.000000e+00> : vector<128x128xf32>
    %55 = tpu.matmul %15, %54, %cst_40 {dimension_numbers = #tpu.dot_dimension_numbers<[1], [0], [0], [1], [0, 0, 1, 1], [], []>} : vector<128x128xbf16>, vector<128x128xbf16>, vector<128x128xf32> -> vector<128x128xf32>
    %56 = arith.addf %52, %55 : vector<128x128xf32>
    %c3 = arith.constant 3 : index
    %c0_41 = arith.constant 0 : index
    %c0_42 = arith.constant 0 : index
    %57 = vector.load %arg3[%c3, %c0_41, %c0_42] : memref<9x128x128xbf16, #tpu.memory_space<vmem>>, vector<1x128x128xbf16>
    %58 = vector.shape_cast %57 : vector<1x128x128xbf16> to vector<128x128xbf16>
    %cst_43 = arith.constant dense<0.000000e+00> : vector<128x128xf32>
    %59 = tpu.matmul %20, %58, %cst_43 {dimension_numbers = #tpu.dot_dimension_numbers<[1], [0], [0], [1], [0, 0, 1, 1], [], []>} : vector<128x128xbf16>, vector<128x128xbf16>, vector<128x128xf32> -> vector<128x128xf32>
    %60 = arith.addf %56, %59 : vector<128x128xf32>
    %c4 = arith.constant 4 : index
    %c0_44 = arith.constant 0 : index
    %c0_45 = arith.constant 0 : index
    %61 = vector.load %arg3[%c4, %c0_44, %c0_45] : memref<9x128x128xbf16, #tpu.memory_space<vmem>>, vector<1x128x128xbf16>
    %62 = vector.shape_cast %61 : vector<1x128x128xbf16> to vector<128x128xbf16>
    %cst_46 = arith.constant dense<0.000000e+00> : vector<128x128xf32>
    %63 = tpu.matmul %25, %62, %cst_46 {dimension_numbers = #tpu.dot_dimension_numbers<[1], [0], [0], [1], [0, 0, 1, 1], [], []>} : vector<128x128xbf16>, vector<128x128xbf16>, vector<128x128xf32> -> vector<128x128xf32>
    %64 = arith.addf %60, %63 : vector<128x128xf32>
    %c5 = arith.constant 5 : index
    %c0_47 = arith.constant 0 : index
    %c0_48 = arith.constant 0 : index
    %65 = vector.load %arg3[%c5, %c0_47, %c0_48] : memref<9x128x128xbf16, #tpu.memory_space<vmem>>, vector<1x128x128xbf16>
    %66 = vector.shape_cast %65 : vector<1x128x128xbf16> to vector<128x128xbf16>
    %cst_49 = arith.constant dense<0.000000e+00> : vector<128x128xf32>
    %67 = tpu.matmul %30, %66, %cst_49 {dimension_numbers = #tpu.dot_dimension_numbers<[1], [0], [0], [1], [0, 0, 1, 1], [], []>} : vector<128x128xbf16>, vector<128x128xbf16>, vector<128x128xf32> -> vector<128x128xf32>
    %68 = arith.addf %64, %67 : vector<128x128xf32>
    %c6 = arith.constant 6 : index
    %c0_50 = arith.constant 0 : index
    %c0_51 = arith.constant 0 : index
    %69 = vector.load %arg3[%c6, %c0_50, %c0_51] : memref<9x128x128xbf16, #tpu.memory_space<vmem>>, vector<1x128x128xbf16>
    %70 = vector.shape_cast %69 : vector<1x128x128xbf16> to vector<128x128xbf16>
    %cst_52 = arith.constant dense<0.000000e+00> : vector<128x128xf32>
    %71 = tpu.matmul %35, %70, %cst_52 {dimension_numbers = #tpu.dot_dimension_numbers<[1], [0], [0], [1], [0, 0, 1, 1], [], []>} : vector<128x128xbf16>, vector<128x128xbf16>, vector<128x128xf32> -> vector<128x128xf32>
    %72 = arith.addf %68, %71 : vector<128x128xf32>
    %c7 = arith.constant 7 : index
    %c0_53 = arith.constant 0 : index
    %c0_54 = arith.constant 0 : index
    %73 = vector.load %arg3[%c7, %c0_53, %c0_54] : memref<9x128x128xbf16, #tpu.memory_space<vmem>>, vector<1x128x128xbf16>
    %74 = vector.shape_cast %73 : vector<1x128x128xbf16> to vector<128x128xbf16>
    %cst_55 = arith.constant dense<0.000000e+00> : vector<128x128xf32>
    %75 = tpu.matmul %40, %74, %cst_55 {dimension_numbers = #tpu.dot_dimension_numbers<[1], [0], [0], [1], [0, 0, 1, 1], [], []>} : vector<128x128xbf16>, vector<128x128xbf16>, vector<128x128xf32> -> vector<128x128xf32>
    %76 = arith.addf %72, %75 : vector<128x128xf32>
    %c8 = arith.constant 8 : index
    %c0_56 = arith.constant 0 : index
    %c0_57 = arith.constant 0 : index
    %77 = vector.load %arg3[%c8, %c0_56, %c0_57] : memref<9x128x128xbf16, #tpu.memory_space<vmem>>, vector<1x128x128xbf16>
    %78 = vector.shape_cast %77 : vector<1x128x128xbf16> to vector<128x128xbf16>
    %cst_58 = arith.constant dense<0.000000e+00> : vector<128x128xf32>
    %79 = tpu.matmul %45, %78, %cst_58 {dimension_numbers = #tpu.dot_dimension_numbers<[1], [0], [0], [1], [0, 0, 1, 1], [], []>} : vector<128x128xbf16>, vector<128x128xbf16>, vector<128x128xf32> -> vector<128x128xf32>
    %80 = arith.addf %76, %79 : vector<128x128xf32>
    %c0_59 = arith.constant 0 : index
    %c0_60 = arith.constant 0 : index
    %81 = vector.load %arg4[%c0_59, %c0_60] : memref<1x128xf32, #tpu.memory_space<vmem>>, vector<1x128xf32>
    %82 = vector.broadcast %81 : vector<1x128xf32> to vector<128x128xf32>
    %83 = arith.addf %80, %82 : vector<128x128xf32>
    %c0_61 = arith.constant 0 : index
    %c0_62 = arith.constant 0 : index
    %c0_63 = arith.constant 0 : index
    %c0_64 = arith.constant 0 : index
    %84 = vector.load %arg5[%c0_61, %c0_62, %c0_63, %c0_64] : memref<1x8x16x16xbf16, #tpu.memory_space<vmem>>, vector<1x8x16x16xbf16>
    %85 = vector.shape_cast %84 : vector<1x8x16x16xbf16> to vector<128x16xbf16>
    %86 = arith.extf %85 : vector<128x16xbf16> to vector<128x16xf32>
    %cst_65 = arith.constant 0.000000e+00 : f32
    %87 = vector.broadcast %cst_65 : f32 to vector<128x112xf32>
    %88 = tpu.concatenate %86, %87 in 1 : vector<128x16xf32>, vector<128x112xf32> -> vector<128x128xf32>
    %89 = arith.addf %83, %88 : vector<128x128xf32>
    %cst_66 = arith.constant 0.000000e+00 : f32
    %90 = vector.broadcast %cst_66 : f32 to vector<128x128xf32>
    %91 = arith.maximumf %89, %90 : vector<128x128xf32>
    %92 = vector.shape_cast %91 : vector<128x128xf32> to vector<1x8x16x128xf32>
    %93 = arith.truncf %92 : vector<1x8x16x128xf32> to vector<1x8x16x128xbf16>
    %c0_67 = arith.constant 0 : index
    %c0_68 = arith.constant 0 : index
    %c0_69 = arith.constant 0 : index
    %c0_70 = arith.constant 0 : index
    %94 = vector.load %arg6[%c0_67, %c0_68, %c0_69, %c0_70] : memref<1x8x16x128xbf16, #tpu.memory_space<vmem>>, vector<1x8x16x128xbf16>
    tpu.vector_store %arg6[%c0_67, %c0_68, %c0_69, %c0_70], %93 {strides = array<i32>} : memref<1x8x16x128xbf16, #tpu.memory_space<vmem>>, vector<1x8x16x128xbf16>,
    return
  }
  func.func @transform_0(%arg0: i32, %arg1: i32) -> (i32, i32, i32, i32) {
    %c0_i32 = arith.constant 0 : i32
    %c0_i32_0 = arith.constant 0 : i32
    %c0_i32_1 = arith.constant 0 : i32
    %c0_i32_2 = arith.constant 0 : i32
    return %arg0, %c0_i32, %c0_i32_0, %c0_i32_1 : i32, i32, i32, i32
  }
  func.func @transform_1(%arg0: i32, %arg1: i32) -> (i32, i32, i32) {
    %c0_i32 = arith.constant 0 : i32
    %c0_i32_0 = arith.constant 0 : i32
    %c0_i32_1 = arith.constant 0 : i32
    %c0_i32_2 = arith.constant 0 : i32
    return %c0_i32, %c0_i32_0, %c0_i32_1 : i32, i32, i32
  }
  func.func @transform_2(%arg0: i32, %arg1: i32) -> (i32, i32) {
    %c0_i32 = arith.constant 0 : i32
    %c0_i32_0 = arith.constant 0 : i32
    %c0_i32_1 = arith.constant 0 : i32
    return %c0_i32, %c0_i32_0 : i32, i32
  }
  func.func @transform_3(%arg0: i32, %arg1: i32) -> (i32, i32, i32, i32) {
    %c0_i32 = arith.constant 0 : i32
    %c0_i32_0 = arith.constant 0 : i32
    %c0_i32_1 = arith.constant 0 : i32
    return %arg0, %arg1, %c0_i32, %c0_i32_0 : i32, i32, i32, i32
  }
  func.func @transform_4(%arg0: i32, %arg1: i32) -> (i32, i32, i32, i32) {
    %c0_i32 = arith.constant 0 : i32
    %c0_i32_0 = arith.constant 0 : i32
    %c0_i32_1 = arith.constant 0 : i32
    return %arg0, %arg1, %c0_i32, %c0_i32_0 : i32, i32, i32, i32
  }
}

module attributes {stable_mosaic.version = 11 : i64} {
  func.func @kernel(%arg0: i32, %arg1: i32, %arg2: memref<4x9x9x128xbf16, #tpu.memory_space<vmem>>, %arg3: memref<9x128x128xbf16, #tpu.memory_space<vmem>>, %arg4: memref<1x128xf32, #tpu.memory_space<vmem>>, %arg5: memref<128x128xbf16, #tpu.memory_space<vmem>>, %arg6: memref<1x128xf32, #tpu.memory_space<vmem>>, %arg7: memref<1x4x8x128xbf16, #tpu.memory_space<vmem>>, %arg8: memref<1x4x8x128xbf16, #tpu.memory_space<vmem>>) attributes {dimension_semantics = [#tpu.dimension_semantics<parallel>, #tpu.dimension_semantics<parallel>], iteration_bounds = array<i64: 2, 2>, scalar_prefetch = 0 : i64, scratch_operands = 0 : i64, tpu.core_type = #tpu.core_type<tc>, window_params = [{transform_indices = @transform_0, window_bounds = array<i64: 4, 9, 9, 128>}, {pipeline_mode = #tpu.pipeline_mode<synchronous>, transform_indices = @transform_1, window_bounds = array<i64: 9, 128, 128>}, {pipeline_mode = #tpu.pipeline_mode<synchronous>, transform_indices = @transform_2, window_bounds = array<i64: 1, 128>}, {pipeline_mode = #tpu.pipeline_mode<synchronous>, transform_indices = @transform_3, window_bounds = array<i64: 128, 128>}, {pipeline_mode = #tpu.pipeline_mode<synchronous>, transform_indices = @transform_4, window_bounds = array<i64: 1, 128>}, {transform_indices = @transform_5, window_bounds = array<i64: 1, 4, 8, 128>}, {transform_indices = @transform_6, window_bounds = array<i64: 1, 4, 8, 128>}]} {
    %c4_i32 = arith.constant 4 : i32
    %0 = arith.muli %arg1, %c4_i32 : i32
    %c0_i32 = arith.constant 0 : i32
    %1 = arith.addi %0, %c0_i32 : i32
    %c0 = arith.constant 0 : index
    %2 = arith.index_cast %1 : i32 to index
    %c0_0 = arith.constant 0 : index
    %c0_1 = arith.constant 0 : index
    %3 = vector.load %arg2[%c0, %2, %c0_0, %c0_1] : memref<4x9x9x128xbf16, #tpu.memory_space<vmem>>, vector<1x4x8x128xbf16>
    %4 = vector.shape_cast %3 : vector<1x4x8x128xbf16> to vector<4x8x128xbf16>
    %5 = vector.shape_cast %4 : vector<4x8x128xbf16> to vector<32x128xbf16>
    %c0_i32_2 = arith.constant 0 : i32
    %6 = arith.addi %0, %c0_i32_2 : i32
    %c1 = arith.constant 1 : index
    %7 = arith.index_cast %6 : i32 to index
    %c0_3 = arith.constant 0 : index
    %c0_4 = arith.constant 0 : index
    %8 = vector.load %arg2[%c1, %7, %c0_3, %c0_4] : memref<4x9x9x128xbf16, #tpu.memory_space<vmem>>, vector<1x4x8x128xbf16>
    %9 = vector.shape_cast %8 : vector<1x4x8x128xbf16> to vector<4x8x128xbf16>
    %10 = vector.shape_cast %9 : vector<4x8x128xbf16> to vector<32x128xbf16>
    %c0_i32_5 = arith.constant 0 : i32
    %11 = arith.addi %0, %c0_i32_5 : i32
    %c0_6 = arith.constant 0 : index
    %12 = arith.index_cast %11 : i32 to index
    %c1_7 = arith.constant 1 : index
    %c0_8 = arith.constant 0 : index
    %13 = vector.load %arg2[%c0_6, %12, %c1_7, %c0_8] : memref<4x9x9x128xbf16, #tpu.memory_space<vmem>>, vector<1x4x8x128xbf16>
    %14 = vector.shape_cast %13 : vector<1x4x8x128xbf16> to vector<4x8x128xbf16>
    %15 = vector.shape_cast %14 : vector<4x8x128xbf16> to vector<32x128xbf16>
    %c0_i32_9 = arith.constant 0 : i32
    %16 = arith.addi %0, %c0_i32_9 : i32
    %c2 = arith.constant 2 : index
    %17 = arith.index_cast %16 : i32 to index
    %c0_10 = arith.constant 0 : index
    %c0_11 = arith.constant 0 : index
    %18 = vector.load %arg2[%c2, %17, %c0_10, %c0_11] : memref<4x9x9x128xbf16, #tpu.memory_space<vmem>>, vector<1x4x8x128xbf16>
    %19 = vector.shape_cast %18 : vector<1x4x8x128xbf16> to vector<4x8x128xbf16>
    %20 = vector.shape_cast %19 : vector<4x8x128xbf16> to vector<32x128xbf16>
    %c0_i32_12 = arith.constant 0 : i32
    %21 = arith.addi %0, %c0_i32_12 : i32
    %c3 = arith.constant 3 : index
    %22 = arith.index_cast %21 : i32 to index
    %c0_13 = arith.constant 0 : index
    %c0_14 = arith.constant 0 : index
    %23 = vector.load %arg2[%c3, %22, %c0_13, %c0_14] : memref<4x9x9x128xbf16, #tpu.memory_space<vmem>>, vector<1x4x8x128xbf16>
    %24 = vector.shape_cast %23 : vector<1x4x8x128xbf16> to vector<4x8x128xbf16>
    %25 = vector.shape_cast %24 : vector<4x8x128xbf16> to vector<32x128xbf16>
    %c0_i32_15 = arith.constant 0 : i32
    %26 = arith.addi %0, %c0_i32_15 : i32
    %c2_16 = arith.constant 2 : index
    %27 = arith.index_cast %26 : i32 to index
    %c1_17 = arith.constant 1 : index
    %c0_18 = arith.constant 0 : index
    %28 = vector.load %arg2[%c2_16, %27, %c1_17, %c0_18] : memref<4x9x9x128xbf16, #tpu.memory_space<vmem>>, vector<1x4x8x128xbf16>
    %29 = vector.shape_cast %28 : vector<1x4x8x128xbf16> to vector<4x8x128xbf16>
    %30 = vector.shape_cast %29 : vector<4x8x128xbf16> to vector<32x128xbf16>
    %c1_i32 = arith.constant 1 : i32
    %31 = arith.addi %0, %c1_i32 : i32
    %c0_19 = arith.constant 0 : index
    %32 = arith.index_cast %31 : i32 to index
    %c0_20 = arith.constant 0 : index
    %c0_21 = arith.constant 0 : index
    %33 = vector.load %arg2[%c0_19, %32, %c0_20, %c0_21] : memref<4x9x9x128xbf16, #tpu.memory_space<vmem>>, vector<1x4x8x128xbf16>
    %34 = vector.shape_cast %33 : vector<1x4x8x128xbf16> to vector<4x8x128xbf16>
    %35 = vector.shape_cast %34 : vector<4x8x128xbf16> to vector<32x128xbf16>
    %c1_i32_22 = arith.constant 1 : i32
    %36 = arith.addi %0, %c1_i32_22 : i32
    %c1_23 = arith.constant 1 : index
    %37 = arith.index_cast %36 : i32 to index
    %c0_24 = arith.constant 0 : index
    %c0_25 = arith.constant 0 : index
    %38 = vector.load %arg2[%c1_23, %37, %c0_24, %c0_25] : memref<4x9x9x128xbf16, #tpu.memory_space<vmem>>, vector<1x4x8x128xbf16>
    %39 = vector.shape_cast %38 : vector<1x4x8x128xbf16> to vector<4x8x128xbf16>
    %40 = vector.shape_cast %39 : vector<4x8x128xbf16> to vector<32x128xbf16>
    %c1_i32_26 = arith.constant 1 : i32
    %41 = arith.addi %0, %c1_i32_26 : i32
    %c0_27 = arith.constant 0 : index
    %42 = arith.index_cast %41 : i32 to index
    %c1_28 = arith.constant 1 : index
    %c0_29 = arith.constant 0 : index
    %43 = vector.load %arg2[%c0_27, %42, %c1_28, %c0_29] : memref<4x9x9x128xbf16, #tpu.memory_space<vmem>>, vector<1x4x8x128xbf16>
    %44 = vector.shape_cast %43 : vector<1x4x8x128xbf16> to vector<4x8x128xbf16>
    %45 = vector.shape_cast %44 : vector<4x8x128xbf16> to vector<32x128xbf16>
    %c0_30 = arith.constant 0 : index
    %c0_31 = arith.constant 0 : index
    %c0_32 = arith.constant 0 : index
    %46 = vector.load %arg3[%c0_30, %c0_31, %c0_32] : memref<9x128x128xbf16, #tpu.memory_space<vmem>>, vector<1x128x128xbf16>
    %47 = vector.shape_cast %46 : vector<1x128x128xbf16> to vector<128x128xbf16>
    %cst = arith.constant dense<0.000000e+00> : vector<32x128xf32>
    %48 = tpu.matmul %5, %47, %cst {dimension_numbers = #tpu.dot_dimension_numbers<[1], [0], [0], [1], [0, 0, 1, 1], [], []>} : vector<32x128xbf16>, vector<128x128xbf16>, vector<32x128xf32> -> vector<32x128xf32>
    %c1_33 = arith.constant 1 : index
    %c0_34 = arith.constant 0 : index
    %c0_35 = arith.constant 0 : index
    %49 = vector.load %arg3[%c1_33, %c0_34, %c0_35] : memref<9x128x128xbf16, #tpu.memory_space<vmem>>, vector<1x128x128xbf16>
    %50 = vector.shape_cast %49 : vector<1x128x128xbf16> to vector<128x128xbf16>
    %cst_36 = arith.constant dense<0.000000e+00> : vector<32x128xf32>
    %51 = tpu.matmul %10, %50, %cst_36 {dimension_numbers = #tpu.dot_dimension_numbers<[1], [0], [0], [1], [0, 0, 1, 1], [], []>} : vector<32x128xbf16>, vector<128x128xbf16>, vector<32x128xf32> -> vector<32x128xf32>
    %52 = arith.addf %48, %51 : vector<32x128xf32>
    %c2_37 = arith.constant 2 : index
    %c0_38 = arith.constant 0 : index
    %c0_39 = arith.constant 0 : index
    %53 = vector.load %arg3[%c2_37, %c0_38, %c0_39] : memref<9x128x128xbf16, #tpu.memory_space<vmem>>, vector<1x128x128xbf16>
    %54 = vector.shape_cast %53 : vector<1x128x128xbf16> to vector<128x128xbf16>
    %cst_40 = arith.constant dense<0.000000e+00> : vector<32x128xf32>
    %55 = tpu.matmul %15, %54, %cst_40 {dimension_numbers = #tpu.dot_dimension_numbers<[1], [0], [0], [1], [0, 0, 1, 1], [], []>} : vector<32x128xbf16>, vector<128x128xbf16>, vector<32x128xf32> -> vector<32x128xf32>
    %56 = arith.addf %52, %55 : vector<32x128xf32>
    %c3_41 = arith.constant 3 : index
    %c0_42 = arith.constant 0 : index
    %c0_43 = arith.constant 0 : index
    %57 = vector.load %arg3[%c3_41, %c0_42, %c0_43] : memref<9x128x128xbf16, #tpu.memory_space<vmem>>, vector<1x128x128xbf16>
    %58 = vector.shape_cast %57 : vector<1x128x128xbf16> to vector<128x128xbf16>
    %cst_44 = arith.constant dense<0.000000e+00> : vector<32x128xf32>
    %59 = tpu.matmul %20, %58, %cst_44 {dimension_numbers = #tpu.dot_dimension_numbers<[1], [0], [0], [1], [0, 0, 1, 1], [], []>} : vector<32x128xbf16>, vector<128x128xbf16>, vector<32x128xf32> -> vector<32x128xf32>
    %60 = arith.addf %56, %59 : vector<32x128xf32>
    %c4 = arith.constant 4 : index
    %c0_45 = arith.constant 0 : index
    %c0_46 = arith.constant 0 : index
    %61 = vector.load %arg3[%c4, %c0_45, %c0_46] : memref<9x128x128xbf16, #tpu.memory_space<vmem>>, vector<1x128x128xbf16>
    %62 = vector.shape_cast %61 : vector<1x128x128xbf16> to vector<128x128xbf16>
    %cst_47 = arith.constant dense<0.000000e+00> : vector<32x128xf32>
    %63 = tpu.matmul %25, %62, %cst_47 {dimension_numbers = #tpu.dot_dimension_numbers<[1], [0], [0], [1], [0, 0, 1, 1], [], []>} : vector<32x128xbf16>, vector<128x128xbf16>, vector<32x128xf32> -> vector<32x128xf32>
    %64 = arith.addf %60, %63 : vector<32x128xf32>
    %c5 = arith.constant 5 : index
    %c0_48 = arith.constant 0 : index
    %c0_49 = arith.constant 0 : index
    %65 = vector.load %arg3[%c5, %c0_48, %c0_49] : memref<9x128x128xbf16, #tpu.memory_space<vmem>>, vector<1x128x128xbf16>
    %66 = vector.shape_cast %65 : vector<1x128x128xbf16> to vector<128x128xbf16>
    %cst_50 = arith.constant dense<0.000000e+00> : vector<32x128xf32>
    %67 = tpu.matmul %30, %66, %cst_50 {dimension_numbers = #tpu.dot_dimension_numbers<[1], [0], [0], [1], [0, 0, 1, 1], [], []>} : vector<32x128xbf16>, vector<128x128xbf16>, vector<32x128xf32> -> vector<32x128xf32>
    %68 = arith.addf %64, %67 : vector<32x128xf32>
    %c6 = arith.constant 6 : index
    %c0_51 = arith.constant 0 : index
    %c0_52 = arith.constant 0 : index
    %69 = vector.load %arg3[%c6, %c0_51, %c0_52] : memref<9x128x128xbf16, #tpu.memory_space<vmem>>, vector<1x128x128xbf16>
    %70 = vector.shape_cast %69 : vector<1x128x128xbf16> to vector<128x128xbf16>
    %cst_53 = arith.constant dense<0.000000e+00> : vector<32x128xf32>
    %71 = tpu.matmul %35, %70, %cst_53 {dimension_numbers = #tpu.dot_dimension_numbers<[1], [0], [0], [1], [0, 0, 1, 1], [], []>} : vector<32x128xbf16>, vector<128x128xbf16>, vector<32x128xf32> -> vector<32x128xf32>
    %72 = arith.addf %68, %71 : vector<32x128xf32>
    %c7 = arith.constant 7 : index
    %c0_54 = arith.constant 0 : index
    %c0_55 = arith.constant 0 : index
    %73 = vector.load %arg3[%c7, %c0_54, %c0_55] : memref<9x128x128xbf16, #tpu.memory_space<vmem>>, vector<1x128x128xbf16>
    %74 = vector.shape_cast %73 : vector<1x128x128xbf16> to vector<128x128xbf16>
    %cst_56 = arith.constant dense<0.000000e+00> : vector<32x128xf32>
    %75 = tpu.matmul %40, %74, %cst_56 {dimension_numbers = #tpu.dot_dimension_numbers<[1], [0], [0], [1], [0, 0, 1, 1], [], []>} : vector<32x128xbf16>, vector<128x128xbf16>, vector<32x128xf32> -> vector<32x128xf32>
    %76 = arith.addf %72, %75 : vector<32x128xf32>
    %c8 = arith.constant 8 : index
    %c0_57 = arith.constant 0 : index
    %c0_58 = arith.constant 0 : index
    %77 = vector.load %arg3[%c8, %c0_57, %c0_58] : memref<9x128x128xbf16, #tpu.memory_space<vmem>>, vector<1x128x128xbf16>
    %78 = vector.shape_cast %77 : vector<1x128x128xbf16> to vector<128x128xbf16>
    %cst_59 = arith.constant dense<0.000000e+00> : vector<32x128xf32>
    %79 = tpu.matmul %45, %78, %cst_59 {dimension_numbers = #tpu.dot_dimension_numbers<[1], [0], [0], [1], [0, 0, 1, 1], [], []>} : vector<32x128xbf16>, vector<128x128xbf16>, vector<32x128xf32> -> vector<32x128xf32>
    %80 = arith.addf %76, %79 : vector<32x128xf32>
    %c0_60 = arith.constant 0 : index
    %c0_61 = arith.constant 0 : index
    %81 = vector.load %arg4[%c0_60, %c0_61] : memref<1x128xf32, #tpu.memory_space<vmem>>, vector<1x128xf32>
    %82 = vector.broadcast %81 : vector<1x128xf32> to vector<32x128xf32>
    %83 = arith.addf %80, %82 : vector<32x128xf32>
    %cst_62 = arith.constant 0.000000e+00 : f32
    %84 = vector.broadcast %cst_62 : f32 to vector<32x128xf32>
    %85 = arith.maximumf %83, %84 : vector<32x128xf32>
    %86 = vector.shape_cast %85 : vector<32x128xf32> to vector<1x4x8x128xf32>
    %87 = arith.truncf %86 : vector<1x4x8x128xf32> to vector<1x4x8x128xbf16>
    %c0_63 = arith.constant 0 : index
    %c0_64 = arith.constant 0 : index
    %c0_65 = arith.constant 0 : index
    %c0_66 = arith.constant 0 : index
    %88 = vector.load %arg7[%c0_63, %c0_64, %c0_65, %c0_66] : memref<1x4x8x128xbf16, #tpu.memory_space<vmem>>, vector<1x4x8x128xbf16>
    tpu.vector_store %arg7[%c0_63, %c0_64, %c0_65, %c0_66], %87 {strides = array<i32>} : memref<1x4x8x128xbf16, #tpu.memory_space<vmem>>, vector<1x4x8x128xbf16>,
    %c0_67 = arith.constant 0 : index
    %c0_68 = arith.constant 0 : index
    %89 = vector.load %arg5[%c0_67, %c0_68] : memref<128x128xbf16, #tpu.memory_space<vmem>>, vector<128x128xbf16>
    %cst_69 = arith.constant dense<0.000000e+00> : vector<32x128xf32>
    %90 = tpu.matmul %25, %89, %cst_69 {dimension_numbers = #tpu.dot_dimension_numbers<[1], [0], [0], [1], [0, 0, 1, 1], [], []>} : vector<32x128xbf16>, vector<128x128xbf16>, vector<32x128xf32> -> vector<32x128xf32>
    %c0_70 = arith.constant 0 : index
    %c0_71 = arith.constant 0 : index
    %91 = vector.load %arg6[%c0_70, %c0_71] : memref<1x128xf32, #tpu.memory_space<vmem>>, vector<1x128xf32>
    %92 = vector.broadcast %91 : vector<1x128xf32> to vector<32x128xf32>
    %93 = arith.addf %90, %92 : vector<32x128xf32>
    %94 = vector.shape_cast %93 : vector<32x128xf32> to vector<1x4x8x128xf32>
    %95 = arith.truncf %94 : vector<1x4x8x128xf32> to vector<1x4x8x128xbf16>
    %c0_72 = arith.constant 0 : index
    %c0_73 = arith.constant 0 : index
    %c0_74 = arith.constant 0 : index
    %c0_75 = arith.constant 0 : index
    %96 = vector.load %arg8[%c0_72, %c0_73, %c0_74, %c0_75] : memref<1x4x8x128xbf16, #tpu.memory_space<vmem>>, vector<1x4x8x128xbf16>
    tpu.vector_store %arg8[%c0_72, %c0_73, %c0_74, %c0_75], %95 {strides = array<i32>} : memref<1x4x8x128xbf16, #tpu.memory_space<vmem>>, vector<1x4x8x128xbf16>,
    return
  }
  func.func @transform_0(%arg0: i32, %arg1: i32) -> (i32, i32, i32, i32) {
    %c0_i32 = arith.constant 0 : i32
    %c0_i32_0 = arith.constant 0 : i32
    %c0_i32_1 = arith.constant 0 : i32
    %c0_i32_2 = arith.constant 0 : i32
    return %arg0, %c0_i32, %c0_i32_0, %c0_i32_1 : i32, i32, i32, i32
  }
  func.func @transform_1(%arg0: i32, %arg1: i32) -> (i32, i32, i32) {
    %c0_i32 = arith.constant 0 : i32
    %c0_i32_0 = arith.constant 0 : i32
    %c0_i32_1 = arith.constant 0 : i32
    %c0_i32_2 = arith.constant 0 : i32
    return %c0_i32, %c0_i32_0, %c0_i32_1 : i32, i32, i32
  }
  func.func @transform_2(%arg0: i32, %arg1: i32) -> (i32, i32) {
    %c0_i32 = arith.constant 0 : i32
    %c0_i32_0 = arith.constant 0 : i32
    %c0_i32_1 = arith.constant 0 : i32
    return %c0_i32, %c0_i32_0 : i32, i32
  }
  func.func @transform_3(%arg0: i32, %arg1: i32) -> (i32, i32) {
    %c0_i32 = arith.constant 0 : i32
    %c0_i32_0 = arith.constant 0 : i32
    %c0_i32_1 = arith.constant 0 : i32
    return %c0_i32, %c0_i32_0 : i32, i32
  }
  func.func @transform_4(%arg0: i32, %arg1: i32) -> (i32, i32) {
    %c0_i32 = arith.constant 0 : i32
    %c0_i32_0 = arith.constant 0 : i32
    %c0_i32_1 = arith.constant 0 : i32
    return %c0_i32, %c0_i32_0 : i32, i32
  }
  func.func @transform_5(%arg0: i32, %arg1: i32) -> (i32, i32, i32, i32) {
    %c0_i32 = arith.constant 0 : i32
    %c0_i32_0 = arith.constant 0 : i32
    %c0_i32_1 = arith.constant 0 : i32
    return %arg0, %arg1, %c0_i32, %c0_i32_0 : i32, i32, i32, i32
  }
  func.func @transform_6(%arg0: i32, %arg1: i32) -> (i32, i32, i32, i32) {
    %c0_i32 = arith.constant 0 : i32
    %c0_i32_0 = arith.constant 0 : i32
    %c0_i32_1 = arith.constant 0 : i32
    return %arg0, %arg1, %c0_i32, %c0_i32_0 : i32, i32, i32, i32
  }
}

module attributes {stable_mosaic.version = 11 : i64} {
  func.func @kernel(%arg0: i32, %arg1: i32, %arg2: memref<1x10x10x128xbf16, #tpu.memory_space<vmem>>, %arg3: memref<9x128x128xbf16, #tpu.memory_space<vmem>>, %arg4: memref<1x128xf32, #tpu.memory_space<vmem>>, %arg5: memref<1x4x8x128xbf16, #tpu.memory_space<vmem>>, %arg6: memref<1x4x8x128xbf16, #tpu.memory_space<vmem>>) attributes {dimension_semantics = [#tpu.dimension_semantics<parallel>, #tpu.dimension_semantics<parallel>], iteration_bounds = array<i64: 2, 2>, scalar_prefetch = 0 : i64, scratch_operands = 0 : i64, tpu.core_type = #tpu.core_type<tc>, window_params = [{transform_indices = @transform_0, window_bounds = array<i64: 1, 10, 10, 128>}, {pipeline_mode = #tpu.pipeline_mode<synchronous>, transform_indices = @transform_1, window_bounds = array<i64: 9, 128, 128>}, {pipeline_mode = #tpu.pipeline_mode<synchronous>, transform_indices = @transform_2, window_bounds = array<i64: 1, 128>}, {transform_indices = @transform_3, window_bounds = array<i64: 1, 4, 8, 128>}, {transform_indices = @transform_4, window_bounds = array<i64: 1, 4, 8, 128>}]} {
    %c4_i32 = arith.constant 4 : i32
    %0 = arith.muli %arg1, %c4_i32 : i32
    %c0_i32 = arith.constant 0 : i32
    %1 = arith.addi %0, %c0_i32 : i32
    %c0 = arith.constant 0 : index
    %2 = arith.index_cast %1 : i32 to index
    %c0_0 = arith.constant 0 : index
    %c0_1 = arith.constant 0 : index
    %3 = vector.load %arg2[%c0, %2, %c0_0, %c0_1] : memref<1x10x10x128xbf16, #tpu.memory_space<vmem>>, vector<1x4x8x128xbf16>
    %4 = vector.shape_cast %3 : vector<1x4x8x128xbf16> to vector<4x8x128xbf16>
    %5 = vector.shape_cast %4 : vector<4x8x128xbf16> to vector<32x128xbf16>
    %c0_i32_2 = arith.constant 0 : i32
    %6 = arith.addi %0, %c0_i32_2 : i32
    %c0_3 = arith.constant 0 : index
    %7 = arith.index_cast %6 : i32 to index
    %c1 = arith.constant 1 : index
    %c0_4 = arith.constant 0 : index
    %8 = vector.load %arg2[%c0_3, %7, %c1, %c0_4] : memref<1x10x10x128xbf16, #tpu.memory_space<vmem>>, vector<1x4x8x128xbf16>
    %9 = vector.shape_cast %8 : vector<1x4x8x128xbf16> to vector<4x8x128xbf16>
    %10 = vector.shape_cast %9 : vector<4x8x128xbf16> to vector<32x128xbf16>
    %c0_i32_5 = arith.constant 0 : i32
    %11 = arith.addi %0, %c0_i32_5 : i32
    %c0_6 = arith.constant 0 : index
    %12 = arith.index_cast %11 : i32 to index
    %c2 = arith.constant 2 : index
    %c0_7 = arith.constant 0 : index
    %13 = vector.load %arg2[%c0_6, %12, %c2, %c0_7] : memref<1x10x10x128xbf16, #tpu.memory_space<vmem>>, vector<1x4x8x128xbf16>
    %14 = vector.shape_cast %13 : vector<1x4x8x128xbf16> to vector<4x8x128xbf16>
    %15 = vector.shape_cast %14 : vector<4x8x128xbf16> to vector<32x128xbf16>
    %c1_i32 = arith.constant 1 : i32
    %16 = arith.addi %0, %c1_i32 : i32
    %c0_8 = arith.constant 0 : index
    %17 = arith.index_cast %16 : i32 to index
    %c0_9 = arith.constant 0 : index
    %c0_10 = arith.constant 0 : index
    %18 = vector.load %arg2[%c0_8, %17, %c0_9, %c0_10] : memref<1x10x10x128xbf16, #tpu.memory_space<vmem>>, vector<1x4x8x128xbf16>
    %19 = vector.shape_cast %18 : vector<1x4x8x128xbf16> to vector<4x8x128xbf16>
    %20 = vector.shape_cast %19 : vector<4x8x128xbf16> to vector<32x128xbf16>
    %c1_i32_11 = arith.constant 1 : i32
    %21 = arith.addi %0, %c1_i32_11 : i32
    %c0_12 = arith.constant 0 : index
    %22 = arith.index_cast %21 : i32 to index
    %c1_13 = arith.constant 1 : index
    %c0_14 = arith.constant 0 : index
    %23 = vector.load %arg2[%c0_12, %22, %c1_13, %c0_14] : memref<1x10x10x128xbf16, #tpu.memory_space<vmem>>, vector<1x4x8x128xbf16>
    %24 = vector.shape_cast %23 : vector<1x4x8x128xbf16> to vector<4x8x128xbf16>
    %25 = vector.shape_cast %24 : vector<4x8x128xbf16> to vector<32x128xbf16>
    %c1_i32_15 = arith.constant 1 : i32
    %26 = arith.addi %0, %c1_i32_15 : i32
    %c0_16 = arith.constant 0 : index
    %27 = arith.index_cast %26 : i32 to index
    %c2_17 = arith.constant 2 : index
    %c0_18 = arith.constant 0 : index
    %28 = vector.load %arg2[%c0_16, %27, %c2_17, %c0_18] : memref<1x10x10x128xbf16, #tpu.memory_space<vmem>>, vector<1x4x8x128xbf16>
    %29 = vector.shape_cast %28 : vector<1x4x8x128xbf16> to vector<4x8x128xbf16>
    %30 = vector.shape_cast %29 : vector<4x8x128xbf16> to vector<32x128xbf16>
    %c2_i32 = arith.constant 2 : i32
    %31 = arith.addi %0, %c2_i32 : i32
    %c0_19 = arith.constant 0 : index
    %32 = arith.index_cast %31 : i32 to index
    %c0_20 = arith.constant 0 : index
    %c0_21 = arith.constant 0 : index
    %33 = vector.load %arg2[%c0_19, %32, %c0_20, %c0_21] : memref<1x10x10x128xbf16, #tpu.memory_space<vmem>>, vector<1x4x8x128xbf16>
    %34 = vector.shape_cast %33 : vector<1x4x8x128xbf16> to vector<4x8x128xbf16>
    %35 = vector.shape_cast %34 : vector<4x8x128xbf16> to vector<32x128xbf16>
    %c2_i32_22 = arith.constant 2 : i32
    %36 = arith.addi %0, %c2_i32_22 : i32
    %c0_23 = arith.constant 0 : index
    %37 = arith.index_cast %36 : i32 to index
    %c1_24 = arith.constant 1 : index
    %c0_25 = arith.constant 0 : index
    %38 = vector.load %arg2[%c0_23, %37, %c1_24, %c0_25] : memref<1x10x10x128xbf16, #tpu.memory_space<vmem>>, vector<1x4x8x128xbf16>
    %39 = vector.shape_cast %38 : vector<1x4x8x128xbf16> to vector<4x8x128xbf16>
    %40 = vector.shape_cast %39 : vector<4x8x128xbf16> to vector<32x128xbf16>
    %c2_i32_26 = arith.constant 2 : i32
    %41 = arith.addi %0, %c2_i32_26 : i32
    %c0_27 = arith.constant 0 : index
    %42 = arith.index_cast %41 : i32 to index
    %c2_28 = arith.constant 2 : index
    %c0_29 = arith.constant 0 : index
    %43 = vector.load %arg2[%c0_27, %42, %c2_28, %c0_29] : memref<1x10x10x128xbf16, #tpu.memory_space<vmem>>, vector<1x4x8x128xbf16>
    %44 = vector.shape_cast %43 : vector<1x4x8x128xbf16> to vector<4x8x128xbf16>
    %45 = vector.shape_cast %44 : vector<4x8x128xbf16> to vector<32x128xbf16>
    %c0_30 = arith.constant 0 : index
    %c0_31 = arith.constant 0 : index
    %c0_32 = arith.constant 0 : index
    %46 = vector.load %arg3[%c0_30, %c0_31, %c0_32] : memref<9x128x128xbf16, #tpu.memory_space<vmem>>, vector<1x128x128xbf16>
    %47 = vector.shape_cast %46 : vector<1x128x128xbf16> to vector<128x128xbf16>
    %cst = arith.constant dense<0.000000e+00> : vector<32x128xf32>
    %48 = tpu.matmul %5, %47, %cst {dimension_numbers = #tpu.dot_dimension_numbers<[1], [0], [0], [1], [0, 0, 1, 1], [], []>} : vector<32x128xbf16>, vector<128x128xbf16>, vector<32x128xf32> -> vector<32x128xf32>
    %c1_33 = arith.constant 1 : index
    %c0_34 = arith.constant 0 : index
    %c0_35 = arith.constant 0 : index
    %49 = vector.load %arg3[%c1_33, %c0_34, %c0_35] : memref<9x128x128xbf16, #tpu.memory_space<vmem>>, vector<1x128x128xbf16>
    %50 = vector.shape_cast %49 : vector<1x128x128xbf16> to vector<128x128xbf16>
    %cst_36 = arith.constant dense<0.000000e+00> : vector<32x128xf32>
    %51 = tpu.matmul %10, %50, %cst_36 {dimension_numbers = #tpu.dot_dimension_numbers<[1], [0], [0], [1], [0, 0, 1, 1], [], []>} : vector<32x128xbf16>, vector<128x128xbf16>, vector<32x128xf32> -> vector<32x128xf32>
    %52 = arith.addf %48, %51 : vector<32x128xf32>
    %c2_37 = arith.constant 2 : index
    %c0_38 = arith.constant 0 : index
    %c0_39 = arith.constant 0 : index
    %53 = vector.load %arg3[%c2_37, %c0_38, %c0_39] : memref<9x128x128xbf16, #tpu.memory_space<vmem>>, vector<1x128x128xbf16>
    %54 = vector.shape_cast %53 : vector<1x128x128xbf16> to vector<128x128xbf16>
    %cst_40 = arith.constant dense<0.000000e+00> : vector<32x128xf32>
    %55 = tpu.matmul %15, %54, %cst_40 {dimension_numbers = #tpu.dot_dimension_numbers<[1], [0], [0], [1], [0, 0, 1, 1], [], []>} : vector<32x128xbf16>, vector<128x128xbf16>, vector<32x128xf32> -> vector<32x128xf32>
    %56 = arith.addf %52, %55 : vector<32x128xf32>
    %c3 = arith.constant 3 : index
    %c0_41 = arith.constant 0 : index
    %c0_42 = arith.constant 0 : index
    %57 = vector.load %arg3[%c3, %c0_41, %c0_42] : memref<9x128x128xbf16, #tpu.memory_space<vmem>>, vector<1x128x128xbf16>
    %58 = vector.shape_cast %57 : vector<1x128x128xbf16> to vector<128x128xbf16>
    %cst_43 = arith.constant dense<0.000000e+00> : vector<32x128xf32>
    %59 = tpu.matmul %20, %58, %cst_43 {dimension_numbers = #tpu.dot_dimension_numbers<[1], [0], [0], [1], [0, 0, 1, 1], [], []>} : vector<32x128xbf16>, vector<128x128xbf16>, vector<32x128xf32> -> vector<32x128xf32>
    %60 = arith.addf %56, %59 : vector<32x128xf32>
    %c4 = arith.constant 4 : index
    %c0_44 = arith.constant 0 : index
    %c0_45 = arith.constant 0 : index
    %61 = vector.load %arg3[%c4, %c0_44, %c0_45] : memref<9x128x128xbf16, #tpu.memory_space<vmem>>, vector<1x128x128xbf16>
    %62 = vector.shape_cast %61 : vector<1x128x128xbf16> to vector<128x128xbf16>
    %cst_46 = arith.constant dense<0.000000e+00> : vector<32x128xf32>
    %63 = tpu.matmul %25, %62, %cst_46 {dimension_numbers = #tpu.dot_dimension_numbers<[1], [0], [0], [1], [0, 0, 1, 1], [], []>} : vector<32x128xbf16>, vector<128x128xbf16>, vector<32x128xf32> -> vector<32x128xf32>
    %64 = arith.addf %60, %63 : vector<32x128xf32>
    %c5 = arith.constant 5 : index
    %c0_47 = arith.constant 0 : index
    %c0_48 = arith.constant 0 : index
    %65 = vector.load %arg3[%c5, %c0_47, %c0_48] : memref<9x128x128xbf16, #tpu.memory_space<vmem>>, vector<1x128x128xbf16>
    %66 = vector.shape_cast %65 : vector<1x128x128xbf16> to vector<128x128xbf16>
    %cst_49 = arith.constant dense<0.000000e+00> : vector<32x128xf32>
    %67 = tpu.matmul %30, %66, %cst_49 {dimension_numbers = #tpu.dot_dimension_numbers<[1], [0], [0], [1], [0, 0, 1, 1], [], []>} : vector<32x128xbf16>, vector<128x128xbf16>, vector<32x128xf32> -> vector<32x128xf32>
    %68 = arith.addf %64, %67 : vector<32x128xf32>
    %c6 = arith.constant 6 : index
    %c0_50 = arith.constant 0 : index
    %c0_51 = arith.constant 0 : index
    %69 = vector.load %arg3[%c6, %c0_50, %c0_51] : memref<9x128x128xbf16, #tpu.memory_space<vmem>>, vector<1x128x128xbf16>
    %70 = vector.shape_cast %69 : vector<1x128x128xbf16> to vector<128x128xbf16>
    %cst_52 = arith.constant dense<0.000000e+00> : vector<32x128xf32>
    %71 = tpu.matmul %35, %70, %cst_52 {dimension_numbers = #tpu.dot_dimension_numbers<[1], [0], [0], [1], [0, 0, 1, 1], [], []>} : vector<32x128xbf16>, vector<128x128xbf16>, vector<32x128xf32> -> vector<32x128xf32>
    %72 = arith.addf %68, %71 : vector<32x128xf32>
    %c7 = arith.constant 7 : index
    %c0_53 = arith.constant 0 : index
    %c0_54 = arith.constant 0 : index
    %73 = vector.load %arg3[%c7, %c0_53, %c0_54] : memref<9x128x128xbf16, #tpu.memory_space<vmem>>, vector<1x128x128xbf16>
    %74 = vector.shape_cast %73 : vector<1x128x128xbf16> to vector<128x128xbf16>
    %cst_55 = arith.constant dense<0.000000e+00> : vector<32x128xf32>
    %75 = tpu.matmul %40, %74, %cst_55 {dimension_numbers = #tpu.dot_dimension_numbers<[1], [0], [0], [1], [0, 0, 1, 1], [], []>} : vector<32x128xbf16>, vector<128x128xbf16>, vector<32x128xf32> -> vector<32x128xf32>
    %76 = arith.addf %72, %75 : vector<32x128xf32>
    %c8 = arith.constant 8 : index
    %c0_56 = arith.constant 0 : index
    %c0_57 = arith.constant 0 : index
    %77 = vector.load %arg3[%c8, %c0_56, %c0_57] : memref<9x128x128xbf16, #tpu.memory_space<vmem>>, vector<1x128x128xbf16>
    %78 = vector.shape_cast %77 : vector<1x128x128xbf16> to vector<128x128xbf16>
    %cst_58 = arith.constant dense<0.000000e+00> : vector<32x128xf32>
    %79 = tpu.matmul %45, %78, %cst_58 {dimension_numbers = #tpu.dot_dimension_numbers<[1], [0], [0], [1], [0, 0, 1, 1], [], []>} : vector<32x128xbf16>, vector<128x128xbf16>, vector<32x128xf32> -> vector<32x128xf32>
    %80 = arith.addf %76, %79 : vector<32x128xf32>
    %c0_59 = arith.constant 0 : index
    %c0_60 = arith.constant 0 : index
    %81 = vector.load %arg4[%c0_59, %c0_60] : memref<1x128xf32, #tpu.memory_space<vmem>>, vector<1x128xf32>
    %82 = vector.broadcast %81 : vector<1x128xf32> to vector<32x128xf32>
    %83 = arith.addf %80, %82 : vector<32x128xf32>
    %c0_61 = arith.constant 0 : index
    %c0_62 = arith.constant 0 : index
    %c0_63 = arith.constant 0 : index
    %c0_64 = arith.constant 0 : index
    %84 = vector.load %arg5[%c0_61, %c0_62, %c0_63, %c0_64] : memref<1x4x8x128xbf16, #tpu.memory_space<vmem>>, vector<1x4x8x128xbf16>
    %85 = vector.shape_cast %84 : vector<1x4x8x128xbf16> to vector<32x128xbf16>
    %86 = arith.extf %85 : vector<32x128xbf16> to vector<32x128xf32>
    %87 = arith.addf %83, %86 : vector<32x128xf32>
    %cst_65 = arith.constant 0.000000e+00 : f32
    %88 = vector.broadcast %cst_65 : f32 to vector<32x128xf32>
    %89 = arith.maximumf %87, %88 : vector<32x128xf32>
    %90 = vector.shape_cast %89 : vector<32x128xf32> to vector<1x4x8x128xf32>
    %91 = arith.truncf %90 : vector<1x4x8x128xf32> to vector<1x4x8x128xbf16>
    %c0_66 = arith.constant 0 : index
    %c0_67 = arith.constant 0 : index
    %c0_68 = arith.constant 0 : index
    %c0_69 = arith.constant 0 : index
    %92 = vector.load %arg6[%c0_66, %c0_67, %c0_68, %c0_69] : memref<1x4x8x128xbf16, #tpu.memory_space<vmem>>, vector<1x4x8x128xbf16>
    tpu.vector_store %arg6[%c0_66, %c0_67, %c0_68, %c0_69], %91 {strides = array<i32>} : memref<1x4x8x128xbf16, #tpu.memory_space<vmem>>, vector<1x4x8x128xbf16>,
    return
  }
  func.func @transform_0(%arg0: i32, %arg1: i32) -> (i32, i32, i32, i32) {
    %c0_i32 = arith.constant 0 : i32
    %c0_i32_0 = arith.constant 0 : i32
    %c0_i32_1 = arith.constant 0 : i32
    %c0_i32_2 = arith.constant 0 : i32
    return %arg0, %c0_i32, %c0_i32_0, %c0_i32_1 : i32, i32, i32, i32
  }
  func.func @transform_1(%arg0: i32, %arg1: i32) -> (i32, i32, i32) {
    %c0_i32 = arith.constant 0 : i32
    %c0_i32_0 = arith.constant 0 : i32
    %c0_i32_1 = arith.constant 0 : i32
    %c0_i32_2 = arith.constant 0 : i32
    return %c0_i32, %c0_i32_0, %c0_i32_1 : i32, i32, i32
  }
  func.func @transform_2(%arg0: i32, %arg1: i32) -> (i32, i32) {
    %c0_i32 = arith.constant 0 : i32
    %c0_i32_0 = arith.constant 0 : i32
    %c0_i32_1 = arith.constant 0 : i32
    return %c0_i32, %c0_i32_0 : i32, i32
  }
  func.func @transform_3(%arg0: i32, %arg1: i32) -> (i32, i32, i32, i32) {
    %c0_i32 = arith.constant 0 : i32
    %c0_i32_0 = arith.constant 0 : i32
    %c0_i32_1 = arith.constant 0 : i32
    return %arg0, %arg1, %c0_i32, %c0_i32_0 : i32, i32, i32, i32
  }
  func.func @transform_4(%arg0: i32, %arg1: i32) -> (i32, i32, i32, i32) {
    %c0_i32 = arith.constant 0 : i32
    %c0_i32_0 = arith.constant 0 : i32
    %c0_i32_1 = arith.constant 0 : i32
    return %arg0, %arg1, %c0_i32, %c0_i32_0 : i32, i32, i32, i32
  }
}

</mosaic_0001>

<llo_original>
// kernel: net.4
$region0: #{net.4}
  #allocation0 [shape = 'u32[]', space=smem, size = 0x4, offset = 0x4, fixed_abs, tag = 'smem constant byte address 0x4 - core index']
  #allocation1 [shape = 'u32[144,128]{1,0:T(1,128)}', space=vmem, size = 0x12000, scoped, tag = 'internal scratch']
  %s0 = inlined_call_operand.vmem [shape: bf16[2,18,18,16], index: 0, kind: input, shape index: {}]
  %s1 = inlined_call_operand.vmem [shape: bf16[144,128], index: 1, kind: input, shape index: {}]
  %s2 = inlined_call_operand.vmem [shape: f32[1,128], index: 2, kind: input, shape index: {}]
  %s3 = inlined_call_operand.vmem [shape: bf16[2,16,16,128], index: 3, kind: output, shape index: {}]
  %s4 = sld [smem:[#allocation0]]
  $region45: #{net.4} parent=0
    _
  %s6 = ssub.s32 1, %s4
  %s7 = scalar_select 0, %s6, %s4
  loop: start=0, step=1, limit=6
  $region2: #{net.4} parent=0 // loop_pre_header
    _
  $region3: #{net.4} parent=0 // loop_header
    %s9 = sphi 0, %s13
    %p10 = scmp.ge.s32.totalorder %s9, 6
    %s16 = sphi 0, %s28
    %s17 = sphi 0, %s24
    %s18 = sphi 0, %s16
    %s19 = sphi 0, %s17
    %s20 = sphi 0, %s18
    %s21 = sphi 0, %s19
    %s31 = sphi 0, %s33
    %s34 = sphi 0, %s31
    %s35 = sphi 0, %s34
    %s51 = sphi 0, %s35
    %s55 = sphi 0, %s55
    %s57 = sphi 0, %s55
    %s58 = sphi 0, %s57
    %s72 = sphi 0, %s58
    %s76 = sphi 0, %s76
    %s78 = sphi 0, %s76
    %s79 = sphi 0, %s78
    %s93 = sphi 0, %s79
    %s101 = sphi 0, %s103
    %s104 = sphi 0, %s101
    %s105 = sphi 0, %s104
    %s121 = sphi 0, %s105
  $region4: #{net.4} parent=0 // loop_header_branch
    %12 = sbr.rel (%p10) target = $region8
  $region5: #{net.4} parent=0 // loop_body
    %s14 = ssub.s32 %s9, 1
    %s15 = ssub.s32 %s9, 2
    %s22 = sadd.s32 1, %s17
    %p23 = scmp.ge.s32.totalorder %s22, 2
    %s24 = scalar_select %p23, 0, %s22
    %s25 = sadd.s32 1, %s16
    %s26 = scalar_select %p23, %s25, %s16
    %p27 = scmp.ge.s32.totalorder %s26, 2
    %s28 = scalar_select %p27, 0, %s26
    %s29 = ssub.s32 %s16, %s28
    %p30 = scmp.eq.s32.totalorder %s29, 0
    %s32 = sadd.s32 %s31, 1
    %s33 = scalar_select %p30, %s31, %s32
    %p36 = pneg %p30
    %p37 = scmp.eq.s32.totalorder %s9, 3
    %p38 = por %p36, %p37
    %p39 = scmp.ne.s32.totalorder %s31, %s34
    %p40 = scmp.eq.s32.totalorder %s9, 0
    %p41 = por %p39, %p40
    %p42 = scmp.ne.s32.totalorder %s31, %s34
    %p43 = scmp.eq.s32.totalorder %s14, 3
    %p44 = por %p42, %p43
    %p45 = scmp.ne.s32.totalorder %s34, %s35
    %p46 = scmp.eq.s32.totalorder %s14, 0
    %p47 = por %p45, %p46
    %p48 = scmp.ne.s32.totalorder %s34, %s35
    %p49 = scmp.eq.s32.totalorder %s15, 3
    %p50 = por %p48, %p49
    %p52 = scmp.ne.s32.totalorder %s35, %s51
    %p53 = scmp.eq.s32.totalorder %s15, 0
    %p54 = por %p52, %p53
    %s56 = sadd.s32 %s55, 1
    %p59 = scmp.eq.s32.totalorder %s9, 3
    %p60 = scmp.ne.s32.totalorder %s55, %s57
    %p61 = scmp.eq.s32.totalorder %s9, 0
    %p62 = por %p60, %p61
    %p63 = scmp.ne.s32.totalorder %s55, %s57
    %p64 = scmp.eq.s32.totalorder %s14, 3
    %p65 = por %p63, %p64
    %p66 = scmp.ne.s32.totalorder %s57, %s58
    %p67 = scmp.eq.s32.totalorder %s14, 0
    %p68 = por %p66, %p67
    %p69 = scmp.ne.s32.totalorder %s57, %s58
    %p70 = scmp.eq.s32.totalorder %s15, 3
    %p71 = por %p69, %p70
    %p73 = scmp.ne.s32.totalorder %s58, %s72
    %p74 = scmp.eq.s32.totalorder %s15, 0
    %p75 = por %p73, %p74
    %s77 = sadd.s32 %s76, 1
    %p80 = scmp.eq.s32.totalorder %s9, 3
    %p81 = scmp.ne.s32.totalorder %s76, %s78
    %p82 = scmp.eq.s32.totalorder %s9, 0
    %p83 = por %p81, %p82
    %p84 = scmp.ne.s32.totalorder %s76, %s78
    %p85 = scmp.eq.s32.totalorder %s14, 3
    %p86 = por %p84, %p85
    %p87 = scmp.ne.s32.totalorder %s78, %s79
    %p88 = scmp.eq.s32.totalorder %s14, 0
    %p89 = por %p87, %p88
    %p90 = scmp.ne.s32.totalorder %s78, %s79
    %p91 = scmp.eq.s32.totalorder %s15, 3
    %p92 = por %p90, %p91
    %p94 = scmp.ne.s32.totalorder %s79, %s93
    %p95 = scmp.eq.s32.totalorder %s15, 0
    %p96 = por %p94, %p95
    %s97 = ssub.s32 %s16, %s28
    %s98 = ssub.s32 %s17, %s24
    %s99 = sor.u32 %s97, %s98
    %p100 = scmp.eq.s32.totalorder %s99, 0
    %s102 = sadd.s32 %s101, 1
    %s103 = scalar_select %p100, %s101, %s102
    %p106 = pneg %p100
    %p107 = scmp.eq.s32.totalorder %s9, 3
    %p108 = por %p106, %p107
    %p109 = scmp.ne.s32.totalorder %s101, %s104
    %p110 = scmp.eq.s32.totalorder %s9, 0
    %p111 = por %p109, %p110
    %p112 = scmp.ne.s32.totalorder %s101, %s104
    %p113 = scmp.eq.s32.totalorder %s14, 3
    %p114 = por %p112, %p113
    %p115 = scmp.ne.s32.totalorder %s104, %s105
    %p116 = scmp.eq.s32.totalorder %s14, 0
    %p117 = por %p115, %p116
    %p118 = scmp.ne.s32.totalorder %s104, %s105
    %p119 = scmp.eq.s32.totalorder %s15, 3
    %p120 = por %p118, %p119
    %p122 = scmp.ne.s32.totalorder %s105, %s121
    %p123 = scmp.eq.s32.totalorder %s15, 0
    %p124 = por %p122, %p123
    %p125 = scmp.le.s32.totalorder 1, %s9
    %p126 = scmp.lt.s32.totalorder %s9, 5
    %p127 = pnand %p125, %p126
    %p128 = pneg %p127
    // Predicated region
    $region9: #{net.4} parent=5 // pred_check
      _
    $region10: #{net.4} parent=5 // pred_check_branch
      %130 = sbr.rel (%p127) target = $region12
    $region11: #{net.4} parent=5 // pred_region
      %s131 = ssub.s32 %s9, 1
      // Predicated region
      $region13: #{net.4} parent=11 // pred_check
        %p132 = pneg %p68
      $region14: #{net.4} parent=11 // pred_check_branch
        %134 = sbr.rel (%p132) target = $region16
      $region15: #{net.4} parent=11 // pred_region
        _
      $region16: #{net.4} parent=11 // pred_fallthru
        _
      // Predicated region
      $region17: #{net.4} parent=11 // pred_check
        %p135 = pneg %p89
      $region18: #{net.4} parent=11 // pred_check_branch
        %137 = sbr.rel (%p135) target = $region20
      $region19: #{net.4} parent=11 // pred_region
        _
      $region20: #{net.4} parent=11 // pred_fallthru
        _
    $region12: #{net.4} parent=5 // pred_fallthru
      _
    %p138 = scmp.lt.s32.totalorder %s9, 4
    // Predicated region
    $region21: #{net.4} parent=5 // pred_check
      %p139 = pneg %p138
    $region22: #{net.4} parent=5 // pred_check_branch
      %141 = sbr.rel (%p139) target = $region24
    $region23: #{net.4} parent=5 // pred_region
      // Predicated region
      $region25: #{net.4} parent=23 // pred_check
        %p142 = pneg %p41
      $region26: #{net.4} parent=23 // pred_check_branch
        %144 = sbr.rel (%p142) target = $region28
      $region27: #{net.4} parent=23 // pred_region
        %p145 = scmp.lt.s32.totalorder %s16, 1
        %s146 = scalar_select %p145, %s16, 1
        %s147 = smul.addr %s146, 54
        %s148 = smul.addr %s147, 4
        %s149 = scalar_lea.vmem %s0, %s148
      $region28: #{net.4} parent=23 // pred_fallthru
        _
    $region24: #{net.4} parent=5 // pred_fallthru
      _
    %p150 = scmp.le.s32.totalorder 1, %s9
    %p151 = scmp.lt.s32.totalorder %s9, 5
    %p152 = pnand %p150, %p151
    %p153 = pneg %p152
    // Predicated region
    $region29: #{net.4} parent=5 // pred_check
      _
    $region30: #{net.4} parent=5 // pred_check_branch
      %155 = sbr.rel (%p152) target = $region32
    $region31: #{net.4} parent=5 // pred_region
      %s156 = ssub.s32 %s9, 1
      %p157 = scmp.lt.s32.totalorder %s18, 1
      %s158 = scalar_select %p157, %s18, 1
      %s159 = smul.addr %s158, 54
      %s160 = smul.addr %s159, 4
      %s161 = scalar_lea.vmem %s0, %s160
      %p162 = pneg %p47
      %p163 = pneg %p44
      %p164 = pneg %p68
      %p165 = pneg %p65
      %p166 = pneg %p89
      %p167 = pneg %p86
      %p168 = pneg %p117
      %p169 = pneg %p114
      %s170 = smul.u32 8, %s19
      %p171 = scmp.lt.s32.totalorder %s18, 1
      %s172 = scalar_select %p171, %s18, 1
      %p173 = scmp.lt.s32.totalorder %s170, 15
      %s174 = scalar_select %p173, %s170, 15
      %s175 = smul.addr %s174, 2
      %s176 = smul.addr %s172, 32
      %s177 = sadd.s32 %s175, %s176
      %s178 = smul.addr %s177, 4
      %s179 = scalar_lea.vmem %s3, %s178
      %p180 = scmp.lt.s32.totalorder %s18, 1
      %s181 = scalar_select %p180, %s18, 1
      %s182 = smul.addr %s181, 54
      %s183 = smul.addr %s182, 4
      %s184 = scalar_lea.vmem %s0, %s183
      %s185 = smul.u32 8, %s19
      %p186 = scmp.lt.s32.totalorder %s18, 1
      %s187 = scalar_select %p186, %s18, 1
      %p188 = scmp.lt.s32.totalorder %s185, 15
      %s189 = scalar_select %p188, %s185, 15
      %s190 = smul.addr %s189, 2
      %s191 = smul.addr %s187, 32
      %s192 = sadd.s32 %s190, %s191
      %s193 = smul.addr %s192, 4
      %s194 = scalar_lea.vmem %s3, %s193
      %s195 = smul.u32 8, %s19
      %s197 = smul.u32 %s19, 8
      %s198 = smul.u32 %s197, 3
      %s199 = smul.addr %s198, 4
      %s200 = scalar_lea.vmem %s184, %s199
      %v201 = vld [vmem:[%s200] sm:$0xf]
      %v202 = vld [vmem:[%s200 + $0x4] sm:$0xf]
      %v203 = vld [vmem:[%s200 + $0xc] sm:$0xf]
      %v204 = vld [vmem:[%s200 + $0x10] sm:$0xf]
      %v205 = vld [vmem:[%s200 + $0x18] sm:$0xf]
      %v206 = vld [vmem:[%s200 + $0x1c] sm:$0xf]
      %v207 = vld [vmem:[%s200 + $0x24] sm:$0xf]
      %v208 = vld [vmem:[%s200 + $0x28] sm:$0xf]
      %v209 = vld [vmem:[%s200 + $0x30] sm:$0xf]
      %v210 = vld [vmem:[%s200 + $0x34] sm:$0xf]
      %v211 = vld [vmem:[%s200 + $0x3c] sm:$0xf]
      %v212 = vld [vmem:[%s200 + $0x40] sm:$0xf]
      %v213 = vld [vmem:[%s200 + $0x48] sm:$0xf]
      %v214 = vld [vmem:[%s200 + $0x4c] sm:$0xf]
      %v215 = vld [vmem:[%s200 + $0x54] sm:$0xf]
      %v216 = vld [vmem:[%s200 + $0x58] sm:$0xf]
      %v217 = vld [vmem:[%s200 + $0x8] sm:$0x1]
      %v218 = vld [vmem:[%s200 + $0x14] sm:$0x1]
      %v219 = vld [vmem:[%s200 + $0x20] sm:$0x1]
      %v220 = vld [vmem:[%s200 + $0x2c] sm:$0x1]
      %v221 = vld [vmem:[%s200 + $0x38] sm:$0x1]
      %v222 = vld [vmem:[%s200 + $0x44] sm:$0x1]
      %v223 = vld [vmem:[%s200 + $0x50] sm:$0x1]
      %v224 = vld [vmem:[%s200 + $0x5c] sm:$0x1]
      %vm225 = vsmask.f32 3328
      %vm226 = vsmask.f32 7440
      %vm227 = vmor %vm225, %vm226
      %v229 = vshrl.u32 %v201, 16
      %v231 = vrot.slane %v229, 4
      %v232 = vshll.u32 %v201, 16
      %v234 = vrot.slane %v232, 5
      %v235 = vor.u32 %v231, %v234
      %v236 = vrot.slane %v235, 4
      %v238 = vshll.u32 %v202, 16
      %v240 = vrot.slane %v238, 5
      %v241 = vsel %vm227, %v236, %v240
      %v242 = vshrl.u32 %v202, 16
      %v244 = vrot.slane %v242, 4
      %v245 = vor.u32 %v244, %v240
      %v246 = vrot.slane %v245, 4
      %v248 = vshll.u32 %v217, 16
      %v250 = vrot.slane %v248, 5
      %v251 = vsel %vm227, %v246, %v250
      %v253 = vshrl.u32 %v203, 16
      %v255 = vrot.slane %v253, 4
      %v256 = vshll.u32 %v203, 16
      %v258 = vrot.slane %v256, 5
      %v259 = vor.u32 %v255, %v258
      %v260 = vrot.slane %v259, 4
      %v262 = vshll.u32 %v204, 16
      %v264 = vrot.slane %v262, 5
      %v265 = vsel %vm227, %v260, %v264
      %v266 = vshrl.u32 %v204, 16
      %v268 = vrot.slane %v266, 4
      %v269 = vor.u32 %v268, %v264
      %v270 = vrot.slane %v269, 4
      %v272 = vshll.u32 %v218, 16
      %v274 = vrot.slane %v272, 5
      %v275 = vsel %vm227, %v270, %v274
      %v277 = vshrl.u32 %v205, 16
      %v279 = vrot.slane %v277, 4
      %v280 = vshll.u32 %v205, 16
      %v282 = vrot.slane %v280, 5
      %v283 = vor.u32 %v279, %v282
      %v284 = vrot.slane %v283, 4
      %v286 = vshll.u32 %v206, 16
      %v288 = vrot.slane %v286, 5
      %v289 = vsel %vm227, %v284, %v288
      %v290 = vshrl.u32 %v206, 16
      %v292 = vrot.slane %v290, 4
      %v293 = vor.u32 %v292, %v288
      %v294 = vrot.slane %v293, 4
      %v296 = vshll.u32 %v219, 16
      %v298 = vrot.slane %v296, 5
      %v299 = vsel %vm227, %v294, %v298
      %v301 = vshrl.u32 %v207, 16
      %v303 = vrot.slane %v301, 4
      %v304 = vshll.u32 %v207, 16
      %v306 = vrot.slane %v304, 5
      %v307 = vor.u32 %v303, %v306
      %v308 = vrot.slane %v307, 4
      %v310 = vshll.u32 %v208, 16
      %v312 = vrot.slane %v310, 5
      %v313 = vsel %vm227, %v308, %v312
      %v314 = vshrl.u32 %v208, 16
      %v316 = vrot.slane %v314, 4
      %v317 = vor.u32 %v316, %v312
      %v318 = vrot.slane %v317, 4
      %v320 = vshll.u32 %v220, 16
      %v322 = vrot.slane %v320, 5
      %v323 = vsel %vm227, %v318, %v322
      %v325 = vshrl.u32 %v209, 16
      %v327 = vrot.slane %v325, 4
      %v328 = vshll.u32 %v209, 16
      %v330 = vrot.slane %v328, 5
      %v331 = vor.u32 %v327, %v330
      %v332 = vrot.slane %v331, 4
      %v334 = vshll.u32 %v210, 16
      %v336 = vrot.slane %v334, 5
      %v337 = vsel %vm227, %v332, %v336
      %v338 = vshrl.u32 %v210, 16
      %v340 = vrot.slane %v338, 4
      %v341 = vor.u32 %v340, %v336
      %v342 = vrot.slane %v341, 4
      %v344 = vshll.u32 %v221, 16
      %v346 = vrot.slane %v344, 5
      %v347 = vsel %vm227, %v342, %v346
      %v349 = vshrl.u32 %v211, 16
      %v351 = vrot.slane %v349, 4
      %v352 = vshll.u32 %v211, 16
      %v354 = vrot.slane %v352, 5
      %v355 = vor.u32 %v351, %v354
      %v356 = vrot.slane %v355, 4
      %v358 = vshll.u32 %v212, 16
      %v360 = vrot.slane %v358, 5
      %v361 = vsel %vm227, %v356, %v360
      %v362 = vshrl.u32 %v212, 16
      %v364 = vrot.slane %v362, 4
      %v365 = vor.u32 %v364, %v360
      %v366 = vrot.slane %v365, 4
      %v368 = vshll.u32 %v222, 16
      %v370 = vrot.slane %v368, 5
      %v371 = vsel %vm227, %v366, %v370
      %v373 = vshrl.u32 %v213, 16
      %v375 = vrot.slane %v373, 4
      %v376 = vshll.u32 %v213, 16
      %v378 = vrot.slane %v376, 5
      %v379 = vor.u32 %v375, %v378
      %v380 = vrot.slane %v379, 4
      %v382 = vshll.u32 %v214, 16
      %v384 = vrot.slane %v382, 5
      %v385 = vsel %vm227, %v380, %v384
      %v386 = vshrl.u32 %v214, 16
      %v388 = vrot.slane %v386, 4
      %v389 = vor.u32 %v388, %v384
      %v390 = vrot.slane %v389, 4
      %v392 = vshll.u32 %v223, 16
      %v394 = vrot.slane %v392, 5
      %v395 = vsel %vm227, %v390, %v394
      %v397 = vshrl.u32 %v215, 16
      %v399 = vrot.slane %v397, 4
      %v400 = vshll.u32 %v215, 16
      %v402 = vrot.slane %v400, 5
      %v403 = vor.u32 %v399, %v402
      %v404 = vrot.slane %v403, 4
      %v406 = vshll.u32 %v216, 16
      %v408 = vrot.slane %v406, 5
      %v409 = vsel %vm227, %v404, %v408
      %v410 = vshrl.u32 %v216, 16
      %v412 = vrot.slane %v410, 4
      %v413 = vor.u32 %v412, %v408
      %v414 = vrot.slane %v413, 4
      %v416 = vshll.u32 %v224, 16
      %v418 = vrot.slane %v416, 5
      %v419 = vsel %vm227, %v414, %v418
      %v420 = vld [vmem:[%s200] sm:$0xe]
      %v421 = vld [vmem:[%s200 + $0xc] sm:$0xe]
      %v422 = vld [vmem:[%s200 + $0x18] sm:$0xe]
      %v423 = vld [vmem:[%s200 + $0x24] sm:$0xe]
      %v424 = vld [vmem:[%s200 + $0x30] sm:$0xe]
      %v425 = vld [vmem:[%s200 + $0x3c] sm:$0xe]
      %v426 = vld [vmem:[%s200 + $0x48] sm:$0xe]
      %v427 = vld [vmem:[%s200 + $0x54] sm:$0xe]
      %vm452 = vcmask 1042432
      %vm453 = vcmask 1046532
      %vm454 = vmor %vm452, %vm453
      %v455 = vrot.slane %v420, 5
      %v456 = vrot.slane %v455, 4
      %v457 = vrot.slane %v202, 5
      %v458 = vsel %vm454, %v456, %v457
      %v459 = vrot.slane %v457, 4
      %v460 = vrot.slane %v217, 5
      %v461 = vsel %vm454, %v459, %v460
      %v462 = vrot.slane %v421, 5
      %v463 = vrot.slane %v462, 4
      %v464 = vrot.slane %v204, 5
      %v465 = vsel %vm454, %v463, %v464
      %v466 = vrot.slane %v464, 4
      %v467 = vrot.slane %v218, 5
      %v468 = vsel %vm454, %v466, %v467
      %v469 = vrot.slane %v422, 5
      %v470 = vrot.slane %v469, 4
      %v471 = vrot.slane %v206, 5
      %v472 = vsel %vm454, %v470, %v471
      %v473 = vrot.slane %v471, 4
      %v474 = vrot.slane %v219, 5
      %v475 = vsel %vm454, %v473, %v474
      %v476 = vrot.slane %v423, 5
      %v477 = vrot.slane %v476, 4
      %v478 = vrot.slane %v208, 5
      %v479 = vsel %vm454, %v477, %v478
      %v480 = vrot.slane %v478, 4
      %v481 = vrot.slane %v220, 5
      %v482 = vsel %vm454, %v480, %v481
      %v483 = vrot.slane %v424, 5
      %v484 = vrot.slane %v483, 4
      %v485 = vrot.slane %v210, 5
      %v486 = vsel %vm454, %v484, %v485
      %v487 = vrot.slane %v485, 4
      %v488 = vrot.slane %v221, 5
      %v489 = vsel %vm454, %v487, %v488
      %v490 = vrot.slane %v425, 5
      %v491 = vrot.slane %v490, 4
      %v492 = vrot.slane %v212, 5
      %v493 = vsel %vm454, %v491, %v492
      %v494 = vrot.slane %v492, 4
      %v495 = vrot.slane %v222, 5
      %v496 = vsel %vm454, %v494, %v495
      %v497 = vrot.slane %v426, 5
      %v498 = vrot.slane %v497, 4
      %v499 = vrot.slane %v214, 5
      %v500 = vsel %vm454, %v498, %v499
      %v501 = vrot.slane %v499, 4
      %v502 = vrot.slane %v223, 5
      %v503 = vsel %vm454, %v501, %v502
      %v504 = vrot.slane %v427, 5
      %v505 = vrot.slane %v504, 4
      %v506 = vrot.slane %v216, 5
      %v507 = vsel %vm454, %v505, %v506
      %v508 = vrot.slane %v506, 4
      %v509 = vrot.slane %v224, 5
      %v510 = vsel %vm454, %v508, %v509
      %s511 = sadd.s32 %s197, 1
      %s512 = smul.u32 %s511, 3
      %s513 = smul.addr %s512, 4
      %s514 = scalar_lea.vmem %s184, %s513
      %v515 = vld [vmem:[%s514] sm:$0xf]
      %v516 = vld [vmem:[%s514 + $0x4] sm:$0xf]
      %v517 = vld [vmem:[%s514 + $0xc] sm:$0xf]
      %v518 = vld [vmem:[%s514 + $0x10] sm:$0xf]
      %v519 = vld [vmem:[%s514 + $0x18] sm:$0xf]
      %v520 = vld [vmem:[%s514 + $0x1c] sm:$0xf]
      %v521 = vld [vmem:[%s514 + $0x24] sm:$0xf]
      %v522 = vld [vmem:[%s514 + $0x28] sm:$0xf]
      %v523 = vld [vmem:[%s514 + $0x30] sm:$0xf]
      %v524 = vld [vmem:[%s514 + $0x34] sm:$0xf]
      %v525 = vld [vmem:[%s514 + $0x3c] sm:$0xf]
      %v526 = vld [vmem:[%s514 + $0x40] sm:$0xf]
      %v527 = vld [vmem:[%s514 + $0x48] sm:$0xf]
      %v528 = vld [vmem:[%s514 + $0x4c] sm:$0xf]
      %v529 = vld [vmem:[%s514 + $0x54] sm:$0xf]
      %v530 = vld [vmem:[%s514 + $0x58] sm:$0xf]
      %v531 = vld [vmem:[%s514 + $0x8] sm:$0x1]
      %v532 = vld [vmem:[%s514 + $0x14] sm:$0x1]
      %v533 = vld [vmem:[%s514 + $0x20] sm:$0x1]
      %v534 = vld [vmem:[%s514 + $0x2c] sm:$0x1]
      %v535 = vld [vmem:[%s514 + $0x38] sm:$0x1]
      %v536 = vld [vmem:[%s514 + $0x44] sm:$0x1]
      %v537 = vld [vmem:[%s514 + $0x50] sm:$0x1]
      %v538 = vld [vmem:[%s514 + $0x5c] sm:$0x1]
      %v540 = vshrl.u32 %v515, 16
      %v542 = vrot.slane %v540, 4
      %v543 = vshll.u32 %v515, 16
      %v545 = vrot.slane %v543, 5
      %v546 = vor.u32 %v542, %v545
      %v547 = vrot.slane %v546, 4
      %v549 = vshll.u32 %v516, 16
      %v551 = vrot.slane %v549, 5
      %v552 = vsel %vm227, %v547, %v551
      %v553 = vshrl.u32 %v516, 16
      %v555 = vrot.slane %v553, 4
      %v556 = vor.u32 %v555, %v551
      %v557 = vrot.slane %v556, 4
      %v559 = vshll.u32 %v531, 16
      %v561 = vrot.slane %v559, 5
      %v562 = vsel %vm227, %v557, %v561
      %v564 = vshrl.u32 %v517, 16
      %v566 = vrot.slane %v564, 4
      %v567 = vshll.u32 %v517, 16
      %v569 = vrot.slane %v567, 5
      %v570 = vor.u32 %v566, %v569
      %v571 = vrot.slane %v570, 4
      %v573 = vshll.u32 %v518, 16
      %v575 = vrot.slane %v573, 5
      %v576 = vsel %vm227, %v571, %v575
      %v577 = vshrl.u32 %v518, 16
      %v579 = vrot.slane %v577, 4
      %v580 = vor.u32 %v579, %v575
      %v581 = vrot.slane %v580, 4
      %v583 = vshll.u32 %v532, 16
      %v585 = vrot.slane %v583, 5
      %v586 = vsel %vm227, %v581, %v585
      %v588 = vshrl.u32 %v519, 16
      %v590 = vrot.slane %v588, 4
      %v591 = vshll.u32 %v519, 16
      %v593 = vrot.slane %v591, 5
      %v594 = vor.u32 %v590, %v593
      %v595 = vrot.slane %v594, 4
      %v597 = vshll.u32 %v520, 16
      %v599 = vrot.slane %v597, 5
      %v600 = vsel %vm227, %v595, %v599
      %v601 = vshrl.u32 %v520, 16
      %v603 = vrot.slane %v601, 4
      %v604 = vor.u32 %v603, %v599
      %v605 = vrot.slane %v604, 4
      %v607 = vshll.u32 %v533, 16
      %v609 = vrot.slane %v607, 5
      %v610 = vsel %vm227, %v605, %v609
      %v612 = vshrl.u32 %v521, 16
      %v614 = vrot.slane %v612, 4
      %v615 = vshll.u32 %v521, 16
      %v617 = vrot.slane %v615, 5
      %v618 = vor.u32 %v614, %v617
      %v619 = vrot.slane %v618, 4
      %v621 = vshll.u32 %v522, 16
      %v623 = vrot.slane %v621, 5
      %v624 = vsel %vm227, %v619, %v623
      %v625 = vshrl.u32 %v522, 16
      %v627 = vrot.slane %v625, 4
      %v628 = vor.u32 %v627, %v623
      %v629 = vrot.slane %v628, 4
      %v631 = vshll.u32 %v534, 16
      %v633 = vrot.slane %v631, 5
      %v634 = vsel %vm227, %v629, %v633
      %v636 = vshrl.u32 %v523, 16
      %v638 = vrot.slane %v636, 4
      %v639 = vshll.u32 %v523, 16
      %v641 = vrot.slane %v639, 5
      %v642 = vor.u32 %v638, %v641
      %v643 = vrot.slane %v642, 4
      %v645 = vshll.u32 %v524, 16
      %v647 = vrot.slane %v645, 5
      %v648 = vsel %vm227, %v643, %v647
      %v649 = vshrl.u32 %v524, 16
      %v651 = vrot.slane %v649, 4
      %v652 = vor.u32 %v651, %v647
      %v653 = vrot.slane %v652, 4
      %v655 = vshll.u32 %v535, 16
      %v657 = vrot.slane %v655, 5
      %v658 = vsel %vm227, %v653, %v657
      %v660 = vshrl.u32 %v525, 16
      %v662 = vrot.slane %v660, 4
      %v663 = vshll.u32 %v525, 16
      %v665 = vrot.slane %v663, 5
      %v666 = vor.u32 %v662, %v665
      %v667 = vrot.slane %v666, 4
      %v669 = vshll.u32 %v526, 16
      %v671 = vrot.slane %v669, 5
      %v672 = vsel %vm227, %v667, %v671
      %v673 = vshrl.u32 %v526, 16
      %v675 = vrot.slane %v673, 4
      %v676 = vor.u32 %v675, %v671
      %v677 = vrot.slane %v676, 4
      %v679 = vshll.u32 %v536, 16
      %v681 = vrot.slane %v679, 5
      %v682 = vsel %vm227, %v677, %v681
      %v684 = vshrl.u32 %v527, 16
      %v686 = vrot.slane %v684, 4
      %v687 = vshll.u32 %v527, 16
      %v689 = vrot.slane %v687, 5
      %v690 = vor.u32 %v686, %v689
      %v691 = vrot.slane %v690, 4
      %v693 = vshll.u32 %v528, 16
      %v695 = vrot.slane %v693, 5
      %v696 = vsel %vm227, %v691, %v695
      %v697 = vshrl.u32 %v528, 16
      %v699 = vrot.slane %v697, 4
      %v700 = vor.u32 %v699, %v695
      %v701 = vrot.slane %v700, 4
      %v703 = vshll.u32 %v537, 16
      %v705 = vrot.slane %v703, 5
      %v706 = vsel %vm227, %v701, %v705
      %v708 = vshrl.u32 %v529, 16
      %v710 = vrot.slane %v708, 4
      %v711 = vshll.u32 %v529, 16
      %v713 = vrot.slane %v711, 5
      %v714 = vor.u32 %v710, %v713
      %v715 = vrot.slane %v714, 4
      %v717 = vshll.u32 %v530, 16
      %v719 = vrot.slane %v717, 5
      %v720 = vsel %vm227, %v715, %v719
      %v721 = vshrl.u32 %v530, 16
      %v723 = vrot.slane %v721, 4
      %v724 = vor.u32 %v723, %v719
      %v725 = vrot.slane %v724, 4
      %v727 = vshll.u32 %v538, 16
      %v729 = vrot.slane %v727, 5
      %v730 = vsel %vm227, %v725, %v729
      %v731 = vld [vmem:[%s514] sm:$0xe]
      %v732 = vld [vmem:[%s514 + $0xc] sm:$0xe]
      %v733 = vld [vmem:[%s514 + $0x18] sm:$0xe]
      %v734 = vld [vmem:[%s514 + $0x24] sm:$0xe]
      %v735 = vld [vmem:[%s514 + $0x30] sm:$0xe]
      %v736 = vld [vmem:[%s514 + $0x3c] sm:$0xe]
      %v737 = vld [vmem:[%s514 + $0x48] sm:$0xe]
      %v738 = vld [vmem:[%s514 + $0x54] sm:$0xe]
      %v763 = vrot.slane %v731, 5
      %v764 = vrot.slane %v763, 4
      %v765 = vrot.slane %v516, 5
      %v766 = vsel %vm454, %v764, %v765
      %v767 = vrot.slane %v765, 4
      %v768 = vrot.slane %v531, 5
      %v769 = vsel %vm454, %v767, %v768
      %v770 = vrot.slane %v732, 5
      %v771 = vrot.slane %v770, 4
      %v772 = vrot.slane %v518, 5
      %v773 = vsel %vm454, %v771, %v772
      %v774 = vrot.slane %v772, 4
      %v775 = vrot.slane %v532, 5
      %v776 = vsel %vm454, %v774, %v775
      %v777 = vrot.slane %v733, 5
      %v778 = vrot.slane %v777, 4
      %v779 = vrot.slane %v520, 5
      %v780 = vsel %vm454, %v778, %v779
      %v781 = vrot.slane %v779, 4
      %v782 = vrot.slane %v533, 5
      %v783 = vsel %vm454, %v781, %v782
      %v784 = vrot.slane %v734, 5
      %v785 = vrot.slane %v784, 4
      %v786 = vrot.slane %v522, 5
      %v787 = vsel %vm454, %v785, %v786
      %v788 = vrot.slane %v786, 4
      %v789 = vrot.slane %v534, 5
      %v790 = vsel %vm454, %v788, %v789
      %v791 = vrot.slane %v735, 5
      %v792 = vrot.slane %v791, 4
      %v793 = vrot.slane %v524, 5
      %v794 = vsel %vm454, %v792, %v793
      %v795 = vrot.slane %v793, 4
      %v796 = vrot.slane %v535, 5
      %v797 = vsel %vm454, %v795, %v796
      %v798 = vrot.slane %v736, 5
      %v799 = vrot.slane %v798, 4
      %v800 = vrot.slane %v526, 5
      %v801 = vsel %vm454, %v799, %v800
      %v802 = vrot.slane %v800, 4
      %v803 = vrot.slane %v536, 5
      %v804 = vsel %vm454, %v802, %v803
      %v805 = vrot.slane %v737, 5
      %v806 = vrot.slane %v805, 4
      %v807 = vrot.slane %v528, 5
      %v808 = vsel %vm454, %v806, %v807
      %v809 = vrot.slane %v807, 4
      %v810 = vrot.slane %v537, 5
      %v811 = vsel %vm454, %v809, %v810
      %v812 = vrot.slane %v738, 5
      %v813 = vrot.slane %v812, 4
      %v814 = vrot.slane %v530, 5
      %v815 = vsel %vm454, %v813, %v814
      %v816 = vrot.slane %v814, 4
      %v817 = vrot.slane %v538, 5
      %v818 = vsel %vm454, %v816, %v817
      %s819 = sadd.s32 %s197, 2
      %s820 = smul.u32 %s819, 3
      %s821 = smul.addr %s820, 4
      %s822 = scalar_lea.vmem %s184, %s821
      %v823 = vld [vmem:[%s822] sm:$0xf]
      %v824 = vld [vmem:[%s822 + $0x4] sm:$0xf]
      %v825 = vld [vmem:[%s822 + $0xc] sm:$0xf]
      %v826 = vld [vmem:[%s822 + $0x10] sm:$0xf]
      %v827 = vld [vmem:[%s822 + $0x18] sm:$0xf]
      %v828 = vld [vmem:[%s822 + $0x1c] sm:$0xf]
      %v829 = vld [vmem:[%s822 + $0x24] sm:$0xf]
      %v830 = vld [vmem:[%s822 + $0x28] sm:$0xf]
      %v831 = vld [vmem:[%s822 + $0x30] sm:$0xf]
      %v832 = vld [vmem:[%s822 + $0x34] sm:$0xf]
      %v833 = vld [vmem:[%s822 + $0x3c] sm:$0xf]
      %v834 = vld [vmem:[%s822 + $0x40] sm:$0xf]
      %v835 = vld [vmem:[%s822 + $0x48] sm:$0xf]
      %v836 = vld [vmem:[%s822 + $0x4c] sm:$0xf]
      %v837 = vld [vmem:[%s822 + $0x54] sm:$0xf]
      %v838 = vld [vmem:[%s822 + $0x58] sm:$0xf]
      %v839 = vld [vmem:[%s822 + $0x8] sm:$0x1]
      %v840 = vld [vmem:[%s822 + $0x14] sm:$0x1]
      %v841 = vld [vmem:[%s822 + $0x20] sm:$0x1]
      %v842 = vld [vmem:[%s822 + $0x2c] sm:$0x1]
      %v843 = vld [vmem:[%s822 + $0x38] sm:$0x1]
      %v844 = vld [vmem:[%s822 + $0x44] sm:$0x1]
      %v845 = vld [vmem:[%s822 + $0x50] sm:$0x1]
      %v846 = vld [vmem:[%s822 + $0x5c] sm:$0x1]
      %v848 = vshrl.u32 %v823, 16
      %v850 = vrot.slane %v848, 4
      %v851 = vshll.u32 %v823, 16
      %v853 = vrot.slane %v851, 5
      %v854 = vor.u32 %v850, %v853
      %v855 = vrot.slane %v854, 4
      %v857 = vshll.u32 %v824, 16
      %v859 = vrot.slane %v857, 5
      %v860 = vsel %vm227, %v855, %v859
      %v861 = vshrl.u32 %v824, 16
      %v863 = vrot.slane %v861, 4
      %v864 = vor.u32 %v863, %v859
      %v865 = vrot.slane %v864, 4
      %v867 = vshll.u32 %v839, 16
      %v869 = vrot.slane %v867, 5
      %v870 = vsel %vm227, %v865, %v869
      %v872 = vshrl.u32 %v825, 16
      %v874 = vrot.slane %v872, 4
      %v875 = vshll.u32 %v825, 16
      %v877 = vrot.slane %v875, 5
      %v878 = vor.u32 %v874, %v877
      %v879 = vrot.slane %v878, 4
      %v881 = vshll.u32 %v826, 16
      %v883 = vrot.slane %v881, 5
      %v884 = vsel %vm227, %v879, %v883
      %v885 = vshrl.u32 %v826, 16
      %v887 = vrot.slane %v885, 4
      %v888 = vor.u32 %v887, %v883
      %v889 = vrot.slane %v888, 4
      %v891 = vshll.u32 %v840, 16
      %v893 = vrot.slane %v891, 5
      %v894 = vsel %vm227, %v889, %v893
      %v896 = vshrl.u32 %v827, 16
      %v898 = vrot.slane %v896, 4
      %v899 = vshll.u32 %v827, 16
      %v901 = vrot.slane %v899, 5
      %v902 = vor.u32 %v898, %v901
      %v903 = vrot.slane %v902, 4
      %v905 = vshll.u32 %v828, 16
      %v907 = vrot.slane %v905, 5
      %v908 = vsel %vm227, %v903, %v907
      %v909 = vshrl.u32 %v828, 16
      %v911 = vrot.slane %v909, 4
      %v912 = vor.u32 %v911, %v907
      %v913 = vrot.slane %v912, 4
      %v915 = vshll.u32 %v841, 16
      %v917 = vrot.slane %v915, 5
      %v918 = vsel %vm227, %v913, %v917
      %v920 = vshrl.u32 %v829, 16
      %v922 = vrot.slane %v920, 4
      %v923 = vshll.u32 %v829, 16
      %v925 = vrot.slane %v923, 5
      %v926 = vor.u32 %v922, %v925
      %v927 = vrot.slane %v926, 4
      %v929 = vshll.u32 %v830, 16
      %v931 = vrot.slane %v929, 5
      %v932 = vsel %vm227, %v927, %v931
      %v933 = vshrl.u32 %v830, 16
      %v935 = vrot.slane %v933, 4
      %v936 = vor.u32 %v935, %v931
      %v937 = vrot.slane %v936, 4
      %v939 = vshll.u32 %v842, 16
      %v941 = vrot.slane %v939, 5
      %v942 = vsel %vm227, %v937, %v941
      %v944 = vshrl.u32 %v831, 16
      %v946 = vrot.slane %v944, 4
      %v947 = vshll.u32 %v831, 16
      %v949 = vrot.slane %v947, 5
      %v950 = vor.u32 %v946, %v949
      %v951 = vrot.slane %v950, 4
      %v953 = vshll.u32 %v832, 16
      %v955 = vrot.slane %v953, 5
      %v956 = vsel %vm227, %v951, %v955
      %v957 = vshrl.u32 %v832, 16
      %v959 = vrot.slane %v957, 4
      %v960 = vor.u32 %v959, %v955
      %v961 = vrot.slane %v960, 4
      %v963 = vshll.u32 %v843, 16
      %v965 = vrot.slane %v963, 5
      %v966 = vsel %vm227, %v961, %v965
      %v968 = vshrl.u32 %v833, 16
      %v970 = vrot.slane %v968, 4
      %v971 = vshll.u32 %v833, 16
      %v973 = vrot.slane %v971, 5
      %v974 = vor.u32 %v970, %v973
      %v975 = vrot.slane %v974, 4
      %v977 = vshll.u32 %v834, 16
      %v979 = vrot.slane %v977, 5
      %v980 = vsel %vm227, %v975, %v979
      %v981 = vshrl.u32 %v834, 16
      %v983 = vrot.slane %v981, 4
      %v984 = vor.u32 %v983, %v979
      %v985 = vrot.slane %v984, 4
      %v987 = vshll.u32 %v844, 16
      %v989 = vrot.slane %v987, 5
      %v990 = vsel %vm227, %v985, %v989
      %v992 = vshrl.u32 %v835, 16
      %v994 = vrot.slane %v992, 4
      %v995 = vshll.u32 %v835, 16
      %v997 = vrot.slane %v995, 5
      %v998 = vor.u32 %v994, %v997
      %v999 = vrot.slane %v998, 4
      %v1001 = vshll.u32 %v836, 16
      %v1003 = vrot.slane %v1001, 5
      %v1004 = vsel %vm227, %v999, %v1003
      %v1005 = vshrl.u32 %v836, 16
      %v1007 = vrot.slane %v1005, 4
      %v1008 = vor.u32 %v1007, %v1003
      %v1009 = vrot.slane %v1008, 4
      %v1011 = vshll.u32 %v845, 16
      %v1013 = vrot.slane %v1011, 5
      %v1014 = vsel %vm227, %v1009, %v1013
      %v1016 = vshrl.u32 %v837, 16
      %v1018 = vrot.slane %v1016, 4
      %v1019 = vshll.u32 %v837, 16
      %v1021 = vrot.slane %v1019, 5
      %v1022 = vor.u32 %v1018, %v1021
      %v1023 = vrot.slane %v1022, 4
      %v1025 = vshll.u32 %v838, 16
      %v1027 = vrot.slane %v1025, 5
      %v1028 = vsel %vm227, %v1023, %v1027
      %v1029 = vshrl.u32 %v838, 16
      %v1031 = vrot.slane %v1029, 4
      %v1032 = vor.u32 %v1031, %v1027
      %v1033 = vrot.slane %v1032, 4
      %v1035 = vshll.u32 %v846, 16
      %v1037 = vrot.slane %v1035, 5
      %v1038 = vsel %vm227, %v1033, %v1037
      %v1039 = vld [vmem:[%s822] sm:$0xe]
      %v1040 = vld [vmem:[%s822 + $0xc] sm:$0xe]
      %v1041 = vld [vmem:[%s822 + $0x18] sm:$0xe]
      %v1042 = vld [vmem:[%s822 + $0x24] sm:$0xe]
      %v1043 = vld [vmem:[%s822 + $0x30] sm:$0xe]
      %v1044 = vld [vmem:[%s822 + $0x3c] sm:$0xe]
      %v1045 = vld [vmem:[%s822 + $0x48] sm:$0xe]
      %v1046 = vld [vmem:[%s822 + $0x54] sm:$0xe]
      %v1071 = vrot.slane %v1039, 5
      %v1072 = vrot.slane %v1071, 4
      %v1073 = vrot.slane %v824, 5
      %v1074 = vsel %vm454, %v1072, %v1073
      %v1075 = vrot.slane %v1073, 4
      %v1076 = vrot.slane %v839, 5
      %v1077 = vsel %vm454, %v1075, %v1076
      %v1078 = vrot.slane %v1040, 5
      %v1079 = vrot.slane %v1078, 4
      %v1080 = vrot.slane %v826, 5
      %v1081 = vsel %vm454, %v1079, %v1080
      %v1082 = vrot.slane %v1080, 4
      %v1083 = vrot.slane %v840, 5
      %v1084 = vsel %vm454, %v1082, %v1083
      %v1085 = vrot.slane %v1041, 5
      %v1086 = vrot.slane %v1085, 4
      %v1087 = vrot.slane %v828, 5
      %v1088 = vsel %vm454, %v1086, %v1087
      %v1089 = vrot.slane %v1087, 4
      %v1090 = vrot.slane %v841, 5
      %v1091 = vsel %vm454, %v1089, %v1090
      %v1092 = vrot.slane %v1042, 5
      %v1093 = vrot.slane %v1092, 4
      %v1094 = vrot.slane %v830, 5
      %v1095 = vsel %vm454, %v1093, %v1094
      %v1096 = vrot.slane %v1094, 4
      %v1097 = vrot.slane %v842, 5
      %v1098 = vsel %vm454, %v1096, %v1097
      %v1099 = vrot.slane %v1043, 5
      %v1100 = vrot.slane %v1099, 4
      %v1101 = vrot.slane %v832, 5
      %v1102 = vsel %vm454, %v1100, %v1101
      %v1103 = vrot.slane %v1101, 4
      %v1104 = vrot.slane %v843, 5
      %v1105 = vsel %vm454, %v1103, %v1104
      %v1106 = vrot.slane %v1044, 5
      %v1107 = vrot.slane %v1106, 4
      %v1108 = vrot.slane %v834, 5
      %v1109 = vsel %vm454, %v1107, %v1108
      %v1110 = vrot.slane %v1108, 4
      %v1111 = vrot.slane %v844, 5
      %v1112 = vsel %vm454, %v1110, %v1111
      %v1113 = vrot.slane %v1045, 5
      %v1114 = vrot.slane %v1113, 4
      %v1115 = vrot.slane %v836, 5
      %v1116 = vsel %vm454, %v1114, %v1115
      %v1117 = vrot.slane %v1115, 4
      %v1118 = vrot.slane %v845, 5
      %v1119 = vsel %vm454, %v1117, %v1118
      %v1120 = vrot.slane %v1046, 5
      %v1121 = vrot.slane %v1120, 4
      %v1122 = vrot.slane %v838, 5
      %v1123 = vsel %vm454, %v1121, %v1122
      %v1124 = vrot.slane %v1122, 4
      %v1125 = vrot.slane %v846, 5
      %v1126 = vsel %vm454, %v1124, %v1125
      %v1135 = vunpack.c.l.b16 %v201
      %v1136 = vunpack.c.l.b16 %v202
      %v1137 = vunpack.c.l.b16 %v203
      %v1138 = vunpack.c.l.b16 %v204
      %v1139 = vunpack.c.l.b16 %v205
      %v1140 = vunpack.c.l.b16 %v206
      %v1141 = vunpack.c.l.b16 %v207
      %v1142 = vunpack.c.l.b16 %v208
      %v1143 = vunpack.c.l.b16 %v209
      %v1144 = vunpack.c.l.b16 %v210
      %v1145 = vunpack.c.l.b16 %v211
      %v1146 = vunpack.c.l.b16 %v212
      %v1147 = vunpack.c.l.b16 %v213
      %v1148 = vunpack.c.l.b16 %v214
      %v1149 = vunpack.c.l.b16 %v215
      %v1150 = vunpack.c.l.b16 %v216
      %v1151 = vpack.c.b16 %v1136, %v1135
      %v1152 = vpack.c.b16 %v1138, %v1137
      %v1153 = vpack.c.b16 %v1140, %v1139
      %v1154 = vpack.c.b16 %v1142, %v1141
      %v1155 = vpack.c.b16 %v1144, %v1143
      %v1156 = vpack.c.b16 %v1146, %v1145
      %v1157 = vpack.c.b16 %v1148, %v1147
      %v1158 = vpack.c.b16 %v1150, %v1149
      %v1159 = vunpack.c.l.b16 %v241
      %v1160 = vunpack.c.l.b16 %v251
      %v1161 = vunpack.c.l.b16 %v265
      %v1162 = vunpack.c.l.b16 %v275
      %v1163 = vunpack.c.l.b16 %v289
      %v1164 = vunpack.c.l.b16 %v299
      %v1165 = vunpack.c.l.b16 %v313
      %v1166 = vunpack.c.l.b16 %v323
      %v1167 = vunpack.c.l.b16 %v337
      %v1168 = vunpack.c.l.b16 %v347
      %v1169 = vunpack.c.l.b16 %v361
      %v1170 = vunpack.c.l.b16 %v371
      %v1171 = vunpack.c.l.b16 %v385
      %v1172 = vunpack.c.l.b16 %v395
      %v1173 = vunpack.c.l.b16 %v409
      %v1174 = vunpack.c.l.b16 %v419
      %v1175 = vpack.c.b16 %v1160, %v1159
      %v1176 = vpack.c.b16 %v1162, %v1161
      %v1177 = vpack.c.b16 %v1164, %v1163
      %v1178 = vpack.c.b16 %v1166, %v1165
      %v1179 = vpack.c.b16 %v1168, %v1167
      %v1180 = vpack.c.b16 %v1170, %v1169
      %v1181 = vpack.c.b16 %v1172, %v1171
      %v1182 = vpack.c.b16 %v1174, %v1173
      %1183 = vrot.lane.b32.xlu0 %v1175, 16
      %v1184 = vpop.permute.xlu0 %1183
      %1185 = vrot.lane.b32.xlu0 %v1176, 16
      %v1186 = vpop.permute.xlu0 %1185
      %1187 = vrot.lane.b32.xlu0 %v1177, 16
      %v1188 = vpop.permute.xlu0 %1187
      %1189 = vrot.lane.b32.xlu0 %v1178, 16
      %v1190 = vpop.permute.xlu0 %1189
      %1191 = vrot.lane.b32.xlu0 %v1179, 16
      %v1192 = vpop.permute.xlu0 %1191
      %1193 = vrot.lane.b32.xlu0 %v1180, 16
      %v1194 = vpop.permute.xlu0 %1193
      %1195 = vrot.lane.b32.xlu0 %v1181, 16
      %v1196 = vpop.permute.xlu0 %1195
      %1197 = vrot.lane.b32.xlu0 %v1182, 16
      %v1198 = vpop.permute.xlu0 %1197
      %v1199 = vunpack.c.l.b16 %v458
      %v1200 = vunpack.c.l.b16 %v461
      %v1201 = vunpack.c.l.b16 %v465
      %v1202 = vunpack.c.l.b16 %v468
      %v1203 = vunpack.c.l.b16 %v472
      %v1204 = vunpack.c.l.b16 %v475
      %v1205 = vunpack.c.l.b16 %v479
      %v1206 = vunpack.c.l.b16 %v482
      %v1207 = vunpack.c.l.b16 %v486
      %v1208 = vunpack.c.l.b16 %v489
      %v1209 = vunpack.c.l.b16 %v493
      %v1210 = vunpack.c.l.b16 %v496
      %v1211 = vunpack.c.l.b16 %v500
      %v1212 = vunpack.c.l.b16 %v503
      %v1213 = vunpack.c.l.b16 %v507
      %v1214 = vunpack.c.l.b16 %v510
      %v1215 = vpack.c.b16 %v1200, %v1199
      %v1216 = vpack.c.b16 %v1202, %v1201
      %v1217 = vpack.c.b16 %v1204, %v1203
      %v1218 = vpack.c.b16 %v1206, %v1205
      %v1219 = vpack.c.b16 %v1208, %v1207
      %v1220 = vpack.c.b16 %v1210, %v1209
      %v1221 = vpack.c.b16 %v1212, %v1211
      %v1222 = vpack.c.b16 %v1214, %v1213
      %1223 = vrot.lane.b32.xlu0 %v1215, 32
      %v1224 = vpop.permute.xlu0 %1223
      %1225 = vrot.lane.b32.xlu0 %v1216, 32
      %v1226 = vpop.permute.xlu0 %1225
      %1227 = vrot.lane.b32.xlu0 %v1217, 32
      %v1228 = vpop.permute.xlu0 %1227
      %1229 = vrot.lane.b32.xlu0 %v1218, 32
      %v1230 = vpop.permute.xlu0 %1229
      %1231 = vrot.lane.b32.xlu0 %v1219, 32
      %v1232 = vpop.permute.xlu0 %1231
      %1233 = vrot.lane.b32.xlu0 %v1220, 32
      %v1234 = vpop.permute.xlu0 %1233
      %1235 = vrot.lane.b32.xlu0 %v1221, 32
      %v1236 = vpop.permute.xlu0 %1235
      %1237 = vrot.lane.b32.xlu0 %v1222, 32
      %v1238 = vpop.permute.xlu0 %1237
      %v1247 = vunpack.c.l.b16 %v515
      %v1248 = vunpack.c.l.b16 %v516
      %v1249 = vunpack.c.l.b16 %v517
      %v1250 = vunpack.c.l.b16 %v518
      %v1251 = vunpack.c.l.b16 %v519
      %v1252 = vunpack.c.l.b16 %v520
      %v1253 = vunpack.c.l.b16 %v521
      %v1254 = vunpack.c.l.b16 %v522
      %v1255 = vunpack.c.l.b16 %v523
      %v1256 = vunpack.c.l.b16 %v524
      %v1257 = vunpack.c.l.b16 %v525
      %v1258 = vunpack.c.l.b16 %v526
      %v1259 = vunpack.c.l.b16 %v527
      %v1260 = vunpack.c.l.b16 %v528
      %v1261 = vunpack.c.l.b16 %v529
      %v1262 = vunpack.c.l.b16 %v530
      %v1263 = vpack.c.b16 %v1248, %v1247
      %v1264 = vpack.c.b16 %v1250, %v1249
      %v1265 = vpack.c.b16 %v1252, %v1251
      %v1266 = vpack.c.b16 %v1254, %v1253
      %v1267 = vpack.c.b16 %v1256, %v1255
      %v1268 = vpack.c.b16 %v1258, %v1257
      %v1269 = vpack.c.b16 %v1260, %v1259
      %v1270 = vpack.c.b16 %v1262, %v1261
      %1271 = vrot.lane.b32.xlu0 %v1263, 48
      %v1272 = vpop.permute.xlu0 %1271
      %1273 = vrot.lane.b32.xlu0 %v1264, 48
      %v1274 = vpop.permute.xlu0 %1273
      %1275 = vrot.lane.b32.xlu0 %v1265, 48
      %v1276 = vpop.permute.xlu0 %1275
      %1277 = vrot.lane.b32.xlu0 %v1266, 48
      %v1278 = vpop.permute.xlu0 %1277
      %1279 = vrot.lane.b32.xlu0 %v1267, 48
      %v1280 = vpop.permute.xlu0 %1279
      %1281 = vrot.lane.b32.xlu0 %v1268, 48
      %v1282 = vpop.permute.xlu0 %1281
      %1283 = vrot.lane.b32.xlu0 %v1269, 48
      %v1284 = vpop.permute.xlu0 %1283
      %1285 = vrot.lane.b32.xlu0 %v1270, 48
      %v1286 = vpop.permute.xlu0 %1285
      %v1287 = vunpack.c.l.b16 %v552
      %v1288 = vunpack.c.l.b16 %v562
      %v1289 = vunpack.c.l.b16 %v576
      %v1290 = vunpack.c.l.b16 %v586
      %v1291 = vunpack.c.l.b16 %v600
      %v1292 = vunpack.c.l.b16 %v610
      %v1293 = vunpack.c.l.b16 %v624
      %v1294 = vunpack.c.l.b16 %v634
      %v1295 = vunpack.c.l.b16 %v648
      %v1296 = vunpack.c.l.b16 %v658
      %v1297 = vunpack.c.l.b16 %v672
      %v1298 = vunpack.c.l.b16 %v682
      %v1299 = vunpack.c.l.b16 %v696
      %v1300 = vunpack.c.l.b16 %v706
      %v1301 = vunpack.c.l.b16 %v720
      %v1302 = vunpack.c.l.b16 %v730
      %v1303 = vpack.c.b16 %v1288, %v1287
      %v1304 = vpack.c.b16 %v1290, %v1289
      %v1305 = vpack.c.b16 %v1292, %v1291
      %v1306 = vpack.c.b16 %v1294, %v1293
      %v1307 = vpack.c.b16 %v1296, %v1295
      %v1308 = vpack.c.b16 %v1298, %v1297
      %v1309 = vpack.c.b16 %v1300, %v1299
      %v1310 = vpack.c.b16 %v1302, %v1301
      %1311 = vrot.lane.b32.xlu0 %v1303, 64
      %v1312 = vpop.permute.xlu0 %1311
      %1313 = vrot.lane.b32.xlu0 %v1304, 64
      %v1314 = vpop.permute.xlu0 %1313
      %1315 = vrot.lane.b32.xlu0 %v1305, 64
      %v1316 = vpop.permute.xlu0 %1315
      %1317 = vrot.lane.b32.xlu0 %v1306, 64
      %v1318 = vpop.permute.xlu0 %1317
      %1319 = vrot.lane.b32.xlu0 %v1307, 64
      %v1320 = vpop.permute.xlu0 %1319
      %1321 = vrot.lane.b32.xlu0 %v1308, 64
      %v1322 = vpop.permute.xlu0 %1321
      %1323 = vrot.lane.b32.xlu0 %v1309, 64
      %v1324 = vpop.permute.xlu0 %1323
      %1325 = vrot.lane.b32.xlu0 %v1310, 64
      %v1326 = vpop.permute.xlu0 %1325
      %v1327 = vunpack.c.l.b16 %v766
      %v1328 = vunpack.c.l.b16 %v769
      %v1329 = vunpack.c.l.b16 %v773
      %v1330 = vunpack.c.l.b16 %v776
      %v1331 = vunpack.c.l.b16 %v780
      %v1332 = vunpack.c.l.b16 %v783
      %v1333 = vunpack.c.l.b16 %v787
      %v1334 = vunpack.c.l.b16 %v790
      %v1335 = vunpack.c.l.b16 %v794
      %v1336 = vunpack.c.l.b16 %v797
      %v1337 = vunpack.c.l.b16 %v801
      %v1338 = vunpack.c.l.b16 %v804
      %v1339 = vunpack.c.l.b16 %v808
      %v1340 = vunpack.c.l.b16 %v811
      %v1341 = vunpack.c.l.b16 %v815
      %v1342 = vunpack.c.l.b16 %v818
      %v1343 = vpack.c.b16 %v1328, %v1327
      %v1344 = vpack.c.b16 %v1330, %v1329
      %v1345 = vpack.c.b16 %v1332, %v1331
      %v1346 = vpack.c.b16 %v1334, %v1333
      %v1347 = vpack.c.b16 %v1336, %v1335
      %v1348 = vpack.c.b16 %v1338, %v1337
      %v1349 = vpack.c.b16 %v1340, %v1339
      %v1350 = vpack.c.b16 %v1342, %v1341
      %1351 = vrot.lane.b32.xlu0 %v1343, 80
      %v1352 = vpop.permute.xlu0 %1351
      %1353 = vrot.lane.b32.xlu0 %v1344, 80
      %v1354 = vpop.permute.xlu0 %1353
      %1355 = vrot.lane.b32.xlu0 %v1345, 80
      %v1356 = vpop.permute.xlu0 %1355
      %1357 = vrot.lane.b32.xlu0 %v1346, 80
      %v1358 = vpop.permute.xlu0 %1357
      %1359 = vrot.lane.b32.xlu0 %v1347, 80
      %v1360 = vpop.permute.xlu0 %1359
      %1361 = vrot.lane.b32.xlu0 %v1348, 80
      %v1362 = vpop.permute.xlu0 %1361
      %1363 = vrot.lane.b32.xlu0 %v1349, 80
      %v1364 = vpop.permute.xlu0 %1363
      %1365 = vrot.lane.b32.xlu0 %v1350, 80
      %v1366 = vpop.permute.xlu0 %1365
      %v1375 = vunpack.c.l.b16 %v823
      %v1376 = vunpack.c.l.b16 %v824
      %v1377 = vunpack.c.l.b16 %v825
      %v1378 = vunpack.c.l.b16 %v826
      %v1379 = vunpack.c.l.b16 %v827
      %v1380 = vunpack.c.l.b16 %v828
      %v1381 = vunpack.c.l.b16 %v829
      %v1382 = vunpack.c.l.b16 %v830
      %v1383 = vunpack.c.l.b16 %v831
      %v1384 = vunpack.c.l.b16 %v832
      %v1385 = vunpack.c.l.b16 %v833
      %v1386 = vunpack.c.l.b16 %v834
      %v1387 = vunpack.c.l.b16 %v835
      %v1388 = vunpack.c.l.b16 %v836
      %v1389 = vunpack.c.l.b16 %v837
      %v1390 = vunpack.c.l.b16 %v838
      %v1391 = vpack.c.b16 %v1376, %v1375
      %v1392 = vpack.c.b16 %v1378, %v1377
      %v1393 = vpack.c.b16 %v1380, %v1379
      %v1394 = vpack.c.b16 %v1382, %v1381
      %v1395 = vpack.c.b16 %v1384, %v1383
      %v1396 = vpack.c.b16 %v1386, %v1385
      %v1397 = vpack.c.b16 %v1388, %v1387
      %v1398 = vpack.c.b16 %v1390, %v1389
      %1399 = vrot.lane.b32.xlu0 %v1391, 96
      %v1400 = vpop.permute.xlu0 %1399
      %1401 = vrot.lane.b32.xlu0 %v1392, 96
      %v1402 = vpop.permute.xlu0 %1401
      %1403 = vrot.lane.b32.xlu0 %v1393, 96
      %v1404 = vpop.permute.xlu0 %1403
      %1405 = vrot.lane.b32.xlu0 %v1394, 96
      %v1406 = vpop.permute.xlu0 %1405
      %1407 = vrot.lane.b32.xlu0 %v1395, 96
      %v1408 = vpop.permute.xlu0 %1407
      %1409 = vrot.lane.b32.xlu0 %v1396, 96
      %v1410 = vpop.permute.xlu0 %1409
      %1411 = vrot.lane.b32.xlu0 %v1397, 96
      %v1412 = vpop.permute.xlu0 %1411
      %1413 = vrot.lane.b32.xlu0 %v1398, 96
      %v1414 = vpop.permute.xlu0 %1413
      %v1415 = vunpack.c.l.b16 %v860
      %v1416 = vunpack.c.l.b16 %v870
      %v1417 = vunpack.c.l.b16 %v884
      %v1418 = vunpack.c.l.b16 %v894
      %v1419 = vunpack.c.l.b16 %v908
      %v1420 = vunpack.c.l.b16 %v918
      %v1421 = vunpack.c.l.b16 %v932
      %v1422 = vunpack.c.l.b16 %v942
      %v1423 = vunpack.c.l.b16 %v956
      %v1424 = vunpack.c.l.b16 %v966
      %v1425 = vunpack.c.l.b16 %v980
      %v1426 = vunpack.c.l.b16 %v990
      %v1427 = vunpack.c.l.b16 %v1004
      %v1428 = vunpack.c.l.b16 %v1014
      %v1429 = vunpack.c.l.b16 %v1028
      %v1430 = vunpack.c.l.b16 %v1038
      %v1431 = vpack.c.b16 %v1416, %v1415
      %v1432 = vpack.c.b16 %v1418, %v1417
      %v1433 = vpack.c.b16 %v1420, %v1419
      %v1434 = vpack.c.b16 %v1422, %v1421
      %v1435 = vpack.c.b16 %v1424, %v1423
      %v1436 = vpack.c.b16 %v1426, %v1425
      %v1437 = vpack.c.b16 %v1428, %v1427
      %v1438 = vpack.c.b16 %v1430, %v1429
      %1439 = vrot.lane.b32.xlu0 %v1431, 112
      %v1440 = vpop.permute.xlu0 %1439
      %1441 = vrot.lane.b32.xlu0 %v1432, 112
      %v1442 = vpop.permute.xlu0 %1441
      %1443 = vrot.lane.b32.xlu0 %v1433, 112
      %v1444 = vpop.permute.xlu0 %1443
      %1445 = vrot.lane.b32.xlu0 %v1434, 112
      %v1446 = vpop.permute.xlu0 %1445
      %1447 = vrot.lane.b32.xlu0 %v1435, 112
      %v1448 = vpop.permute.xlu0 %1447
      %1449 = vrot.lane.b32.xlu0 %v1436, 112
      %v1450 = vpop.permute.xlu0 %1449
      %1451 = vrot.lane.b32.xlu0 %v1437, 112
      %v1452 = vpop.permute.xlu0 %1451
      %1453 = vrot.lane.b32.xlu0 %v1438, 112
      %v1454 = vpop.permute.xlu0 %1453
      %v1455 = vunpack.c.l.b16 %v1074
      %v1456 = vunpack.c.l.b16 %v1077
      %v1457 = vunpack.c.l.b16 %v1081
      %v1458 = vunpack.c.l.b16 %v1084
      %v1459 = vunpack.c.l.b16 %v1088
      %v1460 = vunpack.c.l.b16 %v1091
      %v1461 = vunpack.c.l.b16 %v1095
      %v1462 = vunpack.c.l.b16 %v1098
      %v1463 = vunpack.c.l.b16 %v1102
      %v1464 = vunpack.c.l.b16 %v1105
      %v1465 = vunpack.c.l.b16 %v1109
      %v1466 = vunpack.c.l.b16 %v1112
      %v1467 = vunpack.c.l.b16 %v1116
      %v1468 = vunpack.c.l.b16 %v1119
      %v1469 = vunpack.c.l.b16 %v1123
      %v1470 = vunpack.c.l.b16 %v1126
      %v1471 = vpack.c.b16 %v1456, %v1455
      %v1472 = vpack.c.b16 %v1458, %v1457
      %v1473 = vpack.c.b16 %v1460, %v1459
      %v1474 = vpack.c.b16 %v1462, %v1461
      %v1475 = vpack.c.b16 %v1464, %v1463
      %v1476 = vpack.c.b16 %v1466, %v1465
      %v1477 = vpack.c.b16 %v1468, %v1467
      %v1478 = vpack.c.b16 %v1470, %v1469
      %vm1479 = vcmask 130048
      %v1482 = vsel %vm1479, %v1151, %v1184
      %v1485 = vsel %vm1479, %v1152, %v1186
      %v1488 = vsel %vm1479, %v1153, %v1188
      %v1491 = vsel %vm1479, %v1154, %v1190
      %v1494 = vsel %vm1479, %v1155, %v1192
      %v1497 = vsel %vm1479, %v1156, %v1194
      %v1500 = vsel %vm1479, %v1157, %v1196
      %v1503 = vsel %vm1479, %v1158, %v1198
      %vm1504 = vcmask 261120
      %v1506 = vsel %vm1504, %v1482, %v1224
      %v1508 = vsel %vm1504, %v1485, %v1226
      %v1510 = vsel %vm1504, %v1488, %v1228
      %v1512 = vsel %vm1504, %v1491, %v1230
      %v1514 = vsel %vm1504, %v1494, %v1232
      %v1516 = vsel %vm1504, %v1497, %v1234
      %v1518 = vsel %vm1504, %v1500, %v1236
      %v1520 = vsel %vm1504, %v1503, %v1238
      %vm1521 = vcmask 392192
      %v1523 = vsel %vm1521, %v1506, %v1272
      %v1525 = vsel %vm1521, %v1508, %v1274
      %v1527 = vsel %vm1521, %v1510, %v1276
      %v1529 = vsel %vm1521, %v1512, %v1278
      %v1531 = vsel %vm1521, %v1514, %v1280
      %v1533 = vsel %vm1521, %v1516, %v1282
      %v1535 = vsel %vm1521, %v1518, %v1284
      %v1537 = vsel %vm1521, %v1520, %v1286
      %vm1538 = vcmask 523264
      %v1540 = vsel %vm1538, %v1523, %v1312
      %v1542 = vsel %vm1538, %v1525, %v1314
      %v1544 = vsel %vm1538, %v1527, %v1316
      %v1546 = vsel %vm1538, %v1529, %v1318
      %v1548 = vsel %vm1538, %v1531, %v1320
      %v1550 = vsel %vm1538, %v1533, %v1322
      %v1552 = vsel %vm1538, %v1535, %v1324
      %v1554 = vsel %vm1538, %v1537, %v1326
      %vm1555 = vcmask 654336
      %v1557 = vsel %vm1555, %v1540, %v1352
      %v1559 = vsel %vm1555, %v1542, %v1354
      %v1561 = vsel %vm1555, %v1544, %v1356
      %v1563 = vsel %vm1555, %v1546, %v1358
      %v1565 = vsel %vm1555, %v1548, %v1360
      %v1567 = vsel %vm1555, %v1550, %v1362
      %v1569 = vsel %vm1555, %v1552, %v1364
      %v1571 = vsel %vm1555, %v1554, %v1366
      %vm1572 = vcmask 785408
      %v1574 = vsel %vm1572, %v1557, %v1400
      %v1576 = vsel %vm1572, %v1559, %v1402
      %v1578 = vsel %vm1572, %v1561, %v1404
      %v1580 = vsel %vm1572, %v1563, %v1406
      %v1582 = vsel %vm1572, %v1565, %v1408
      %v1584 = vsel %vm1572, %v1567, %v1410
      %v1586 = vsel %vm1572, %v1569, %v1412
      %v1588 = vsel %vm1572, %v1571, %v1414
      %vm1589 = vcmask 916480
      %v1591 = vsel %vm1589, %v1574, %v1440
      %v1594 = vsel %vm1589, %v1576, %v1442
      %v1597 = vsel %vm1589, %v1578, %v1444
      %v1600 = vsel %vm1589, %v1580, %v1446
      %v1603 = vsel %vm1589, %v1582, %v1448
      %v1606 = vsel %vm1589, %v1584, %v1450
      %v1609 = vsel %vm1589, %v1586, %v1452
      %v1612 = vsel %vm1589, %v1588, %v1454
      %v1614 = vld [vmem:[%s1] sm:$0xf]
      %v1615 = vld [vmem:[%s1 + $0x4] sm:$0xf]
      %v1616 = vld [vmem:[%s1 + $0x8] sm:$0xf]
      %v1617 = vld [vmem:[%s1 + $0xc] sm:$0xf]
      %v1618 = vld [vmem:[%s1 + $0x10] sm:$0xf]
      %v1619 = vld [vmem:[%s1 + $0x14] sm:$0xf]
      %v1620 = vld [vmem:[%s1 + $0x18] sm:$0xf]
      %v1621 = vld [vmem:[%s1 + $0x1c] sm:$0xf]
      %v1622 = vld [vmem:[%s1 + $0x20] sm:$0xf]
      %v1623 = vld [vmem:[%s1 + $0x24] sm:$0xf]
      %v1624 = vld [vmem:[%s1 + $0x28] sm:$0xf]
      %v1625 = vld [vmem:[%s1 + $0x2c] sm:$0xf]
      %v1626 = vld [vmem:[%s1 + $0x30] sm:$0xf]
      %v1627 = vld [vmem:[%s1 + $0x34] sm:$0xf]
      %v1628 = vld [vmem:[%s1 + $0x38] sm:$0xf]
      %v1629 = vld [vmem:[%s1 + $0x3c] sm:$0xf]
      %v1630 = vld [vmem:[%s1 + $0x40] sm:$0xf]
      %v1631 = vld [vmem:[%s1 + $0x44] sm:$0xf]
      %v1632 = vld [vmem:[%s2] sm:$0x1]
      %v1634 = vlaneseq
      %v1635 = vshrl.u32 %v1634, 7
      %v1636 = vsub.s32 0, %v1635
      %v1637 = vrot.slane %v1632, %v1636
      %v1657 = vunpack.c.l.b16 %v1614
      %v1658 = vunpack.c.l.b16 %v1615
      %v1659 = vunpack.c.l.b16 %v1616
      %v1660 = vunpack.c.l.b16 %v1617
      %v1661 = vunpack.c.l.b16 %v1618
      %v1662 = vunpack.c.l.b16 %v1619
      %v1663 = vunpack.c.l.b16 %v1620
      %v1664 = vunpack.c.l.b16 %v1621
      %v1665 = vunpack.c.l.b16 %v1622
      %v1666 = vunpack.c.l.b16 %v1623
      %v1667 = vunpack.c.l.b16 %v1624
      %v1668 = vunpack.c.l.b16 %v1625
      %v1669 = vunpack.c.l.b16 %v1626
      %v1670 = vunpack.c.l.b16 %v1627
      %v1671 = vunpack.c.l.b16 %v1628
      %v1672 = vunpack.c.l.b16 %v1629
      %v1673 = vunpack.c.l.b16 %v1630
      %v1674 = vunpack.c.l.b16 %v1631
      %v1675 = vpack.c.b16 %v1658, %v1657
      %v1676 = vpack.c.b16 %v1660, %v1659
      %v1677 = vpack.c.b16 %v1662, %v1661
      %v1678 = vpack.c.b16 %v1664, %v1663
      %v1679 = vpack.c.b16 %v1666, %v1665
      %v1680 = vpack.c.b16 %v1668, %v1667
      %v1681 = vpack.c.b16 %v1670, %v1669
      %v1682 = vpack.c.b16 %v1672, %v1671
      %v1683 = vpack.c.b16 %v1674, %v1673
      %v1694 = vsel %vm1479, %v1471, 0
      %v1697 = vsel %vm1479, %v1472, 0
      %v1700 = vsel %vm1479, %v1473, 0
      %v1703 = vsel %vm1479, %v1474, 0
      %v1706 = vsel %vm1479, %v1475, 0
      %v1709 = vsel %vm1479, %v1476, 0
      %v1712 = vsel %vm1479, %v1477, 0
      %v1715 = vsel %vm1479, %v1478, 0
      %1717 = vmatprep.subr.bf16.mxu0 0
      %1718 = vmatpush1.bf16.msra.mxu0 %v1675
      %1719 = vmatprep.subr.bf16.mxu0 0
      %1720 = vmatpush1.bf16.msra.mxu0 %v1676
      %1721 = vmatprep.subr.bf16.mxu0 0
      %1722 = vmatpush1.bf16.msra.mxu0 %v1677
      %1723 = vmatprep.subr.bf16.mxu0 0
      %1724 = vmatpush1.bf16.msra.mxu0 %v1678
      %1725 = vmatprep.subr.bf16.mxu0 0
      %1726 = vmatpush1.bf16.msra.mxu0 %v1679
      %1727 = vmatprep.subr.bf16.mxu0 0
      %1728 = vmatpush1.bf16.msra.mxu0 %v1680
      %1729 = vmatprep.subr.bf16.mxu0 0
      %1730 = vmatpush1.bf16.msra.mxu0 %v1681
      %1731 = vmatprep.subr.bf16.mxu0 0
      %1732 = vmatpush1.bf16.msra.mxu0 %v1682
      %1733 = vmatprep.subr.bf16.mxu0 0
      %1734 = vmatpush1.bf16.msra.mxu0 %v1683
      %1735 = vmatprep.subr.bf16.mxu0 0
      %1736 = vmatpush1.bf16.msra.mxu0 0
      %1737 = vmatprep.subr.bf16.mxu0 0
      %1738 = vmatpush1.bf16.msra.mxu0 0
      %1739 = vmatprep.subr.bf16.mxu0 0
      %1740 = vmatpush1.bf16.msra.mxu0 0
      %1741 = vmatprep.subr.bf16.mxu0 0
      %1742 = vmatpush1.bf16.msra.mxu0 0
      %1743 = vmatprep.subr.bf16.mxu0 0
      %1744 = vmatpush1.bf16.msra.mxu0 0
      %1745 = vmatprep.subr.bf16.mxu0 0
      %1746 = vmatpush1.bf16.msra.mxu0 0
      %1747 = vmatprep.subr.bf16.mxu0 0
      %1748 = vmatpush1.bf16.msra.mxu0 0
      %1749 = vmatprep.mubr.bf16.mxu0 %v1694
      %1750 = vmatmul.mubr.bf16.gmra.mrb[0].mxu0 %v1591
      %v1751 = vpop.f32.mrb[0].mxu0
      %v1752 = vadd.f32 %v1637, %v1751
      %v1753 = vpop.f32.mrb[0].mxu0
      %v1754 = vpop.f32.mrb[0].mxu0
      %v1755 = vadd.f32 %v1637, %v1754
      %v1756 = vpop.f32.mrb[0].mxu0
      %1757 = vmatprep.mubr.bf16.mxu0 %v1697
      %1758 = vmatmul.mubr.bf16.gmra.mrb[0].mxu0 %v1594
      %v1759 = vpop.f32.mrb[0].mxu0
      %v1760 = vadd.f32 %v1637, %v1759
      %v1761 = vpop.f32.mrb[0].mxu0
      %v1762 = vpop.f32.mrb[0].mxu0
      %v1763 = vadd.f32 %v1637, %v1762
      %v1764 = vpop.f32.mrb[0].mxu0
      %1765 = vmatprep.mubr.bf16.mxu0 %v1700
      %1766 = vmatmul.mubr.bf16.gmra.mrb[0].mxu0 %v1597
      %v1767 = vpop.f32.mrb[0].mxu0
      %v1768 = vadd.f32 %v1637, %v1767
      %v1769 = vpop.f32.mrb[0].mxu0
      %v1770 = vpop.f32.mrb[0].mxu0
      %v1771 = vadd.f32 %v1637, %v1770
      %v1772 = vpop.f32.mrb[0].mxu0
      %1773 = vmatprep.mubr.bf16.mxu0 %v1703
      %1774 = vmatmul.mubr.bf16.gmra.mrb[0].mxu0 %v1600
      %v1775 = vpop.f32.mrb[0].mxu0
      %v1776 = vadd.f32 %v1637, %v1775
      %v1777 = vpop.f32.mrb[0].mxu0
      %v1778 = vpop.f32.mrb[0].mxu0
      %v1779 = vadd.f32 %v1637, %v1778
      %v1780 = vpop.f32.mrb[0].mxu0
      %1781 = vmatprep.mubr.bf16.mxu0 %v1706
      %1782 = vmatmul.mubr.bf16.gmra.mrb[0].mxu0 %v1603
      %v1783 = vpop.f32.mrb[0].mxu0
      %v1784 = vadd.f32 %v1637, %v1783
      %v1785 = vpop.f32.mrb[0].mxu0
      %v1786 = vpop.f32.mrb[0].mxu0
      %v1787 = vadd.f32 %v1637, %v1786
      %v1788 = vpop.f32.mrb[0].mxu0
      %1789 = vmatprep.mubr.bf16.mxu0 %v1709
      %1790 = vmatmul.mubr.bf16.gmra.mrb[0].mxu0 %v1606
      %v1791 = vpop.f32.mrb[0].mxu0
      %v1792 = vadd.f32 %v1637, %v1791
      %v1793 = vpop.f32.mrb[0].mxu0
      %v1794 = vpop.f32.mrb[0].mxu0
      %v1795 = vadd.f32 %v1637, %v1794
      %v1796 = vpop.f32.mrb[0].mxu0
      %1797 = vmatprep.mubr.bf16.mxu0 %v1712
      %1798 = vmatmul.mubr.bf16.gmra.mrb[0].mxu0 %v1609
      %v1799 = vpop.f32.mrb[0].mxu0
      %v1800 = vadd.f32 %v1637, %v1799
      %v1801 = vpop.f32.mrb[0].mxu0
      %v1802 = vpop.f32.mrb[0].mxu0
      %v1803 = vadd.f32 %v1637, %v1802
      %v1804 = vpop.f32.mrb[0].mxu0
      %1805 = vmatprep.mubr.bf16.mxu0 %v1715
      %1806 = vmatmul.mubr.bf16.gmra.mrb[0].mxu0 %v1612
      %v1807 = vpop.f32.mrb[0].mxu0
      %v1808 = vadd.f32 %v1637, %v1807
      %v1809 = vpop.f32.mrb[0].mxu0
      %v1810 = vpop.f32.mrb[0].mxu0
      %v1811 = vadd.f32 %v1637, %v1810
      %v1812 = vpop.f32.mrb[0].mxu0
      %1813 = vdwg.mxu0
      %v1814 = vmax.f32 %v1752, 0.0
      %v1815 = vmax.f32 %v1755, 0.0
      %v1816 = vmax.f32 %v1760, 0.0
      %v1817 = vmax.f32 %v1763, 0.0
      %v1818 = vmax.f32 %v1768, 0.0
      %v1819 = vmax.f32 %v1771, 0.0
      %v1820 = vmax.f32 %v1776, 0.0
      %v1821 = vmax.f32 %v1779, 0.0
      %v1822 = vmax.f32 %v1784, 0.0
      %v1823 = vmax.f32 %v1787, 0.0
      %v1824 = vmax.f32 %v1792, 0.0
      %v1825 = vmax.f32 %v1795, 0.0
      %v1826 = vmax.f32 %v1800, 0.0
      %v1827 = vmax.f32 %v1803, 0.0
      %v1828 = vmax.f32 %v1808, 0.0
      %v1829 = vmax.f32 %v1811, 0.0
      %v1830 = vpack.c.bf16 %v1815, %v1814
      %v1831 = vpack.c.bf16 %v1817, %v1816
      %v1832 = vpack.c.bf16 %v1819, %v1818
      %v1833 = vpack.c.bf16 %v1821, %v1820
      %v1834 = vpack.c.bf16 %v1823, %v1822
      %v1835 = vpack.c.bf16 %v1825, %v1824
      %v1836 = vpack.c.bf16 %v1827, %v1826
      %v1837 = vpack.c.bf16 %v1829, %v1828
      %v1846 = vunpack.c.l.b16 %v1830
      %v1847 = vunpack.c.h.b16 %v1830
      %v1848 = vunpack.c.l.b16 %v1831
      %v1849 = vunpack.c.h.b16 %v1831
      %v1850 = vunpack.c.l.b16 %v1832
      %v1851 = vunpack.c.h.b16 %v1832
      %v1852 = vunpack.c.l.b16 %v1833
      %v1853 = vunpack.c.h.b16 %v1833
      %v1854 = vunpack.c.l.b16 %v1834
      %v1855 = vunpack.c.h.b16 %v1834
      %v1856 = vunpack.c.l.b16 %v1835
      %v1857 = vunpack.c.h.b16 %v1835
      %v1858 = vunpack.c.l.b16 %v1836
      %v1859 = vunpack.c.h.b16 %v1836
      %v1860 = vunpack.c.l.b16 %v1837
      %v1861 = vunpack.c.h.b16 %v1837
      %v1862 = vpack.c.b16 %v1846, %v1846
      %v1863 = vpack.c.b16 %v1847, %v1847
      %v1864 = vpack.c.b16 %v1848, %v1848
      %v1865 = vpack.c.b16 %v1849, %v1849
      %v1866 = vpack.c.b16 %v1850, %v1850
      %v1867 = vpack.c.b16 %v1851, %v1851
      %v1868 = vpack.c.b16 %v1852, %v1852
      %v1869 = vpack.c.b16 %v1853, %v1853
      %v1870 = vpack.c.b16 %v1854, %v1854
      %v1871 = vpack.c.b16 %v1855, %v1855
      %v1872 = vpack.c.b16 %v1856, %v1856
      %v1873 = vpack.c.b16 %v1857, %v1857
      %v1874 = vpack.c.b16 %v1858, %v1858
      %v1875 = vpack.c.b16 %v1859, %v1859
      %v1876 = vpack.c.b16 %v1860, %v1860
      %v1877 = vpack.c.b16 %v1861, %v1861
      %1894 = vst [vmem:[%s194] sm:$0xf] %v1862
      %1895 = vst [vmem:[%s194 + $0x4] sm:$0xf] %v1863
      %1896 = vst [vmem:[%s194 + $0x8] sm:$0xf] %v1864
      %1897 = vst [vmem:[%s194 + $0xc] sm:$0xf] %v1865
      %1898 = vst [vmem:[%s194 + $0x10] sm:$0xf] %v1866
      %1899 = vst [vmem:[%s194 + $0x14] sm:$0xf] %v1867
      %1900 = vst [vmem:[%s194 + $0x18] sm:$0xf] %v1868
      %1901 = vst [vmem:[%s194 + $0x1c] sm:$0xf] %v1869
      %1902 = vst [vmem:[%s194 + $0x20] sm:$0xf] %v1870
      %1903 = vst [vmem:[%s194 + $0x24] sm:$0xf] %v1871
      %1904 = vst [vmem:[%s194 + $0x28] sm:$0xf] %v1872
      %1905 = vst [vmem:[%s194 + $0x2c] sm:$0xf] %v1873
      %1906 = vst [vmem:[%s194 + $0x30] sm:$0xf] %v1874
      %1907 = vst [vmem:[%s194 + $0x34] sm:$0xf] %v1875
      %1908 = vst [vmem:[%s194 + $0x38] sm:$0xf] %v1876
      %1909 = vst [vmem:[%s194 + $0x3c] sm:$0xf] %v1877
      %s1910 = smul.u32 8, %s19
      %p1911 = scmp.lt.s32.totalorder %s18, 1
      %s1912 = scalar_select %p1911, %s18, 1
      %p1913 = scmp.lt.s32.totalorder %s1910, 15
      %s1914 = scalar_select %p1913, %s1910, 15
      %s1915 = smul.addr %s1914, 2
      %s1916 = smul.addr %s1912, 32
      %s1917 = sadd.s32 %s1915, %s1916
      %s1918 = smul.addr %s1917, 4
      %s1919 = scalar_lea.vmem %s3, %s1918
      // Predicated region
      $region33: #{net.4} parent=31 // pred_check
        %p1920 = pneg %p114
      $region34: #{net.4} parent=31 // pred_check_branch
        %1922 = sbr.rel (%p1920) target = $region36
      $region35: #{net.4} parent=31 // pred_region
        %s1923 = smul.u32 8, %s19
      $region36: #{net.4} parent=31 // pred_fallthru
        _
    $region32: #{net.4} parent=5 // pred_fallthru
      _
    %p1924 = scmp.le.s32.totalorder 2, %s9
    // Predicated region
    $region37: #{net.4} parent=5 // pred_check
      %p1925 = pneg %p1924
    $region38: #{net.4} parent=5 // pred_check_branch
      %1927 = sbr.rel (%p1925) target = $region40
    $region39: #{net.4} parent=5 // pred_region
      %s1928 = ssub.s32 %s9, 2
      // Predicated region
      $region41: #{net.4} parent=39 // pred_check
        %p1929 = pneg %p120
      $region42: #{net.4} parent=39 // pred_check_branch
        %1931 = sbr.rel (%p1929) target = $region44
      $region43: #{net.4} parent=39 // pred_region
        %s1932 = smul.u32 8, %s21
        %p1933 = scmp.lt.s32.totalorder %s20, 1
        %s1934 = scalar_select %p1933, %s20, 1
        %p1935 = scmp.lt.s32.totalorder %s1932, 15
        %s1936 = scalar_select %p1935, %s1932, 15
        %s1937 = smul.addr %s1936, 2
        %s1938 = smul.addr %s1934, 32
        %s1939 = sadd.s32 %s1937, %s1938
        %s1940 = smul.addr %s1939, 4
        %s1941 = scalar_lea.vmem %s3, %s1940
      $region44: #{net.4} parent=39 // pred_fallthru
        _
    $region40: #{net.4} parent=5 // pred_fallthru
      _
  $region6: #{net.4} parent=0 // loop_footer
    %s13 = sadd.s32 1, %s9
  $region7: #{net.4} parent=0 // loop_footer_branch
    %8 = sbr.rel target = $region3
  $region8: #{net.4} parent=0 // loop_exit
    _

// kernel: net.6
$region0: #{net.6}
  #allocation0 [shape = 'u32[]', space=smem, size = 0x4, offset = 0x4, fixed_abs, tag = 'smem constant byte address 0x4 - core index']
  #allocation1 [shape = 'u32[144,128]{1,0:T(1,128)}', space=vmem, size = 0x12000, scoped, tag = 'internal scratch']
  %s0 = inlined_call_operand.vmem [shape: bf16[8,9,9,128], index: 0, kind: input, shape index: {}]
  %s1 = inlined_call_operand.vmem [shape: bf16[9,128,128], index: 1, kind: input, shape index: {}]
  %s2 = inlined_call_operand.vmem [shape: f32[1,128], index: 2, kind: input, shape index: {}, may-alias: {2,4}]
  %s3 = inlined_call_operand.vmem [shape: bf16[128,128], index: 3, kind: input, shape index: {}]
  %s4 = inlined_call_operand.vmem [shape: f32[1,128], index: 4, kind: input, shape index: {}, may-alias: {2,4}]
  %s5 = inlined_call_operand.vmem [shape: bf16[2,8,8,128], index: 5, kind: output, shape index: {0}]
  %s6 = inlined_call_operand.vmem [shape: bf16[2,8,8,128], index: 6, kind: output, shape index: {1}]
  %7 = xla_tuple %s5, %s6
  %s8 = sld [smem:[#allocation0]]
  $region61: #{net.6} parent=0
    _
  %s10 = ssub.s32 1, %s8
  %s11 = scalar_select 0, %s10, %s8
  loop: start=0, step=1, limit=6
  $region2: #{net.6} parent=0 // loop_pre_header
    _
  $region3: #{net.6} parent=0 // loop_header
    %s13 = sphi 0, %s17
    %p14 = scmp.ge.s32.totalorder %s13, 6
    %s20 = sphi 0, %s32
    %s21 = sphi 0, %s28
    %s22 = sphi 0, %s20
    %s23 = sphi 0, %s21
    %s24 = sphi 0, %s22
    %s25 = sphi 0, %s23
    %s35 = sphi 0, %s37
    %s38 = sphi 0, %s35
    %s39 = sphi 0, %s38
    %s55 = sphi 0, %s39
    %s59 = sphi 0, %s59
    %s61 = sphi 0, %s59
    %s62 = sphi 0, %s61
    %s76 = sphi 0, %s62
    %s80 = sphi 0, %s80
    %s82 = sphi 0, %s80
    %s83 = sphi 0, %s82
    %s97 = sphi 0, %s83
    %s101 = sphi 0, %s101
    %s103 = sphi 0, %s101
    %s104 = sphi 0, %s103
    %s118 = sphi 0, %s104
    %s122 = sphi 0, %s122
    %s124 = sphi 0, %s122
    %s125 = sphi 0, %s124
    %s139 = sphi 0, %s125
    %s147 = sphi 0, %s149
    %s150 = sphi 0, %s147
    %s151 = sphi 0, %s150
    %s167 = sphi 0, %s151
    %s175 = sphi 0, %s177
    %s178 = sphi 0, %s175
    %s179 = sphi 0, %s178
    %s195 = sphi 0, %s179
  $region4: #{net.6} parent=0 // loop_header_branch
    %16 = sbr.rel (%p14) target = $region8
  $region5: #{net.6} parent=0 // loop_body
    %s18 = ssub.s32 %s13, 1
    %s19 = ssub.s32 %s13, 2
    %s26 = sadd.s32 1, %s21
    %p27 = scmp.ge.s32.totalorder %s26, 2
    %s28 = scalar_select %p27, 0, %s26
    %s29 = sadd.s32 1, %s20
    %s30 = scalar_select %p27, %s29, %s20
    %p31 = scmp.ge.s32.totalorder %s30, 2
    %s32 = scalar_select %p31, 0, %s30
    %s33 = ssub.s32 %s20, %s32
    %p34 = scmp.eq.s32.totalorder %s33, 0
    %s36 = sadd.s32 %s35, 1
    %s37 = scalar_select %p34, %s35, %s36
    %p40 = pneg %p34
    %p41 = scmp.eq.s32.totalorder %s13, 3
    %p42 = por %p40, %p41
    %p43 = scmp.ne.s32.totalorder %s35, %s38
    %p44 = scmp.eq.s32.totalorder %s13, 0
    %p45 = por %p43, %p44
    %p46 = scmp.ne.s32.totalorder %s35, %s38
    %p47 = scmp.eq.s32.totalorder %s18, 3
    %p48 = por %p46, %p47
    %p49 = scmp.ne.s32.totalorder %s38, %s39
    %p50 = scmp.eq.s32.totalorder %s18, 0
    %p51 = por %p49, %p50
    %p52 = scmp.ne.s32.totalorder %s38, %s39
    %p53 = scmp.eq.s32.totalorder %s19, 3
    %p54 = por %p52, %p53
    %p56 = scmp.ne.s32.totalorder %s39, %s55
    %p57 = scmp.eq.s32.totalorder %s19, 0
    %p58 = por %p56, %p57
    %s60 = sadd.s32 %s59, 1
    %p63 = scmp.eq.s32.totalorder %s13, 3
    %p64 = scmp.ne.s32.totalorder %s59, %s61
    %p65 = scmp.eq.s32.totalorder %s13, 0
    %p66 = por %p64, %p65
    %p67 = scmp.ne.s32.totalorder %s59, %s61
    %p68 = scmp.eq.s32.totalorder %s18, 3
    %p69 = por %p67, %p68
    %p70 = scmp.ne.s32.totalorder %s61, %s62
    %p71 = scmp.eq.s32.totalorder %s18, 0
    %p72 = por %p70, %p71
    %p73 = scmp.ne.s32.totalorder %s61, %s62
    %p74 = scmp.eq.s32.totalorder %s19, 3
    %p75 = por %p73, %p74
    %p77 = scmp.ne.s32.totalorder %s62, %s76
    %p78 = scmp.eq.s32.totalorder %s19, 0
    %p79 = por %p77, %p78
    %s81 = sadd.s32 %s80, 1
    %p84 = scmp.eq.s32.totalorder %s13, 3
    %p85 = scmp.ne.s32.totalorder %s80, %s82
    %p86 = scmp.eq.s32.totalorder %s13, 0
    %p87 = por %p85, %p86
    %p88 = scmp.ne.s32.totalorder %s80, %s82
    %p89 = scmp.eq.s32.totalorder %s18, 3
    %p90 = por %p88, %p89
    %p91 = scmp.ne.s32.totalorder %s82, %s83
    %p92 = scmp.eq.s32.totalorder %s18, 0
    %p93 = por %p91, %p92
    %p94 = scmp.ne.s32.totalorder %s82, %s83
    %p95 = scmp.eq.s32.totalorder %s19, 3
    %p96 = por %p94, %p95
    %p98 = scmp.ne.s32.totalorder %s83, %s97
    %p99 = scmp.eq.s32.totalorder %s19, 0
    %p100 = por %p98, %p99
    %s102 = sadd.s32 %s101, 1
    %p105 = scmp.eq.s32.totalorder %s13, 3
    %p106 = scmp.ne.s32.totalorder %s101, %s103
    %p107 = scmp.eq.s32.totalorder %s13, 0
    %p108 = por %p106, %p107
    %p109 = scmp.ne.s32.totalorder %s101, %s103
    %p110 = scmp.eq.s32.totalorder %s18, 3
    %p111 = por %p109, %p110
    %p112 = scmp.ne.s32.totalorder %s103, %s104
    %p113 = scmp.eq.s32.totalorder %s18, 0
    %p114 = por %p112, %p113
    %p115 = scmp.ne.s32.totalorder %s103, %s104
    %p116 = scmp.eq.s32.totalorder %s19, 3
    %p117 = por %p115, %p116
    %p119 = scmp.ne.s32.totalorder %s104, %s118
    %p120 = scmp.eq.s32.totalorder %s19, 0
    %p121 = por %p119, %p120
    %s123 = sadd.s32 %s122, 1
    %p126 = scmp.eq.s32.totalorder %s13, 3
    %p127 = scmp.ne.s32.totalorder %s122, %s124
    %p128 = scmp.eq.s32.totalorder %s13, 0
    %p129 = por %p127, %p128
    %p130 = scmp.ne.s32.totalorder %s122, %s124
    %p131 = scmp.eq.s32.totalorder %s18, 3
    %p132 = por %p130, %p131
    %p133 = scmp.ne.s32.totalorder %s124, %s125
    %p134 = scmp.eq.s32.totalorder %s18, 0
    %p135 = por %p133, %p134
    %p136 = scmp.ne.s32.totalorder %s124, %s125
    %p137 = scmp.eq.s32.totalorder %s19, 3
    %p138 = por %p136, %p137
    %p140 = scmp.ne.s32.totalorder %s125, %s139
    %p141 = scmp.eq.s32.totalorder %s19, 0
    %p142 = por %p140, %p141
    %s143 = ssub.s32 %s20, %s32
    %s144 = ssub.s32 %s21, %s28
    %s145 = sor.u32 %s143, %s144
    %p146 = scmp.eq.s32.totalorder %s145, 0
    %s148 = sadd.s32 %s147, 1
    %s149 = scalar_select %p146, %s147, %s148
    %p152 = pneg %p146
    %p153 = scmp.eq.s32.totalorder %s13, 3
    %p154 = por %p152, %p153
    %p155 = scmp.ne.s32.totalorder %s147, %s150
    %p156 = scmp.eq.s32.totalorder %s13, 0
    %p157 = por %p155, %p156
    %p158 = scmp.ne.s32.totalorder %s147, %s150
    %p159 = scmp.eq.s32.totalorder %s18, 3
    %p160 = por %p158, %p159
    %p161 = scmp.ne.s32.totalorder %s150, %s151
    %p162 = scmp.eq.s32.totalorder %s18, 0
    %p163 = por %p161, %p162
    %p164 = scmp.ne.s32.totalorder %s150, %s151
    %p165 = scmp.eq.s32.totalorder %s19, 3
    %p166 = por %p164, %p165
    %p168 = scmp.ne.s32.totalorder %s151, %s167
    %p169 = scmp.eq.s32.totalorder %s19, 0
    %p170 = por %p168, %p169
    %s171 = ssub.s32 %s20, %s32
    %s172 = ssub.s32 %s21, %s28
    %s173 = sor.u32 %s171, %s172
    %p174 = scmp.eq.s32.totalorder %s173, 0
    %s176 = sadd.s32 %s175, 1
    %s177 = scalar_select %p174, %s175, %s176
    %p180 = pneg %p174
    %p181 = scmp.eq.s32.totalorder %s13, 3
    %p182 = por %p180, %p181
    %p183 = scmp.ne.s32.totalorder %s175, %s178
    %p184 = scmp.eq.s32.totalorder %s13, 0
    %p185 = por %p183, %p184
    %p186 = scmp.ne.s32.totalorder %s175, %s178
    %p187 = scmp.eq.s32.totalorder %s18, 3
    %p188 = por %p186, %p187
    %p189 = scmp.ne.s32.totalorder %s178, %s179
    %p190 = scmp.eq.s32.totalorder %s18, 0
    %p191 = por %p189, %p190
    %p192 = scmp.ne.s32.totalorder %s178, %s179
    %p193 = scmp.eq.s32.totalorder %s19, 3
    %p194 = por %p192, %p193
    %p196 = scmp.ne.s32.totalorder %s179, %s195
    %p197 = scmp.eq.s32.totalorder %s19, 0
    %p198 = por %p196, %p197
    %p199 = scmp.le.s32.totalorder 1, %s13
    %p200 = scmp.lt.s32.totalorder %s13, 5
    %p201 = pnand %p199, %p200
    %p202 = pneg %p201
    // Predicated region
    $region9: #{net.6} parent=5 // pred_check
      _
    $region10: #{net.6} parent=5 // pred_check_branch
      %204 = sbr.rel (%p201) target = $region12
    $region11: #{net.6} parent=5 // pred_region
      %s205 = ssub.s32 %s13, 1
      // Predicated region
      $region13: #{net.6} parent=11 // pred_check
        %p206 = pneg %p72
      $region14: #{net.6} parent=11 // pred_check_branch
        %208 = sbr.rel (%p206) target = $region16
      $region15: #{net.6} parent=11 // pred_region
        _
      $region16: #{net.6} parent=11 // pred_fallthru
        _
      // Predicated region
      $region17: #{net.6} parent=11 // pred_check
        %p209 = pneg %p93
      $region18: #{net.6} parent=11 // pred_check_branch
        %211 = sbr.rel (%p209) target = $region20
      $region19: #{net.6} parent=11 // pred_region
        _
      $region20: #{net.6} parent=11 // pred_fallthru
        _
      // Predicated region
      $region21: #{net.6} parent=11 // pred_check
        %p212 = pneg %p114
      $region22: #{net.6} parent=11 // pred_check_branch
        %214 = sbr.rel (%p212) target = $region24
      $region23: #{net.6} parent=11 // pred_region
        _
      $region24: #{net.6} parent=11 // pred_fallthru
        _
      // Predicated region
      $region25: #{net.6} parent=11 // pred_check
        %p215 = pneg %p135
      $region26: #{net.6} parent=11 // pred_check_branch
        %217 = sbr.rel (%p215) target = $region28
      $region27: #{net.6} parent=11 // pred_region
        _
      $region28: #{net.6} parent=11 // pred_fallthru
        _
    $region12: #{net.6} parent=5 // pred_fallthru
      _
    %p218 = scmp.lt.s32.totalorder %s13, 4
    // Predicated region
    $region29: #{net.6} parent=5 // pred_check
      %p219 = pneg %p218
    $region30: #{net.6} parent=5 // pred_check_branch
      %221 = sbr.rel (%p219) target = $region32
    $region31: #{net.6} parent=5 // pred_region
      // Predicated region
      $region33: #{net.6} parent=31 // pred_check
        %p222 = pneg %p45
      $region34: #{net.6} parent=31 // pred_check_branch
        %224 = sbr.rel (%p222) target = $region36
      $region35: #{net.6} parent=31 // pred_region
        %s225 = smul.u32 4, %s20
        %p226 = scmp.lt.s32.totalorder %s225, 7
        %s227 = scalar_select %p226, %s225, 7
        %s228 = smul.addr %s227, 18
        %s229 = smul.addr %s228, 4
        %s230 = scalar_lea.vmem %s0, %s229
        %s231 = smul.u32 4, %s20
      $region36: #{net.6} parent=31 // pred_fallthru
        _
    $region32: #{net.6} parent=5 // pred_fallthru
      _
    %p232 = scmp.le.s32.totalorder 1, %s13
    %p233 = scmp.lt.s32.totalorder %s13, 5
    %p234 = pnand %p232, %p233
    %p235 = pneg %p234
    // Predicated region
    $region37: #{net.6} parent=5 // pred_check
      _
    $region38: #{net.6} parent=5 // pred_check_branch
      %237 = sbr.rel (%p234) target = $region40
    $region39: #{net.6} parent=5 // pred_region
      %s238 = ssub.s32 %s13, 1
      %s239 = smul.u32 4, %s22
      %p240 = scmp.lt.s32.totalorder %s239, 7
      %s241 = scalar_select %p240, %s239, 7
      %s242 = smul.addr %s241, 18
      %s243 = smul.addr %s242, 4
      %s244 = scalar_lea.vmem %s0, %s243
      %p245 = pneg %p51
      %p246 = pneg %p48
      %p247 = pneg %p72
      %p248 = pneg %p69
      %p249 = pneg %p93
      %p250 = pneg %p90
      %p251 = pneg %p114
      %p252 = pneg %p111
      %p253 = pneg %p135
      %p254 = pneg %p132
      %p255 = pneg %p163
      %p256 = pneg %p160
      %s257 = smul.u32 4, %s23
      %p258 = scmp.lt.s32.totalorder %s22, 1
      %s259 = scalar_select %p258, %s22, 1
      %p260 = scmp.lt.s32.totalorder %s257, 7
      %s261 = scalar_select %p260, %s257, 7
      %s262 = smul.addr %s259, 8
      %s263 = sadd.s32 %s261, %s262
      %s264 = smul.addr %s263, 4
      %s265 = scalar_lea.vmem %s5, %s264
      %p266 = pneg %p191
      %p267 = pneg %p188
      %s268 = smul.u32 4, %s23
      %p269 = scmp.lt.s32.totalorder %s22, 1
      %s270 = scalar_select %p269, %s22, 1
      %p271 = scmp.lt.s32.totalorder %s268, 7
      %s272 = scalar_select %p271, %s268, 7
      %s273 = smul.addr %s270, 8
      %s274 = sadd.s32 %s272, %s273
      %s275 = smul.addr %s274, 4
      %s276 = scalar_lea.vmem %s6, %s275
      %s277 = smul.u32 4, %s22
      %p278 = scmp.lt.s32.totalorder %s277, 7
      %s279 = scalar_select %p278, %s277, 7
      %s280 = smul.addr %s279, 18
      %s281 = smul.addr %s280, 4
      %s282 = scalar_lea.vmem %s0, %s281
      %s283 = smul.u32 4, %s22
      %s284 = smul.u32 4, %s23
      %p285 = scmp.lt.s32.totalorder %s22, 1
      %s286 = scalar_select %p285, %s22, 1
      %p287 = scmp.lt.s32.totalorder %s284, 7
      %s288 = scalar_select %p287, %s284, 7
      %s289 = smul.addr %s286, 8
      %s290 = sadd.s32 %s288, %s289
      %s291 = smul.addr %s290, 4
      %s292 = scalar_lea.vmem %s5, %s291
      %s293 = smul.u32 4, %s23
      %s294 = smul.u32 4, %s23
      %p295 = scmp.lt.s32.totalorder %s22, 1
      %s296 = scalar_select %p295, %s22, 1
      %p297 = scmp.lt.s32.totalorder %s294, 7
      %s298 = scalar_select %p297, %s294, 7
      %s299 = smul.addr %s296, 8
      %s300 = sadd.s32 %s298, %s299
      %s301 = smul.addr %s300, 4
      %s302 = scalar_lea.vmem %s6, %s301
      %s303 = smul.u32 4, %s23
      %s305 = smul.u32 %s23, 4
      %s306 = smul.u32 %s305, 2
      %s307 = smul.addr %s306, 4
      %s308 = scalar_lea.vmem %s282, %s307
      %v309 = vld [vmem:[%s308] sm:$0xf]
      %v310 = vld [vmem:[%s308 + $0x8] sm:$0xf]
      %v311 = vld [vmem:[%s308 + $0x10] sm:$0xf]
      %v312 = vld [vmem:[%s308 + $0x18] sm:$0xf]
      %s313 = sadd.s32 %s306, 18
      %s314 = smul.addr %s313, 4
      %s315 = scalar_lea.vmem %s282, %s314
      %v316 = vld [vmem:[%s315] sm:$0xf]
      %v317 = vld [vmem:[%s315 + $0x8] sm:$0xf]
      %v318 = vld [vmem:[%s315 + $0x10] sm:$0xf]
      %v319 = vld [vmem:[%s315 + $0x18] sm:$0xf]
      %v320 = vld [vmem:[%s308 + $0x4] sm:$0x1]
      %v321 = vld [vmem:[%s308 + $0xc] sm:$0x1]
      %v322 = vld [vmem:[%s308 + $0x14] sm:$0x1]
      %v323 = vld [vmem:[%s308 + $0x1c] sm:$0x1]
      %vm324 = vsmask.f32 3328
      %vm325 = vsmask.f32 7440
      %vm326 = vmor %vm324, %vm325
      %v328 = vshrl.u32 %v309, 16
      %v330 = vrot.slane %v328, 4
      %v331 = vshll.u32 %v309, 16
      %v333 = vrot.slane %v331, 5
      %v334 = vor.u32 %v330, %v333
      %v335 = vrot.slane %v334, 4
      %v337 = vshll.u32 %v320, 16
      %v339 = vrot.slane %v337, 5
      %v340 = vsel %vm326, %v335, %v339
      %v342 = vshrl.u32 %v310, 16
      %v344 = vrot.slane %v342, 4
      %v345 = vshll.u32 %v310, 16
      %v347 = vrot.slane %v345, 5
      %v348 = vor.u32 %v344, %v347
      %v349 = vrot.slane %v348, 4
      %v351 = vshll.u32 %v321, 16
      %v353 = vrot.slane %v351, 5
      %v354 = vsel %vm326, %v349, %v353
      %v356 = vshrl.u32 %v311, 16
      %v358 = vrot.slane %v356, 4
      %v359 = vshll.u32 %v311, 16
      %v361 = vrot.slane %v359, 5
      %v362 = vor.u32 %v358, %v361
      %v363 = vrot.slane %v362, 4
      %v365 = vshll.u32 %v322, 16
      %v367 = vrot.slane %v365, 5
      %v368 = vsel %vm326, %v363, %v367
      %v370 = vshrl.u32 %v312, 16
      %v372 = vrot.slane %v370, 4
      %v373 = vshll.u32 %v312, 16
      %v375 = vrot.slane %v373, 5
      %v376 = vor.u32 %v372, %v375
      %v377 = vrot.slane %v376, 4
      %v379 = vshll.u32 %v323, 16
      %v381 = vrot.slane %v379, 5
      %v382 = vsel %vm326, %v377, %v381
      %s383 = sadd.s32 %s306, 36
      %s384 = smul.addr %s383, 4
      %s385 = scalar_lea.vmem %s282, %s384
      %v386 = vld [vmem:[%s385] sm:$0xf]
      %v387 = vld [vmem:[%s385 + $0x8] sm:$0xf]
      %v388 = vld [vmem:[%s385 + $0x10] sm:$0xf]
      %v389 = vld [vmem:[%s385 + $0x18] sm:$0xf]
      %s390 = sadd.s32 %s306, 54
      %s391 = smul.addr %s390, 4
      %s392 = scalar_lea.vmem %s282, %s391
      %v393 = vld [vmem:[%s392] sm:$0xf]
      %v394 = vld [vmem:[%s392 + $0x8] sm:$0xf]
      %v395 = vld [vmem:[%s392 + $0x10] sm:$0xf]
      %v396 = vld [vmem:[%s392 + $0x18] sm:$0xf]
      %v397 = vld [vmem:[%s385 + $0x4] sm:$0x1]
      %v398 = vld [vmem:[%s385 + $0xc] sm:$0x1]
      %v399 = vld [vmem:[%s385 + $0x14] sm:$0x1]
      %v400 = vld [vmem:[%s385 + $0x1c] sm:$0x1]
      %v402 = vshrl.u32 %v386, 16
      %v404 = vrot.slane %v402, 4
      %v405 = vshll.u32 %v386, 16
      %v407 = vrot.slane %v405, 5
      %v408 = vor.u32 %v404, %v407
      %v409 = vrot.slane %v408, 4
      %v411 = vshll.u32 %v397, 16
      %v413 = vrot.slane %v411, 5
      %v414 = vsel %vm326, %v409, %v413
      %v416 = vshrl.u32 %v387, 16
      %v418 = vrot.slane %v416, 4
      %v419 = vshll.u32 %v387, 16
      %v421 = vrot.slane %v419, 5
      %v422 = vor.u32 %v418, %v421
      %v423 = vrot.slane %v422, 4
      %v425 = vshll.u32 %v398, 16
      %v427 = vrot.slane %v425, 5
      %v428 = vsel %vm326, %v423, %v427
      %v430 = vshrl.u32 %v388, 16
      %v432 = vrot.slane %v430, 4
      %v433 = vshll.u32 %v388, 16
      %v435 = vrot.slane %v433, 5
      %v436 = vor.u32 %v432, %v435
      %v437 = vrot.slane %v436, 4
      %v439 = vshll.u32 %v399, 16
      %v441 = vrot.slane %v439, 5
      %v442 = vsel %vm326, %v437, %v441
      %v444 = vshrl.u32 %v389, 16
      %v446 = vrot.slane %v444, 4
      %v447 = vshll.u32 %v389, 16
      %v449 = vrot.slane %v447, 5
      %v450 = vor.u32 %v446, %v449
      %v451 = vrot.slane %v450, 4
      %v453 = vshll.u32 %v400, 16
      %v455 = vrot.slane %v453, 5
      %v456 = vsel %vm326, %v451, %v455
      %s457 = sadd.s32 %s305, 1
      %s458 = smul.u32 %s457, 2
      %s459 = smul.addr %s458, 4
      %s460 = scalar_lea.vmem %s282, %s459
      %v461 = vld [vmem:[%s460] sm:$0xf]
      %v462 = vld [vmem:[%s460 + $0x8] sm:$0xf]
      %v463 = vld [vmem:[%s460 + $0x10] sm:$0xf]
      %v464 = vld [vmem:[%s460 + $0x18] sm:$0xf]
      %s465 = sadd.s32 %s458, 18
      %s466 = smul.addr %s465, 4
      %s467 = scalar_lea.vmem %s282, %s466
      %v468 = vld [vmem:[%s467] sm:$0xf]
      %v469 = vld [vmem:[%s467 + $0x8] sm:$0xf]
      %v470 = vld [vmem:[%s467 + $0x10] sm:$0xf]
      %v471 = vld [vmem:[%s467 + $0x18] sm:$0xf]
      %v472 = vld [vmem:[%s460 + $0x4] sm:$0x1]
      %v473 = vld [vmem:[%s460 + $0xc] sm:$0x1]
      %v474 = vld [vmem:[%s460 + $0x14] sm:$0x1]
      %v475 = vld [vmem:[%s460 + $0x1c] sm:$0x1]
      %v477 = vshrl.u32 %v461, 16
      %v479 = vrot.slane %v477, 4
      %v480 = vshll.u32 %v461, 16
      %v482 = vrot.slane %v480, 5
      %v483 = vor.u32 %v479, %v482
      %v484 = vrot.slane %v483, 4
      %v486 = vshll.u32 %v472, 16
      %v488 = vrot.slane %v486, 5
      %v489 = vsel %vm326, %v484, %v488
      %v491 = vshrl.u32 %v462, 16
      %v493 = vrot.slane %v491, 4
      %v494 = vshll.u32 %v462, 16
      %v496 = vrot.slane %v494, 5
      %v497 = vor.u32 %v493, %v496
      %v498 = vrot.slane %v497, 4
      %v500 = vshll.u32 %v473, 16
      %v502 = vrot.slane %v500, 5
      %v503 = vsel %vm326, %v498, %v502
      %v505 = vshrl.u32 %v463, 16
      %v507 = vrot.slane %v505, 4
      %v508 = vshll.u32 %v463, 16
      %v510 = vrot.slane %v508, 5
      %v511 = vor.u32 %v507, %v510
      %v512 = vrot.slane %v511, 4
      %v514 = vshll.u32 %v474, 16
      %v516 = vrot.slane %v514, 5
      %v517 = vsel %vm326, %v512, %v516
      %v519 = vshrl.u32 %v464, 16
      %v521 = vrot.slane %v519, 4
      %v522 = vshll.u32 %v464, 16
      %v524 = vrot.slane %v522, 5
      %v525 = vor.u32 %v521, %v524
      %v526 = vrot.slane %v525, 4
      %v528 = vshll.u32 %v475, 16
      %v530 = vrot.slane %v528, 5
      %v531 = vsel %vm326, %v526, %v530
      %v532 = vld [vmem:[%s1] sm:$0xf]
      %v533 = vld [vmem:[%s1 + $0x4] sm:$0xf]
      %v534 = vld [vmem:[%s1 + $0x8] sm:$0xf]
      %v535 = vld [vmem:[%s1 + $0xc] sm:$0xf]
      %v536 = vld [vmem:[%s1 + $0x10] sm:$0xf]
      %v537 = vld [vmem:[%s1 + $0x14] sm:$0xf]
      %v538 = vld [vmem:[%s1 + $0x18] sm:$0xf]
      %v539 = vld [vmem:[%s1 + $0x1c] sm:$0xf]
      %v540 = vld [vmem:[%s1 + $0x20] sm:$0xf]
      %v541 = vld [vmem:[%s1 + $0x24] sm:$0xf]
      %v542 = vld [vmem:[%s1 + $0x28] sm:$0xf]
      %v543 = vld [vmem:[%s1 + $0x2c] sm:$0xf]
      %v544 = vld [vmem:[%s1 + $0x30] sm:$0xf]
      %v545 = vld [vmem:[%s1 + $0x34] sm:$0xf]
      %v546 = vld [vmem:[%s1 + $0x38] sm:$0xf]
      %v547 = vld [vmem:[%s1 + $0x3c] sm:$0xf]
      %s548 = scalar_lea.vmem %s1, 64
      %v549 = vld [vmem:[%s548] sm:$0xf]
      %v550 = vld [vmem:[%s548 + $0x4] sm:$0xf]
      %v551 = vld [vmem:[%s548 + $0x8] sm:$0xf]
      %v552 = vld [vmem:[%s548 + $0xc] sm:$0xf]
      %v553 = vld [vmem:[%s548 + $0x10] sm:$0xf]
      %v554 = vld [vmem:[%s548 + $0x14] sm:$0xf]
      %v555 = vld [vmem:[%s548 + $0x18] sm:$0xf]
      %v556 = vld [vmem:[%s548 + $0x1c] sm:$0xf]
      %v557 = vld [vmem:[%s548 + $0x20] sm:$0xf]
      %v558 = vld [vmem:[%s548 + $0x24] sm:$0xf]
      %v559 = vld [vmem:[%s548 + $0x28] sm:$0xf]
      %v560 = vld [vmem:[%s548 + $0x2c] sm:$0xf]
      %v561 = vld [vmem:[%s548 + $0x30] sm:$0xf]
      %v562 = vld [vmem:[%s548 + $0x34] sm:$0xf]
      %v563 = vld [vmem:[%s548 + $0x38] sm:$0xf]
      %v564 = vld [vmem:[%s548 + $0x3c] sm:$0xf]
      %v569 = vunpack.c.l.b16 %v316
      %v570 = vunpack.c.l.b16 %v317
      %v571 = vunpack.c.l.b16 %v318
      %v572 = vunpack.c.l.b16 %v319
      %v573 = vpack.c.b16 %v570, %v569
      %v574 = vpack.c.b16 %v572, %v571
      %v593 = vunpack.c.l.b16 %v549
      %v594 = vunpack.c.l.b16 %v550
      %v595 = vunpack.c.l.b16 %v551
      %v596 = vunpack.c.l.b16 %v552
      %v597 = vunpack.c.l.b16 %v553
      %v598 = vunpack.c.l.b16 %v554
      %v599 = vunpack.c.l.b16 %v555
      %v600 = vunpack.c.l.b16 %v556
      %v601 = vunpack.c.l.b16 %v557
      %v602 = vunpack.c.l.b16 %v558
      %v603 = vunpack.c.l.b16 %v559
      %v604 = vunpack.c.l.b16 %v560
      %v605 = vunpack.c.l.b16 %v561
      %v606 = vunpack.c.l.b16 %v562
      %v607 = vunpack.c.l.b16 %v563
      %v608 = vunpack.c.l.b16 %v564
      %v609 = vpack.c.b16 %v594, %v593
      %v610 = vpack.c.b16 %v596, %v595
      %v611 = vpack.c.b16 %v598, %v597
      %v612 = vpack.c.b16 %v600, %v599
      %v613 = vpack.c.b16 %v602, %v601
      %v614 = vpack.c.b16 %v604, %v603
      %v615 = vpack.c.b16 %v606, %v605
      %v616 = vpack.c.b16 %v608, %v607
      %625 = vmatprep.subr.bf16.mxu0 0
      %626 = vmatpush1.bf16.msra.mxu0 %v609
      %627 = vmatprep.subr.bf16.mxu0 0
      %628 = vmatpush1.bf16.msra.mxu0 %v610
      %629 = vmatprep.subr.bf16.mxu0 0
      %630 = vmatpush1.bf16.msra.mxu0 %v611
      %631 = vmatprep.subr.bf16.mxu0 0
      %632 = vmatpush1.bf16.msra.mxu0 %v612
      %633 = vmatprep.subr.bf16.mxu0 0
      %634 = vmatpush1.bf16.msra.mxu0 %v613
      %635 = vmatprep.subr.bf16.mxu0 0
      %636 = vmatpush1.bf16.msra.mxu0 %v614
      %637 = vmatprep.subr.bf16.mxu0 0
      %638 = vmatpush1.bf16.msra.mxu0 %v615
      %639 = vmatprep.subr.bf16.mxu0 0
      %640 = vmatpush1.bf16.msra.mxu0 %v616
      %641 = vmatprep.subr.bf16.mxu0 0
      %642 = vmatpush1.bf16.msra.mxu0 0
      %643 = vmatprep.subr.bf16.mxu0 0
      %644 = vmatpush1.bf16.msra.mxu0 0
      %645 = vmatprep.subr.bf16.mxu0 0
      %646 = vmatpush1.bf16.msra.mxu0 0
      %647 = vmatprep.subr.bf16.mxu0 0
      %648 = vmatpush1.bf16.msra.mxu0 0
      %649 = vmatprep.subr.bf16.mxu0 0
      %650 = vmatpush1.bf16.msra.mxu0 0
      %651 = vmatprep.subr.bf16.mxu0 0
      %652 = vmatpush1.bf16.msra.mxu0 0
      %653 = vmatprep.subr.bf16.mxu0 0
      %654 = vmatpush1.bf16.msra.mxu0 0
      %655 = vmatprep.subr.bf16.mxu0 0
      %656 = vmatpush1.bf16.msra.mxu0 0
      %657 = vmatprep.mubr.bf16.mxu0 0
      %658 = vmatmul.mubr.bf16.gmra.mrb[0].mxu0 %v573
      %v659 = vpop.f32.mrb[0].mxu0
      %v660 = vadd.f32 0.0, %v659
      %v661 = vpop.f32.mrb[0].mxu0
      %v662 = vpop.f32.mrb[0].mxu0
      %v663 = vadd.f32 0.0, %v662
      %v664 = vpop.f32.mrb[0].mxu0
      %665 = vmatprep.mubr.bf16.mxu0 0
      %666 = vmatmul.mubr.bf16.gmra.mrb[0].mxu0 %v574
      %v667 = vpop.f32.mrb[0].mxu0
      %v668 = vadd.f32 0.0, %v667
      %v669 = vpop.f32.mrb[0].mxu0
      %v670 = vpop.f32.mrb[0].mxu0
      %v671 = vadd.f32 0.0, %v670
      %v672 = vpop.f32.mrb[0].mxu0
      %673 = vdwg.mxu0
      %v678 = vunpack.c.l.b16 %v309
      %v679 = vunpack.c.l.b16 %v310
      %v680 = vunpack.c.l.b16 %v311
      %v681 = vunpack.c.l.b16 %v312
      %v682 = vpack.c.b16 %v679, %v678
      %v683 = vpack.c.b16 %v681, %v680
      %v702 = vunpack.c.l.b16 %v532
      %v703 = vunpack.c.l.b16 %v533
      %v704 = vunpack.c.l.b16 %v534
      %v705 = vunpack.c.l.b16 %v535
      %v706 = vunpack.c.l.b16 %v536
      %v707 = vunpack.c.l.b16 %v537
      %v708 = vunpack.c.l.b16 %v538
      %v709 = vunpack.c.l.b16 %v539
      %v710 = vunpack.c.l.b16 %v540
      %v711 = vunpack.c.l.b16 %v541
      %v712 = vunpack.c.l.b16 %v542
      %v713 = vunpack.c.l.b16 %v543
      %v714 = vunpack.c.l.b16 %v544
      %v715 = vunpack.c.l.b16 %v545
      %v716 = vunpack.c.l.b16 %v546
      %v717 = vunpack.c.l.b16 %v547
      %v718 = vpack.c.b16 %v703, %v702
      %v719 = vpack.c.b16 %v705, %v704
      %v720 = vpack.c.b16 %v707, %v706
      %v721 = vpack.c.b16 %v709, %v708
      %v722 = vpack.c.b16 %v711, %v710
      %v723 = vpack.c.b16 %v713, %v712
      %v724 = vpack.c.b16 %v715, %v714
      %v725 = vpack.c.b16 %v717, %v716
      %734 = vmatprep.subr.bf16.mxu0 0
      %735 = vmatpush1.bf16.msra.mxu0 %v718
      %736 = vmatprep.subr.bf16.mxu0 0
      %737 = vmatpush1.bf16.msra.mxu0 %v719
      %738 = vmatprep.subr.bf16.mxu0 0
      %739 = vmatpush1.bf16.msra.mxu0 %v720
      %740 = vmatprep.subr.bf16.mxu0 0
      %741 = vmatpush1.bf16.msra.mxu0 %v721
      %742 = vmatprep.subr.bf16.mxu0 0
      %743 = vmatpush1.bf16.msra.mxu0 %v722
      %744 = vmatprep.subr.bf16.mxu0 0
      %745 = vmatpush1.bf16.msra.mxu0 %v723
      %746 = vmatprep.subr.bf16.mxu0 0
      %747 = vmatpush1.bf16.msra.mxu0 %v724
      %748 = vmatprep.subr.bf16.mxu0 0
      %749 = vmatpush1.bf16.msra.mxu0 %v725
      %750 = vmatprep.subr.bf16.mxu0 0
      %751 = vmatpush1.bf16.msra.mxu0 0
      %752 = vmatprep.subr.bf16.mxu0 0
      %753 = vmatpush1.bf16.msra.mxu0 0
      %754 = vmatprep.subr.bf16.mxu0 0
      %755 = vmatpush1.bf16.msra.mxu0 0
      %756 = vmatprep.subr.bf16.mxu0 0
      %757 = vmatpush1.bf16.msra.mxu0 0
      %758 = vmatprep.subr.bf16.mxu0 0
      %759 = vmatpush1.bf16.msra.mxu0 0
      %760 = vmatprep.subr.bf16.mxu0 0
      %761 = vmatpush1.bf16.msra.mxu0 0
      %762 = vmatprep.subr.bf16.mxu0 0
      %763 = vmatpush1.bf16.msra.mxu0 0
      %764 = vmatprep.subr.bf16.mxu0 0
      %765 = vmatpush1.bf16.msra.mxu0 0
      %766 = vmatprep.mubr.bf16.mxu0 0
      %767 = vmatmul.mubr.bf16.gmra.mrb[0].mxu0 %v682
      %v768 = vpop.f32.mrb[0].mxu0
      %v769 = vadd.f32 %v660, %v768
      %v770 = vpop.f32.mrb[0].mxu0
      %v771 = vpop.f32.mrb[0].mxu0
      %v772 = vadd.f32 %v663, %v771
      %v773 = vpop.f32.mrb[0].mxu0
      %774 = vmatprep.mubr.bf16.mxu0 0
      %775 = vmatmul.mubr.bf16.gmra.mrb[0].mxu0 %v683
      %v776 = vpop.f32.mrb[0].mxu0
      %v777 = vadd.f32 %v668, %v776
      %v778 = vpop.f32.mrb[0].mxu0
      %v779 = vpop.f32.mrb[0].mxu0
      %v780 = vadd.f32 %v671, %v779
      %v781 = vpop.f32.mrb[0].mxu0
      %782 = vdwg.mxu0
      %s783 = scalar_lea.vmem %s1, 128
      %v784 = vld [vmem:[%s783] sm:$0xf]
      %v785 = vld [vmem:[%s783 + $0x4] sm:$0xf]
      %v786 = vld [vmem:[%s783 + $0x8] sm:$0xf]
      %v787 = vld [vmem:[%s783 + $0xc] sm:$0xf]
      %v788 = vld [vmem:[%s783 + $0x10] sm:$0xf]
      %v789 = vld [vmem:[%s783 + $0x14] sm:$0xf]
      %v790 = vld [vmem:[%s783 + $0x18] sm:$0xf]
      %v791 = vld [vmem:[%s783 + $0x1c] sm:$0xf]
      %v792 = vld [vmem:[%s783 + $0x20] sm:$0xf]
      %v793 = vld [vmem:[%s783 + $0x24] sm:$0xf]
      %v794 = vld [vmem:[%s783 + $0x28] sm:$0xf]
      %v795 = vld [vmem:[%s783 + $0x2c] sm:$0xf]
      %v796 = vld [vmem:[%s783 + $0x30] sm:$0xf]
      %v797 = vld [vmem:[%s783 + $0x34] sm:$0xf]
      %v798 = vld [vmem:[%s783 + $0x38] sm:$0xf]
      %v799 = vld [vmem:[%s783 + $0x3c] sm:$0xf]
      %v800 = vunpack.c.l.b16 %v340
      %v801 = vunpack.c.l.b16 %v354
      %v802 = vunpack.c.l.b16 %v368
      %v803 = vunpack.c.l.b16 %v382
      %v804 = vpack.c.b16 %v801, %v800
      %v805 = vpack.c.b16 %v803, %v802
      %v824 = vunpack.c.l.b16 %v784
      %v825 = vunpack.c.l.b16 %v785
      %v826 = vunpack.c.l.b16 %v786
      %v827 = vunpack.c.l.b16 %v787
      %v828 = vunpack.c.l.b16 %v788
      %v829 = vunpack.c.l.b16 %v789
      %v830 = vunpack.c.l.b16 %v790
      %v831 = vunpack.c.l.b16 %v791
      %v832 = vunpack.c.l.b16 %v792
      %v833 = vunpack.c.l.b16 %v793
      %v834 = vunpack.c.l.b16 %v794
      %v835 = vunpack.c.l.b16 %v795
      %v836 = vunpack.c.l.b16 %v796
      %v837 = vunpack.c.l.b16 %v797
      %v838 = vunpack.c.l.b16 %v798
      %v839 = vunpack.c.l.b16 %v799
      %v840 = vpack.c.b16 %v825, %v824
      %v841 = vpack.c.b16 %v827, %v826
      %v842 = vpack.c.b16 %v829, %v828
      %v843 = vpack.c.b16 %v831, %v830
      %v844 = vpack.c.b16 %v833, %v832
      %v845 = vpack.c.b16 %v835, %v834
      %v846 = vpack.c.b16 %v837, %v836
      %v847 = vpack.c.b16 %v839, %v838
      %856 = vmatprep.subr.bf16.mxu0 0
      %857 = vmatpush1.bf16.msra.mxu0 %v840
      %858 = vmatprep.subr.bf16.mxu0 0
      %859 = vmatpush1.bf16.msra.mxu0 %v841
      %860 = vmatprep.subr.bf16.mxu0 0
      %861 = vmatpush1.bf16.msra.mxu0 %v842
      %862 = vmatprep.subr.bf16.mxu0 0
      %863 = vmatpush1.bf16.msra.mxu0 %v843
      %864 = vmatprep.subr.bf16.mxu0 0
      %865 = vmatpush1.bf16.msra.mxu0 %v844
      %866 = vmatprep.subr.bf16.mxu0 0
      %867 = vmatpush1.bf16.msra.mxu0 %v845
      %868 = vmatprep.subr.bf16.mxu0 0
      %869 = vmatpush1.bf16.msra.mxu0 %v846
      %870 = vmatprep.subr.bf16.mxu0 0
      %871 = vmatpush1.bf16.msra.mxu0 %v847
      %872 = vmatprep.subr.bf16.mxu0 0
      %873 = vmatpush1.bf16.msra.mxu0 0
      %874 = vmatprep.subr.bf16.mxu0 0
      %875 = vmatpush1.bf16.msra.mxu0 0
      %876 = vmatprep.subr.bf16.mxu0 0
      %877 = vmatpush1.bf16.msra.mxu0 0
      %878 = vmatprep.subr.bf16.mxu0 0
      %879 = vmatpush1.bf16.msra.mxu0 0
      %880 = vmatprep.subr.bf16.mxu0 0
      %881 = vmatpush1.bf16.msra.mxu0 0
      %882 = vmatprep.subr.bf16.mxu0 0
      %883 = vmatpush1.bf16.msra.mxu0 0
      %884 = vmatprep.subr.bf16.mxu0 0
      %885 = vmatpush1.bf16.msra.mxu0 0
      %886 = vmatprep.subr.bf16.mxu0 0
      %887 = vmatpush1.bf16.msra.mxu0 0
      %888 = vmatprep.mubr.bf16.mxu0 0
      %889 = vmatmul.mubr.bf16.gmra.mrb[0].mxu0 %v804
      %v890 = vpop.f32.mrb[0].mxu0
      %v891 = vadd.f32 0.0, %v890
      %v892 = vpop.f32.mrb[0].mxu0
      %v893 = vpop.f32.mrb[0].mxu0
      %v894 = vadd.f32 0.0, %v893
      %v895 = vpop.f32.mrb[0].mxu0
      %896 = vmatprep.mubr.bf16.mxu0 0
      %897 = vmatmul.mubr.bf16.gmra.mrb[0].mxu0 %v805
      %v898 = vpop.f32.mrb[0].mxu0
      %v899 = vadd.f32 0.0, %v898
      %v900 = vpop.f32.mrb[0].mxu0
      %v901 = vpop.f32.mrb[0].mxu0
      %v902 = vadd.f32 0.0, %v901
      %v903 = vpop.f32.mrb[0].mxu0
      %904 = vdwg.mxu0
      %v905 = vadd.f32 %v769, %v891
      %v906 = vadd.f32 %v772, %v894
      %v907 = vadd.f32 %v777, %v899
      %v908 = vadd.f32 %v780, %v902
      %s909 = scalar_lea.vmem %s1, 192
      %v910 = vld [vmem:[%s909] sm:$0xf]
      %v911 = vld [vmem:[%s909 + $0x4] sm:$0xf]
      %v912 = vld [vmem:[%s909 + $0x8] sm:$0xf]
      %v913 = vld [vmem:[%s909 + $0xc] sm:$0xf]
      %v914 = vld [vmem:[%s909 + $0x10] sm:$0xf]
      %v915 = vld [vmem:[%s909 + $0x14] sm:$0xf]
      %v916 = vld [vmem:[%s909 + $0x18] sm:$0xf]
      %v917 = vld [vmem:[%s909 + $0x1c] sm:$0xf]
      %v918 = vld [vmem:[%s909 + $0x20] sm:$0xf]
      %v919 = vld [vmem:[%s909 + $0x24] sm:$0xf]
      %v920 = vld [vmem:[%s909 + $0x28] sm:$0xf]
      %v921 = vld [vmem:[%s909 + $0x2c] sm:$0xf]
      %v922 = vld [vmem:[%s909 + $0x30] sm:$0xf]
      %v923 = vld [vmem:[%s909 + $0x34] sm:$0xf]
      %v924 = vld [vmem:[%s909 + $0x38] sm:$0xf]
      %v925 = vld [vmem:[%s909 + $0x3c] sm:$0xf]
      %v930 = vunpack.c.l.b16 %v386
      %v931 = vunpack.c.l.b16 %v387
      %v932 = vunpack.c.l.b16 %v388
      %v933 = vunpack.c.l.b16 %v389
      %v934 = vpack.c.b16 %v931, %v930
      %v935 = vpack.c.b16 %v933, %v932
      %v954 = vunpack.c.l.b16 %v910
      %v955 = vunpack.c.l.b16 %v911
      %v956 = vunpack.c.l.b16 %v912
      %v957 = vunpack.c.l.b16 %v913
      %v958 = vunpack.c.l.b16 %v914
      %v959 = vunpack.c.l.b16 %v915
      %v960 = vunpack.c.l.b16 %v916
      %v961 = vunpack.c.l.b16 %v917
      %v962 = vunpack.c.l.b16 %v918
      %v963 = vunpack.c.l.b16 %v919
      %v964 = vunpack.c.l.b16 %v920
      %v965 = vunpack.c.l.b16 %v921
      %v966 = vunpack.c.l.b16 %v922
      %v967 = vunpack.c.l.b16 %v923
      %v968 = vunpack.c.l.b16 %v924
      %v969 = vunpack.c.l.b16 %v925
      %v970 = vpack.c.b16 %v955, %v954
      %v971 = vpack.c.b16 %v957, %v956
      %v972 = vpack.c.b16 %v959, %v958
      %v973 = vpack.c.b16 %v961, %v960
      %v974 = vpack.c.b16 %v963, %v962
      %v975 = vpack.c.b16 %v965, %v964
      %v976 = vpack.c.b16 %v967, %v966
      %v977 = vpack.c.b16 %v969, %v968
      %986 = vmatprep.subr.bf16.mxu0 0
      %987 = vmatpush1.bf16.msra.mxu0 %v970
      %988 = vmatprep.subr.bf16.mxu0 0
      %989 = vmatpush1.bf16.msra.mxu0 %v971
      %990 = vmatprep.subr.bf16.mxu0 0
      %991 = vmatpush1.bf16.msra.mxu0 %v972
      %992 = vmatprep.subr.bf16.mxu0 0
      %993 = vmatpush1.bf16.msra.mxu0 %v973
      %994 = vmatprep.subr.bf16.mxu0 0
      %995 = vmatpush1.bf16.msra.mxu0 %v974
      %996 = vmatprep.subr.bf16.mxu0 0
      %997 = vmatpush1.bf16.msra.mxu0 %v975
      %998 = vmatprep.subr.bf16.mxu0 0
      %999 = vmatpush1.bf16.msra.mxu0 %v976
      %1000 = vmatprep.subr.bf16.mxu0 0
      %1001 = vmatpush1.bf16.msra.mxu0 %v977
      %1002 = vmatprep.subr.bf16.mxu0 0
      %1003 = vmatpush1.bf16.msra.mxu0 0
      %1004 = vmatprep.subr.bf16.mxu0 0
      %1005 = vmatpush1.bf16.msra.mxu0 0
      %1006 = vmatprep.subr.bf16.mxu0 0
      %1007 = vmatpush1.bf16.msra.mxu0 0
      %1008 = vmatprep.subr.bf16.mxu0 0
      %1009 = vmatpush1.bf16.msra.mxu0 0
      %1010 = vmatprep.subr.bf16.mxu0 0
      %1011 = vmatpush1.bf16.msra.mxu0 0
      %1012 = vmatprep.subr.bf16.mxu0 0
      %1013 = vmatpush1.bf16.msra.mxu0 0
      %1014 = vmatprep.subr.bf16.mxu0 0
      %1015 = vmatpush1.bf16.msra.mxu0 0
      %1016 = vmatprep.subr.bf16.mxu0 0
      %1017 = vmatpush1.bf16.msra.mxu0 0
      %1018 = vmatprep.mubr.bf16.mxu0 0
      %1019 = vmatmul.mubr.bf16.gmra.mrb[0].mxu0 %v934
      %v1020 = vpop.f32.mrb[0].mxu0
      %v1021 = vadd.f32 0.0, %v1020
      %v1022 = vpop.f32.mrb[0].mxu0
      %v1023 = vpop.f32.mrb[0].mxu0
      %v1024 = vadd.f32 0.0, %v1023
      %v1025 = vpop.f32.mrb[0].mxu0
      %1026 = vmatprep.mubr.bf16.mxu0 0
      %1027 = vmatmul.mubr.bf16.gmra.mrb[0].mxu0 %v935
      %v1028 = vpop.f32.mrb[0].mxu0
      %v1029 = vadd.f32 0.0, %v1028
      %v1030 = vpop.f32.mrb[0].mxu0
      %v1031 = vpop.f32.mrb[0].mxu0
      %v1032 = vadd.f32 0.0, %v1031
      %v1033 = vpop.f32.mrb[0].mxu0
      %1034 = vdwg.mxu0
      %v1035 = vadd.f32 %v905, %v1021
      %v1036 = vadd.f32 %v906, %v1024
      %v1037 = vadd.f32 %v907, %v1029
      %v1038 = vadd.f32 %v908, %v1032
      %s1039 = scalar_lea.vmem %s1, 256
      %v1040 = vld [vmem:[%s1039] sm:$0xf]
      %v1041 = vld [vmem:[%s1039 + $0x4] sm:$0xf]
      %v1042 = vld [vmem:[%s1039 + $0x8] sm:$0xf]
      %v1043 = vld [vmem:[%s1039 + $0xc] sm:$0xf]
      %v1044 = vld [vmem:[%s1039 + $0x10] sm:$0xf]
      %v1045 = vld [vmem:[%s1039 + $0x14] sm:$0xf]
      %v1046 = vld [vmem:[%s1039 + $0x18] sm:$0xf]
      %v1047 = vld [vmem:[%s1039 + $0x1c] sm:$0xf]
      %v1048 = vld [vmem:[%s1039 + $0x20] sm:$0xf]
      %v1049 = vld [vmem:[%s1039 + $0x24] sm:$0xf]
      %v1050 = vld [vmem:[%s1039 + $0x28] sm:$0xf]
      %v1051 = vld [vmem:[%s1039 + $0x2c] sm:$0xf]
      %v1052 = vld [vmem:[%s1039 + $0x30] sm:$0xf]
      %v1053 = vld [vmem:[%s1039 + $0x34] sm:$0xf]
      %v1054 = vld [vmem:[%s1039 + $0x38] sm:$0xf]
      %v1055 = vld [vmem:[%s1039 + $0x3c] sm:$0xf]
      %v1060 = vunpack.c.l.b16 %v393
      %v1061 = vunpack.c.l.b16 %v394
      %v1062 = vunpack.c.l.b16 %v395
      %v1063 = vunpack.c.l.b16 %v396
      %v1064 = vpack.c.b16 %v1061, %v1060
      %v1065 = vpack.c.b16 %v1063, %v1062
      %v1084 = vunpack.c.l.b16 %v1040
      %v1085 = vunpack.c.l.b16 %v1041
      %v1086 = vunpack.c.l.b16 %v1042
      %v1087 = vunpack.c.l.b16 %v1043
      %v1088 = vunpack.c.l.b16 %v1044
      %v1089 = vunpack.c.l.b16 %v1045
      %v1090 = vunpack.c.l.b16 %v1046
      %v1091 = vunpack.c.l.b16 %v1047
      %v1092 = vunpack.c.l.b16 %v1048
      %v1093 = vunpack.c.l.b16 %v1049
      %v1094 = vunpack.c.l.b16 %v1050
      %v1095 = vunpack.c.l.b16 %v1051
      %v1096 = vunpack.c.l.b16 %v1052
      %v1097 = vunpack.c.l.b16 %v1053
      %v1098 = vunpack.c.l.b16 %v1054
      %v1099 = vunpack.c.l.b16 %v1055
      %v1100 = vpack.c.b16 %v1085, %v1084
      %v1101 = vpack.c.b16 %v1087, %v1086
      %v1102 = vpack.c.b16 %v1089, %v1088
      %v1103 = vpack.c.b16 %v1091, %v1090
      %v1104 = vpack.c.b16 %v1093, %v1092
      %v1105 = vpack.c.b16 %v1095, %v1094
      %v1106 = vpack.c.b16 %v1097, %v1096
      %v1107 = vpack.c.b16 %v1099, %v1098
      %1116 = vmatprep.subr.bf16.mxu0 0
      %1117 = vmatpush1.bf16.msra.mxu0 %v1100
      %1118 = vmatprep.subr.bf16.mxu0 0
      %1119 = vmatpush1.bf16.msra.mxu0 %v1101
      %1120 = vmatprep.subr.bf16.mxu0 0
      %1121 = vmatpush1.bf16.msra.mxu0 %v1102
      %1122 = vmatprep.subr.bf16.mxu0 0
      %1123 = vmatpush1.bf16.msra.mxu0 %v1103
      %1124 = vmatprep.subr.bf16.mxu0 0
      %1125 = vmatpush1.bf16.msra.mxu0 %v1104
      %1126 = vmatprep.subr.bf16.mxu0 0
      %1127 = vmatpush1.bf16.msra.mxu0 %v1105
      %1128 = vmatprep.subr.bf16.mxu0 0
      %1129 = vmatpush1.bf16.msra.mxu0 %v1106
      %1130 = vmatprep.subr.bf16.mxu0 0
      %1131 = vmatpush1.bf16.msra.mxu0 %v1107
      %1132 = vmatprep.subr.bf16.mxu0 0
      %1133 = vmatpush1.bf16.msra.mxu0 0
      %1134 = vmatprep.subr.bf16.mxu0 0
      %1135 = vmatpush1.bf16.msra.mxu0 0
      %1136 = vmatprep.subr.bf16.mxu0 0
      %1137 = vmatpush1.bf16.msra.mxu0 0
      %1138 = vmatprep.subr.bf16.mxu0 0
      %1139 = vmatpush1.bf16.msra.mxu0 0
      %1140 = vmatprep.subr.bf16.mxu0 0
      %1141 = vmatpush1.bf16.msra.mxu0 0
      %1142 = vmatprep.subr.bf16.mxu0 0
      %1143 = vmatpush1.bf16.msra.mxu0 0
      %1144 = vmatprep.subr.bf16.mxu0 0
      %1145 = vmatpush1.bf16.msra.mxu0 0
      %1146 = vmatprep.subr.bf16.mxu0 0
      %1147 = vmatpush1.bf16.msra.mxu0 0
      %1148 = vmatprep.mubr.bf16.mxu0 0
      %1149 = vmatmul.mubr.bf16.gmra.mrb[0].mxu0 %v1064
      %v1150 = vpop.f32.mrb[0].mxu0
      %v1151 = vadd.f32 0.0, %v1150
      %v1152 = vpop.f32.mrb[0].mxu0
      %v1153 = vpop.f32.mrb[0].mxu0
      %v1154 = vadd.f32 0.0, %v1153
      %v1155 = vpop.f32.mrb[0].mxu0
      %1156 = vmatprep.mubr.bf16.mxu0 0
      %1157 = vmatmul.mubr.bf16.gmra.mrb[0].mxu0 %v1065
      %v1158 = vpop.f32.mrb[0].mxu0
      %v1159 = vadd.f32 0.0, %v1158
      %v1160 = vpop.f32.mrb[0].mxu0
      %v1161 = vpop.f32.mrb[0].mxu0
      %v1162 = vadd.f32 0.0, %v1161
      %v1163 = vpop.f32.mrb[0].mxu0
      %1164 = vdwg.mxu0
      %v1165 = vadd.f32 %v1035, %v1151
      %v1166 = vadd.f32 %v1036, %v1154
      %v1167 = vadd.f32 %v1037, %v1159
      %v1168 = vadd.f32 %v1038, %v1162
      %s1169 = scalar_lea.vmem %s1, 320
      %v1170 = vld [vmem:[%s1169] sm:$0xf]
      %v1171 = vld [vmem:[%s1169 + $0x4] sm:$0xf]
      %v1172 = vld [vmem:[%s1169 + $0x8] sm:$0xf]
      %v1173 = vld [vmem:[%s1169 + $0xc] sm:$0xf]
      %v1174 = vld [vmem:[%s1169 + $0x10] sm:$0xf]
      %v1175 = vld [vmem:[%s1169 + $0x14] sm:$0xf]
      %v1176 = vld [vmem:[%s1169 + $0x18] sm:$0xf]
      %v1177 = vld [vmem:[%s1169 + $0x1c] sm:$0xf]
      %v1178 = vld [vmem:[%s1169 + $0x20] sm:$0xf]
      %v1179 = vld [vmem:[%s1169 + $0x24] sm:$0xf]
      %v1180 = vld [vmem:[%s1169 + $0x28] sm:$0xf]
      %v1181 = vld [vmem:[%s1169 + $0x2c] sm:$0xf]
      %v1182 = vld [vmem:[%s1169 + $0x30] sm:$0xf]
      %v1183 = vld [vmem:[%s1169 + $0x34] sm:$0xf]
      %v1184 = vld [vmem:[%s1169 + $0x38] sm:$0xf]
      %v1185 = vld [vmem:[%s1169 + $0x3c] sm:$0xf]
      %v1186 = vunpack.c.l.b16 %v414
      %v1187 = vunpack.c.l.b16 %v428
      %v1188 = vunpack.c.l.b16 %v442
      %v1189 = vunpack.c.l.b16 %v456
      %v1190 = vpack.c.b16 %v1187, %v1186
      %v1191 = vpack.c.b16 %v1189, %v1188
      %v1210 = vunpack.c.l.b16 %v1170
      %v1211 = vunpack.c.l.b16 %v1171
      %v1212 = vunpack.c.l.b16 %v1172
      %v1213 = vunpack.c.l.b16 %v1173
      %v1214 = vunpack.c.l.b16 %v1174
      %v1215 = vunpack.c.l.b16 %v1175
      %v1216 = vunpack.c.l.b16 %v1176
      %v1217 = vunpack.c.l.b16 %v1177
      %v1218 = vunpack.c.l.b16 %v1178
      %v1219 = vunpack.c.l.b16 %v1179
      %v1220 = vunpack.c.l.b16 %v1180
      %v1221 = vunpack.c.l.b16 %v1181
      %v1222 = vunpack.c.l.b16 %v1182
      %v1223 = vunpack.c.l.b16 %v1183
      %v1224 = vunpack.c.l.b16 %v1184
      %v1225 = vunpack.c.l.b16 %v1185
      %v1226 = vpack.c.b16 %v1211, %v1210
      %v1227 = vpack.c.b16 %v1213, %v1212
      %v1228 = vpack.c.b16 %v1215, %v1214
      %v1229 = vpack.c.b16 %v1217, %v1216
      %v1230 = vpack.c.b16 %v1219, %v1218
      %v1231 = vpack.c.b16 %v1221, %v1220
      %v1232 = vpack.c.b16 %v1223, %v1222
      %v1233 = vpack.c.b16 %v1225, %v1224
      %1242 = vmatprep.subr.bf16.mxu0 0
      %1243 = vmatpush1.bf16.msra.mxu0 %v1226
      %1244 = vmatprep.subr.bf16.mxu0 0
      %1245 = vmatpush1.bf16.msra.mxu0 %v1227
      %1246 = vmatprep.subr.bf16.mxu0 0
      %1247 = vmatpush1.bf16.msra.mxu0 %v1228
      %1248 = vmatprep.subr.bf16.mxu0 0
      %1249 = vmatpush1.bf16.msra.mxu0 %v1229
      %1250 = vmatprep.subr.bf16.mxu0 0
      %1251 = vmatpush1.bf16.msra.mxu0 %v1230
      %1252 = vmatprep.subr.bf16.mxu0 0
      %1253 = vmatpush1.bf16.msra.mxu0 %v1231
      %1254 = vmatprep.subr.bf16.mxu0 0
      %1255 = vmatpush1.bf16.msra.mxu0 %v1232
      %1256 = vmatprep.subr.bf16.mxu0 0
      %1257 = vmatpush1.bf16.msra.mxu0 %v1233
      %1258 = vmatprep.subr.bf16.mxu0 0
      %1259 = vmatpush1.bf16.msra.mxu0 0
      %1260 = vmatprep.subr.bf16.mxu0 0
      %1261 = vmatpush1.bf16.msra.mxu0 0
      %1262 = vmatprep.subr.bf16.mxu0 0
      %1263 = vmatpush1.bf16.msra.mxu0 0
      %1264 = vmatprep.subr.bf16.mxu0 0
      %1265 = vmatpush1.bf16.msra.mxu0 0
      %1266 = vmatprep.subr.bf16.mxu0 0
      %1267 = vmatpush1.bf16.msra.mxu0 0
      %1268 = vmatprep.subr.bf16.mxu0 0
      %1269 = vmatpush1.bf16.msra.mxu0 0
      %1270 = vmatprep.subr.bf16.mxu0 0
      %1271 = vmatpush1.bf16.msra.mxu0 0
      %1272 = vmatprep.subr.bf16.mxu0 0
      %1273 = vmatpush1.bf16.msra.mxu0 0
      %1274 = vmatprep.mubr.bf16.mxu0 0
      %1275 = vmatmul.mubr.bf16.gmra.mrb[0].mxu0 %v1190
      %v1276 = vpop.f32.mrb[0].mxu0
      %v1277 = vadd.f32 0.0, %v1276
      %v1278 = vpop.f32.mrb[0].mxu0
      %v1279 = vpop.f32.mrb[0].mxu0
      %v1280 = vadd.f32 0.0, %v1279
      %v1281 = vpop.f32.mrb[0].mxu0
      %1282 = vmatprep.mubr.bf16.mxu0 0
      %1283 = vmatmul.mubr.bf16.gmra.mrb[0].mxu0 %v1191
      %v1284 = vpop.f32.mrb[0].mxu0
      %v1285 = vadd.f32 0.0, %v1284
      %v1286 = vpop.f32.mrb[0].mxu0
      %v1287 = vpop.f32.mrb[0].mxu0
      %v1288 = vadd.f32 0.0, %v1287
      %v1289 = vpop.f32.mrb[0].mxu0
      %1290 = vdwg.mxu0
      %v1291 = vadd.f32 %v1165, %v1277
      %v1292 = vadd.f32 %v1166, %v1280
      %v1293 = vadd.f32 %v1167, %v1285
      %v1294 = vadd.f32 %v1168, %v1288
      %s1295 = scalar_lea.vmem %s1, 384
      %v1296 = vld [vmem:[%s1295] sm:$0xf]
      %v1297 = vld [vmem:[%s1295 + $0x4] sm:$0xf]
      %v1298 = vld [vmem:[%s1295 + $0x8] sm:$0xf]
      %v1299 = vld [vmem:[%s1295 + $0xc] sm:$0xf]
      %v1300 = vld [vmem:[%s1295 + $0x10] sm:$0xf]
      %v1301 = vld [vmem:[%s1295 + $0x14] sm:$0xf]
      %v1302 = vld [vmem:[%s1295 + $0x18] sm:$0xf]
      %v1303 = vld [vmem:[%s1295 + $0x1c] sm:$0xf]
      %v1304 = vld [vmem:[%s1295 + $0x20] sm:$0xf]
      %v1305 = vld [vmem:[%s1295 + $0x24] sm:$0xf]
      %v1306 = vld [vmem:[%s1295 + $0x28] sm:$0xf]
      %v1307 = vld [vmem:[%s1295 + $0x2c] sm:$0xf]
      %v1308 = vld [vmem:[%s1295 + $0x30] sm:$0xf]
      %v1309 = vld [vmem:[%s1295 + $0x34] sm:$0xf]
      %v1310 = vld [vmem:[%s1295 + $0x38] sm:$0xf]
      %v1311 = vld [vmem:[%s1295 + $0x3c] sm:$0xf]
      %v1316 = vunpack.c.l.b16 %v461
      %v1317 = vunpack.c.l.b16 %v462
      %v1318 = vunpack.c.l.b16 %v463
      %v1319 = vunpack.c.l.b16 %v464
      %v1320 = vpack.c.b16 %v1317, %v1316
      %v1321 = vpack.c.b16 %v1319, %v1318
      %v1340 = vunpack.c.l.b16 %v1296
      %v1341 = vunpack.c.l.b16 %v1297
      %v1342 = vunpack.c.l.b16 %v1298
      %v1343 = vunpack.c.l.b16 %v1299
      %v1344 = vunpack.c.l.b16 %v1300
      %v1345 = vunpack.c.l.b16 %v1301
      %v1346 = vunpack.c.l.b16 %v1302
      %v1347 = vunpack.c.l.b16 %v1303
      %v1348 = vunpack.c.l.b16 %v1304
      %v1349 = vunpack.c.l.b16 %v1305
      %v1350 = vunpack.c.l.b16 %v1306
      %v1351 = vunpack.c.l.b16 %v1307
      %v1352 = vunpack.c.l.b16 %v1308
      %v1353 = vunpack.c.l.b16 %v1309
      %v1354 = vunpack.c.l.b16 %v1310
      %v1355 = vunpack.c.l.b16 %v1311
      %v1356 = vpack.c.b16 %v1341, %v1340
      %v1357 = vpack.c.b16 %v1343, %v1342
      %v1358 = vpack.c.b16 %v1345, %v1344
      %v1359 = vpack.c.b16 %v1347, %v1346
      %v1360 = vpack.c.b16 %v1349, %v1348
      %v1361 = vpack.c.b16 %v1351, %v1350
      %v1362 = vpack.c.b16 %v1353, %v1352
      %v1363 = vpack.c.b16 %v1355, %v1354
      %1372 = vmatprep.subr.bf16.mxu0 0
      %1373 = vmatpush1.bf16.msra.mxu0 %v1356
      %1374 = vmatprep.subr.bf16.mxu0 0
      %1375 = vmatpush1.bf16.msra.mxu0 %v1357
      %1376 = vmatprep.subr.bf16.mxu0 0
      %1377 = vmatpush1.bf16.msra.mxu0 %v1358
      %1378 = vmatprep.subr.bf16.mxu0 0
      %1379 = vmatpush1.bf16.msra.mxu0 %v1359
      %1380 = vmatprep.subr.bf16.mxu0 0
      %1381 = vmatpush1.bf16.msra.mxu0 %v1360
      %1382 = vmatprep.subr.bf16.mxu0 0
      %1383 = vmatpush1.bf16.msra.mxu0 %v1361
      %1384 = vmatprep.subr.bf16.mxu0 0
      %1385 = vmatpush1.bf16.msra.mxu0 %v1362
      %1386 = vmatprep.subr.bf16.mxu0 0
      %1387 = vmatpush1.bf16.msra.mxu0 %v1363
      %1388 = vmatprep.subr.bf16.mxu0 0
      %1389 = vmatpush1.bf16.msra.mxu0 0
      %1390 = vmatprep.subr.bf16.mxu0 0
      %1391 = vmatpush1.bf16.msra.mxu0 0
      %1392 = vmatprep.subr.bf16.mxu0 0
      %1393 = vmatpush1.bf16.msra.mxu0 0
      %1394 = vmatprep.subr.bf16.mxu0 0
      %1395 = vmatpush1.bf16.msra.mxu0 0
      %1396 = vmatprep.subr.bf16.mxu0 0
      %1397 = vmatpush1.bf16.msra.mxu0 0
      %1398 = vmatprep.subr.bf16.mxu0 0
      %1399 = vmatpush1.bf16.msra.mxu0 0
      %1400 = vmatprep.subr.bf16.mxu0 0
      %1401 = vmatpush1.bf16.msra.mxu0 0
      %1402 = vmatprep.subr.bf16.mxu0 0
      %1403 = vmatpush1.bf16.msra.mxu0 0
      %1404 = vmatprep.mubr.bf16.mxu0 0
      %1405 = vmatmul.mubr.bf16.gmra.mrb[0].mxu0 %v1320
      %v1406 = vpop.f32.mrb[0].mxu0
      %v1407 = vadd.f32 0.0, %v1406
      %v1408 = vpop.f32.mrb[0].mxu0
      %v1409 = vpop.f32.mrb[0].mxu0
      %v1410 = vadd.f32 0.0, %v1409
      %v1411 = vpop.f32.mrb[0].mxu0
      %1412 = vmatprep.mubr.bf16.mxu0 0
      %1413 = vmatmul.mubr.bf16.gmra.mrb[0].mxu0 %v1321
      %v1414 = vpop.f32.mrb[0].mxu0
      %v1415 = vadd.f32 0.0, %v1414
      %v1416 = vpop.f32.mrb[0].mxu0
      %v1417 = vpop.f32.mrb[0].mxu0
      %v1418 = vadd.f32 0.0, %v1417
      %v1419 = vpop.f32.mrb[0].mxu0
      %1420 = vdwg.mxu0
      %v1421 = vadd.f32 %v1291, %v1407
      %v1422 = vadd.f32 %v1292, %v1410
      %v1423 = vadd.f32 %v1293, %v1415
      %v1424 = vadd.f32 %v1294, %v1418
      %s1425 = scalar_lea.vmem %s1, 448
      %v1426 = vld [vmem:[%s1425] sm:$0xf]
      %v1427 = vld [vmem:[%s1425 + $0x4] sm:$0xf]
      %v1428 = vld [vmem:[%s1425 + $0x8] sm:$0xf]
      %v1429 = vld [vmem:[%s1425 + $0xc] sm:$0xf]
      %v1430 = vld [vmem:[%s1425 + $0x10] sm:$0xf]
      %v1431 = vld [vmem:[%s1425 + $0x14] sm:$0xf]
      %v1432 = vld [vmem:[%s1425 + $0x18] sm:$0xf]
      %v1433 = vld [vmem:[%s1425 + $0x1c] sm:$0xf]
      %v1434 = vld [vmem:[%s1425 + $0x20] sm:$0xf]
      %v1435 = vld [vmem:[%s1425 + $0x24] sm:$0xf]
      %v1436 = vld [vmem:[%s1425 + $0x28] sm:$0xf]
      %v1437 = vld [vmem:[%s1425 + $0x2c] sm:$0xf]
      %v1438 = vld [vmem:[%s1425 + $0x30] sm:$0xf]
      %v1439 = vld [vmem:[%s1425 + $0x34] sm:$0xf]
      %v1440 = vld [vmem:[%s1425 + $0x38] sm:$0xf]
      %v1441 = vld [vmem:[%s1425 + $0x3c] sm:$0xf]
      %v1446 = vunpack.c.l.b16 %v468
      %v1447 = vunpack.c.l.b16 %v469
      %v1448 = vunpack.c.l.b16 %v470
      %v1449 = vunpack.c.l.b16 %v471
      %v1450 = vpack.c.b16 %v1447, %v1446
      %v1451 = vpack.c.b16 %v1449, %v1448
      %v1470 = vunpack.c.l.b16 %v1426
      %v1471 = vunpack.c.l.b16 %v1427
      %v1472 = vunpack.c.l.b16 %v1428
      %v1473 = vunpack.c.l.b16 %v1429
      %v1474 = vunpack.c.l.b16 %v1430
      %v1475 = vunpack.c.l.b16 %v1431
      %v1476 = vunpack.c.l.b16 %v1432
      %v1477 = vunpack.c.l.b16 %v1433
      %v1478 = vunpack.c.l.b16 %v1434
      %v1479 = vunpack.c.l.b16 %v1435
      %v1480 = vunpack.c.l.b16 %v1436
      %v1481 = vunpack.c.l.b16 %v1437
      %v1482 = vunpack.c.l.b16 %v1438
      %v1483 = vunpack.c.l.b16 %v1439
      %v1484 = vunpack.c.l.b16 %v1440
      %v1485 = vunpack.c.l.b16 %v1441
      %v1486 = vpack.c.b16 %v1471, %v1470
      %v1487 = vpack.c.b16 %v1473, %v1472
      %v1488 = vpack.c.b16 %v1475, %v1474
      %v1489 = vpack.c.b16 %v1477, %v1476
      %v1490 = vpack.c.b16 %v1479, %v1478
      %v1491 = vpack.c.b16 %v1481, %v1480
      %v1492 = vpack.c.b16 %v1483, %v1482
      %v1493 = vpack.c.b16 %v1485, %v1484
      %1502 = vmatprep.subr.bf16.mxu0 0
      %1503 = vmatpush1.bf16.msra.mxu0 %v1486
      %1504 = vmatprep.subr.bf16.mxu0 0
      %1505 = vmatpush1.bf16.msra.mxu0 %v1487
      %1506 = vmatprep.subr.bf16.mxu0 0
      %1507 = vmatpush1.bf16.msra.mxu0 %v1488
      %1508 = vmatprep.subr.bf16.mxu0 0
      %1509 = vmatpush1.bf16.msra.mxu0 %v1489
      %1510 = vmatprep.subr.bf16.mxu0 0
      %1511 = vmatpush1.bf16.msra.mxu0 %v1490
      %1512 = vmatprep.subr.bf16.mxu0 0
      %1513 = vmatpush1.bf16.msra.mxu0 %v1491
      %1514 = vmatprep.subr.bf16.mxu0 0
      %1515 = vmatpush1.bf16.msra.mxu0 %v1492
      %1516 = vmatprep.subr.bf16.mxu0 0
      %1517 = vmatpush1.bf16.msra.mxu0 %v1493
      %1518 = vmatprep.subr.bf16.mxu0 0
      %1519 = vmatpush1.bf16.msra.mxu0 0
      %1520 = vmatprep.subr.bf16.mxu0 0
      %1521 = vmatpush1.bf16.msra.mxu0 0
      %1522 = vmatprep.subr.bf16.mxu0 0
      %1523 = vmatpush1.bf16.msra.mxu0 0
      %1524 = vmatprep.subr.bf16.mxu0 0
      %1525 = vmatpush1.bf16.msra.mxu0 0
      %1526 = vmatprep.subr.bf16.mxu0 0
      %1527 = vmatpush1.bf16.msra.mxu0 0
      %1528 = vmatprep.subr.bf16.mxu0 0
      %1529 = vmatpush1.bf16.msra.mxu0 0
      %1530 = vmatprep.subr.bf16.mxu0 0
      %1531 = vmatpush1.bf16.msra.mxu0 0
      %1532 = vmatprep.subr.bf16.mxu0 0
      %1533 = vmatpush1.bf16.msra.mxu0 0
      %1534 = vmatprep.mubr.bf16.mxu0 0
      %1535 = vmatmul.mubr.bf16.gmra.mrb[0].mxu0 %v1450
      %v1536 = vpop.f32.mrb[0].mxu0
      %v1537 = vadd.f32 0.0, %v1536
      %v1538 = vpop.f32.mrb[0].mxu0
      %v1539 = vpop.f32.mrb[0].mxu0
      %v1540 = vadd.f32 0.0, %v1539
      %v1541 = vpop.f32.mrb[0].mxu0
      %1542 = vmatprep.mubr.bf16.mxu0 0
      %1543 = vmatmul.mubr.bf16.gmra.mrb[0].mxu0 %v1451
      %v1544 = vpop.f32.mrb[0].mxu0
      %v1545 = vadd.f32 0.0, %v1544
      %v1546 = vpop.f32.mrb[0].mxu0
      %v1547 = vpop.f32.mrb[0].mxu0
      %v1548 = vadd.f32 0.0, %v1547
      %v1549 = vpop.f32.mrb[0].mxu0
      %1550 = vdwg.mxu0
      %v1551 = vadd.f32 %v1421, %v1537
      %v1552 = vadd.f32 %v1422, %v1540
      %v1553 = vadd.f32 %v1423, %v1545
      %v1554 = vadd.f32 %v1424, %v1548
      %s1555 = scalar_lea.vmem %s1, 512
      %v1556 = vld [vmem:[%s1555] sm:$0xf]
      %v1557 = vld [vmem:[%s1555 + $0x4] sm:$0xf]
      %v1558 = vld [vmem:[%s1555 + $0x8] sm:$0xf]
      %v1559 = vld [vmem:[%s1555 + $0xc] sm:$0xf]
      %v1560 = vld [vmem:[%s1555 + $0x10] sm:$0xf]
      %v1561 = vld [vmem:[%s1555 + $0x14] sm:$0xf]
      %v1562 = vld [vmem:[%s1555 + $0x18] sm:$0xf]
      %v1563 = vld [vmem:[%s1555 + $0x1c] sm:$0xf]
      %v1564 = vld [vmem:[%s1555 + $0x20] sm:$0xf]
      %v1565 = vld [vmem:[%s1555 + $0x24] sm:$0xf]
      %v1566 = vld [vmem:[%s1555 + $0x28] sm:$0xf]
      %v1567 = vld [vmem:[%s1555 + $0x2c] sm:$0xf]
      %v1568 = vld [vmem:[%s1555 + $0x30] sm:$0xf]
      %v1569 = vld [vmem:[%s1555 + $0x34] sm:$0xf]
      %v1570 = vld [vmem:[%s1555 + $0x38] sm:$0xf]
      %v1571 = vld [vmem:[%s1555 + $0x3c] sm:$0xf]
      %v1572 = vunpack.c.l.b16 %v489
      %v1573 = vunpack.c.l.b16 %v503
      %v1574 = vunpack.c.l.b16 %v517
      %v1575 = vunpack.c.l.b16 %v531
      %v1576 = vpack.c.b16 %v1573, %v1572
      %v1577 = vpack.c.b16 %v1575, %v1574
      %v1596 = vunpack.c.l.b16 %v1556
      %v1597 = vunpack.c.l.b16 %v1557
      %v1598 = vunpack.c.l.b16 %v1558
      %v1599 = vunpack.c.l.b16 %v1559
      %v1600 = vunpack.c.l.b16 %v1560
      %v1601 = vunpack.c.l.b16 %v1561
      %v1602 = vunpack.c.l.b16 %v1562
      %v1603 = vunpack.c.l.b16 %v1563
      %v1604 = vunpack.c.l.b16 %v1564
      %v1605 = vunpack.c.l.b16 %v1565
      %v1606 = vunpack.c.l.b16 %v1566
      %v1607 = vunpack.c.l.b16 %v1567
      %v1608 = vunpack.c.l.b16 %v1568
      %v1609 = vunpack.c.l.b16 %v1569
      %v1610 = vunpack.c.l.b16 %v1570
      %v1611 = vunpack.c.l.b16 %v1571
      %v1612 = vpack.c.b16 %v1597, %v1596
      %v1613 = vpack.c.b16 %v1599, %v1598
      %v1614 = vpack.c.b16 %v1601, %v1600
      %v1615 = vpack.c.b16 %v1603, %v1602
      %v1616 = vpack.c.b16 %v1605, %v1604
      %v1617 = vpack.c.b16 %v1607, %v1606
      %v1618 = vpack.c.b16 %v1609, %v1608
      %v1619 = vpack.c.b16 %v1611, %v1610
      %1628 = vmatprep.subr.bf16.mxu0 0
      %1629 = vmatpush1.bf16.msra.mxu0 %v1612
      %1630 = vmatprep.subr.bf16.mxu0 0
      %1631 = vmatpush1.bf16.msra.mxu0 %v1613
      %1632 = vmatprep.subr.bf16.mxu0 0
      %1633 = vmatpush1.bf16.msra.mxu0 %v1614
      %1634 = vmatprep.subr.bf16.mxu0 0
      %1635 = vmatpush1.bf16.msra.mxu0 %v1615
      %1636 = vmatprep.subr.bf16.mxu0 0
      %1637 = vmatpush1.bf16.msra.mxu0 %v1616
      %1638 = vmatprep.subr.bf16.mxu0 0
      %1639 = vmatpush1.bf16.msra.mxu0 %v1617
      %1640 = vmatprep.subr.bf16.mxu0 0
      %1641 = vmatpush1.bf16.msra.mxu0 %v1618
      %1642 = vmatprep.subr.bf16.mxu0 0
      %1643 = vmatpush1.bf16.msra.mxu0 %v1619
      %1644 = vmatprep.subr.bf16.mxu0 0
      %1645 = vmatpush1.bf16.msra.mxu0 0
      %1646 = vmatprep.subr.bf16.mxu0 0
      %1647 = vmatpush1.bf16.msra.mxu0 0
      %1648 = vmatprep.subr.bf16.mxu0 0
      %1649 = vmatpush1.bf16.msra.mxu0 0
      %1650 = vmatprep.subr.bf16.mxu0 0
      %1651 = vmatpush1.bf16.msra.mxu0 0
      %1652 = vmatprep.subr.bf16.mxu0 0
      %1653 = vmatpush1.bf16.msra.mxu0 0
      %1654 = vmatprep.subr.bf16.mxu0 0
      %1655 = vmatpush1.bf16.msra.mxu0 0
      %1656 = vmatprep.subr.bf16.mxu0 0
      %1657 = vmatpush1.bf16.msra.mxu0 0
      %1658 = vmatprep.subr.bf16.mxu0 0
      %1659 = vmatpush1.bf16.msra.mxu0 0
      %1660 = vmatprep.mubr.bf16.mxu0 0
      %1661 = vmatmul.mubr.bf16.gmra.mrb[0].mxu0 %v1576
      %v1662 = vpop.f32.mrb[0].mxu0
      %v1663 = vadd.f32 0.0, %v1662
      %v1664 = vpop.f32.mrb[0].mxu0
      %v1665 = vpop.f32.mrb[0].mxu0
      %v1666 = vadd.f32 0.0, %v1665
      %v1667 = vpop.f32.mrb[0].mxu0
      %1668 = vmatprep.mubr.bf16.mxu0 0
      %1669 = vmatmul.mubr.bf16.gmra.mrb[0].mxu0 %v1577
      %v1670 = vpop.f32.mrb[0].mxu0
      %v1671 = vadd.f32 0.0, %v1670
      %v1672 = vpop.f32.mrb[0].mxu0
      %v1673 = vpop.f32.mrb[0].mxu0
      %v1674 = vadd.f32 0.0, %v1673
      %v1675 = vpop.f32.mrb[0].mxu0
      %1676 = vdwg.mxu0
      %v1677 = vadd.f32 %v1551, %v1663
      %v1678 = vadd.f32 %v1552, %v1666
      %v1679 = vadd.f32 %v1553, %v1671
      %v1680 = vadd.f32 %v1554, %v1674
      %v1681 = vld [vmem:[%s2] sm:$0x1]
      %v1683 = vlaneseq
      %v1684 = vshrl.u32 %v1683, 7
      %v1685 = vsub.s32 0, %v1684
      %v1686 = vrot.slane %v1681, %v1685
      %v1688 = vadd.f32 %v1677, %v1686
      %v1689 = vadd.f32 %v1678, %v1686
      %v1690 = vadd.f32 %v1679, %v1686
      %v1691 = vadd.f32 %v1680, %v1686
      %v1692 = vmax.f32 %v1688, 0.0
      %v1693 = vmax.f32 %v1689, 0.0
      %v1694 = vmax.f32 %v1690, 0.0
      %v1695 = vmax.f32 %v1691, 0.0
      %v1696 = vpack.c.bf16 %v1692, %v1692
      %v1697 = vpack.c.bf16 %v1693, %v1693
      %v1698 = vpack.c.bf16 %v1694, %v1694
      %v1699 = vpack.c.bf16 %v1695, %v1695
      %1700 = vst [vmem:[%s292] sm:$0xf] %v1696
      %1701 = vst [vmem:[%s292 + $0x4] sm:$0xf] %v1697
      %1702 = vst [vmem:[%s292 + $0x8] sm:$0xf] %v1698
      %1703 = vst [vmem:[%s292 + $0xc] sm:$0xf] %v1699
      %v1704 = vld [vmem:[%s3] sm:$0xf]
      %v1705 = vld [vmem:[%s3 + $0x4] sm:$0xf]
      %v1706 = vld [vmem:[%s3 + $0x8] sm:$0xf]
      %v1707 = vld [vmem:[%s3 + $0xc] sm:$0xf]
      %v1708 = vld [vmem:[%s3 + $0x10] sm:$0xf]
      %v1709 = vld [vmem:[%s3 + $0x14] sm:$0xf]
      %v1710 = vld [vmem:[%s3 + $0x18] sm:$0xf]
      %v1711 = vld [vmem:[%s3 + $0x1c] sm:$0xf]
      %v1712 = vld [vmem:[%s3 + $0x20] sm:$0xf]
      %v1713 = vld [vmem:[%s3 + $0x24] sm:$0xf]
      %v1714 = vld [vmem:[%s3 + $0x28] sm:$0xf]
      %v1715 = vld [vmem:[%s3 + $0x2c] sm:$0xf]
      %v1716 = vld [vmem:[%s3 + $0x30] sm:$0xf]
      %v1717 = vld [vmem:[%s3 + $0x34] sm:$0xf]
      %v1718 = vld [vmem:[%s3 + $0x38] sm:$0xf]
      %v1719 = vld [vmem:[%s3 + $0x3c] sm:$0xf]
      %v1720 = vld [vmem:[%s4] sm:$0x1]
      %v1722 = vlaneseq
      %v1723 = vshrl.u32 %v1722, 7
      %v1724 = vsub.s32 0, %v1723
      %v1725 = vrot.slane %v1720, %v1724
      %v1743 = vunpack.c.l.b16 %v1704
      %v1744 = vunpack.c.l.b16 %v1705
      %v1745 = vunpack.c.l.b16 %v1706
      %v1746 = vunpack.c.l.b16 %v1707
      %v1747 = vunpack.c.l.b16 %v1708
      %v1748 = vunpack.c.l.b16 %v1709
      %v1749 = vunpack.c.l.b16 %v1710
      %v1750 = vunpack.c.l.b16 %v1711
      %v1751 = vunpack.c.l.b16 %v1712
      %v1752 = vunpack.c.l.b16 %v1713
      %v1753 = vunpack.c.l.b16 %v1714
      %v1754 = vunpack.c.l.b16 %v1715
      %v1755 = vunpack.c.l.b16 %v1716
      %v1756 = vunpack.c.l.b16 %v1717
      %v1757 = vunpack.c.l.b16 %v1718
      %v1758 = vunpack.c.l.b16 %v1719
      %v1759 = vpack.c.b16 %v1744, %v1743
      %v1760 = vpack.c.b16 %v1746, %v1745
      %v1761 = vpack.c.b16 %v1748, %v1747
      %v1762 = vpack.c.b16 %v1750, %v1749
      %v1763 = vpack.c.b16 %v1752, %v1751
      %v1764 = vpack.c.b16 %v1754, %v1753
      %v1765 = vpack.c.b16 %v1756, %v1755
      %v1766 = vpack.c.b16 %v1758, %v1757
      %1775 = vmatprep.subr.bf16.mxu0 0
      %1776 = vmatpush1.bf16.msra.mxu0 %v1759
      %1777 = vmatprep.subr.bf16.mxu0 0
      %1778 = vmatpush1.bf16.msra.mxu0 %v1760
      %1779 = vmatprep.subr.bf16.mxu0 0
      %1780 = vmatpush1.bf16.msra.mxu0 %v1761
      %1781 = vmatprep.subr.bf16.mxu0 0
      %1782 = vmatpush1.bf16.msra.mxu0 %v1762
      %1783 = vmatprep.subr.bf16.mxu0 0
      %1784 = vmatpush1.bf16.msra.mxu0 %v1763
      %1785 = vmatprep.subr.bf16.mxu0 0
      %1786 = vmatpush1.bf16.msra.mxu0 %v1764
      %1787 = vmatprep.subr.bf16.mxu0 0
      %1788 = vmatpush1.bf16.msra.mxu0 %v1765
      %1789 = vmatprep.subr.bf16.mxu0 0
      %1790 = vmatpush1.bf16.msra.mxu0 %v1766
      %1791 = vmatprep.subr.bf16.mxu0 0
      %1792 = vmatpush1.bf16.msra.mxu0 0
      %1793 = vmatprep.subr.bf16.mxu0 0
      %1794 = vmatpush1.bf16.msra.mxu0 0
      %1795 = vmatprep.subr.bf16.mxu0 0
      %1796 = vmatpush1.bf16.msra.mxu0 0
      %1797 = vmatprep.subr.bf16.mxu0 0
      %1798 = vmatpush1.bf16.msra.mxu0 0
      %1799 = vmatprep.subr.bf16.mxu0 0
      %1800 = vmatpush1.bf16.msra.mxu0 0
      %1801 = vmatprep.subr.bf16.mxu0 0
      %1802 = vmatpush1.bf16.msra.mxu0 0
      %1803 = vmatprep.subr.bf16.mxu0 0
      %1804 = vmatpush1.bf16.msra.mxu0 0
      %1805 = vmatprep.subr.bf16.mxu0 0
      %1806 = vmatpush1.bf16.msra.mxu0 0
      %1807 = vmatprep.mubr.bf16.mxu0 0
      %1808 = vmatmul.mubr.bf16.gmra.mrb[0].mxu0 %v1064
      %v1809 = vpop.f32.mrb[0].mxu0
      %v1810 = vadd.f32 %v1725, %v1809
      %v1811 = vpop.f32.mrb[0].mxu0
      %v1812 = vpop.f32.mrb[0].mxu0
      %v1813 = vadd.f32 %v1725, %v1812
      %v1814 = vpop.f32.mrb[0].mxu0
      %1815 = vmatprep.mubr.bf16.mxu0 0
      %1816 = vmatmul.mubr.bf16.gmra.mrb[0].mxu0 %v1065
      %v1817 = vpop.f32.mrb[0].mxu0
      %v1818 = vadd.f32 %v1725, %v1817
      %v1819 = vpop.f32.mrb[0].mxu0
      %v1820 = vpop.f32.mrb[0].mxu0
      %v1821 = vadd.f32 %v1725, %v1820
      %v1822 = vpop.f32.mrb[0].mxu0
      %1823 = vdwg.mxu0
      %v1824 = vpack.c.bf16 %v1810, %v1810
      %v1825 = vpack.c.bf16 %v1813, %v1813
      %v1826 = vpack.c.bf16 %v1818, %v1818
      %v1827 = vpack.c.bf16 %v1821, %v1821
      %1828 = vst [vmem:[%s302] sm:$0xf] %v1824
      %1829 = vst [vmem:[%s302 + $0x4] sm:$0xf] %v1825
      %1830 = vst [vmem:[%s302 + $0x8] sm:$0xf] %v1826
      %1831 = vst [vmem:[%s302 + $0xc] sm:$0xf] %v1827
      %s1832 = smul.u32 4, %s23
      %p1833 = scmp.lt.s32.totalorder %s22, 1
      %s1834 = scalar_select %p1833, %s22, 1
      %p1835 = scmp.lt.s32.totalorder %s1832, 7
      %s1836 = scalar_select %p1835, %s1832, 7
      %s1837 = smul.addr %s1834, 8
      %s1838 = sadd.s32 %s1836, %s1837
      %s1839 = smul.addr %s1838, 4
      %s1840 = scalar_lea.vmem %s5, %s1839
      %s1841 = smul.u32 4, %s23
      %p1842 = scmp.lt.s32.totalorder %s22, 1
      %s1843 = scalar_select %p1842, %s22, 1
      %p1844 = scmp.lt.s32.totalorder %s1841, 7
      %s1845 = scalar_select %p1844, %s1841, 7
      %s1846 = smul.addr %s1843, 8
      %s1847 = sadd.s32 %s1845, %s1846
      %s1848 = smul.addr %s1847, 4
      %s1849 = scalar_lea.vmem %s6, %s1848
      // Predicated region
      $region41: #{net.6} parent=39 // pred_check
        %p1850 = pneg %p160
      $region42: #{net.6} parent=39 // pred_check_branch
        %1852 = sbr.rel (%p1850) target = $region44
      $region43: #{net.6} parent=39 // pred_region
        %s1853 = smul.u32 4, %s23
      $region44: #{net.6} parent=39 // pred_fallthru
        _
      // Predicated region
      $region45: #{net.6} parent=39 // pred_check
        %p1854 = pneg %p188
      $region46: #{net.6} parent=39 // pred_check_branch
        %1856 = sbr.rel (%p1854) target = $region48
      $region47: #{net.6} parent=39 // pred_region
        %s1857 = smul.u32 4, %s23
      $region48: #{net.6} parent=39 // pred_fallthru
        _
    $region40: #{net.6} parent=5 // pred_fallthru
      _
    %p1858 = scmp.le.s32.totalorder 2, %s13
    // Predicated region
    $region49: #{net.6} parent=5 // pred_check
      %p1859 = pneg %p1858
    $region50: #{net.6} parent=5 // pred_check_branch
      %1861 = sbr.rel (%p1859) target = $region52
    $region51: #{net.6} parent=5 // pred_region
      %s1862 = ssub.s32 %s13, 2
      // Predicated region
      $region53: #{net.6} parent=51 // pred_check
        %p1863 = pneg %p166
      $region54: #{net.6} parent=51 // pred_check_branch
        %1865 = sbr.rel (%p1863) target = $region56
      $region55: #{net.6} parent=51 // pred_region
        %s1866 = smul.u32 4, %s25
        %p1867 = scmp.lt.s32.totalorder %s24, 1
        %s1868 = scalar_select %p1867, %s24, 1
        %p1869 = scmp.lt.s32.totalorder %s1866, 7
        %s1870 = scalar_select %p1869, %s1866, 7
        %s1871 = smul.addr %s1868, 8
        %s1872 = sadd.s32 %s1870, %s1871
        %s1873 = smul.addr %s1872, 4
        %s1874 = scalar_lea.vmem %s5, %s1873
      $region56: #{net.6} parent=51 // pred_fallthru
        _
      // Predicated region
      $region57: #{net.6} parent=51 // pred_check
        %p1875 = pneg %p194
      $region58: #{net.6} parent=51 // pred_check_branch
        %1877 = sbr.rel (%p1875) target = $region60
      $region59: #{net.6} parent=51 // pred_region
        %s1878 = smul.u32 4, %s25
        %p1879 = scmp.lt.s32.totalorder %s24, 1
        %s1880 = scalar_select %p1879, %s24, 1
        %p1881 = scmp.lt.s32.totalorder %s1878, 7
        %s1882 = scalar_select %p1881, %s1878, 7
        %s1883 = smul.addr %s1880, 8
        %s1884 = sadd.s32 %s1882, %s1883
        %s1885 = smul.addr %s1884, 4
        %s1886 = scalar_lea.vmem %s6, %s1885
      $region60: #{net.6} parent=51 // pred_fallthru
        _
    $region52: #{net.6} parent=5 // pred_fallthru
      _
  $region6: #{net.6} parent=0 // loop_footer
    %s17 = sadd.s32 1, %s13
  $region7: #{net.6} parent=0 // loop_footer_branch
    %12 = sbr.rel target = $region3
  $region8: #{net.6} parent=0 // loop_exit
    _

// kernel: net.5
$region0: #{net.5}
  #allocation0 [shape = 'u32[]', space=smem, size = 0x4, offset = 0x4, fixed_abs, tag = 'smem constant byte address 0x4 - core index']
  #allocation1 [shape = 'u32[144,128]{1,0:T(1,128)}', space=vmem, size = 0x12000, scoped, tag = 'internal scratch']
  %s0 = inlined_call_operand.vmem [shape: bf16[2,18,18,128], index: 0, kind: input, shape index: {}]
  %s1 = inlined_call_operand.vmem [shape: bf16[9,128,128], index: 1, kind: input, shape index: {}]
  %s2 = inlined_call_operand.vmem [shape: f32[1,128], index: 2, kind: input, shape index: {}]
  %s3 = inlined_call_operand.vmem [shape: bf16[2,16,16,16], index: 3, kind: input, shape index: {}]
  %s4 = inlined_call_operand.vmem [shape: bf16[2,16,16,128], index: 4, kind: output, shape index: {}]
  %s5 = sld [smem:[#allocation0]]
  $region49: #{net.5} parent=0
    _
  %s7 = ssub.s32 1, %s5
  %s8 = scalar_select 0, %s7, %s5
  loop: start=0, step=1, limit=6
  $region2: #{net.5} parent=0 // loop_pre_header
    _
  $region3: #{net.5} parent=0 // loop_header
    %s10 = sphi 0, %s14
    %p11 = scmp.ge.s32.totalorder %s10, 6
    %s17 = sphi 0, %s29
    %s18 = sphi 0, %s25
    %s19 = sphi 0, %s17
    %s20 = sphi 0, %s18
    %s21 = sphi 0, %s19
    %s22 = sphi 0, %s20
    %s32 = sphi 0, %s34
    %s35 = sphi 0, %s32
    %s36 = sphi 0, %s35
    %s52 = sphi 0, %s36
    %s56 = sphi 0, %s56
    %s58 = sphi 0, %s56
    %s59 = sphi 0, %s58
    %s73 = sphi 0, %s59
    %s77 = sphi 0, %s77
    %s79 = sphi 0, %s77
    %s80 = sphi 0, %s79
    %s94 = sphi 0, %s80
    %s102 = sphi 0, %s104
    %s105 = sphi 0, %s102
    %s106 = sphi 0, %s105
    %s122 = sphi 0, %s106
    %s130 = sphi 0, %s132
    %s133 = sphi 0, %s130
    %s134 = sphi 0, %s133
    %s150 = sphi 0, %s134
  $region4: #{net.5} parent=0 // loop_header_branch
    %13 = sbr.rel (%p11) target = $region8
  $region5: #{net.5} parent=0 // loop_body
    %s15 = ssub.s32 %s10, 1
    %s16 = ssub.s32 %s10, 2
    %s23 = sadd.s32 1, %s18
    %p24 = scmp.ge.s32.totalorder %s23, 2
    %s25 = scalar_select %p24, 0, %s23
    %s26 = sadd.s32 1, %s17
    %s27 = scalar_select %p24, %s26, %s17
    %p28 = scmp.ge.s32.totalorder %s27, 2
    %s29 = scalar_select %p28, 0, %s27
    %s30 = ssub.s32 %s17, %s29
    %p31 = scmp.eq.s32.totalorder %s30, 0
    %s33 = sadd.s32 %s32, 1
    %s34 = scalar_select %p31, %s32, %s33
    %p37 = pneg %p31
    %p38 = scmp.eq.s32.totalorder %s10, 3
    %p39 = por %p37, %p38
    %p40 = scmp.ne.s32.totalorder %s32, %s35
    %p41 = scmp.eq.s32.totalorder %s10, 0
    %p42 = por %p40, %p41
    %p43 = scmp.ne.s32.totalorder %s32, %s35
    %p44 = scmp.eq.s32.totalorder %s15, 3
    %p45 = por %p43, %p44
    %p46 = scmp.ne.s32.totalorder %s35, %s36
    %p47 = scmp.eq.s32.totalorder %s15, 0
    %p48 = por %p46, %p47
    %p49 = scmp.ne.s32.totalorder %s35, %s36
    %p50 = scmp.eq.s32.totalorder %s16, 3
    %p51 = por %p49, %p50
    %p53 = scmp.ne.s32.totalorder %s36, %s52
    %p54 = scmp.eq.s32.totalorder %s16, 0
    %p55 = por %p53, %p54
    %s57 = sadd.s32 %s56, 1
    %p60 = scmp.eq.s32.totalorder %s10, 3
    %p61 = scmp.ne.s32.totalorder %s56, %s58
    %p62 = scmp.eq.s32.totalorder %s10, 0
    %p63 = por %p61, %p62
    %p64 = scmp.ne.s32.totalorder %s56, %s58
    %p65 = scmp.eq.s32.totalorder %s15, 3
    %p66 = por %p64, %p65
    %p67 = scmp.ne.s32.totalorder %s58, %s59
    %p68 = scmp.eq.s32.totalorder %s15, 0
    %p69 = por %p67, %p68
    %p70 = scmp.ne.s32.totalorder %s58, %s59
    %p71 = scmp.eq.s32.totalorder %s16, 3
    %p72 = por %p70, %p71
    %p74 = scmp.ne.s32.totalorder %s59, %s73
    %p75 = scmp.eq.s32.totalorder %s16, 0
    %p76 = por %p74, %p75
    %s78 = sadd.s32 %s77, 1
    %p81 = scmp.eq.s32.totalorder %s10, 3
    %p82 = scmp.ne.s32.totalorder %s77, %s79
    %p83 = scmp.eq.s32.totalorder %s10, 0
    %p84 = por %p82, %p83
    %p85 = scmp.ne.s32.totalorder %s77, %s79
    %p86 = scmp.eq.s32.totalorder %s15, 3
    %p87 = por %p85, %p86
    %p88 = scmp.ne.s32.totalorder %s79, %s80
    %p89 = scmp.eq.s32.totalorder %s15, 0
    %p90 = por %p88, %p89
    %p91 = scmp.ne.s32.totalorder %s79, %s80
    %p92 = scmp.eq.s32.totalorder %s16, 3
    %p93 = por %p91, %p92
    %p95 = scmp.ne.s32.totalorder %s80, %s94
    %p96 = scmp.eq.s32.totalorder %s16, 0
    %p97 = por %p95, %p96
    %s98 = ssub.s32 %s17, %s29
    %s99 = ssub.s32 %s18, %s25
    %s100 = sor.u32 %s98, %s99
    %p101 = scmp.eq.s32.totalorder %s100, 0
    %s103 = sadd.s32 %s102, 1
    %s104 = scalar_select %p101, %s102, %s103
    %p107 = pneg %p101
    %p108 = scmp.eq.s32.totalorder %s10, 3
    %p109 = por %p107, %p108
    %p110 = scmp.ne.s32.totalorder %s102, %s105
    %p111 = scmp.eq.s32.totalorder %s10, 0
    %p112 = por %p110, %p111
    %p113 = scmp.ne.s32.totalorder %s102, %s105
    %p114 = scmp.eq.s32.totalorder %s15, 3
    %p115 = por %p113, %p114
    %p116 = scmp.ne.s32.totalorder %s105, %s106
    %p117 = scmp.eq.s32.totalorder %s15, 0
    %p118 = por %p116, %p117
    %p119 = scmp.ne.s32.totalorder %s105, %s106
    %p120 = scmp.eq.s32.totalorder %s16, 3
    %p121 = por %p119, %p120
    %p123 = scmp.ne.s32.totalorder %s106, %s122
    %p124 = scmp.eq.s32.totalorder %s16, 0
    %p125 = por %p123, %p124
    %s126 = ssub.s32 %s17, %s29
    %s127 = ssub.s32 %s18, %s25
    %s128 = sor.u32 %s126, %s127
    %p129 = scmp.eq.s32.totalorder %s128, 0
    %s131 = sadd.s32 %s130, 1
    %s132 = scalar_select %p129, %s130, %s131
    %p135 = pneg %p129
    %p136 = scmp.eq.s32.totalorder %s10, 3
    %p137 = por %p135, %p136
    %p138 = scmp.ne.s32.totalorder %s130, %s133
    %p139 = scmp.eq.s32.totalorder %s10, 0
    %p140 = por %p138, %p139
    %p141 = scmp.ne.s32.totalorder %s130, %s133
    %p142 = scmp.eq.s32.totalorder %s15, 3
    %p143 = por %p141, %p142
    %p144 = scmp.ne.s32.totalorder %s133, %s134
    %p145 = scmp.eq.s32.totalorder %s15, 0
    %p146 = por %p144, %p145
    %p147 = scmp.ne.s32.totalorder %s133, %s134
    %p148 = scmp.eq.s32.totalorder %s16, 3
    %p149 = por %p147, %p148
    %p151 = scmp.ne.s32.totalorder %s134, %s150
    %p152 = scmp.eq.s32.totalorder %s16, 0
    %p153 = por %p151, %p152
    %p154 = scmp.le.s32.totalorder 1, %s10
    %p155 = scmp.lt.s32.totalorder %s10, 5
    %p156 = pnand %p154, %p155
    %p157 = pneg %p156
    // Predicated region
    $region9: #{net.5} parent=5 // pred_check
      _
    $region10: #{net.5} parent=5 // pred_check_branch
      %159 = sbr.rel (%p156) target = $region12
    $region11: #{net.5} parent=5 // pred_region
      %s160 = ssub.s32 %s10, 1
      // Predicated region
      $region13: #{net.5} parent=11 // pred_check
        %p161 = pneg %p69
      $region14: #{net.5} parent=11 // pred_check_branch
        %163 = sbr.rel (%p161) target = $region16
      $region15: #{net.5} parent=11 // pred_region
        _
      $region16: #{net.5} parent=11 // pred_fallthru
        _
      // Predicated region
      $region17: #{net.5} parent=11 // pred_check
        %p164 = pneg %p90
      $region18: #{net.5} parent=11 // pred_check_branch
        %166 = sbr.rel (%p164) target = $region20
      $region19: #{net.5} parent=11 // pred_region
        _
      $region20: #{net.5} parent=11 // pred_fallthru
        _
    $region12: #{net.5} parent=5 // pred_fallthru
      _
    %p167 = scmp.lt.s32.totalorder %s10, 4
    // Predicated region
    $region21: #{net.5} parent=5 // pred_check
      %p168 = pneg %p167
    $region22: #{net.5} parent=5 // pred_check_branch
      %170 = sbr.rel (%p168) target = $region24
    $region23: #{net.5} parent=5 // pred_region
      // Predicated region
      $region25: #{net.5} parent=23 // pred_check
        %p171 = pneg %p42
      $region26: #{net.5} parent=23 // pred_check_branch
        %173 = sbr.rel (%p171) target = $region28
      $region27: #{net.5} parent=23 // pred_region
        %p174 = scmp.lt.s32.totalorder %s17, 1
        %s175 = scalar_select %p174, %s17, 1
        %s176 = smul.addr %s175, 54
        %s177 = smul.addr %s176, 4
        %s178 = scalar_lea.vmem %s0, %s177
      $region28: #{net.5} parent=23 // pred_fallthru
        _
      // Predicated region
      $region29: #{net.5} parent=23 // pred_check
        %p179 = pneg %p112
      $region30: #{net.5} parent=23 // pred_check_branch
        %181 = sbr.rel (%p179) target = $region32
      $region31: #{net.5} parent=23 // pred_region
        %s182 = smul.u32 8, %s18
        %p183 = scmp.lt.s32.totalorder %s17, 1
        %s184 = scalar_select %p183, %s17, 1
        %p185 = scmp.lt.s32.totalorder %s182, 15
        %s186 = scalar_select %p185, %s182, 15
        %s187 = smul.addr %s186, 2
        %s188 = smul.addr %s184, 32
        %s189 = sadd.s32 %s187, %s188
        %s190 = smul.addr %s189, 4
        %s191 = scalar_lea.vmem %s3, %s190
        %s192 = smul.u32 8, %s18
      $region32: #{net.5} parent=23 // pred_fallthru
        _
    $region24: #{net.5} parent=5 // pred_fallthru
      _
    %p193 = scmp.le.s32.totalorder 1, %s10
    %p194 = scmp.lt.s32.totalorder %s10, 5
    %p195 = pnand %p193, %p194
    %p196 = pneg %p195
    // Predicated region
    $region33: #{net.5} parent=5 // pred_check
      _
    $region34: #{net.5} parent=5 // pred_check_branch
      %198 = sbr.rel (%p195) target = $region36
    $region35: #{net.5} parent=5 // pred_region
      %s199 = ssub.s32 %s10, 1
      %p200 = scmp.lt.s32.totalorder %s19, 1
      %s201 = scalar_select %p200, %s19, 1
      %s202 = smul.addr %s201, 54
      %s203 = smul.addr %s202, 4
      %s204 = scalar_lea.vmem %s0, %s203
      %p205 = pneg %p48
      %p206 = pneg %p45
      %p207 = pneg %p69
      %p208 = pneg %p66
      %p209 = pneg %p90
      %p210 = pneg %p87
      %s211 = smul.u32 8, %s20
      %p212 = scmp.lt.s32.totalorder %s19, 1
      %s213 = scalar_select %p212, %s19, 1
      %p214 = scmp.lt.s32.totalorder %s211, 15
      %s215 = scalar_select %p214, %s211, 15
      %s216 = smul.addr %s215, 2
      %s217 = smul.addr %s213, 32
      %s218 = sadd.s32 %s216, %s217
      %s219 = smul.addr %s218, 4
      %s220 = scalar_lea.vmem %s3, %s219
      %p221 = pneg %p118
      %p222 = pneg %p115
      %p223 = pneg %p146
      %p224 = pneg %p143
      %s225 = smul.u32 8, %s20
      %p226 = scmp.lt.s32.totalorder %s19, 1
      %s227 = scalar_select %p226, %s19, 1
      %p228 = scmp.lt.s32.totalorder %s225, 15
      %s229 = scalar_select %p228, %s225, 15
      %s230 = smul.addr %s229, 2
      %s231 = smul.addr %s227, 32
      %s232 = sadd.s32 %s230, %s231
      %s233 = smul.addr %s232, 4
      %s234 = scalar_lea.vmem %s4, %s233
      %p235 = scmp.lt.s32.totalorder %s19, 1
      %s236 = scalar_select %p235, %s19, 1
      %s237 = smul.addr %s236, 54
      %s238 = smul.addr %s237, 4
      %s239 = scalar_lea.vmem %s0, %s238
      %s240 = smul.u32 8, %s20
      %p241 = scmp.lt.s32.totalorder %s19, 1
      %s242 = scalar_select %p241, %s19, 1
      %p243 = scmp.lt.s32.totalorder %s240, 15
      %s244 = scalar_select %p243, %s240, 15
      %s245 = smul.addr %s244, 2
      %s246 = smul.addr %s242, 32
      %s247 = sadd.s32 %s245, %s246
      %s248 = smul.addr %s247, 4
      %s249 = scalar_lea.vmem %s3, %s248
      %s250 = smul.u32 8, %s20
      %s251 = smul.u32 8, %s20
      %p252 = scmp.lt.s32.totalorder %s19, 1
      %s253 = scalar_select %p252, %s19, 1
      %p254 = scmp.lt.s32.totalorder %s251, 15
      %s255 = scalar_select %p254, %s251, 15
      %s256 = smul.addr %s255, 2
      %s257 = smul.addr %s253, 32
      %s258 = sadd.s32 %s256, %s257
      %s259 = smul.addr %s258, 4
      %s260 = scalar_lea.vmem %s4, %s259
      %s261 = smul.u32 8, %s20
      %s263 = smul.u32 %s20, 8
      %s264 = smul.u32 %s263, 3
      %s265 = smul.addr %s264, 4
      %s266 = scalar_lea.vmem %s239, %s265
      %v267 = vld [vmem:[%s266] sm:$0xf]
      %v268 = vld [vmem:[%s266 + $0x4] sm:$0xf]
      %v269 = vld [vmem:[%s266 + $0xc] sm:$0xf]
      %v270 = vld [vmem:[%s266 + $0x10] sm:$0xf]
      %v271 = vld [vmem:[%s266 + $0x18] sm:$0xf]
      %v272 = vld [vmem:[%s266 + $0x1c] sm:$0xf]
      %v273 = vld [vmem:[%s266 + $0x24] sm:$0xf]
      %v274 = vld [vmem:[%s266 + $0x28] sm:$0xf]
      %v275 = vld [vmem:[%s266 + $0x30] sm:$0xf]
      %v276 = vld [vmem:[%s266 + $0x34] sm:$0xf]
      %v277 = vld [vmem:[%s266 + $0x3c] sm:$0xf]
      %v278 = vld [vmem:[%s266 + $0x40] sm:$0xf]
      %v279 = vld [vmem:[%s266 + $0x48] sm:$0xf]
      %v280 = vld [vmem:[%s266 + $0x4c] sm:$0xf]
      %v281 = vld [vmem:[%s266 + $0x54] sm:$0xf]
      %v282 = vld [vmem:[%s266 + $0x58] sm:$0xf]
      %v283 = vld [vmem:[%s266 + $0x8] sm:$0x1]
      %v284 = vld [vmem:[%s266 + $0x14] sm:$0x1]
      %v285 = vld [vmem:[%s266 + $0x20] sm:$0x1]
      %v286 = vld [vmem:[%s266 + $0x2c] sm:$0x1]
      %v287 = vld [vmem:[%s266 + $0x38] sm:$0x1]
      %v288 = vld [vmem:[%s266 + $0x44] sm:$0x1]
      %v289 = vld [vmem:[%s266 + $0x50] sm:$0x1]
      %v290 = vld [vmem:[%s266 + $0x5c] sm:$0x1]
      %vm291 = vsmask.f32 3328
      %vm292 = vsmask.f32 7440
      %vm293 = vmor %vm291, %vm292
      %v295 = vshrl.u32 %v267, 16
      %v297 = vrot.slane %v295, 4
      %v298 = vshll.u32 %v267, 16
      %v300 = vrot.slane %v298, 5
      %v301 = vor.u32 %v297, %v300
      %v302 = vrot.slane %v301, 4
      %v304 = vshll.u32 %v268, 16
      %v306 = vrot.slane %v304, 5
      %v307 = vsel %vm293, %v302, %v306
      %v308 = vshrl.u32 %v268, 16
      %v310 = vrot.slane %v308, 4
      %v311 = vor.u32 %v310, %v306
      %v312 = vrot.slane %v311, 4
      %v314 = vshll.u32 %v283, 16
      %v316 = vrot.slane %v314, 5
      %v317 = vsel %vm293, %v312, %v316
      %v319 = vshrl.u32 %v269, 16
      %v321 = vrot.slane %v319, 4
      %v322 = vshll.u32 %v269, 16
      %v324 = vrot.slane %v322, 5
      %v325 = vor.u32 %v321, %v324
      %v326 = vrot.slane %v325, 4
      %v328 = vshll.u32 %v270, 16
      %v330 = vrot.slane %v328, 5
      %v331 = vsel %vm293, %v326, %v330
      %v332 = vshrl.u32 %v270, 16
      %v334 = vrot.slane %v332, 4
      %v335 = vor.u32 %v334, %v330
      %v336 = vrot.slane %v335, 4
      %v338 = vshll.u32 %v284, 16
      %v340 = vrot.slane %v338, 5
      %v341 = vsel %vm293, %v336, %v340
      %v343 = vshrl.u32 %v271, 16
      %v345 = vrot.slane %v343, 4
      %v346 = vshll.u32 %v271, 16
      %v348 = vrot.slane %v346, 5
      %v349 = vor.u32 %v345, %v348
      %v350 = vrot.slane %v349, 4
      %v352 = vshll.u32 %v272, 16
      %v354 = vrot.slane %v352, 5
      %v355 = vsel %vm293, %v350, %v354
      %v356 = vshrl.u32 %v272, 16
      %v358 = vrot.slane %v356, 4
      %v359 = vor.u32 %v358, %v354
      %v360 = vrot.slane %v359, 4
      %v362 = vshll.u32 %v285, 16
      %v364 = vrot.slane %v362, 5
      %v365 = vsel %vm293, %v360, %v364
      %v367 = vshrl.u32 %v273, 16
      %v369 = vrot.slane %v367, 4
      %v370 = vshll.u32 %v273, 16
      %v372 = vrot.slane %v370, 5
      %v373 = vor.u32 %v369, %v372
      %v374 = vrot.slane %v373, 4
      %v376 = vshll.u32 %v274, 16
      %v378 = vrot.slane %v376, 5
      %v379 = vsel %vm293, %v374, %v378
      %v380 = vshrl.u32 %v274, 16
      %v382 = vrot.slane %v380, 4
      %v383 = vor.u32 %v382, %v378
      %v384 = vrot.slane %v383, 4
      %v386 = vshll.u32 %v286, 16
      %v388 = vrot.slane %v386, 5
      %v389 = vsel %vm293, %v384, %v388
      %v391 = vshrl.u32 %v275, 16
      %v393 = vrot.slane %v391, 4
      %v394 = vshll.u32 %v275, 16
      %v396 = vrot.slane %v394, 5
      %v397 = vor.u32 %v393, %v396
      %v398 = vrot.slane %v397, 4
      %v400 = vshll.u32 %v276, 16
      %v402 = vrot.slane %v400, 5
      %v403 = vsel %vm293, %v398, %v402
      %v404 = vshrl.u32 %v276, 16
      %v406 = vrot.slane %v404, 4
      %v407 = vor.u32 %v406, %v402
      %v408 = vrot.slane %v407, 4
      %v410 = vshll.u32 %v287, 16
      %v412 = vrot.slane %v410, 5
      %v413 = vsel %vm293, %v408, %v412
      %v415 = vshrl.u32 %v277, 16
      %v417 = vrot.slane %v415, 4
      %v418 = vshll.u32 %v277, 16
      %v420 = vrot.slane %v418, 5
      %v421 = vor.u32 %v417, %v420
      %v422 = vrot.slane %v421, 4
      %v424 = vshll.u32 %v278, 16
      %v426 = vrot.slane %v424, 5
      %v427 = vsel %vm293, %v422, %v426
      %v428 = vshrl.u32 %v278, 16
      %v430 = vrot.slane %v428, 4
      %v431 = vor.u32 %v430, %v426
      %v432 = vrot.slane %v431, 4
      %v434 = vshll.u32 %v288, 16
      %v436 = vrot.slane %v434, 5
      %v437 = vsel %vm293, %v432, %v436
      %v439 = vshrl.u32 %v279, 16
      %v441 = vrot.slane %v439, 4
      %v442 = vshll.u32 %v279, 16
      %v444 = vrot.slane %v442, 5
      %v445 = vor.u32 %v441, %v444
      %v446 = vrot.slane %v445, 4
      %v448 = vshll.u32 %v280, 16
      %v450 = vrot.slane %v448, 5
      %v451 = vsel %vm293, %v446, %v450
      %v452 = vshrl.u32 %v280, 16
      %v454 = vrot.slane %v452, 4
      %v455 = vor.u32 %v454, %v450
      %v456 = vrot.slane %v455, 4
      %v458 = vshll.u32 %v289, 16
      %v460 = vrot.slane %v458, 5
      %v461 = vsel %vm293, %v456, %v460
      %v463 = vshrl.u32 %v281, 16
      %v465 = vrot.slane %v463, 4
      %v466 = vshll.u32 %v281, 16
      %v468 = vrot.slane %v466, 5
      %v469 = vor.u32 %v465, %v468
      %v470 = vrot.slane %v469, 4
      %v472 = vshll.u32 %v282, 16
      %v474 = vrot.slane %v472, 5
      %v475 = vsel %vm293, %v470, %v474
      %v476 = vshrl.u32 %v282, 16
      %v478 = vrot.slane %v476, 4
      %v479 = vor.u32 %v478, %v474
      %v480 = vrot.slane %v479, 4
      %v482 = vshll.u32 %v290, 16
      %v484 = vrot.slane %v482, 5
      %v485 = vsel %vm293, %v480, %v484
      %v486 = vld [vmem:[%s266] sm:$0xe]
      %v487 = vld [vmem:[%s266 + $0xc] sm:$0xe]
      %v488 = vld [vmem:[%s266 + $0x18] sm:$0xe]
      %v489 = vld [vmem:[%s266 + $0x24] sm:$0xe]
      %v490 = vld [vmem:[%s266 + $0x30] sm:$0xe]
      %v491 = vld [vmem:[%s266 + $0x3c] sm:$0xe]
      %v492 = vld [vmem:[%s266 + $0x48] sm:$0xe]
      %v493 = vld [vmem:[%s266 + $0x54] sm:$0xe]
      %vm518 = vcmask 1042432
      %vm519 = vcmask 1046532
      %vm520 = vmor %vm518, %vm519
      %v521 = vrot.slane %v486, 5
      %v522 = vrot.slane %v521, 4
      %v523 = vrot.slane %v268, 5
      %v524 = vsel %vm520, %v522, %v523
      %v525 = vrot.slane %v523, 4
      %v526 = vrot.slane %v283, 5
      %v527 = vsel %vm520, %v525, %v526
      %v528 = vrot.slane %v487, 5
      %v529 = vrot.slane %v528, 4
      %v530 = vrot.slane %v270, 5
      %v531 = vsel %vm520, %v529, %v530
      %v532 = vrot.slane %v530, 4
      %v533 = vrot.slane %v284, 5
      %v534 = vsel %vm520, %v532, %v533
      %v535 = vrot.slane %v488, 5
      %v536 = vrot.slane %v535, 4
      %v537 = vrot.slane %v272, 5
      %v538 = vsel %vm520, %v536, %v537
      %v539 = vrot.slane %v537, 4
      %v540 = vrot.slane %v285, 5
      %v541 = vsel %vm520, %v539, %v540
      %v542 = vrot.slane %v489, 5
      %v543 = vrot.slane %v542, 4
      %v544 = vrot.slane %v274, 5
      %v545 = vsel %vm520, %v543, %v544
      %v546 = vrot.slane %v544, 4
      %v547 = vrot.slane %v286, 5
      %v548 = vsel %vm520, %v546, %v547
      %v549 = vrot.slane %v490, 5
      %v550 = vrot.slane %v549, 4
      %v551 = vrot.slane %v276, 5
      %v552 = vsel %vm520, %v550, %v551
      %v553 = vrot.slane %v551, 4
      %v554 = vrot.slane %v287, 5
      %v555 = vsel %vm520, %v553, %v554
      %v556 = vrot.slane %v491, 5
      %v557 = vrot.slane %v556, 4
      %v558 = vrot.slane %v278, 5
      %v559 = vsel %vm520, %v557, %v558
      %v560 = vrot.slane %v558, 4
      %v561 = vrot.slane %v288, 5
      %v562 = vsel %vm520, %v560, %v561
      %v563 = vrot.slane %v492, 5
      %v564 = vrot.slane %v563, 4
      %v565 = vrot.slane %v280, 5
      %v566 = vsel %vm520, %v564, %v565
      %v567 = vrot.slane %v565, 4
      %v568 = vrot.slane %v289, 5
      %v569 = vsel %vm520, %v567, %v568
      %v570 = vrot.slane %v493, 5
      %v571 = vrot.slane %v570, 4
      %v572 = vrot.slane %v282, 5
      %v573 = vsel %vm520, %v571, %v572
      %v574 = vrot.slane %v572, 4
      %v575 = vrot.slane %v290, 5
      %v576 = vsel %vm520, %v574, %v575
      %s577 = sadd.s32 %s263, 1
      %s578 = smul.u32 %s577, 3
      %s579 = smul.addr %s578, 4
      %s580 = scalar_lea.vmem %s239, %s579
      %v581 = vld [vmem:[%s580] sm:$0xf]
      %v582 = vld [vmem:[%s580 + $0x4] sm:$0xf]
      %v583 = vld [vmem:[%s580 + $0xc] sm:$0xf]
      %v584 = vld [vmem:[%s580 + $0x10] sm:$0xf]
      %v585 = vld [vmem:[%s580 + $0x18] sm:$0xf]
      %v586 = vld [vmem:[%s580 + $0x1c] sm:$0xf]
      %v587 = vld [vmem:[%s580 + $0x24] sm:$0xf]
      %v588 = vld [vmem:[%s580 + $0x28] sm:$0xf]
      %v589 = vld [vmem:[%s580 + $0x30] sm:$0xf]
      %v590 = vld [vmem:[%s580 + $0x34] sm:$0xf]
      %v591 = vld [vmem:[%s580 + $0x3c] sm:$0xf]
      %v592 = vld [vmem:[%s580 + $0x40] sm:$0xf]
      %v593 = vld [vmem:[%s580 + $0x48] sm:$0xf]
      %v594 = vld [vmem:[%s580 + $0x4c] sm:$0xf]
      %v595 = vld [vmem:[%s580 + $0x54] sm:$0xf]
      %v596 = vld [vmem:[%s580 + $0x58] sm:$0xf]
      %v597 = vld [vmem:[%s580 + $0x8] sm:$0x1]
      %v598 = vld [vmem:[%s580 + $0x14] sm:$0x1]
      %v599 = vld [vmem:[%s580 + $0x20] sm:$0x1]
      %v600 = vld [vmem:[%s580 + $0x2c] sm:$0x1]
      %v601 = vld [vmem:[%s580 + $0x38] sm:$0x1]
      %v602 = vld [vmem:[%s580 + $0x44] sm:$0x1]
      %v603 = vld [vmem:[%s580 + $0x50] sm:$0x1]
      %v604 = vld [vmem:[%s580 + $0x5c] sm:$0x1]
      %v606 = vshrl.u32 %v581, 16
      %v608 = vrot.slane %v606, 4
      %v609 = vshll.u32 %v581, 16
      %v611 = vrot.slane %v609, 5
      %v612 = vor.u32 %v608, %v611
      %v613 = vrot.slane %v612, 4
      %v615 = vshll.u32 %v582, 16
      %v617 = vrot.slane %v615, 5
      %v618 = vsel %vm293, %v613, %v617
      %v619 = vshrl.u32 %v582, 16
      %v621 = vrot.slane %v619, 4
      %v622 = vor.u32 %v621, %v617
      %v623 = vrot.slane %v622, 4
      %v625 = vshll.u32 %v597, 16
      %v627 = vrot.slane %v625, 5
      %v628 = vsel %vm293, %v623, %v627
      %v630 = vshrl.u32 %v583, 16
      %v632 = vrot.slane %v630, 4
      %v633 = vshll.u32 %v583, 16
      %v635 = vrot.slane %v633, 5
      %v636 = vor.u32 %v632, %v635
      %v637 = vrot.slane %v636, 4
      %v639 = vshll.u32 %v584, 16
      %v641 = vrot.slane %v639, 5
      %v642 = vsel %vm293, %v637, %v641
      %v643 = vshrl.u32 %v584, 16
      %v645 = vrot.slane %v643, 4
      %v646 = vor.u32 %v645, %v641
      %v647 = vrot.slane %v646, 4
      %v649 = vshll.u32 %v598, 16
      %v651 = vrot.slane %v649, 5
      %v652 = vsel %vm293, %v647, %v651
      %v654 = vshrl.u32 %v585, 16
      %v656 = vrot.slane %v654, 4
      %v657 = vshll.u32 %v585, 16
      %v659 = vrot.slane %v657, 5
      %v660 = vor.u32 %v656, %v659
      %v661 = vrot.slane %v660, 4
      %v663 = vshll.u32 %v586, 16
      %v665 = vrot.slane %v663, 5
      %v666 = vsel %vm293, %v661, %v665
      %v667 = vshrl.u32 %v586, 16
      %v669 = vrot.slane %v667, 4
      %v670 = vor.u32 %v669, %v665
      %v671 = vrot.slane %v670, 4
      %v673 = vshll.u32 %v599, 16
      %v675 = vrot.slane %v673, 5
      %v676 = vsel %vm293, %v671, %v675
      %v678 = vshrl.u32 %v587, 16
      %v680 = vrot.slane %v678, 4
      %v681 = vshll.u32 %v587, 16
      %v683 = vrot.slane %v681, 5
      %v684 = vor.u32 %v680, %v683
      %v685 = vrot.slane %v684, 4
      %v687 = vshll.u32 %v588, 16
      %v689 = vrot.slane %v687, 5
      %v690 = vsel %vm293, %v685, %v689
      %v691 = vshrl.u32 %v588, 16
      %v693 = vrot.slane %v691, 4
      %v694 = vor.u32 %v693, %v689
      %v695 = vrot.slane %v694, 4
      %v697 = vshll.u32 %v600, 16
      %v699 = vrot.slane %v697, 5
      %v700 = vsel %vm293, %v695, %v699
      %v702 = vshrl.u32 %v589, 16
      %v704 = vrot.slane %v702, 4
      %v705 = vshll.u32 %v589, 16
      %v707 = vrot.slane %v705, 5
      %v708 = vor.u32 %v704, %v707
      %v709 = vrot.slane %v708, 4
      %v711 = vshll.u32 %v590, 16
      %v713 = vrot.slane %v711, 5
      %v714 = vsel %vm293, %v709, %v713
      %v715 = vshrl.u32 %v590, 16
      %v717 = vrot.slane %v715, 4
      %v718 = vor.u32 %v717, %v713
      %v719 = vrot.slane %v718, 4
      %v721 = vshll.u32 %v601, 16
      %v723 = vrot.slane %v721, 5
      %v724 = vsel %vm293, %v719, %v723
      %v726 = vshrl.u32 %v591, 16
      %v728 = vrot.slane %v726, 4
      %v729 = vshll.u32 %v591, 16
      %v731 = vrot.slane %v729, 5
      %v732 = vor.u32 %v728, %v731
      %v733 = vrot.slane %v732, 4
      %v735 = vshll.u32 %v592, 16
      %v737 = vrot.slane %v735, 5
      %v738 = vsel %vm293, %v733, %v737
      %v739 = vshrl.u32 %v592, 16
      %v741 = vrot.slane %v739, 4
      %v742 = vor.u32 %v741, %v737
      %v743 = vrot.slane %v742, 4
      %v745 = vshll.u32 %v602, 16
      %v747 = vrot.slane %v745, 5
      %v748 = vsel %vm293, %v743, %v747
      %v750 = vshrl.u32 %v593, 16
      %v752 = vrot.slane %v750, 4
      %v753 = vshll.u32 %v593, 16
      %v755 = vrot.slane %v753, 5
      %v756 = vor.u32 %v752, %v755
      %v757 = vrot.slane %v756, 4
      %v759 = vshll.u32 %v594, 16
      %v761 = vrot.slane %v759, 5
      %v762 = vsel %vm293, %v757, %v761
      %v763 = vshrl.u32 %v594, 16
      %v765 = vrot.slane %v763, 4
      %v766 = vor.u32 %v765, %v761
      %v767 = vrot.slane %v766, 4
      %v769 = vshll.u32 %v603, 16
      %v771 = vrot.slane %v769, 5
      %v772 = vsel %vm293, %v767, %v771
      %v774 = vshrl.u32 %v595, 16
      %v776 = vrot.slane %v774, 4
      %v777 = vshll.u32 %v595, 16
      %v779 = vrot.slane %v777, 5
      %v780 = vor.u32 %v776, %v779
      %v781 = vrot.slane %v780, 4
      %v783 = vshll.u32 %v596, 16
      %v785 = vrot.slane %v783, 5
      %v786 = vsel %vm293, %v781, %v785
      %v787 = vshrl.u32 %v596, 16
      %v789 = vrot.slane %v787, 4
      %v790 = vor.u32 %v789, %v785
      %v791 = vrot.slane %v790, 4
      %v793 = vshll.u32 %v604, 16
      %v795 = vrot.slane %v793, 5
      %v796 = vsel %vm293, %v791, %v795
      %v797 = vld [vmem:[%s580] sm:$0xe]
      %v798 = vld [vmem:[%s580 + $0xc] sm:$0xe]
      %v799 = vld [vmem:[%s580 + $0x18] sm:$0xe]
      %v800 = vld [vmem:[%s580 + $0x24] sm:$0xe]
      %v801 = vld [vmem:[%s580 + $0x30] sm:$0xe]
      %v802 = vld [vmem:[%s580 + $0x3c] sm:$0xe]
      %v803 = vld [vmem:[%s580 + $0x48] sm:$0xe]
      %v804 = vld [vmem:[%s580 + $0x54] sm:$0xe]
      %v829 = vrot.slane %v797, 5
      %v830 = vrot.slane %v829, 4
      %v831 = vrot.slane %v582, 5
      %v832 = vsel %vm520, %v830, %v831
      %v833 = vrot.slane %v831, 4
      %v834 = vrot.slane %v597, 5
      %v835 = vsel %vm520, %v833, %v834
      %v836 = vrot.slane %v798, 5
      %v837 = vrot.slane %v836, 4
      %v838 = vrot.slane %v584, 5
      %v839 = vsel %vm520, %v837, %v838
      %v840 = vrot.slane %v838, 4
      %v841 = vrot.slane %v598, 5
      %v842 = vsel %vm520, %v840, %v841
      %v843 = vrot.slane %v799, 5
      %v844 = vrot.slane %v843, 4
      %v845 = vrot.slane %v586, 5
      %v846 = vsel %vm520, %v844, %v845
      %v847 = vrot.slane %v845, 4
      %v848 = vrot.slane %v599, 5
      %v849 = vsel %vm520, %v847, %v848
      %v850 = vrot.slane %v800, 5
      %v851 = vrot.slane %v850, 4
      %v852 = vrot.slane %v588, 5
      %v853 = vsel %vm520, %v851, %v852
      %v854 = vrot.slane %v852, 4
      %v855 = vrot.slane %v600, 5
      %v856 = vsel %vm520, %v854, %v855
      %v857 = vrot.slane %v801, 5
      %v858 = vrot.slane %v857, 4
      %v859 = vrot.slane %v590, 5
      %v860 = vsel %vm520, %v858, %v859
      %v861 = vrot.slane %v859, 4
      %v862 = vrot.slane %v601, 5
      %v863 = vsel %vm520, %v861, %v862
      %v864 = vrot.slane %v802, 5
      %v865 = vrot.slane %v864, 4
      %v866 = vrot.slane %v592, 5
      %v867 = vsel %vm520, %v865, %v866
      %v868 = vrot.slane %v866, 4
      %v869 = vrot.slane %v602, 5
      %v870 = vsel %vm520, %v868, %v869
      %v871 = vrot.slane %v803, 5
      %v872 = vrot.slane %v871, 4
      %v873 = vrot.slane %v594, 5
      %v874 = vsel %vm520, %v872, %v873
      %v875 = vrot.slane %v873, 4
      %v876 = vrot.slane %v603, 5
      %v877 = vsel %vm520, %v875, %v876
      %v878 = vrot.slane %v804, 5
      %v879 = vrot.slane %v878, 4
      %v880 = vrot.slane %v596, 5
      %v881 = vsel %vm520, %v879, %v880
      %v882 = vrot.slane %v880, 4
      %v883 = vrot.slane %v604, 5
      %v884 = vsel %vm520, %v882, %v883
      %s885 = sadd.s32 %s263, 2
      %s886 = smul.u32 %s885, 3
      %s887 = smul.addr %s886, 4
      %s888 = scalar_lea.vmem %s239, %s887
      %v889 = vld [vmem:[%s888] sm:$0xf]
      %v890 = vld [vmem:[%s888 + $0x4] sm:$0xf]
      %v891 = vld [vmem:[%s888 + $0xc] sm:$0xf]
      %v892 = vld [vmem:[%s888 + $0x10] sm:$0xf]
      %v893 = vld [vmem:[%s888 + $0x18] sm:$0xf]
      %v894 = vld [vmem:[%s888 + $0x1c] sm:$0xf]
      %v895 = vld [vmem:[%s888 + $0x24] sm:$0xf]
      %v896 = vld [vmem:[%s888 + $0x28] sm:$0xf]
      %v897 = vld [vmem:[%s888 + $0x30] sm:$0xf]
      %v898 = vld [vmem:[%s888 + $0x34] sm:$0xf]
      %v899 = vld [vmem:[%s888 + $0x3c] sm:$0xf]
      %v900 = vld [vmem:[%s888 + $0x40] sm:$0xf]
      %v901 = vld [vmem:[%s888 + $0x48] sm:$0xf]
      %v902 = vld [vmem:[%s888 + $0x4c] sm:$0xf]
      %v903 = vld [vmem:[%s888 + $0x54] sm:$0xf]
      %v904 = vld [vmem:[%s888 + $0x58] sm:$0xf]
      %v905 = vld [vmem:[%s888 + $0x8] sm:$0x1]
      %v906 = vld [vmem:[%s888 + $0x14] sm:$0x1]
      %v907 = vld [vmem:[%s888 + $0x20] sm:$0x1]
      %v908 = vld [vmem:[%s888 + $0x2c] sm:$0x1]
      %v909 = vld [vmem:[%s888 + $0x38] sm:$0x1]
      %v910 = vld [vmem:[%s888 + $0x44] sm:$0x1]
      %v911 = vld [vmem:[%s888 + $0x50] sm:$0x1]
      %v912 = vld [vmem:[%s888 + $0x5c] sm:$0x1]
      %v914 = vshrl.u32 %v889, 16
      %v916 = vrot.slane %v914, 4
      %v917 = vshll.u32 %v889, 16
      %v919 = vrot.slane %v917, 5
      %v920 = vor.u32 %v916, %v919
      %v921 = vrot.slane %v920, 4
      %v923 = vshll.u32 %v890, 16
      %v925 = vrot.slane %v923, 5
      %v926 = vsel %vm293, %v921, %v925
      %v927 = vshrl.u32 %v890, 16
      %v929 = vrot.slane %v927, 4
      %v930 = vor.u32 %v929, %v925
      %v931 = vrot.slane %v930, 4
      %v933 = vshll.u32 %v905, 16
      %v935 = vrot.slane %v933, 5
      %v936 = vsel %vm293, %v931, %v935
      %v938 = vshrl.u32 %v891, 16
      %v940 = vrot.slane %v938, 4
      %v941 = vshll.u32 %v891, 16
      %v943 = vrot.slane %v941, 5
      %v944 = vor.u32 %v940, %v943
      %v945 = vrot.slane %v944, 4
      %v947 = vshll.u32 %v892, 16
      %v949 = vrot.slane %v947, 5
      %v950 = vsel %vm293, %v945, %v949
      %v951 = vshrl.u32 %v892, 16
      %v953 = vrot.slane %v951, 4
      %v954 = vor.u32 %v953, %v949
      %v955 = vrot.slane %v954, 4
      %v957 = vshll.u32 %v906, 16
      %v959 = vrot.slane %v957, 5
      %v960 = vsel %vm293, %v955, %v959
      %v962 = vshrl.u32 %v893, 16
      %v964 = vrot.slane %v962, 4
      %v965 = vshll.u32 %v893, 16
      %v967 = vrot.slane %v965, 5
      %v968 = vor.u32 %v964, %v967
      %v969 = vrot.slane %v968, 4
      %v971 = vshll.u32 %v894, 16
      %v973 = vrot.slane %v971, 5
      %v974 = vsel %vm293, %v969, %v973
      %v975 = vshrl.u32 %v894, 16
      %v977 = vrot.slane %v975, 4
      %v978 = vor.u32 %v977, %v973
      %v979 = vrot.slane %v978, 4
      %v981 = vshll.u32 %v907, 16
      %v983 = vrot.slane %v981, 5
      %v984 = vsel %vm293, %v979, %v983
      %v986 = vshrl.u32 %v895, 16
      %v988 = vrot.slane %v986, 4
      %v989 = vshll.u32 %v895, 16
      %v991 = vrot.slane %v989, 5
      %v992 = vor.u32 %v988, %v991
      %v993 = vrot.slane %v992, 4
      %v995 = vshll.u32 %v896, 16
      %v997 = vrot.slane %v995, 5
      %v998 = vsel %vm293, %v993, %v997
      %v999 = vshrl.u32 %v896, 16
      %v1001 = vrot.slane %v999, 4
      %v1002 = vor.u32 %v1001, %v997
      %v1003 = vrot.slane %v1002, 4
      %v1005 = vshll.u32 %v908, 16
      %v1007 = vrot.slane %v1005, 5
      %v1008 = vsel %vm293, %v1003, %v1007
      %v1010 = vshrl.u32 %v897, 16
      %v1012 = vrot.slane %v1010, 4
      %v1013 = vshll.u32 %v897, 16
      %v1015 = vrot.slane %v1013, 5
      %v1016 = vor.u32 %v1012, %v1015
      %v1017 = vrot.slane %v1016, 4
      %v1019 = vshll.u32 %v898, 16
      %v1021 = vrot.slane %v1019, 5
      %v1022 = vsel %vm293, %v1017, %v1021
      %v1023 = vshrl.u32 %v898, 16
      %v1025 = vrot.slane %v1023, 4
      %v1026 = vor.u32 %v1025, %v1021
      %v1027 = vrot.slane %v1026, 4
      %v1029 = vshll.u32 %v909, 16
      %v1031 = vrot.slane %v1029, 5
      %v1032 = vsel %vm293, %v1027, %v1031
      %v1034 = vshrl.u32 %v899, 16
      %v1036 = vrot.slane %v1034, 4
      %v1037 = vshll.u32 %v899, 16
      %v1039 = vrot.slane %v1037, 5
      %v1040 = vor.u32 %v1036, %v1039
      %v1041 = vrot.slane %v1040, 4
      %v1043 = vshll.u32 %v900, 16
      %v1045 = vrot.slane %v1043, 5
      %v1046 = vsel %vm293, %v1041, %v1045
      %v1047 = vshrl.u32 %v900, 16
      %v1049 = vrot.slane %v1047, 4
      %v1050 = vor.u32 %v1049, %v1045
      %v1051 = vrot.slane %v1050, 4
      %v1053 = vshll.u32 %v910, 16
      %v1055 = vrot.slane %v1053, 5
      %v1056 = vsel %vm293, %v1051, %v1055
      %v1058 = vshrl.u32 %v901, 16
      %v1060 = vrot.slane %v1058, 4
      %v1061 = vshll.u32 %v901, 16
      %v1063 = vrot.slane %v1061, 5
      %v1064 = vor.u32 %v1060, %v1063
      %v1065 = vrot.slane %v1064, 4
      %v1067 = vshll.u32 %v902, 16
      %v1069 = vrot.slane %v1067, 5
      %v1070 = vsel %vm293, %v1065, %v1069
      %v1071 = vshrl.u32 %v902, 16
      %v1073 = vrot.slane %v1071, 4
      %v1074 = vor.u32 %v1073, %v1069
      %v1075 = vrot.slane %v1074, 4
      %v1077 = vshll.u32 %v911, 16
      %v1079 = vrot.slane %v1077, 5
      %v1080 = vsel %vm293, %v1075, %v1079
      %v1082 = vshrl.u32 %v903, 16
      %v1084 = vrot.slane %v1082, 4
      %v1085 = vshll.u32 %v903, 16
      %v1087 = vrot.slane %v1085, 5
      %v1088 = vor.u32 %v1084, %v1087
      %v1089 = vrot.slane %v1088, 4
      %v1091 = vshll.u32 %v904, 16
      %v1093 = vrot.slane %v1091, 5
      %v1094 = vsel %vm293, %v1089, %v1093
      %v1095 = vshrl.u32 %v904, 16
      %v1097 = vrot.slane %v1095, 4
      %v1098 = vor.u32 %v1097, %v1093
      %v1099 = vrot.slane %v1098, 4
      %v1101 = vshll.u32 %v912, 16
      %v1103 = vrot.slane %v1101, 5
      %v1104 = vsel %vm293, %v1099, %v1103
      %v1105 = vld [vmem:[%s888] sm:$0xe]
      %v1106 = vld [vmem:[%s888 + $0xc] sm:$0xe]
      %v1107 = vld [vmem:[%s888 + $0x18] sm:$0xe]
      %v1108 = vld [vmem:[%s888 + $0x24] sm:$0xe]
      %v1109 = vld [vmem:[%s888 + $0x30] sm:$0xe]
      %v1110 = vld [vmem:[%s888 + $0x3c] sm:$0xe]
      %v1111 = vld [vmem:[%s888 + $0x48] sm:$0xe]
      %v1112 = vld [vmem:[%s888 + $0x54] sm:$0xe]
      %v1137 = vrot.slane %v1105, 5
      %v1138 = vrot.slane %v1137, 4
      %v1139 = vrot.slane %v890, 5
      %v1140 = vsel %vm520, %v1138, %v1139
      %v1141 = vrot.slane %v1139, 4
      %v1142 = vrot.slane %v905, 5
      %v1143 = vsel %vm520, %v1141, %v1142
      %v1144 = vrot.slane %v1106, 5
      %v1145 = vrot.slane %v1144, 4
      %v1146 = vrot.slane %v892, 5
      %v1147 = vsel %vm520, %v1145, %v1146
      %v1148 = vrot.slane %v1146, 4
      %v1149 = vrot.slane %v906, 5
      %v1150 = vsel %vm520, %v1148, %v1149
      %v1151 = vrot.slane %v1107, 5
      %v1152 = vrot.slane %v1151, 4
      %v1153 = vrot.slane %v894, 5
      %v1154 = vsel %vm520, %v1152, %v1153
      %v1155 = vrot.slane %v1153, 4
      %v1156 = vrot.slane %v907, 5
      %v1157 = vsel %vm520, %v1155, %v1156
      %v1158 = vrot.slane %v1108, 5
      %v1159 = vrot.slane %v1158, 4
      %v1160 = vrot.slane %v896, 5
      %v1161 = vsel %vm520, %v1159, %v1160
      %v1162 = vrot.slane %v1160, 4
      %v1163 = vrot.slane %v908, 5
      %v1164 = vsel %vm520, %v1162, %v1163
      %v1165 = vrot.slane %v1109, 5
      %v1166 = vrot.slane %v1165, 4
      %v1167 = vrot.slane %v898, 5
      %v1168 = vsel %vm520, %v1166, %v1167
      %v1169 = vrot.slane %v1167, 4
      %v1170 = vrot.slane %v909, 5
      %v1171 = vsel %vm520, %v1169, %v1170
      %v1172 = vrot.slane %v1110, 5
      %v1173 = vrot.slane %v1172, 4
      %v1174 = vrot.slane %v900, 5
      %v1175 = vsel %vm520, %v1173, %v1174
      %v1176 = vrot.slane %v1174, 4
      %v1177 = vrot.slane %v910, 5
      %v1178 = vsel %vm520, %v1176, %v1177
      %v1179 = vrot.slane %v1111, 5
      %v1180 = vrot.slane %v1179, 4
      %v1181 = vrot.slane %v902, 5
      %v1182 = vsel %vm520, %v1180, %v1181
      %v1183 = vrot.slane %v1181, 4
      %v1184 = vrot.slane %v911, 5
      %v1185 = vsel %vm520, %v1183, %v1184
      %v1186 = vrot.slane %v1112, 5
      %v1187 = vrot.slane %v1186, 4
      %v1188 = vrot.slane %v904, 5
      %v1189 = vsel %vm520, %v1187, %v1188
      %v1190 = vrot.slane %v1188, 4
      %v1191 = vrot.slane %v912, 5
      %v1192 = vsel %vm520, %v1190, %v1191
      %v1193 = vld [vmem:[%s1] sm:$0xf]
      %v1194 = vld [vmem:[%s1 + $0x4] sm:$0xf]
      %v1195 = vld [vmem:[%s1 + $0x8] sm:$0xf]
      %v1196 = vld [vmem:[%s1 + $0xc] sm:$0xf]
      %v1197 = vld [vmem:[%s1 + $0x10] sm:$0xf]
      %v1198 = vld [vmem:[%s1 + $0x14] sm:$0xf]
      %v1199 = vld [vmem:[%s1 + $0x18] sm:$0xf]
      %v1200 = vld [vmem:[%s1 + $0x1c] sm:$0xf]
      %v1201 = vld [vmem:[%s1 + $0x20] sm:$0xf]
      %v1202 = vld [vmem:[%s1 + $0x24] sm:$0xf]
      %v1203 = vld [vmem:[%s1 + $0x28] sm:$0xf]
      %v1204 = vld [vmem:[%s1 + $0x2c] sm:$0xf]
      %v1205 = vld [vmem:[%s1 + $0x30] sm:$0xf]
      %v1206 = vld [vmem:[%s1 + $0x34] sm:$0xf]
      %v1207 = vld [vmem:[%s1 + $0x38] sm:$0xf]
      %v1208 = vld [vmem:[%s1 + $0x3c] sm:$0xf]
      %s1209 = scalar_lea.vmem %s1, 64
      %v1210 = vld [vmem:[%s1209] sm:$0xf]
      %v1211 = vld [vmem:[%s1209 + $0x4] sm:$0xf]
      %v1212 = vld [vmem:[%s1209 + $0x8] sm:$0xf]
      %v1213 = vld [vmem:[%s1209 + $0xc] sm:$0xf]
      %v1214 = vld [vmem:[%s1209 + $0x10] sm:$0xf]
      %v1215 = vld [vmem:[%s1209 + $0x14] sm:$0xf]
      %v1216 = vld [vmem:[%s1209 + $0x18] sm:$0xf]
      %v1217 = vld [vmem:[%s1209 + $0x1c] sm:$0xf]
      %v1218 = vld [vmem:[%s1209 + $0x20] sm:$0xf]
      %v1219 = vld [vmem:[%s1209 + $0x24] sm:$0xf]
      %v1220 = vld [vmem:[%s1209 + $0x28] sm:$0xf]
      %v1221 = vld [vmem:[%s1209 + $0x2c] sm:$0xf]
      %v1222 = vld [vmem:[%s1209 + $0x30] sm:$0xf]
      %v1223 = vld [vmem:[%s1209 + $0x34] sm:$0xf]
      %v1224 = vld [vmem:[%s1209 + $0x38] sm:$0xf]
      %v1225 = vld [vmem:[%s1209 + $0x3c] sm:$0xf]
      %v1226 = vunpack.c.l.b16 %v307
      %v1227 = vunpack.c.l.b16 %v317
      %v1228 = vunpack.c.l.b16 %v331
      %v1229 = vunpack.c.l.b16 %v341
      %v1230 = vunpack.c.l.b16 %v355
      %v1231 = vunpack.c.l.b16 %v365
      %v1232 = vunpack.c.l.b16 %v379
      %v1233 = vunpack.c.l.b16 %v389
      %v1234 = vunpack.c.l.b16 %v403
      %v1235 = vunpack.c.l.b16 %v413
      %v1236 = vunpack.c.l.b16 %v427
      %v1237 = vunpack.c.l.b16 %v437
      %v1238 = vunpack.c.l.b16 %v451
      %v1239 = vunpack.c.l.b16 %v461
      %v1240 = vunpack.c.l.b16 %v475
      %v1241 = vunpack.c.l.b16 %v485
      %v1242 = vpack.c.b16 %v1227, %v1226
      %v1243 = vpack.c.b16 %v1229, %v1228
      %v1244 = vpack.c.b16 %v1231, %v1230
      %v1245 = vpack.c.b16 %v1233, %v1232
      %v1246 = vpack.c.b16 %v1235, %v1234
      %v1247 = vpack.c.b16 %v1237, %v1236
      %v1248 = vpack.c.b16 %v1239, %v1238
      %v1249 = vpack.c.b16 %v1241, %v1240
      %v1274 = vunpack.c.l.b16 %v1210
      %v1275 = vunpack.c.l.b16 %v1211
      %v1276 = vunpack.c.l.b16 %v1212
      %v1277 = vunpack.c.l.b16 %v1213
      %v1278 = vunpack.c.l.b16 %v1214
      %v1279 = vunpack.c.l.b16 %v1215
      %v1280 = vunpack.c.l.b16 %v1216
      %v1281 = vunpack.c.l.b16 %v1217
      %v1282 = vunpack.c.l.b16 %v1218
      %v1283 = vunpack.c.l.b16 %v1219
      %v1284 = vunpack.c.l.b16 %v1220
      %v1285 = vunpack.c.l.b16 %v1221
      %v1286 = vunpack.c.l.b16 %v1222
      %v1287 = vunpack.c.l.b16 %v1223
      %v1288 = vunpack.c.l.b16 %v1224
      %v1289 = vunpack.c.l.b16 %v1225
      %v1290 = vpack.c.b16 %v1275, %v1274
      %v1291 = vpack.c.b16 %v1277, %v1276
      %v1292 = vpack.c.b16 %v1279, %v1278
      %v1293 = vpack.c.b16 %v1281, %v1280
      %v1294 = vpack.c.b16 %v1283, %v1282
      %v1295 = vpack.c.b16 %v1285, %v1284
      %v1296 = vpack.c.b16 %v1287, %v1286
      %v1297 = vpack.c.b16 %v1289, %v1288
      %1306 = vmatprep.subr.bf16.mxu0 0
      %1307 = vmatpush1.bf16.msra.mxu0 %v1290
      %1308 = vmatprep.subr.bf16.mxu0 0
      %1309 = vmatpush1.bf16.msra.mxu0 %v1291
      %1310 = vmatprep.subr.bf16.mxu0 0
      %1311 = vmatpush1.bf16.msra.mxu0 %v1292
      %1312 = vmatprep.subr.bf16.mxu0 0
      %1313 = vmatpush1.bf16.msra.mxu0 %v1293
      %1314 = vmatprep.subr.bf16.mxu0 0
      %1315 = vmatpush1.bf16.msra.mxu0 %v1294
      %1316 = vmatprep.subr.bf16.mxu0 0
      %1317 = vmatpush1.bf16.msra.mxu0 %v1295
      %1318 = vmatprep.subr.bf16.mxu0 0
      %1319 = vmatpush1.bf16.msra.mxu0 %v1296
      %1320 = vmatprep.subr.bf16.mxu0 0
      %1321 = vmatpush1.bf16.msra.mxu0 %v1297
      %1322 = vmatprep.subr.bf16.mxu0 0
      %1323 = vmatpush1.bf16.msra.mxu0 0
      %1324 = vmatprep.subr.bf16.mxu0 0
      %1325 = vmatpush1.bf16.msra.mxu0 0
      %1326 = vmatprep.subr.bf16.mxu0 0
      %1327 = vmatpush1.bf16.msra.mxu0 0
      %1328 = vmatprep.subr.bf16.mxu0 0
      %1329 = vmatpush1.bf16.msra.mxu0 0
      %1330 = vmatprep.subr.bf16.mxu0 0
      %1331 = vmatpush1.bf16.msra.mxu0 0
      %1332 = vmatprep.subr.bf16.mxu0 0
      %1333 = vmatpush1.bf16.msra.mxu0 0
      %1334 = vmatprep.subr.bf16.mxu0 0
      %1335 = vmatpush1.bf16.msra.mxu0 0
      %1336 = vmatprep.subr.bf16.mxu0 0
      %1337 = vmatpush1.bf16.msra.mxu0 0
      %1338 = vmatprep.mubr.bf16.mxu0 0
      %1339 = vmatmul.mubr.bf16.gmra.mrb[0].mxu0 %v1242
      %v1340 = vpop.f32.mrb[0].mxu0
      %v1341 = vadd.f32 0.0, %v1340
      %v1342 = vpop.f32.mrb[0].mxu0
      %v1343 = vpop.f32.mrb[0].mxu0
      %v1344 = vadd.f32 0.0, %v1343
      %v1345 = vpop.f32.mrb[0].mxu0
      %1346 = vmatprep.mubr.bf16.mxu0 0
      %1347 = vmatmul.mubr.bf16.gmra.mrb[0].mxu0 %v1243
      %v1348 = vpop.f32.mrb[0].mxu0
      %v1349 = vadd.f32 0.0, %v1348
      %v1350 = vpop.f32.mrb[0].mxu0
      %v1351 = vpop.f32.mrb[0].mxu0
      %v1352 = vadd.f32 0.0, %v1351
      %v1353 = vpop.f32.mrb[0].mxu0
      %1354 = vmatprep.mubr.bf16.mxu0 0
      %1355 = vmatmul.mubr.bf16.gmra.mrb[0].mxu0 %v1244
      %v1356 = vpop.f32.mrb[0].mxu0
      %v1357 = vadd.f32 0.0, %v1356
      %v1358 = vpop.f32.mrb[0].mxu0
      %v1359 = vpop.f32.mrb[0].mxu0
      %v1360 = vadd.f32 0.0, %v1359
      %v1361 = vpop.f32.mrb[0].mxu0
      %1362 = vmatprep.mubr.bf16.mxu0 0
      %1363 = vmatmul.mubr.bf16.gmra.mrb[0].mxu0 %v1245
      %v1364 = vpop.f32.mrb[0].mxu0
      %v1365 = vadd.f32 0.0, %v1364
      %v1366 = vpop.f32.mrb[0].mxu0
      %v1367 = vpop.f32.mrb[0].mxu0
      %v1368 = vadd.f32 0.0, %v1367
      %v1369 = vpop.f32.mrb[0].mxu0
      %1370 = vmatprep.mubr.bf16.mxu0 0
      %1371 = vmatmul.mubr.bf16.gmra.mrb[0].mxu0 %v1246
      %v1372 = vpop.f32.mrb[0].mxu0
      %v1373 = vadd.f32 0.0, %v1372
      %v1374 = vpop.f32.mrb[0].mxu0
      %v1375 = vpop.f32.mrb[0].mxu0
      %v1376 = vadd.f32 0.0, %v1375
      %v1377 = vpop.f32.mrb[0].mxu0
      %1378 = vmatprep.mubr.bf16.mxu0 0
      %1379 = vmatmul.mubr.bf16.gmra.mrb[0].mxu0 %v1247
      %v1380 = vpop.f32.mrb[0].mxu0
      %v1381 = vadd.f32 0.0, %v1380
      %v1382 = vpop.f32.mrb[0].mxu0
      %v1383 = vpop.f32.mrb[0].mxu0
      %v1384 = vadd.f32 0.0, %v1383
      %v1385 = vpop.f32.mrb[0].mxu0
      %1386 = vmatprep.mubr.bf16.mxu0 0
      %1387 = vmatmul.mubr.bf16.gmra.mrb[0].mxu0 %v1248
      %v1388 = vpop.f32.mrb[0].mxu0
      %v1389 = vadd.f32 0.0, %v1388
      %v1390 = vpop.f32.mrb[0].mxu0
      %v1391 = vpop.f32.mrb[0].mxu0
      %v1392 = vadd.f32 0.0, %v1391
      %v1393 = vpop.f32.mrb[0].mxu0
      %1394 = vmatprep.mubr.bf16.mxu0 0
      %1395 = vmatmul.mubr.bf16.gmra.mrb[0].mxu0 %v1249
      %v1396 = vpop.f32.mrb[0].mxu0
      %v1397 = vadd.f32 0.0, %v1396
      %v1398 = vpop.f32.mrb[0].mxu0
      %v1399 = vpop.f32.mrb[0].mxu0
      %v1400 = vadd.f32 0.0, %v1399
      %v1401 = vpop.f32.mrb[0].mxu0
      %1402 = vdwg.mxu0
      %v1411 = vunpack.c.l.b16 %v267
      %v1412 = vunpack.c.l.b16 %v268
      %v1413 = vunpack.c.l.b16 %v269
      %v1414 = vunpack.c.l.b16 %v270
      %v1415 = vunpack.c.l.b16 %v271
      %v1416 = vunpack.c.l.b16 %v272
      %v1417 = vunpack.c.l.b16 %v273
      %v1418 = vunpack.c.l.b16 %v274
      %v1419 = vunpack.c.l.b16 %v275
      %v1420 = vunpack.c.l.b16 %v276
      %v1421 = vunpack.c.l.b16 %v277
      %v1422 = vunpack.c.l.b16 %v278
      %v1423 = vunpack.c.l.b16 %v279
      %v1424 = vunpack.c.l.b16 %v280
      %v1425 = vunpack.c.l.b16 %v281
      %v1426 = vunpack.c.l.b16 %v282
      %v1427 = vpack.c.b16 %v1412, %v1411
      %v1428 = vpack.c.b16 %v1414, %v1413
      %v1429 = vpack.c.b16 %v1416, %v1415
      %v1430 = vpack.c.b16 %v1418, %v1417
      %v1431 = vpack.c.b16 %v1420, %v1419
      %v1432 = vpack.c.b16 %v1422, %v1421
      %v1433 = vpack.c.b16 %v1424, %v1423
      %v1434 = vpack.c.b16 %v1426, %v1425
      %v1459 = vunpack.c.l.b16 %v1193
      %v1460 = vunpack.c.l.b16 %v1194
      %v1461 = vunpack.c.l.b16 %v1195
      %v1462 = vunpack.c.l.b16 %v1196
      %v1463 = vunpack.c.l.b16 %v1197
      %v1464 = vunpack.c.l.b16 %v1198
      %v1465 = vunpack.c.l.b16 %v1199
      %v1466 = vunpack.c.l.b16 %v1200
      %v1467 = vunpack.c.l.b16 %v1201
      %v1468 = vunpack.c.l.b16 %v1202
      %v1469 = vunpack.c.l.b16 %v1203
      %v1470 = vunpack.c.l.b16 %v1204
      %v1471 = vunpack.c.l.b16 %v1205
      %v1472 = vunpack.c.l.b16 %v1206
      %v1473 = vunpack.c.l.b16 %v1207
      %v1474 = vunpack.c.l.b16 %v1208
      %v1475 = vpack.c.b16 %v1460, %v1459
      %v1476 = vpack.c.b16 %v1462, %v1461
      %v1477 = vpack.c.b16 %v1464, %v1463
      %v1478 = vpack.c.b16 %v1466, %v1465
      %v1479 = vpack.c.b16 %v1468, %v1467
      %v1480 = vpack.c.b16 %v1470, %v1469
      %v1481 = vpack.c.b16 %v1472, %v1471
      %v1482 = vpack.c.b16 %v1474, %v1473
      %1491 = vmatprep.subr.bf16.mxu0 0
      %1492 = vmatpush1.bf16.msra.mxu0 %v1475
      %1493 = vmatprep.subr.bf16.mxu0 0
      %1494 = vmatpush1.bf16.msra.mxu0 %v1476
      %1495 = vmatprep.subr.bf16.mxu0 0
      %1496 = vmatpush1.bf16.msra.mxu0 %v1477
      %1497 = vmatprep.subr.bf16.mxu0 0
      %1498 = vmatpush1.bf16.msra.mxu0 %v1478
      %1499 = vmatprep.subr.bf16.mxu0 0
      %1500 = vmatpush1.bf16.msra.mxu0 %v1479
      %1501 = vmatprep.subr.bf16.mxu0 0
      %1502 = vmatpush1.bf16.msra.mxu0 %v1480
      %1503 = vmatprep.subr.bf16.mxu0 0
      %1504 = vmatpush1.bf16.msra.mxu0 %v1481
      %1505 = vmatprep.subr.bf16.mxu0 0
      %1506 = vmatpush1.bf16.msra.mxu0 %v1482
      %1507 = vmatprep.subr.bf16.mxu0 0
      %1508 = vmatpush1.bf16.msra.mxu0 0
      %1509 = vmatprep.subr.bf16.mxu0 0
      %1510 = vmatpush1.bf16.msra.mxu0 0
      %1511 = vmatprep.subr.bf16.mxu0 0
      %1512 = vmatpush1.bf16.msra.mxu0 0
      %1513 = vmatprep.subr.bf16.mxu0 0
      %1514 = vmatpush1.bf16.msra.mxu0 0
      %1515 = vmatprep.subr.bf16.mxu0 0
      %1516 = vmatpush1.bf16.msra.mxu0 0
      %1517 = vmatprep.subr.bf16.mxu0 0
      %1518 = vmatpush1.bf16.msra.mxu0 0
      %1519 = vmatprep.subr.bf16.mxu0 0
      %1520 = vmatpush1.bf16.msra.mxu0 0
      %1521 = vmatprep.subr.bf16.mxu0 0
      %1522 = vmatpush1.bf16.msra.mxu0 0
      %1523 = vmatprep.mubr.bf16.mxu0 0
      %1524 = vmatmul.mubr.bf16.gmra.mrb[0].mxu0 %v1427
      %v1525 = vpop.f32.mrb[0].mxu0
      %v1526 = vadd.f32 %v1341, %v1525
      %v1527 = vpop.f32.mrb[0].mxu0
      %v1528 = vpop.f32.mrb[0].mxu0
      %v1529 = vadd.f32 %v1344, %v1528
      %v1530 = vpop.f32.mrb[0].mxu0
      %1531 = vmatprep.mubr.bf16.mxu0 0
      %1532 = vmatmul.mubr.bf16.gmra.mrb[0].mxu0 %v1428
      %v1533 = vpop.f32.mrb[0].mxu0
      %v1534 = vadd.f32 %v1349, %v1533
      %v1535 = vpop.f32.mrb[0].mxu0
      %v1536 = vpop.f32.mrb[0].mxu0
      %v1537 = vadd.f32 %v1352, %v1536
      %v1538 = vpop.f32.mrb[0].mxu0
      %1539 = vmatprep.mubr.bf16.mxu0 0
      %1540 = vmatmul.mubr.bf16.gmra.mrb[0].mxu0 %v1429
      %v1541 = vpop.f32.mrb[0].mxu0
      %v1542 = vadd.f32 %v1357, %v1541
      %v1543 = vpop.f32.mrb[0].mxu0
      %v1544 = vpop.f32.mrb[0].mxu0
      %v1545 = vadd.f32 %v1360, %v1544
      %v1546 = vpop.f32.mrb[0].mxu0
      %1547 = vmatprep.mubr.bf16.mxu0 0
      %1548 = vmatmul.mubr.bf16.gmra.mrb[0].mxu0 %v1430
      %v1549 = vpop.f32.mrb[0].mxu0
      %v1550 = vadd.f32 %v1365, %v1549
      %v1551 = vpop.f32.mrb[0].mxu0
      %v1552 = vpop.f32.mrb[0].mxu0
      %v1553 = vadd.f32 %v1368, %v1552
      %v1554 = vpop.f32.mrb[0].mxu0
      %1555 = vmatprep.mubr.bf16.mxu0 0
      %1556 = vmatmul.mubr.bf16.gmra.mrb[0].mxu0 %v1431
      %v1557 = vpop.f32.mrb[0].mxu0
      %v1558 = vadd.f32 %v1373, %v1557
      %v1559 = vpop.f32.mrb[0].mxu0
      %v1560 = vpop.f32.mrb[0].mxu0
      %v1561 = vadd.f32 %v1376, %v1560
      %v1562 = vpop.f32.mrb[0].mxu0
      %1563 = vmatprep.mubr.bf16.mxu0 0
      %1564 = vmatmul.mubr.bf16.gmra.mrb[0].mxu0 %v1432
      %v1565 = vpop.f32.mrb[0].mxu0
      %v1566 = vadd.f32 %v1381, %v1565
      %v1567 = vpop.f32.mrb[0].mxu0
      %v1568 = vpop.f32.mrb[0].mxu0
      %v1569 = vadd.f32 %v1384, %v1568
      %v1570 = vpop.f32.mrb[0].mxu0
      %1571 = vmatprep.mubr.bf16.mxu0 0
      %1572 = vmatmul.mubr.bf16.gmra.mrb[0].mxu0 %v1433
      %v1573 = vpop.f32.mrb[0].mxu0
      %v1574 = vadd.f32 %v1389, %v1573
      %v1575 = vpop.f32.mrb[0].mxu0
      %v1576 = vpop.f32.mrb[0].mxu0
      %v1577 = vadd.f32 %v1392, %v1576
      %v1578 = vpop.f32.mrb[0].mxu0
      %1579 = vmatprep.mubr.bf16.mxu0 0
      %1580 = vmatmul.mubr.bf16.gmra.mrb[0].mxu0 %v1434
      %v1581 = vpop.f32.mrb[0].mxu0
      %v1582 = vadd.f32 %v1397, %v1581
      %v1583 = vpop.f32.mrb[0].mxu0
      %v1584 = vpop.f32.mrb[0].mxu0
      %v1585 = vadd.f32 %v1400, %v1584
      %v1586 = vpop.f32.mrb[0].mxu0
      %1587 = vdwg.mxu0
      %s1588 = scalar_lea.vmem %s1, 128
      %v1589 = vld [vmem:[%s1588] sm:$0xf]
      %v1590 = vld [vmem:[%s1588 + $0x4] sm:$0xf]
      %v1591 = vld [vmem:[%s1588 + $0x8] sm:$0xf]
      %v1592 = vld [vmem:[%s1588 + $0xc] sm:$0xf]
      %v1593 = vld [vmem:[%s1588 + $0x10] sm:$0xf]
      %v1594 = vld [vmem:[%s1588 + $0x14] sm:$0xf]
      %v1595 = vld [vmem:[%s1588 + $0x18] sm:$0xf]
      %v1596 = vld [vmem:[%s1588 + $0x1c] sm:$0xf]
      %v1597 = vld [vmem:[%s1588 + $0x20] sm:$0xf]
      %v1598 = vld [vmem:[%s1588 + $0x24] sm:$0xf]
      %v1599 = vld [vmem:[%s1588 + $0x28] sm:$0xf]
      %v1600 = vld [vmem:[%s1588 + $0x2c] sm:$0xf]
      %v1601 = vld [vmem:[%s1588 + $0x30] sm:$0xf]
      %v1602 = vld [vmem:[%s1588 + $0x34] sm:$0xf]
      %v1603 = vld [vmem:[%s1588 + $0x38] sm:$0xf]
      %v1604 = vld [vmem:[%s1588 + $0x3c] sm:$0xf]
      %v1605 = vunpack.c.l.b16 %v524
      %v1606 = vunpack.c.l.b16 %v527
      %v1607 = vunpack.c.l.b16 %v531
      %v1608 = vunpack.c.l.b16 %v534
      %v1609 = vunpack.c.l.b16 %v538
      %v1610 = vunpack.c.l.b16 %v541
      %v1611 = vunpack.c.l.b16 %v545
      %v1612 = vunpack.c.l.b16 %v548
      %v1613 = vunpack.c.l.b16 %v552
      %v1614 = vunpack.c.l.b16 %v555
      %v1615 = vunpack.c.l.b16 %v559
      %v1616 = vunpack.c.l.b16 %v562
      %v1617 = vunpack.c.l.b16 %v566
      %v1618 = vunpack.c.l.b16 %v569
      %v1619 = vunpack.c.l.b16 %v573
      %v1620 = vunpack.c.l.b16 %v576
      %v1621 = vpack.c.b16 %v1606, %v1605
      %v1622 = vpack.c.b16 %v1608, %v1607
      %v1623 = vpack.c.b16 %v1610, %v1609
      %v1624 = vpack.c.b16 %v1612, %v1611
      %v1625 = vpack.c.b16 %v1614, %v1613
      %v1626 = vpack.c.b16 %v1616, %v1615
      %v1627 = vpack.c.b16 %v1618, %v1617
      %v1628 = vpack.c.b16 %v1620, %v1619
      %v1653 = vunpack.c.l.b16 %v1589
      %v1654 = vunpack.c.l.b16 %v1590
      %v1655 = vunpack.c.l.b16 %v1591
      %v1656 = vunpack.c.l.b16 %v1592
      %v1657 = vunpack.c.l.b16 %v1593
      %v1658 = vunpack.c.l.b16 %v1594
      %v1659 = vunpack.c.l.b16 %v1595
      %v1660 = vunpack.c.l.b16 %v1596
      %v1661 = vunpack.c.l.b16 %v1597
      %v1662 = vunpack.c.l.b16 %v1598
      %v1663 = vunpack.c.l.b16 %v1599
      %v1664 = vunpack.c.l.b16 %v1600
      %v1665 = vunpack.c.l.b16 %v1601
      %v1666 = vunpack.c.l.b16 %v1602
      %v1667 = vunpack.c.l.b16 %v1603
      %v1668 = vunpack.c.l.b16 %v1604
      %v1669 = vpack.c.b16 %v1654, %v1653
      %v1670 = vpack.c.b16 %v1656, %v1655
      %v1671 = vpack.c.b16 %v1658, %v1657
      %v1672 = vpack.c.b16 %v1660, %v1659
      %v1673 = vpack.c.b16 %v1662, %v1661
      %v1674 = vpack.c.b16 %v1664, %v1663
      %v1675 = vpack.c.b16 %v1666, %v1665
      %v1676 = vpack.c.b16 %v1668, %v1667
      %1685 = vmatprep.subr.bf16.mxu0 0
      %1686 = vmatpush1.bf16.msra.mxu0 %v1669
      %1687 = vmatprep.subr.bf16.mxu0 0
      %1688 = vmatpush1.bf16.msra.mxu0 %v1670
      %1689 = vmatprep.subr.bf16.mxu0 0
      %1690 = vmatpush1.bf16.msra.mxu0 %v1671
      %1691 = vmatprep.subr.bf16.mxu0 0
      %1692 = vmatpush1.bf16.msra.mxu0 %v1672
      %1693 = vmatprep.subr.bf16.mxu0 0
      %1694 = vmatpush1.bf16.msra.mxu0 %v1673
      %1695 = vmatprep.subr.bf16.mxu0 0
      %1696 = vmatpush1.bf16.msra.mxu0 %v1674
      %1697 = vmatprep.subr.bf16.mxu0 0
      %1698 = vmatpush1.bf16.msra.mxu0 %v1675
      %1699 = vmatprep.subr.bf16.mxu0 0
      %1700 = vmatpush1.bf16.msra.mxu0 %v1676
      %1701 = vmatprep.subr.bf16.mxu0 0
      %1702 = vmatpush1.bf16.msra.mxu0 0
      %1703 = vmatprep.subr.bf16.mxu0 0
      %1704 = vmatpush1.bf16.msra.mxu0 0
      %1705 = vmatprep.subr.bf16.mxu0 0
      %1706 = vmatpush1.bf16.msra.mxu0 0
      %1707 = vmatprep.subr.bf16.mxu0 0
      %1708 = vmatpush1.bf16.msra.mxu0 0
      %1709 = vmatprep.subr.bf16.mxu0 0
      %1710 = vmatpush1.bf16.msra.mxu0 0
      %1711 = vmatprep.subr.bf16.mxu0 0
      %1712 = vmatpush1.bf16.msra.mxu0 0
      %1713 = vmatprep.subr.bf16.mxu0 0
      %1714 = vmatpush1.bf16.msra.mxu0 0
      %1715 = vmatprep.subr.bf16.mxu0 0
      %1716 = vmatpush1.bf16.msra.mxu0 0
      %1717 = vmatprep.mubr.bf16.mxu0 0
      %1718 = vmatmul.mubr.bf16.gmra.mrb[0].mxu0 %v1621
      %v1719 = vpop.f32.mrb[0].mxu0
      %v1720 = vadd.f32 0.0, %v1719
      %v1721 = vpop.f32.mrb[0].mxu0
      %v1722 = vpop.f32.mrb[0].mxu0
      %v1723 = vadd.f32 0.0, %v1722
      %v1724 = vpop.f32.mrb[0].mxu0
      %1725 = vmatprep.mubr.bf16.mxu0 0
      %1726 = vmatmul.mubr.bf16.gmra.mrb[0].mxu0 %v1622
      %v1727 = vpop.f32.mrb[0].mxu0
      %v1728 = vadd.f32 0.0, %v1727
      %v1729 = vpop.f32.mrb[0].mxu0
      %v1730 = vpop.f32.mrb[0].mxu0
      %v1731 = vadd.f32 0.0, %v1730
      %v1732 = vpop.f32.mrb[0].mxu0
      %1733 = vmatprep.mubr.bf16.mxu0 0
      %1734 = vmatmul.mubr.bf16.gmra.mrb[0].mxu0 %v1623
      %v1735 = vpop.f32.mrb[0].mxu0
      %v1736 = vadd.f32 0.0, %v1735
      %v1737 = vpop.f32.mrb[0].mxu0
      %v1738 = vpop.f32.mrb[0].mxu0
      %v1739 = vadd.f32 0.0, %v1738
      %v1740 = vpop.f32.mrb[0].mxu0
      %1741 = vmatprep.mubr.bf16.mxu0 0
      %1742 = vmatmul.mubr.bf16.gmra.mrb[0].mxu0 %v1624
      %v1743 = vpop.f32.mrb[0].mxu0
      %v1744 = vadd.f32 0.0, %v1743
      %v1745 = vpop.f32.mrb[0].mxu0
      %v1746 = vpop.f32.mrb[0].mxu0
      %v1747 = vadd.f32 0.0, %v1746
      %v1748 = vpop.f32.mrb[0].mxu0
      %1749 = vmatprep.mubr.bf16.mxu0 0
      %1750 = vmatmul.mubr.bf16.gmra.mrb[0].mxu0 %v1625
      %v1751 = vpop.f32.mrb[0].mxu0
      %v1752 = vadd.f32 0.0, %v1751
      %v1753 = vpop.f32.mrb[0].mxu0
      %v1754 = vpop.f32.mrb[0].mxu0
      %v1755 = vadd.f32 0.0, %v1754
      %v1756 = vpop.f32.mrb[0].mxu0
      %1757 = vmatprep.mubr.bf16.mxu0 0
      %1758 = vmatmul.mubr.bf16.gmra.mrb[0].mxu0 %v1626
      %v1759 = vpop.f32.mrb[0].mxu0
      %v1760 = vadd.f32 0.0, %v1759
      %v1761 = vpop.f32.mrb[0].mxu0
      %v1762 = vpop.f32.mrb[0].mxu0
      %v1763 = vadd.f32 0.0, %v1762
      %v1764 = vpop.f32.mrb[0].mxu0
      %1765 = vmatprep.mubr.bf16.mxu0 0
      %1766 = vmatmul.mubr.bf16.gmra.mrb[0].mxu0 %v1627
      %v1767 = vpop.f32.mrb[0].mxu0
      %v1768 = vadd.f32 0.0, %v1767
      %v1769 = vpop.f32.mrb[0].mxu0
      %v1770 = vpop.f32.mrb[0].mxu0
      %v1771 = vadd.f32 0.0, %v1770
      %v1772 = vpop.f32.mrb[0].mxu0
      %1773 = vmatprep.mubr.bf16.mxu0 0
      %1774 = vmatmul.mubr.bf16.gmra.mrb[0].mxu0 %v1628
      %v1775 = vpop.f32.mrb[0].mxu0
      %v1776 = vadd.f32 0.0, %v1775
      %v1777 = vpop.f32.mrb[0].mxu0
      %v1778 = vpop.f32.mrb[0].mxu0
      %v1779 = vadd.f32 0.0, %v1778
      %v1780 = vpop.f32.mrb[0].mxu0
      %1781 = vdwg.mxu0
      %v1782 = vadd.f32 %v1526, %v1720
      %v1783 = vadd.f32 %v1529, %v1723
      %v1784 = vadd.f32 %v1534, %v1728
      %v1785 = vadd.f32 %v1537, %v1731
      %v1786 = vadd.f32 %v1542, %v1736
      %v1787 = vadd.f32 %v1545, %v1739
      %v1788 = vadd.f32 %v1550, %v1744
      %v1789 = vadd.f32 %v1553, %v1747
      %v1790 = vadd.f32 %v1558, %v1752
      %v1791 = vadd.f32 %v1561, %v1755
      %v1792 = vadd.f32 %v1566, %v1760
      %v1793 = vadd.f32 %v1569, %v1763
      %v1794 = vadd.f32 %v1574, %v1768
      %v1795 = vadd.f32 %v1577, %v1771
      %v1796 = vadd.f32 %v1582, %v1776
      %v1797 = vadd.f32 %v1585, %v1779
      %s1798 = scalar_lea.vmem %s1, 192
      %v1799 = vld [vmem:[%s1798] sm:$0xf]
      %v1800 = vld [vmem:[%s1798 + $0x4] sm:$0xf]
      %v1801 = vld [vmem:[%s1798 + $0x8] sm:$0xf]
      %v1802 = vld [vmem:[%s1798 + $0xc] sm:$0xf]
      %v1803 = vld [vmem:[%s1798 + $0x10] sm:$0xf]
      %v1804 = vld [vmem:[%s1798 + $0x14] sm:$0xf]
      %v1805 = vld [vmem:[%s1798 + $0x18] sm:$0xf]
      %v1806 = vld [vmem:[%s1798 + $0x1c] sm:$0xf]
      %v1807 = vld [vmem:[%s1798 + $0x20] sm:$0xf]
      %v1808 = vld [vmem:[%s1798 + $0x24] sm:$0xf]
      %v1809 = vld [vmem:[%s1798 + $0x28] sm:$0xf]
      %v1810 = vld [vmem:[%s1798 + $0x2c] sm:$0xf]
      %v1811 = vld [vmem:[%s1798 + $0x30] sm:$0xf]
      %v1812 = vld [vmem:[%s1798 + $0x34] sm:$0xf]
      %v1813 = vld [vmem:[%s1798 + $0x38] sm:$0xf]
      %v1814 = vld [vmem:[%s1798 + $0x3c] sm:$0xf]
      %v1823 = vunpack.c.l.b16 %v581
      %v1824 = vunpack.c.l.b16 %v582
      %v1825 = vunpack.c.l.b16 %v583
      %v1826 = vunpack.c.l.b16 %v584
      %v1827 = vunpack.c.l.b16 %v585
      %v1828 = vunpack.c.l.b16 %v586
      %v1829 = vunpack.c.l.b16 %v587
      %v1830 = vunpack.c.l.b16 %v588
      %v1831 = vunpack.c.l.b16 %v589
      %v1832 = vunpack.c.l.b16 %v590
      %v1833 = vunpack.c.l.b16 %v591
      %v1834 = vunpack.c.l.b16 %v592
      %v1835 = vunpack.c.l.b16 %v593
      %v1836 = vunpack.c.l.b16 %v594
      %v1837 = vunpack.c.l.b16 %v595
      %v1838 = vunpack.c.l.b16 %v596
      %v1839 = vpack.c.b16 %v1824, %v1823
      %v1840 = vpack.c.b16 %v1826, %v1825
      %v1841 = vpack.c.b16 %v1828, %v1827
      %v1842 = vpack.c.b16 %v1830, %v1829
      %v1843 = vpack.c.b16 %v1832, %v1831
      %v1844 = vpack.c.b16 %v1834, %v1833
      %v1845 = vpack.c.b16 %v1836, %v1835
      %v1846 = vpack.c.b16 %v1838, %v1837
      %v1871 = vunpack.c.l.b16 %v1799
      %v1872 = vunpack.c.l.b16 %v1800
      %v1873 = vunpack.c.l.b16 %v1801
      %v1874 = vunpack.c.l.b16 %v1802
      %v1875 = vunpack.c.l.b16 %v1803
      %v1876 = vunpack.c.l.b16 %v1804
      %v1877 = vunpack.c.l.b16 %v1805
      %v1878 = vunpack.c.l.b16 %v1806
      %v1879 = vunpack.c.l.b16 %v1807
      %v1880 = vunpack.c.l.b16 %v1808
      %v1881 = vunpack.c.l.b16 %v1809
      %v1882 = vunpack.c.l.b16 %v1810
      %v1883 = vunpack.c.l.b16 %v1811
      %v1884 = vunpack.c.l.b16 %v1812
      %v1885 = vunpack.c.l.b16 %v1813
      %v1886 = vunpack.c.l.b16 %v1814
      %v1887 = vpack.c.b16 %v1872, %v1871
      %v1888 = vpack.c.b16 %v1874, %v1873
      %v1889 = vpack.c.b16 %v1876, %v1875
      %v1890 = vpack.c.b16 %v1878, %v1877
      %v1891 = vpack.c.b16 %v1880, %v1879
      %v1892 = vpack.c.b16 %v1882, %v1881
      %v1893 = vpack.c.b16 %v1884, %v1883
      %v1894 = vpack.c.b16 %v1886, %v1885
      %1903 = vmatprep.subr.bf16.mxu0 0
      %1904 = vmatpush1.bf16.msra.mxu0 %v1887
      %1905 = vmatprep.subr.bf16.mxu0 0
      %1906 = vmatpush1.bf16.msra.mxu0 %v1888
      %1907 = vmatprep.subr.bf16.mxu0 0
      %1908 = vmatpush1.bf16.msra.mxu0 %v1889
      %1909 = vmatprep.subr.bf16.mxu0 0
      %1910 = vmatpush1.bf16.msra.mxu0 %v1890
      %1911 = vmatprep.subr.bf16.mxu0 0
      %1912 = vmatpush1.bf16.msra.mxu0 %v1891
      %1913 = vmatprep.subr.bf16.mxu0 0
      %1914 = vmatpush1.bf16.msra.mxu0 %v1892
      %1915 = vmatprep.subr.bf16.mxu0 0
      %1916 = vmatpush1.bf16.msra.mxu0 %v1893
      %1917 = vmatprep.subr.bf16.mxu0 0
      %1918 = vmatpush1.bf16.msra.mxu0 %v1894
      %1919 = vmatprep.subr.bf16.mxu0 0
      %1920 = vmatpush1.bf16.msra.mxu0 0
      %1921 = vmatprep.subr.bf16.mxu0 0
      %1922 = vmatpush1.bf16.msra.mxu0 0
      %1923 = vmatprep.subr.bf16.mxu0 0
      %1924 = vmatpush1.bf16.msra.mxu0 0
      %1925 = vmatprep.subr.bf16.mxu0 0
      %1926 = vmatpush1.bf16.msra.mxu0 0
      %1927 = vmatprep.subr.bf16.mxu0 0
      %1928 = vmatpush1.bf16.msra.mxu0 0
      %1929 = vmatprep.subr.bf16.mxu0 0
      %1930 = vmatpush1.bf16.msra.mxu0 0
      %1931 = vmatprep.subr.bf16.mxu0 0
      %1932 = vmatpush1.bf16.msra.mxu0 0
      %1933 = vmatprep.subr.bf16.mxu0 0
      %1934 = vmatpush1.bf16.msra.mxu0 0
      %1935 = vmatprep.mubr.bf16.mxu0 0
      %1936 = vmatmul.mubr.bf16.gmra.mrb[0].mxu0 %v1839
      %v1937 = vpop.f32.mrb[0].mxu0
      %v1938 = vadd.f32 0.0, %v1937
      %v1939 = vpop.f32.mrb[0].mxu0
      %v1940 = vpop.f32.mrb[0].mxu0
      %v1941 = vadd.f32 0.0, %v1940
      %v1942 = vpop.f32.mrb[0].mxu0
      %1943 = vmatprep.mubr.bf16.mxu0 0
      %1944 = vmatmul.mubr.bf16.gmra.mrb[0].mxu0 %v1840
      %v1945 = vpop.f32.mrb[0].mxu0
      %v1946 = vadd.f32 0.0, %v1945
      %v1947 = vpop.f32.mrb[0].mxu0
      %v1948 = vpop.f32.mrb[0].mxu0
      %v1949 = vadd.f32 0.0, %v1948
      %v1950 = vpop.f32.mrb[0].mxu0
      %1951 = vmatprep.mubr.bf16.mxu0 0
      %1952 = vmatmul.mubr.bf16.gmra.mrb[0].mxu0 %v1841
      %v1953 = vpop.f32.mrb[0].mxu0
      %v1954 = vadd.f32 0.0, %v1953
      %v1955 = vpop.f32.mrb[0].mxu0
      %v1956 = vpop.f32.mrb[0].mxu0
      %v1957 = vadd.f32 0.0, %v1956
      %v1958 = vpop.f32.mrb[0].mxu0
      %1959 = vmatprep.mubr.bf16.mxu0 0
      %1960 = vmatmul.mubr.bf16.gmra.mrb[0].mxu0 %v1842
      %v1961 = vpop.f32.mrb[0].mxu0
      %v1962 = vadd.f32 0.0, %v1961
      %v1963 = vpop.f32.mrb[0].mxu0
      %v1964 = vpop.f32.mrb[0].mxu0
      %v1965 = vadd.f32 0.0, %v1964
      %v1966 = vpop.f32.mrb[0].mxu0
      %1967 = vmatprep.mubr.bf16.mxu0 0
      %1968 = vmatmul.mubr.bf16.gmra.mrb[0].mxu0 %v1843
      %v1969 = vpop.f32.mrb[0].mxu0
      %v1970 = vadd.f32 0.0, %v1969
      %v1971 = vpop.f32.mrb[0].mxu0
      %v1972 = vpop.f32.mrb[0].mxu0
      %v1973 = vadd.f32 0.0, %v1972
      %v1974 = vpop.f32.mrb[0].mxu0
      %1975 = vmatprep.mubr.bf16.mxu0 0
      %1976 = vmatmul.mubr.bf16.gmra.mrb[0].mxu0 %v1844
      %v1977 = vpop.f32.mrb[0].mxu0
      %v1978 = vadd.f32 0.0, %v1977
      %v1979 = vpop.f32.mrb[0].mxu0
      %v1980 = vpop.f32.mrb[0].mxu0
      %v1981 = vadd.f32 0.0, %v1980
      %v1982 = vpop.f32.mrb[0].mxu0
      %1983 = vmatprep.mubr.bf16.mxu0 0
      %1984 = vmatmul.mubr.bf16.gmra.mrb[0].mxu0 %v1845
      %v1985 = vpop.f32.mrb[0].mxu0
      %v1986 = vadd.f32 0.0, %v1985
      %v1987 = vpop.f32.mrb[0].mxu0
      %v1988 = vpop.f32.mrb[0].mxu0
      %v1989 = vadd.f32 0.0, %v1988
      %v1990 = vpop.f32.mrb[0].mxu0
      %1991 = vmatprep.mubr.bf16.mxu0 0
      %1992 = vmatmul.mubr.bf16.gmra.mrb[0].mxu0 %v1846
      %v1993 = vpop.f32.mrb[0].mxu0
      %v1994 = vadd.f32 0.0, %v1993
      %v1995 = vpop.f32.mrb[0].mxu0
      %v1996 = vpop.f32.mrb[0].mxu0
      %v1997 = vadd.f32 0.0, %v1996
      %v1998 = vpop.f32.mrb[0].mxu0
      %1999 = vdwg.mxu0
      %v2000 = vadd.f32 %v1782, %v1938
      %v2001 = vadd.f32 %v1783, %v1941
      %v2002 = vadd.f32 %v1784, %v1946
      %v2003 = vadd.f32 %v1785, %v1949
      %v2004 = vadd.f32 %v1786, %v1954
      %v2005 = vadd.f32 %v1787, %v1957
      %v2006 = vadd.f32 %v1788, %v1962
      %v2007 = vadd.f32 %v1789, %v1965
      %v2008 = vadd.f32 %v1790, %v1970
      %v2009 = vadd.f32 %v1791, %v1973
      %v2010 = vadd.f32 %v1792, %v1978
      %v2011 = vadd.f32 %v1793, %v1981
      %v2012 = vadd.f32 %v1794, %v1986
      %v2013 = vadd.f32 %v1795, %v1989
      %v2014 = vadd.f32 %v1796, %v1994
      %v2015 = vadd.f32 %v1797, %v1997
      %s2016 = scalar_lea.vmem %s1, 256
      %v2017 = vld [vmem:[%s2016] sm:$0xf]
      %v2018 = vld [vmem:[%s2016 + $0x4] sm:$0xf]
      %v2019 = vld [vmem:[%s2016 + $0x8] sm:$0xf]
      %v2020 = vld [vmem:[%s2016 + $0xc] sm:$0xf]
      %v2021 = vld [vmem:[%s2016 + $0x10] sm:$0xf]
      %v2022 = vld [vmem:[%s2016 + $0x14] sm:$0xf]
      %v2023 = vld [vmem:[%s2016 + $0x18] sm:$0xf]
      %v2024 = vld [vmem:[%s2016 + $0x1c] sm:$0xf]
      %v2025 = vld [vmem:[%s2016 + $0x20] sm:$0xf]
      %v2026 = vld [vmem:[%s2016 + $0x24] sm:$0xf]
      %v2027 = vld [vmem:[%s2016 + $0x28] sm:$0xf]
      %v2028 = vld [vmem:[%s2016 + $0x2c] sm:$0xf]
      %v2029 = vld [vmem:[%s2016 + $0x30] sm:$0xf]
      %v2030 = vld [vmem:[%s2016 + $0x34] sm:$0xf]
      %v2031 = vld [vmem:[%s2016 + $0x38] sm:$0xf]
      %v2032 = vld [vmem:[%s2016 + $0x3c] sm:$0xf]
      %v2033 = vunpack.c.l.b16 %v618
      %v2034 = vunpack.c.l.b16 %v628
      %v2035 = vunpack.c.l.b16 %v642
      %v2036 = vunpack.c.l.b16 %v652
      %v2037 = vunpack.c.l.b16 %v666
      %v2038 = vunpack.c.l.b16 %v676
      %v2039 = vunpack.c.l.b16 %v690
      %v2040 = vunpack.c.l.b16 %v700
      %v2041 = vunpack.c.l.b16 %v714
      %v2042 = vunpack.c.l.b16 %v724
      %v2043 = vunpack.c.l.b16 %v738
      %v2044 = vunpack.c.l.b16 %v748
      %v2045 = vunpack.c.l.b16 %v762
      %v2046 = vunpack.c.l.b16 %v772
      %v2047 = vunpack.c.l.b16 %v786
      %v2048 = vunpack.c.l.b16 %v796
      %v2049 = vpack.c.b16 %v2034, %v2033
      %v2050 = vpack.c.b16 %v2036, %v2035
      %v2051 = vpack.c.b16 %v2038, %v2037
      %v2052 = vpack.c.b16 %v2040, %v2039
      %v2053 = vpack.c.b16 %v2042, %v2041
      %v2054 = vpack.c.b16 %v2044, %v2043
      %v2055 = vpack.c.b16 %v2046, %v2045
      %v2056 = vpack.c.b16 %v2048, %v2047
      %v2081 = vunpack.c.l.b16 %v2017
      %v2082 = vunpack.c.l.b16 %v2018
      %v2083 = vunpack.c.l.b16 %v2019
      %v2084 = vunpack.c.l.b16 %v2020
      %v2085 = vunpack.c.l.b16 %v2021
      %v2086 = vunpack.c.l.b16 %v2022
      %v2087 = vunpack.c.l.b16 %v2023
      %v2088 = vunpack.c.l.b16 %v2024
      %v2089 = vunpack.c.l.b16 %v2025
      %v2090 = vunpack.c.l.b16 %v2026
      %v2091 = vunpack.c.l.b16 %v2027
      %v2092 = vunpack.c.l.b16 %v2028
      %v2093 = vunpack.c.l.b16 %v2029
      %v2094 = vunpack.c.l.b16 %v2030
      %v2095 = vunpack.c.l.b16 %v2031
      %v2096 = vunpack.c.l.b16 %v2032
      %v2097 = vpack.c.b16 %v2082, %v2081
      %v2098 = vpack.c.b16 %v2084, %v2083
      %v2099 = vpack.c.b16 %v2086, %v2085
      %v2100 = vpack.c.b16 %v2088, %v2087
      %v2101 = vpack.c.b16 %v2090, %v2089
      %v2102 = vpack.c.b16 %v2092, %v2091
      %v2103 = vpack.c.b16 %v2094, %v2093
      %v2104 = vpack.c.b16 %v2096, %v2095
      %2113 = vmatprep.subr.bf16.mxu0 0
      %2114 = vmatpush1.bf16.msra.mxu0 %v2097
      %2115 = vmatprep.subr.bf16.mxu0 0
      %2116 = vmatpush1.bf16.msra.mxu0 %v2098
      %2117 = vmatprep.subr.bf16.mxu0 0
      %2118 = vmatpush1.bf16.msra.mxu0 %v2099
      %2119 = vmatprep.subr.bf16.mxu0 0
      %2120 = vmatpush1.bf16.msra.mxu0 %v2100
      %2121 = vmatprep.subr.bf16.mxu0 0
      %2122 = vmatpush1.bf16.msra.mxu0 %v2101
      %2123 = vmatprep.subr.bf16.mxu0 0
      %2124 = vmatpush1.bf16.msra.mxu0 %v2102
      %2125 = vmatprep.subr.bf16.mxu0 0
      %2126 = vmatpush1.bf16.msra.mxu0 %v2103
      %2127 = vmatprep.subr.bf16.mxu0 0
      %2128 = vmatpush1.bf16.msra.mxu0 %v2104
      %2129 = vmatprep.subr.bf16.mxu0 0
      %2130 = vmatpush1.bf16.msra.mxu0 0
      %2131 = vmatprep.subr.bf16.mxu0 0
      %2132 = vmatpush1.bf16.msra.mxu0 0
      %2133 = vmatprep.subr.bf16.mxu0 0
      %2134 = vmatpush1.bf16.msra.mxu0 0
      %2135 = vmatprep.subr.bf16.mxu0 0
      %2136 = vmatpush1.bf16.msra.mxu0 0
      %2137 = vmatprep.subr.bf16.mxu0 0
      %2138 = vmatpush1.bf16.msra.mxu0 0
      %2139 = vmatprep.subr.bf16.mxu0 0
      %2140 = vmatpush1.bf16.msra.mxu0 0
      %2141 = vmatprep.subr.bf16.mxu0 0
      %2142 = vmatpush1.bf16.msra.mxu0 0
      %2143 = vmatprep.subr.bf16.mxu0 0
      %2144 = vmatpush1.bf16.msra.mxu0 0
      %2145 = vmatprep.mubr.bf16.mxu0 0
      %2146 = vmatmul.mubr.bf16.gmra.mrb[0].mxu0 %v2049
      %v2147 = vpop.f32.mrb[0].mxu0
      %v2148 = vadd.f32 0.0, %v2147
      %v2149 = vpop.f32.mrb[0].mxu0
      %v2150 = vpop.f32.mrb[0].mxu0
      %v2151 = vadd.f32 0.0, %v2150
      %v2152 = vpop.f32.mrb[0].mxu0
      %2153 = vmatprep.mubr.bf16.mxu0 0
      %2154 = vmatmul.mubr.bf16.gmra.mrb[0].mxu0 %v2050
      %v2155 = vpop.f32.mrb[0].mxu0
      %v2156 = vadd.f32 0.0, %v2155
      %v2157 = vpop.f32.mrb[0].mxu0
      %v2158 = vpop.f32.mrb[0].mxu0
      %v2159 = vadd.f32 0.0, %v2158
      %v2160 = vpop.f32.mrb[0].mxu0
      %2161 = vmatprep.mubr.bf16.mxu0 0
      %2162 = vmatmul.mubr.bf16.gmra.mrb[0].mxu0 %v2051
      %v2163 = vpop.f32.mrb[0].mxu0
      %v2164 = vadd.f32 0.0, %v2163
      %v2165 = vpop.f32.mrb[0].mxu0
      %v2166 = vpop.f32.mrb[0].mxu0
      %v2167 = vadd.f32 0.0, %v2166
      %v2168 = vpop.f32.mrb[0].mxu0
      %2169 = vmatprep.mubr.bf16.mxu0 0
      %2170 = vmatmul.mubr.bf16.gmra.mrb[0].mxu0 %v2052
      %v2171 = vpop.f32.mrb[0].mxu0
      %v2172 = vadd.f32 0.0, %v2171
      %v2173 = vpop.f32.mrb[0].mxu0
      %v2174 = vpop.f32.mrb[0].mxu0
      %v2175 = vadd.f32 0.0, %v2174
      %v2176 = vpop.f32.mrb[0].mxu0
      %2177 = vmatprep.mubr.bf16.mxu0 0
      %2178 = vmatmul.mubr.bf16.gmra.mrb[0].mxu0 %v2053
      %v2179 = vpop.f32.mrb[0].mxu0
      %v2180 = vadd.f32 0.0, %v2179
      %v2181 = vpop.f32.mrb[0].mxu0
      %v2182 = vpop.f32.mrb[0].mxu0
      %v2183 = vadd.f32 0.0, %v2182
      %v2184 = vpop.f32.mrb[0].mxu0
      %2185 = vmatprep.mubr.bf16.mxu0 0
      %2186 = vmatmul.mubr.bf16.gmra.mrb[0].mxu0 %v2054
      %v2187 = vpop.f32.mrb[0].mxu0
      %v2188 = vadd.f32 0.0, %v2187
      %v2189 = vpop.f32.mrb[0].mxu0
      %v2190 = vpop.f32.mrb[0].mxu0
      %v2191 = vadd.f32 0.0, %v2190
      %v2192 = vpop.f32.mrb[0].mxu0
      %2193 = vmatprep.mubr.bf16.mxu0 0
      %2194 = vmatmul.mubr.bf16.gmra.mrb[0].mxu0 %v2055
      %v2195 = vpop.f32.mrb[0].mxu0
      %v2196 = vadd.f32 0.0, %v2195
      %v2197 = vpop.f32.mrb[0].mxu0
      %v2198 = vpop.f32.mrb[0].mxu0
      %v2199 = vadd.f32 0.0, %v2198
      %v2200 = vpop.f32.mrb[0].mxu0
      %2201 = vmatprep.mubr.bf16.mxu0 0
      %2202 = vmatmul.mubr.bf16.gmra.mrb[0].mxu0 %v2056
      %v2203 = vpop.f32.mrb[0].mxu0
      %v2204 = vadd.f32 0.0, %v2203
      %v2205 = vpop.f32.mrb[0].mxu0
      %v2206 = vpop.f32.mrb[0].mxu0
      %v2207 = vadd.f32 0.0, %v2206
      %v2208 = vpop.f32.mrb[0].mxu0
      %2209 = vdwg.mxu0
      %v2210 = vadd.f32 %v2000, %v2148
      %v2211 = vadd.f32 %v2001, %v2151
      %v2212 = vadd.f32 %v2002, %v2156
      %v2213 = vadd.f32 %v2003, %v2159
      %v2214 = vadd.f32 %v2004, %v2164
      %v2215 = vadd.f32 %v2005, %v2167
      %v2216 = vadd.f32 %v2006, %v2172
      %v2217 = vadd.f32 %v2007, %v2175
      %v2218 = vadd.f32 %v2008, %v2180
      %v2219 = vadd.f32 %v2009, %v2183
      %v2220 = vadd.f32 %v2010, %v2188
      %v2221 = vadd.f32 %v2011, %v2191
      %v2222 = vadd.f32 %v2012, %v2196
      %v2223 = vadd.f32 %v2013, %v2199
      %v2224 = vadd.f32 %v2014, %v2204
      %v2225 = vadd.f32 %v2015, %v2207
      %s2226 = scalar_lea.vmem %s1, 320
      %v2227 = vld [vmem:[%s2226] sm:$0xf]
      %v2228 = vld [vmem:[%s2226 + $0x4] sm:$0xf]
      %v2229 = vld [vmem:[%s2226 + $0x8] sm:$0xf]
      %v2230 = vld [vmem:[%s2226 + $0xc] sm:$0xf]
      %v2231 = vld [vmem:[%s2226 + $0x10] sm:$0xf]
      %v2232 = vld [vmem:[%s2226 + $0x14] sm:$0xf]
      %v2233 = vld [vmem:[%s2226 + $0x18] sm:$0xf]
      %v2234 = vld [vmem:[%s2226 + $0x1c] sm:$0xf]
      %v2235 = vld [vmem:[%s2226 + $0x20] sm:$0xf]
      %v2236 = vld [vmem:[%s2226 + $0x24] sm:$0xf]
      %v2237 = vld [vmem:[%s2226 + $0x28] sm:$0xf]
      %v2238 = vld [vmem:[%s2226 + $0x2c] sm:$0xf]
      %v2239 = vld [vmem:[%s2226 + $0x30] sm:$0xf]
      %v2240 = vld [vmem:[%s2226 + $0x34] sm:$0xf]
      %v2241 = vld [vmem:[%s2226 + $0x38] sm:$0xf]
      %v2242 = vld [vmem:[%s2226 + $0x3c] sm:$0xf]
      %v2243 = vunpack.c.l.b16 %v832
      %v2244 = vunpack.c.l.b16 %v835
      %v2245 = vunpack.c.l.b16 %v839
      %v2246 = vunpack.c.l.b16 %v842
      %v2247 = vunpack.c.l.b16 %v846
      %v2248 = vunpack.c.l.b16 %v849
      %v2249 = vunpack.c.l.b16 %v853
      %v2250 = vunpack.c.l.b16 %v856
      %v2251 = vunpack.c.l.b16 %v860
      %v2252 = vunpack.c.l.b16 %v863
      %v2253 = vunpack.c.l.b16 %v867
      %v2254 = vunpack.c.l.b16 %v870
      %v2255 = vunpack.c.l.b16 %v874
      %v2256 = vunpack.c.l.b16 %v877
      %v2257 = vunpack.c.l.b16 %v881
      %v2258 = vunpack.c.l.b16 %v884
      %v2259 = vpack.c.b16 %v2244, %v2243
      %v2260 = vpack.c.b16 %v2246, %v2245
      %v2261 = vpack.c.b16 %v2248, %v2247
      %v2262 = vpack.c.b16 %v2250, %v2249
      %v2263 = vpack.c.b16 %v2252, %v2251
      %v2264 = vpack.c.b16 %v2254, %v2253
      %v2265 = vpack.c.b16 %v2256, %v2255
      %v2266 = vpack.c.b16 %v2258, %v2257
      %v2291 = vunpack.c.l.b16 %v2227
      %v2292 = vunpack.c.l.b16 %v2228
      %v2293 = vunpack.c.l.b16 %v2229
      %v2294 = vunpack.c.l.b16 %v2230
      %v2295 = vunpack.c.l.b16 %v2231
      %v2296 = vunpack.c.l.b16 %v2232
      %v2297 = vunpack.c.l.b16 %v2233
      %v2298 = vunpack.c.l.b16 %v2234
      %v2299 = vunpack.c.l.b16 %v2235
      %v2300 = vunpack.c.l.b16 %v2236
      %v2301 = vunpack.c.l.b16 %v2237
      %v2302 = vunpack.c.l.b16 %v2238
      %v2303 = vunpack.c.l.b16 %v2239
      %v2304 = vunpack.c.l.b16 %v2240
      %v2305 = vunpack.c.l.b16 %v2241
      %v2306 = vunpack.c.l.b16 %v2242
      %v2307 = vpack.c.b16 %v2292, %v2291
      %v2308 = vpack.c.b16 %v2294, %v2293
      %v2309 = vpack.c.b16 %v2296, %v2295
      %v2310 = vpack.c.b16 %v2298, %v2297
      %v2311 = vpack.c.b16 %v2300, %v2299
      %v2312 = vpack.c.b16 %v2302, %v2301
      %v2313 = vpack.c.b16 %v2304, %v2303
      %v2314 = vpack.c.b16 %v2306, %v2305
      %2323 = vmatprep.subr.bf16.mxu0 0
      %2324 = vmatpush1.bf16.msra.mxu0 %v2307
      %2325 = vmatprep.subr.bf16.mxu0 0
      %2326 = vmatpush1.bf16.msra.mxu0 %v2308
      %2327 = vmatprep.subr.bf16.mxu0 0
      %2328 = vmatpush1.bf16.msra.mxu0 %v2309
      %2329 = vmatprep.subr.bf16.mxu0 0
      %2330 = vmatpush1.bf16.msra.mxu0 %v2310
      %2331 = vmatprep.subr.bf16.mxu0 0
      %2332 = vmatpush1.bf16.msra.mxu0 %v2311
      %2333 = vmatprep.subr.bf16.mxu0 0
      %2334 = vmatpush1.bf16.msra.mxu0 %v2312
      %2335 = vmatprep.subr.bf16.mxu0 0
      %2336 = vmatpush1.bf16.msra.mxu0 %v2313
      %2337 = vmatprep.subr.bf16.mxu0 0
      %2338 = vmatpush1.bf16.msra.mxu0 %v2314
      %2339 = vmatprep.subr.bf16.mxu0 0
      %2340 = vmatpush1.bf16.msra.mxu0 0
      %2341 = vmatprep.subr.bf16.mxu0 0
      %2342 = vmatpush1.bf16.msra.mxu0 0
      %2343 = vmatprep.subr.bf16.mxu0 0
      %2344 = vmatpush1.bf16.msra.mxu0 0
      %2345 = vmatprep.subr.bf16.mxu0 0
      %2346 = vmatpush1.bf16.msra.mxu0 0
      %2347 = vmatprep.subr.bf16.mxu0 0
      %2348 = vmatpush1.bf16.msra.mxu0 0
      %2349 = vmatprep.subr.bf16.mxu0 0
      %2350 = vmatpush1.bf16.msra.mxu0 0
      %2351 = vmatprep.subr.bf16.mxu0 0
      %2352 = vmatpush1.bf16.msra.mxu0 0
      %2353 = vmatprep.subr.bf16.mxu0 0
      %2354 = vmatpush1.bf16.msra.mxu0 0
      %2355 = vmatprep.mubr.bf16.mxu0 0
      %2356 = vmatmul.mubr.bf16.gmra.mrb[0].mxu0 %v2259
      %v2357 = vpop.f32.mrb[0].mxu0
      %v2358 = vadd.f32 0.0, %v2357
      %v2359 = vpop.f32.mrb[0].mxu0
      %v2360 = vpop.f32.mrb[0].mxu0
      %v2361 = vadd.f32 0.0, %v2360
      %v2362 = vpop.f32.mrb[0].mxu0
      %2363 = vmatprep.mubr.bf16.mxu0 0
      %2364 = vmatmul.mubr.bf16.gmra.mrb[0].mxu0 %v2260
      %v2365 = vpop.f32.mrb[0].mxu0
      %v2366 = vadd.f32 0.0, %v2365
      %v2367 = vpop.f32.mrb[0].mxu0
      %v2368 = vpop.f32.mrb[0].mxu0
      %v2369 = vadd.f32 0.0, %v2368
      %v2370 = vpop.f32.mrb[0].mxu0
      %2371 = vmatprep.mubr.bf16.mxu0 0
      %2372 = vmatmul.mubr.bf16.gmra.mrb[0].mxu0 %v2261
      %v2373 = vpop.f32.mrb[0].mxu0
      %v2374 = vadd.f32 0.0, %v2373
      %v2375 = vpop.f32.mrb[0].mxu0
      %v2376 = vpop.f32.mrb[0].mxu0
      %v2377 = vadd.f32 0.0, %v2376
      %v2378 = vpop.f32.mrb[0].mxu0
      %2379 = vmatprep.mubr.bf16.mxu0 0
      %2380 = vmatmul.mubr.bf16.gmra.mrb[0].mxu0 %v2262
      %v2381 = vpop.f32.mrb[0].mxu0
      %v2382 = vadd.f32 0.0, %v2381
      %v2383 = vpop.f32.mrb[0].mxu0
      %v2384 = vpop.f32.mrb[0].mxu0
      %v2385 = vadd.f32 0.0, %v2384
      %v2386 = vpop.f32.mrb[0].mxu0
      %2387 = vmatprep.mubr.bf16.mxu0 0
      %2388 = vmatmul.mubr.bf16.gmra.mrb[0].mxu0 %v2263
      %v2389 = vpop.f32.mrb[0].mxu0
      %v2390 = vadd.f32 0.0, %v2389
      %v2391 = vpop.f32.mrb[0].mxu0
      %v2392 = vpop.f32.mrb[0].mxu0
      %v2393 = vadd.f32 0.0, %v2392
      %v2394 = vpop.f32.mrb[0].mxu0
      %2395 = vmatprep.mubr.bf16.mxu0 0
      %2396 = vmatmul.mubr.bf16.gmra.mrb[0].mxu0 %v2264
      %v2397 = vpop.f32.mrb[0].mxu0
      %v2398 = vadd.f32 0.0, %v2397
      %v2399 = vpop.f32.mrb[0].mxu0
      %v2400 = vpop.f32.mrb[0].mxu0
      %v2401 = vadd.f32 0.0, %v2400
      %v2402 = vpop.f32.mrb[0].mxu0
      %2403 = vmatprep.mubr.bf16.mxu0 0
      %2404 = vmatmul.mubr.bf16.gmra.mrb[0].mxu0 %v2265
      %v2405 = vpop.f32.mrb[0].mxu0
      %v2406 = vadd.f32 0.0, %v2405
      %v2407 = vpop.f32.mrb[0].mxu0
      %v2408 = vpop.f32.mrb[0].mxu0
      %v2409 = vadd.f32 0.0, %v2408
      %v2410 = vpop.f32.mrb[0].mxu0
      %2411 = vmatprep.mubr.bf16.mxu0 0
      %2412 = vmatmul.mubr.bf16.gmra.mrb[0].mxu0 %v2266
      %v2413 = vpop.f32.mrb[0].mxu0
      %v2414 = vadd.f32 0.0, %v2413
      %v2415 = vpop.f32.mrb[0].mxu0
      %v2416 = vpop.f32.mrb[0].mxu0
      %v2417 = vadd.f32 0.0, %v2416
      %v2418 = vpop.f32.mrb[0].mxu0
      %2419 = vdwg.mxu0
      %v2420 = vadd.f32 %v2210, %v2358
      %v2421 = vadd.f32 %v2211, %v2361
      %v2422 = vadd.f32 %v2212, %v2366
      %v2423 = vadd.f32 %v2213, %v2369
      %v2424 = vadd.f32 %v2214, %v2374
      %v2425 = vadd.f32 %v2215, %v2377
      %v2426 = vadd.f32 %v2216, %v2382
      %v2427 = vadd.f32 %v2217, %v2385
      %v2428 = vadd.f32 %v2218, %v2390
      %v2429 = vadd.f32 %v2219, %v2393
      %v2430 = vadd.f32 %v2220, %v2398
      %v2431 = vadd.f32 %v2221, %v2401
      %v2432 = vadd.f32 %v2222, %v2406
      %v2433 = vadd.f32 %v2223, %v2409
      %v2434 = vadd.f32 %v2224, %v2414
      %v2435 = vadd.f32 %v2225, %v2417
      %s2436 = scalar_lea.vmem %s1, 384
      %v2437 = vld [vmem:[%s2436] sm:$0xf]
      %v2438 = vld [vmem:[%s2436 + $0x4] sm:$0xf]
      %v2439 = vld [vmem:[%s2436 + $0x8] sm:$0xf]
      %v2440 = vld [vmem:[%s2436 + $0xc] sm:$0xf]
      %v2441 = vld [vmem:[%s2436 + $0x10] sm:$0xf]
      %v2442 = vld [vmem:[%s2436 + $0x14] sm:$0xf]
      %v2443 = vld [vmem:[%s2436 + $0x18] sm:$0xf]
      %v2444 = vld [vmem:[%s2436 + $0x1c] sm:$0xf]
      %v2445 = vld [vmem:[%s2436 + $0x20] sm:$0xf]
      %v2446 = vld [vmem:[%s2436 + $0x24] sm:$0xf]
      %v2447 = vld [vmem:[%s2436 + $0x28] sm:$0xf]
      %v2448 = vld [vmem:[%s2436 + $0x2c] sm:$0xf]
      %v2449 = vld [vmem:[%s2436 + $0x30] sm:$0xf]
      %v2450 = vld [vmem:[%s2436 + $0x34] sm:$0xf]
      %v2451 = vld [vmem:[%s2436 + $0x38] sm:$0xf]
      %v2452 = vld [vmem:[%s2436 + $0x3c] sm:$0xf]
      %v2461 = vunpack.c.l.b16 %v889
      %v2462 = vunpack.c.l.b16 %v890
      %v2463 = vunpack.c.l.b16 %v891
      %v2464 = vunpack.c.l.b16 %v892
      %v2465 = vunpack.c.l.b16 %v893
      %v2466 = vunpack.c.l.b16 %v894
      %v2467 = vunpack.c.l.b16 %v895
      %v2468 = vunpack.c.l.b16 %v896
      %v2469 = vunpack.c.l.b16 %v897
      %v2470 = vunpack.c.l.b16 %v898
      %v2471 = vunpack.c.l.b16 %v899
      %v2472 = vunpack.c.l.b16 %v900
      %v2473 = vunpack.c.l.b16 %v901
      %v2474 = vunpack.c.l.b16 %v902
      %v2475 = vunpack.c.l.b16 %v903
      %v2476 = vunpack.c.l.b16 %v904
      %v2477 = vpack.c.b16 %v2462, %v2461
      %v2478 = vpack.c.b16 %v2464, %v2463
      %v2479 = vpack.c.b16 %v2466, %v2465
      %v2480 = vpack.c.b16 %v2468, %v2467
      %v2481 = vpack.c.b16 %v2470, %v2469
      %v2482 = vpack.c.b16 %v2472, %v2471
      %v2483 = vpack.c.b16 %v2474, %v2473
      %v2484 = vpack.c.b16 %v2476, %v2475
      %v2509 = vunpack.c.l.b16 %v2437
      %v2510 = vunpack.c.l.b16 %v2438
      %v2511 = vunpack.c.l.b16 %v2439
      %v2512 = vunpack.c.l.b16 %v2440
      %v2513 = vunpack.c.l.b16 %v2441
      %v2514 = vunpack.c.l.b16 %v2442
      %v2515 = vunpack.c.l.b16 %v2443
      %v2516 = vunpack.c.l.b16 %v2444
      %v2517 = vunpack.c.l.b16 %v2445
      %v2518 = vunpack.c.l.b16 %v2446
      %v2519 = vunpack.c.l.b16 %v2447
      %v2520 = vunpack.c.l.b16 %v2448
      %v2521 = vunpack.c.l.b16 %v2449
      %v2522 = vunpack.c.l.b16 %v2450
      %v2523 = vunpack.c.l.b16 %v2451
      %v2524 = vunpack.c.l.b16 %v2452
      %v2525 = vpack.c.b16 %v2510, %v2509
      %v2526 = vpack.c.b16 %v2512, %v2511
      %v2527 = vpack.c.b16 %v2514, %v2513
      %v2528 = vpack.c.b16 %v2516, %v2515
      %v2529 = vpack.c.b16 %v2518, %v2517
      %v2530 = vpack.c.b16 %v2520, %v2519
      %v2531 = vpack.c.b16 %v2522, %v2521
      %v2532 = vpack.c.b16 %v2524, %v2523
      %2541 = vmatprep.subr.bf16.mxu0 0
      %2542 = vmatpush1.bf16.msra.mxu0 %v2525
      %2543 = vmatprep.subr.bf16.mxu0 0
      %2544 = vmatpush1.bf16.msra.mxu0 %v2526
      %2545 = vmatprep.subr.bf16.mxu0 0
      %2546 = vmatpush1.bf16.msra.mxu0 %v2527
      %2547 = vmatprep.subr.bf16.mxu0 0
      %2548 = vmatpush1.bf16.msra.mxu0 %v2528
      %2549 = vmatprep.subr.bf16.mxu0 0
      %2550 = vmatpush1.bf16.msra.mxu0 %v2529
      %2551 = vmatprep.subr.bf16.mxu0 0
      %2552 = vmatpush1.bf16.msra.mxu0 %v2530
      %2553 = vmatprep.subr.bf16.mxu0 0
      %2554 = vmatpush1.bf16.msra.mxu0 %v2531
      %2555 = vmatprep.subr.bf16.mxu0 0
      %2556 = vmatpush1.bf16.msra.mxu0 %v2532
      %2557 = vmatprep.subr.bf16.mxu0 0
      %2558 = vmatpush1.bf16.msra.mxu0 0
      %2559 = vmatprep.subr.bf16.mxu0 0
      %2560 = vmatpush1.bf16.msra.mxu0 0
      %2561 = vmatprep.subr.bf16.mxu0 0
      %2562 = vmatpush1.bf16.msra.mxu0 0
      %2563 = vmatprep.subr.bf16.mxu0 0
      %2564 = vmatpush1.bf16.msra.mxu0 0
      %2565 = vmatprep.subr.bf16.mxu0 0
      %2566 = vmatpush1.bf16.msra.mxu0 0
      %2567 = vmatprep.subr.bf16.mxu0 0
      %2568 = vmatpush1.bf16.msra.mxu0 0
      %2569 = vmatprep.subr.bf16.mxu0 0
      %2570 = vmatpush1.bf16.msra.mxu0 0
      %2571 = vmatprep.subr.bf16.mxu0 0
      %2572 = vmatpush1.bf16.msra.mxu0 0
      %2573 = vmatprep.mubr.bf16.mxu0 0
      %2574 = vmatmul.mubr.bf16.gmra.mrb[0].mxu0 %v2477
      %v2575 = vpop.f32.mrb[0].mxu0
      %v2576 = vadd.f32 0.0, %v2575
      %v2577 = vpop.f32.mrb[0].mxu0
      %v2578 = vpop.f32.mrb[0].mxu0
      %v2579 = vadd.f32 0.0, %v2578
      %v2580 = vpop.f32.mrb[0].mxu0
      %2581 = vmatprep.mubr.bf16.mxu0 0
      %2582 = vmatmul.mubr.bf16.gmra.mrb[0].mxu0 %v2478
      %v2583 = vpop.f32.mrb[0].mxu0
      %v2584 = vadd.f32 0.0, %v2583
      %v2585 = vpop.f32.mrb[0].mxu0
      %v2586 = vpop.f32.mrb[0].mxu0
      %v2587 = vadd.f32 0.0, %v2586
      %v2588 = vpop.f32.mrb[0].mxu0
      %2589 = vmatprep.mubr.bf16.mxu0 0
      %2590 = vmatmul.mubr.bf16.gmra.mrb[0].mxu0 %v2479
      %v2591 = vpop.f32.mrb[0].mxu0
      %v2592 = vadd.f32 0.0, %v2591
      %v2593 = vpop.f32.mrb[0].mxu0
      %v2594 = vpop.f32.mrb[0].mxu0
      %v2595 = vadd.f32 0.0, %v2594
      %v2596 = vpop.f32.mrb[0].mxu0
      %2597 = vmatprep.mubr.bf16.mxu0 0
      %2598 = vmatmul.mubr.bf16.gmra.mrb[0].mxu0 %v2480
      %v2599 = vpop.f32.mrb[0].mxu0
      %v2600 = vadd.f32 0.0, %v2599
      %v2601 = vpop.f32.mrb[0].mxu0
      %v2602 = vpop.f32.mrb[0].mxu0
      %v2603 = vadd.f32 0.0, %v2602
      %v2604 = vpop.f32.mrb[0].mxu0
      %2605 = vmatprep.mubr.bf16.mxu0 0
      %2606 = vmatmul.mubr.bf16.gmra.mrb[0].mxu0 %v2481
      %v2607 = vpop.f32.mrb[0].mxu0
      %v2608 = vadd.f32 0.0, %v2607
      %v2609 = vpop.f32.mrb[0].mxu0
      %v2610 = vpop.f32.mrb[0].mxu0
      %v2611 = vadd.f32 0.0, %v2610
      %v2612 = vpop.f32.mrb[0].mxu0
      %2613 = vmatprep.mubr.bf16.mxu0 0
      %2614 = vmatmul.mubr.bf16.gmra.mrb[0].mxu0 %v2482
      %v2615 = vpop.f32.mrb[0].mxu0
      %v2616 = vadd.f32 0.0, %v2615
      %v2617 = vpop.f32.mrb[0].mxu0
      %v2618 = vpop.f32.mrb[0].mxu0
      %v2619 = vadd.f32 0.0, %v2618
      %v2620 = vpop.f32.mrb[0].mxu0
      %2621 = vmatprep.mubr.bf16.mxu0 0
      %2622 = vmatmul.mubr.bf16.gmra.mrb[0].mxu0 %v2483
      %v2623 = vpop.f32.mrb[0].mxu0
      %v2624 = vadd.f32 0.0, %v2623
      %v2625 = vpop.f32.mrb[0].mxu0
      %v2626 = vpop.f32.mrb[0].mxu0
      %v2627 = vadd.f32 0.0, %v2626
      %v2628 = vpop.f32.mrb[0].mxu0
      %2629 = vmatprep.mubr.bf16.mxu0 0
      %2630 = vmatmul.mubr.bf16.gmra.mrb[0].mxu0 %v2484
      %v2631 = vpop.f32.mrb[0].mxu0
      %v2632 = vadd.f32 0.0, %v2631
      %v2633 = vpop.f32.mrb[0].mxu0
      %v2634 = vpop.f32.mrb[0].mxu0
      %v2635 = vadd.f32 0.0, %v2634
      %v2636 = vpop.f32.mrb[0].mxu0
      %2637 = vdwg.mxu0
      %v2638 = vadd.f32 %v2420, %v2576
      %v2639 = vadd.f32 %v2421, %v2579
      %v2640 = vadd.f32 %v2422, %v2584
      %v2641 = vadd.f32 %v2423, %v2587
      %v2642 = vadd.f32 %v2424, %v2592
      %v2643 = vadd.f32 %v2425, %v2595
      %v2644 = vadd.f32 %v2426, %v2600
      %v2645 = vadd.f32 %v2427, %v2603
      %v2646 = vadd.f32 %v2428, %v2608
      %v2647 = vadd.f32 %v2429, %v2611
      %v2648 = vadd.f32 %v2430, %v2616
      %v2649 = vadd.f32 %v2431, %v2619
      %v2650 = vadd.f32 %v2432, %v2624
      %v2651 = vadd.f32 %v2433, %v2627
      %v2652 = vadd.f32 %v2434, %v2632
      %v2653 = vadd.f32 %v2435, %v2635
      %s2654 = scalar_lea.vmem %s1, 448
      %v2655 = vld [vmem:[%s2654] sm:$0xf]
      %v2656 = vld [vmem:[%s2654 + $0x4] sm:$0xf]
      %v2657 = vld [vmem:[%s2654 + $0x8] sm:$0xf]
      %v2658 = vld [vmem:[%s2654 + $0xc] sm:$0xf]
      %v2659 = vld [vmem:[%s2654 + $0x10] sm:$0xf]
      %v2660 = vld [vmem:[%s2654 + $0x14] sm:$0xf]
      %v2661 = vld [vmem:[%s2654 + $0x18] sm:$0xf]
      %v2662 = vld [vmem:[%s2654 + $0x1c] sm:$0xf]
      %v2663 = vld [vmem:[%s2654 + $0x20] sm:$0xf]
      %v2664 = vld [vmem:[%s2654 + $0x24] sm:$0xf]
      %v2665 = vld [vmem:[%s2654 + $0x28] sm:$0xf]
      %v2666 = vld [vmem:[%s2654 + $0x2c] sm:$0xf]
      %v2667 = vld [vmem:[%s2654 + $0x30] sm:$0xf]
      %v2668 = vld [vmem:[%s2654 + $0x34] sm:$0xf]
      %v2669 = vld [vmem:[%s2654 + $0x38] sm:$0xf]
      %v2670 = vld [vmem:[%s2654 + $0x3c] sm:$0xf]
      %v2671 = vunpack.c.l.b16 %v926
      %v2672 = vunpack.c.l.b16 %v936
      %v2673 = vunpack.c.l.b16 %v950
      %v2674 = vunpack.c.l.b16 %v960
      %v2675 = vunpack.c.l.b16 %v974
      %v2676 = vunpack.c.l.b16 %v984
      %v2677 = vunpack.c.l.b16 %v998
      %v2678 = vunpack.c.l.b16 %v1008
      %v2679 = vunpack.c.l.b16 %v1022
      %v2680 = vunpack.c.l.b16 %v1032
      %v2681 = vunpack.c.l.b16 %v1046
      %v2682 = vunpack.c.l.b16 %v1056
      %v2683 = vunpack.c.l.b16 %v1070
      %v2684 = vunpack.c.l.b16 %v1080
      %v2685 = vunpack.c.l.b16 %v1094
      %v2686 = vunpack.c.l.b16 %v1104
      %v2687 = vpack.c.b16 %v2672, %v2671
      %v2688 = vpack.c.b16 %v2674, %v2673
      %v2689 = vpack.c.b16 %v2676, %v2675
      %v2690 = vpack.c.b16 %v2678, %v2677
      %v2691 = vpack.c.b16 %v2680, %v2679
      %v2692 = vpack.c.b16 %v2682, %v2681
      %v2693 = vpack.c.b16 %v2684, %v2683
      %v2694 = vpack.c.b16 %v2686, %v2685
      %v2719 = vunpack.c.l.b16 %v2655
      %v2720 = vunpack.c.l.b16 %v2656
      %v2721 = vunpack.c.l.b16 %v2657
      %v2722 = vunpack.c.l.b16 %v2658
      %v2723 = vunpack.c.l.b16 %v2659
      %v2724 = vunpack.c.l.b16 %v2660
      %v2725 = vunpack.c.l.b16 %v2661
      %v2726 = vunpack.c.l.b16 %v2662
      %v2727 = vunpack.c.l.b16 %v2663
      %v2728 = vunpack.c.l.b16 %v2664
      %v2729 = vunpack.c.l.b16 %v2665
      %v2730 = vunpack.c.l.b16 %v2666
      %v2731 = vunpack.c.l.b16 %v2667
      %v2732 = vunpack.c.l.b16 %v2668
      %v2733 = vunpack.c.l.b16 %v2669
      %v2734 = vunpack.c.l.b16 %v2670
      %v2735 = vpack.c.b16 %v2720, %v2719
      %v2736 = vpack.c.b16 %v2722, %v2721
      %v2737 = vpack.c.b16 %v2724, %v2723
      %v2738 = vpack.c.b16 %v2726, %v2725
      %v2739 = vpack.c.b16 %v2728, %v2727
      %v2740 = vpack.c.b16 %v2730, %v2729
      %v2741 = vpack.c.b16 %v2732, %v2731
      %v2742 = vpack.c.b16 %v2734, %v2733
      %2751 = vmatprep.subr.bf16.mxu0 0
      %2752 = vmatpush1.bf16.msra.mxu0 %v2735
      %2753 = vmatprep.subr.bf16.mxu0 0
      %2754 = vmatpush1.bf16.msra.mxu0 %v2736
      %2755 = vmatprep.subr.bf16.mxu0 0
      %2756 = vmatpush1.bf16.msra.mxu0 %v2737
      %2757 = vmatprep.subr.bf16.mxu0 0
      %2758 = vmatpush1.bf16.msra.mxu0 %v2738
      %2759 = vmatprep.subr.bf16.mxu0 0
      %2760 = vmatpush1.bf16.msra.mxu0 %v2739
      %2761 = vmatprep.subr.bf16.mxu0 0
      %2762 = vmatpush1.bf16.msra.mxu0 %v2740
      %2763 = vmatprep.subr.bf16.mxu0 0
      %2764 = vmatpush1.bf16.msra.mxu0 %v2741
      %2765 = vmatprep.subr.bf16.mxu0 0
      %2766 = vmatpush1.bf16.msra.mxu0 %v2742
      %2767 = vmatprep.subr.bf16.mxu0 0
      %2768 = vmatpush1.bf16.msra.mxu0 0
      %2769 = vmatprep.subr.bf16.mxu0 0
      %2770 = vmatpush1.bf16.msra.mxu0 0
      %2771 = vmatprep.subr.bf16.mxu0 0
      %2772 = vmatpush1.bf16.msra.mxu0 0
      %2773 = vmatprep.subr.bf16.mxu0 0
      %2774 = vmatpush1.bf16.msra.mxu0 0
      %2775 = vmatprep.subr.bf16.mxu0 0
      %2776 = vmatpush1.bf16.msra.mxu0 0
      %2777 = vmatprep.subr.bf16.mxu0 0
      %2778 = vmatpush1.bf16.msra.mxu0 0
      %2779 = vmatprep.subr.bf16.mxu0 0
      %2780 = vmatpush1.bf16.msra.mxu0 0
      %2781 = vmatprep.subr.bf16.mxu0 0
      %2782 = vmatpush1.bf16.msra.mxu0 0
      %2783 = vmatprep.mubr.bf16.mxu0 0
      %2784 = vmatmul.mubr.bf16.gmra.mrb[0].mxu0 %v2687
      %v2785 = vpop.f32.mrb[0].mxu0
      %v2786 = vadd.f32 0.0, %v2785
      %v2787 = vpop.f32.mrb[0].mxu0
      %v2788 = vpop.f32.mrb[0].mxu0
      %v2789 = vadd.f32 0.0, %v2788
      %v2790 = vpop.f32.mrb[0].mxu0
      %2791 = vmatprep.mubr.bf16.mxu0 0
      %2792 = vmatmul.mubr.bf16.gmra.mrb[0].mxu0 %v2688
      %v2793 = vpop.f32.mrb[0].mxu0
      %v2794 = vadd.f32 0.0, %v2793
      %v2795 = vpop.f32.mrb[0].mxu0
      %v2796 = vpop.f32.mrb[0].mxu0
      %v2797 = vadd.f32 0.0, %v2796
      %v2798 = vpop.f32.mrb[0].mxu0
      %2799 = vmatprep.mubr.bf16.mxu0 0
      %2800 = vmatmul.mubr.bf16.gmra.mrb[0].mxu0 %v2689
      %v2801 = vpop.f32.mrb[0].mxu0
      %v2802 = vadd.f32 0.0, %v2801
      %v2803 = vpop.f32.mrb[0].mxu0
      %v2804 = vpop.f32.mrb[0].mxu0
      %v2805 = vadd.f32 0.0, %v2804
      %v2806 = vpop.f32.mrb[0].mxu0
      %2807 = vmatprep.mubr.bf16.mxu0 0
      %2808 = vmatmul.mubr.bf16.gmra.mrb[0].mxu0 %v2690
      %v2809 = vpop.f32.mrb[0].mxu0
      %v2810 = vadd.f32 0.0, %v2809
      %v2811 = vpop.f32.mrb[0].mxu0
      %v2812 = vpop.f32.mrb[0].mxu0
      %v2813 = vadd.f32 0.0, %v2812
      %v2814 = vpop.f32.mrb[0].mxu0
      %2815 = vmatprep.mubr.bf16.mxu0 0
      %2816 = vmatmul.mubr.bf16.gmra.mrb[0].mxu0 %v2691
      %v2817 = vpop.f32.mrb[0].mxu0
      %v2818 = vadd.f32 0.0, %v2817
      %v2819 = vpop.f32.mrb[0].mxu0
      %v2820 = vpop.f32.mrb[0].mxu0
      %v2821 = vadd.f32 0.0, %v2820
      %v2822 = vpop.f32.mrb[0].mxu0
      %2823 = vmatprep.mubr.bf16.mxu0 0
      %2824 = vmatmul.mubr.bf16.gmra.mrb[0].mxu0 %v2692
      %v2825 = vpop.f32.mrb[0].mxu0
      %v2826 = vadd.f32 0.0, %v2825
      %v2827 = vpop.f32.mrb[0].mxu0
      %v2828 = vpop.f32.mrb[0].mxu0
      %v2829 = vadd.f32 0.0, %v2828
      %v2830 = vpop.f32.mrb[0].mxu0
      %2831 = vmatprep.mubr.bf16.mxu0 0
      %2832 = vmatmul.mubr.bf16.gmra.mrb[0].mxu0 %v2693
      %v2833 = vpop.f32.mrb[0].mxu0
      %v2834 = vadd.f32 0.0, %v2833
      %v2835 = vpop.f32.mrb[0].mxu0
      %v2836 = vpop.f32.mrb[0].mxu0
      %v2837 = vadd.f32 0.0, %v2836
      %v2838 = vpop.f32.mrb[0].mxu0
      %2839 = vmatprep.mubr.bf16.mxu0 0
      %2840 = vmatmul.mubr.bf16.gmra.mrb[0].mxu0 %v2694
      %v2841 = vpop.f32.mrb[0].mxu0
      %v2842 = vadd.f32 0.0, %v2841
      %v2843 = vpop.f32.mrb[0].mxu0
      %v2844 = vpop.f32.mrb[0].mxu0
      %v2845 = vadd.f32 0.0, %v2844
      %v2846 = vpop.f32.mrb[0].mxu0
      %2847 = vdwg.mxu0
      %v2848 = vadd.f32 %v2638, %v2786
      %v2849 = vadd.f32 %v2639, %v2789
      %v2850 = vadd.f32 %v2640, %v2794
      %v2851 = vadd.f32 %v2641, %v2797
      %v2852 = vadd.f32 %v2642, %v2802
      %v2853 = vadd.f32 %v2643, %v2805
      %v2854 = vadd.f32 %v2644, %v2810
      %v2855 = vadd.f32 %v2645, %v2813
      %v2856 = vadd.f32 %v2646, %v2818
      %v2857 = vadd.f32 %v2647, %v2821
      %v2858 = vadd.f32 %v2648, %v2826
      %v2859 = vadd.f32 %v2649, %v2829
      %v2860 = vadd.f32 %v2650, %v2834
      %v2861 = vadd.f32 %v2651, %v2837
      %v2862 = vadd.f32 %v2652, %v2842
      %v2863 = vadd.f32 %v2653, %v2845
      %s2864 = scalar_lea.vmem %s1, 512
      %v2865 = vld [vmem:[%s2864] sm:$0xf]
      %v2866 = vld [vmem:[%s2864 + $0x4] sm:$0xf]
      %v2867 = vld [vmem:[%s2864 + $0x8] sm:$0xf]
      %v2868 = vld [vmem:[%s2864 + $0xc] sm:$0xf]
      %v2869 = vld [vmem:[%s2864 + $0x10] sm:$0xf]
      %v2870 = vld [vmem:[%s2864 + $0x14] sm:$0xf]
      %v2871 = vld [vmem:[%s2864 + $0x18] sm:$0xf]
      %v2872 = vld [vmem:[%s2864 + $0x1c] sm:$0xf]
      %v2873 = vld [vmem:[%s2864 + $0x20] sm:$0xf]
      %v2874 = vld [vmem:[%s2864 + $0x24] sm:$0xf]
      %v2875 = vld [vmem:[%s2864 + $0x28] sm:$0xf]
      %v2876 = vld [vmem:[%s2864 + $0x2c] sm:$0xf]
      %v2877 = vld [vmem:[%s2864 + $0x30] sm:$0xf]
      %v2878 = vld [vmem:[%s2864 + $0x34] sm:$0xf]
      %v2879 = vld [vmem:[%s2864 + $0x38] sm:$0xf]
      %v2880 = vld [vmem:[%s2864 + $0x3c] sm:$0xf]
      %v2881 = vunpack.c.l.b16 %v1140
      %v2882 = vunpack.c.l.b16 %v1143
      %v2883 = vunpack.c.l.b16 %v1147
      %v2884 = vunpack.c.l.b16 %v1150
      %v2885 = vunpack.c.l.b16 %v1154
      %v2886 = vunpack.c.l.b16 %v1157
      %v2887 = vunpack.c.l.b16 %v1161
      %v2888 = vunpack.c.l.b16 %v1164
      %v2889 = vunpack.c.l.b16 %v1168
      %v2890 = vunpack.c.l.b16 %v1171
      %v2891 = vunpack.c.l.b16 %v1175
      %v2892 = vunpack.c.l.b16 %v1178
      %v2893 = vunpack.c.l.b16 %v1182
      %v2894 = vunpack.c.l.b16 %v1185
      %v2895 = vunpack.c.l.b16 %v1189
      %v2896 = vunpack.c.l.b16 %v1192
      %v2897 = vpack.c.b16 %v2882, %v2881
      %v2898 = vpack.c.b16 %v2884, %v2883
      %v2899 = vpack.c.b16 %v2886, %v2885
      %v2900 = vpack.c.b16 %v2888, %v2887
      %v2901 = vpack.c.b16 %v2890, %v2889
      %v2902 = vpack.c.b16 %v2892, %v2891
      %v2903 = vpack.c.b16 %v2894, %v2893
      %v2904 = vpack.c.b16 %v2896, %v2895
      %v2929 = vunpack.c.l.b16 %v2865
      %v2930 = vunpack.c.l.b16 %v2866
      %v2931 = vunpack.c.l.b16 %v2867
      %v2932 = vunpack.c.l.b16 %v2868
      %v2933 = vunpack.c.l.b16 %v2869
      %v2934 = vunpack.c.l.b16 %v2870
      %v2935 = vunpack.c.l.b16 %v2871
      %v2936 = vunpack.c.l.b16 %v2872
      %v2937 = vunpack.c.l.b16 %v2873
      %v2938 = vunpack.c.l.b16 %v2874
      %v2939 = vunpack.c.l.b16 %v2875
      %v2940 = vunpack.c.l.b16 %v2876
      %v2941 = vunpack.c.l.b16 %v2877
      %v2942 = vunpack.c.l.b16 %v2878
      %v2943 = vunpack.c.l.b16 %v2879
      %v2944 = vunpack.c.l.b16 %v2880
      %v2945 = vpack.c.b16 %v2930, %v2929
      %v2946 = vpack.c.b16 %v2932, %v2931
      %v2947 = vpack.c.b16 %v2934, %v2933
      %v2948 = vpack.c.b16 %v2936, %v2935
      %v2949 = vpack.c.b16 %v2938, %v2937
      %v2950 = vpack.c.b16 %v2940, %v2939
      %v2951 = vpack.c.b16 %v2942, %v2941
      %v2952 = vpack.c.b16 %v2944, %v2943
      %2961 = vmatprep.subr.bf16.mxu0 0
      %2962 = vmatpush1.bf16.msra.mxu0 %v2945
      %2963 = vmatprep.subr.bf16.mxu0 0
      %2964 = vmatpush1.bf16.msra.mxu0 %v2946
      %2965 = vmatprep.subr.bf16.mxu0 0
      %2966 = vmatpush1.bf16.msra.mxu0 %v2947
      %2967 = vmatprep.subr.bf16.mxu0 0
      %2968 = vmatpush1.bf16.msra.mxu0 %v2948
      %2969 = vmatprep.subr.bf16.mxu0 0
      %2970 = vmatpush1.bf16.msra.mxu0 %v2949
      %2971 = vmatprep.subr.bf16.mxu0 0
      %2972 = vmatpush1.bf16.msra.mxu0 %v2950
      %2973 = vmatprep.subr.bf16.mxu0 0
      %2974 = vmatpush1.bf16.msra.mxu0 %v2951
      %2975 = vmatprep.subr.bf16.mxu0 0
      %2976 = vmatpush1.bf16.msra.mxu0 %v2952
      %2977 = vmatprep.subr.bf16.mxu0 0
      %2978 = vmatpush1.bf16.msra.mxu0 0
      %2979 = vmatprep.subr.bf16.mxu0 0
      %2980 = vmatpush1.bf16.msra.mxu0 0
      %2981 = vmatprep.subr.bf16.mxu0 0
      %2982 = vmatpush1.bf16.msra.mxu0 0
      %2983 = vmatprep.subr.bf16.mxu0 0
      %2984 = vmatpush1.bf16.msra.mxu0 0
      %2985 = vmatprep.subr.bf16.mxu0 0
      %2986 = vmatpush1.bf16.msra.mxu0 0
      %2987 = vmatprep.subr.bf16.mxu0 0
      %2988 = vmatpush1.bf16.msra.mxu0 0
      %2989 = vmatprep.subr.bf16.mxu0 0
      %2990 = vmatpush1.bf16.msra.mxu0 0
      %2991 = vmatprep.subr.bf16.mxu0 0
      %2992 = vmatpush1.bf16.msra.mxu0 0
      %2993 = vmatprep.mubr.bf16.mxu0 0
      %2994 = vmatmul.mubr.bf16.gmra.mrb[0].mxu0 %v2897
      %v2995 = vpop.f32.mrb[0].mxu0
      %v2996 = vadd.f32 0.0, %v2995
      %v2997 = vpop.f32.mrb[0].mxu0
      %v2998 = vpop.f32.mrb[0].mxu0
      %v2999 = vadd.f32 0.0, %v2998
      %v3000 = vpop.f32.mrb[0].mxu0
      %3001 = vmatprep.mubr.bf16.mxu0 0
      %3002 = vmatmul.mubr.bf16.gmra.mrb[0].mxu0 %v2898
      %v3003 = vpop.f32.mrb[0].mxu0
      %v3004 = vadd.f32 0.0, %v3003
      %v3005 = vpop.f32.mrb[0].mxu0
      %v3006 = vpop.f32.mrb[0].mxu0
      %v3007 = vadd.f32 0.0, %v3006
      %v3008 = vpop.f32.mrb[0].mxu0
      %3009 = vmatprep.mubr.bf16.mxu0 0
      %3010 = vmatmul.mubr.bf16.gmra.mrb[0].mxu0 %v2899
      %v3011 = vpop.f32.mrb[0].mxu0
      %v3012 = vadd.f32 0.0, %v3011
      %v3013 = vpop.f32.mrb[0].mxu0
      %v3014 = vpop.f32.mrb[0].mxu0
      %v3015 = vadd.f32 0.0, %v3014
      %v3016 = vpop.f32.mrb[0].mxu0
      %3017 = vmatprep.mubr.bf16.mxu0 0
      %3018 = vmatmul.mubr.bf16.gmra.mrb[0].mxu0 %v2900
      %v3019 = vpop.f32.mrb[0].mxu0
      %v3020 = vadd.f32 0.0, %v3019
      %v3021 = vpop.f32.mrb[0].mxu0
      %v3022 = vpop.f32.mrb[0].mxu0
      %v3023 = vadd.f32 0.0, %v3022
      %v3024 = vpop.f32.mrb[0].mxu0
      %3025 = vmatprep.mubr.bf16.mxu0 0
      %3026 = vmatmul.mubr.bf16.gmra.mrb[0].mxu0 %v2901
      %v3027 = vpop.f32.mrb[0].mxu0
      %v3028 = vadd.f32 0.0, %v3027
      %v3029 = vpop.f32.mrb[0].mxu0
      %v3030 = vpop.f32.mrb[0].mxu0
      %v3031 = vadd.f32 0.0, %v3030
      %v3032 = vpop.f32.mrb[0].mxu0
      %3033 = vmatprep.mubr.bf16.mxu0 0
      %3034 = vmatmul.mubr.bf16.gmra.mrb[0].mxu0 %v2902
      %v3035 = vpop.f32.mrb[0].mxu0
      %v3036 = vadd.f32 0.0, %v3035
      %v3037 = vpop.f32.mrb[0].mxu0
      %v3038 = vpop.f32.mrb[0].mxu0
      %v3039 = vadd.f32 0.0, %v3038
      %v3040 = vpop.f32.mrb[0].mxu0
      %3041 = vmatprep.mubr.bf16.mxu0 0
      %3042 = vmatmul.mubr.bf16.gmra.mrb[0].mxu0 %v2903
      %v3043 = vpop.f32.mrb[0].mxu0
      %v3044 = vadd.f32 0.0, %v3043
      %v3045 = vpop.f32.mrb[0].mxu0
      %v3046 = vpop.f32.mrb[0].mxu0
      %v3047 = vadd.f32 0.0, %v3046
      %v3048 = vpop.f32.mrb[0].mxu0
      %3049 = vmatprep.mubr.bf16.mxu0 0
      %3050 = vmatmul.mubr.bf16.gmra.mrb[0].mxu0 %v2904
      %v3051 = vpop.f32.mrb[0].mxu0
      %v3052 = vadd.f32 0.0, %v3051
      %v3053 = vpop.f32.mrb[0].mxu0
      %v3054 = vpop.f32.mrb[0].mxu0
      %v3055 = vadd.f32 0.0, %v3054
      %v3056 = vpop.f32.mrb[0].mxu0
      %3057 = vdwg.mxu0
      %v3058 = vadd.f32 %v2848, %v2996
      %v3059 = vadd.f32 %v2849, %v2999
      %v3060 = vadd.f32 %v2850, %v3004
      %v3061 = vadd.f32 %v2851, %v3007
      %v3062 = vadd.f32 %v2852, %v3012
      %v3063 = vadd.f32 %v2853, %v3015
      %v3064 = vadd.f32 %v2854, %v3020
      %v3065 = vadd.f32 %v2855, %v3023
      %v3066 = vadd.f32 %v2856, %v3028
      %v3067 = vadd.f32 %v2857, %v3031
      %v3068 = vadd.f32 %v2858, %v3036
      %v3069 = vadd.f32 %v2859, %v3039
      %v3070 = vadd.f32 %v2860, %v3044
      %v3071 = vadd.f32 %v2861, %v3047
      %v3072 = vadd.f32 %v2862, %v3052
      %v3073 = vadd.f32 %v2863, %v3055
      %v3074 = vld [vmem:[%s2] sm:$0x1]
      %v3076 = vlaneseq
      %v3077 = vshrl.u32 %v3076, 7
      %v3078 = vsub.s32 0, %v3077
      %v3079 = vrot.slane %v3074, %v3078
      %v3081 = vadd.f32 %v3058, %v3079
      %v3082 = vadd.f32 %v3059, %v3079
      %v3083 = vadd.f32 %v3060, %v3079
      %v3084 = vadd.f32 %v3061, %v3079
      %v3085 = vadd.f32 %v3062, %v3079
      %v3086 = vadd.f32 %v3063, %v3079
      %v3087 = vadd.f32 %v3064, %v3079
      %v3088 = vadd.f32 %v3065, %v3079
      %v3089 = vadd.f32 %v3066, %v3079
      %v3090 = vadd.f32 %v3067, %v3079
      %v3091 = vadd.f32 %v3068, %v3079
      %v3092 = vadd.f32 %v3069, %v3079
      %v3093 = vadd.f32 %v3070, %v3079
      %v3094 = vadd.f32 %v3071, %v3079
      %v3095 = vadd.f32 %v3072, %v3079
      %v3096 = vadd.f32 %v3073, %v3079
      %v3097 = vld [vmem:[%s249] sm:$0xf]
      %v3098 = vld [vmem:[%s249 + $0x4] sm:$0xf]
      %v3099 = vld [vmem:[%s249 + $0x8] sm:$0xf]
      %v3100 = vld [vmem:[%s249 + $0xc] sm:$0xf]
      %v3101 = vld [vmem:[%s249 + $0x10] sm:$0xf]
      %v3102 = vld [vmem:[%s249 + $0x14] sm:$0xf]
      %v3103 = vld [vmem:[%s249 + $0x18] sm:$0xf]
      %v3104 = vld [vmem:[%s249 + $0x1c] sm:$0xf]
      %v3105 = vld [vmem:[%s249 + $0x20] sm:$0xf]
      %v3106 = vld [vmem:[%s249 + $0x24] sm:$0xf]
      %v3107 = vld [vmem:[%s249 + $0x28] sm:$0xf]
      %v3108 = vld [vmem:[%s249 + $0x2c] sm:$0xf]
      %v3109 = vld [vmem:[%s249 + $0x30] sm:$0xf]
      %v3110 = vld [vmem:[%s249 + $0x34] sm:$0xf]
      %v3111 = vld [vmem:[%s249 + $0x38] sm:$0xf]
      %v3112 = vld [vmem:[%s249 + $0x3c] sm:$0xf]
      %v3113 = vunpack.c.l.bf16 %v3097
      %v3114 = vunpack.c.l.bf16 %v3098
      %v3115 = vunpack.c.l.bf16 %v3099
      %v3116 = vunpack.c.l.bf16 %v3100
      %v3117 = vunpack.c.l.bf16 %v3101
      %v3118 = vunpack.c.l.bf16 %v3102
      %v3119 = vunpack.c.l.bf16 %v3103
      %v3120 = vunpack.c.l.bf16 %v3104
      %v3121 = vunpack.c.l.bf16 %v3105
      %v3122 = vunpack.c.l.bf16 %v3106
      %v3123 = vunpack.c.l.bf16 %v3107
      %v3124 = vunpack.c.l.bf16 %v3108
      %v3125 = vunpack.c.l.bf16 %v3109
      %v3126 = vunpack.c.l.bf16 %v3110
      %v3127 = vunpack.c.l.bf16 %v3111
      %v3128 = vunpack.c.l.bf16 %v3112
      %vm3129 = vcmask 130048
      %v3130 = vsel %vm3129, %v3113, 0.0
      %v3131 = vsel %vm3129, %v3114, 0.0
      %v3132 = vsel %vm3129, %v3115, 0.0
      %v3133 = vsel %vm3129, %v3116, 0.0
      %v3134 = vsel %vm3129, %v3117, 0.0
      %v3135 = vsel %vm3129, %v3118, 0.0
      %v3136 = vsel %vm3129, %v3119, 0.0
      %v3137 = vsel %vm3129, %v3120, 0.0
      %v3138 = vsel %vm3129, %v3121, 0.0
      %v3139 = vsel %vm3129, %v3122, 0.0
      %v3140 = vsel %vm3129, %v3123, 0.0
      %v3141 = vsel %vm3129, %v3124, 0.0
      %v3142 = vsel %vm3129, %v3125, 0.0
      %v3143 = vsel %vm3129, %v3126, 0.0
      %v3144 = vsel %vm3129, %v3127, 0.0
      %v3145 = vsel %vm3129, %v3128, 0.0
      %v3146 = vadd.f32 %v3081, %v3130
      %v3147 = vadd.f32 %v3082, %v3131
      %v3148 = vadd.f32 %v3083, %v3132
      %v3149 = vadd.f32 %v3084, %v3133
      %v3150 = vadd.f32 %v3085, %v3134
      %v3151 = vadd.f32 %v3086, %v3135
      %v3152 = vadd.f32 %v3087, %v3136
      %v3153 = vadd.f32 %v3088, %v3137
      %v3154 = vadd.f32 %v3089, %v3138
      %v3155 = vadd.f32 %v3090, %v3139
      %v3156 = vadd.f32 %v3091, %v3140
      %v3157 = vadd.f32 %v3092, %v3141
      %v3158 = vadd.f32 %v3093, %v3142
      %v3159 = vadd.f32 %v3094, %v3143
      %v3160 = vadd.f32 %v3095, %v3144
      %v3161 = vadd.f32 %v3096, %v3145
      %v3162 = vmax.f32 %v3146, 0.0
      %v3163 = vmax.f32 %v3147, 0.0
      %v3164 = vmax.f32 %v3148, 0.0
      %v3165 = vmax.f32 %v3149, 0.0
      %v3166 = vmax.f32 %v3150, 0.0
      %v3167 = vmax.f32 %v3151, 0.0
      %v3168 = vmax.f32 %v3152, 0.0
      %v3169 = vmax.f32 %v3153, 0.0
      %v3170 = vmax.f32 %v3154, 0.0
      %v3171 = vmax.f32 %v3155, 0.0
      %v3172 = vmax.f32 %v3156, 0.0
      %v3173 = vmax.f32 %v3157, 0.0
      %v3174 = vmax.f32 %v3158, 0.0
      %v3175 = vmax.f32 %v3159, 0.0
      %v3176 = vmax.f32 %v3160, 0.0
      %v3177 = vmax.f32 %v3161, 0.0
      %v3178 = vpack.c.bf16 %v3163, %v3162
      %v3179 = vpack.c.bf16 %v3165, %v3164
      %v3180 = vpack.c.bf16 %v3167, %v3166
      %v3181 = vpack.c.bf16 %v3169, %v3168
      %v3182 = vpack.c.bf16 %v3171, %v3170
      %v3183 = vpack.c.bf16 %v3173, %v3172
      %v3184 = vpack.c.bf16 %v3175, %v3174
      %v3185 = vpack.c.bf16 %v3177, %v3176
      %v3194 = vunpack.c.l.b16 %v3178
      %v3195 = vunpack.c.h.b16 %v3178
      %v3196 = vunpack.c.l.b16 %v3179
      %v3197 = vunpack.c.h.b16 %v3179
      %v3198 = vunpack.c.l.b16 %v3180
      %v3199 = vunpack.c.h.b16 %v3180
      %v3200 = vunpack.c.l.b16 %v3181
      %v3201 = vunpack.c.h.b16 %v3181
      %v3202 = vunpack.c.l.b16 %v3182
      %v3203 = vunpack.c.h.b16 %v3182
      %v3204 = vunpack.c.l.b16 %v3183
      %v3205 = vunpack.c.h.b16 %v3183
      %v3206 = vunpack.c.l.b16 %v3184
      %v3207 = vunpack.c.h.b16 %v3184
      %v3208 = vunpack.c.l.b16 %v3185
      %v3209 = vunpack.c.h.b16 %v3185
      %v3210 = vpack.c.b16 %v3194, %v3194
      %v3211 = vpack.c.b16 %v3195, %v3195
      %v3212 = vpack.c.b16 %v3196, %v3196
      %v3213 = vpack.c.b16 %v3197, %v3197
      %v3214 = vpack.c.b16 %v3198, %v3198
      %v3215 = vpack.c.b16 %v3199, %v3199
      %v3216 = vpack.c.b16 %v3200, %v3200
      %v3217 = vpack.c.b16 %v3201, %v3201
      %v3218 = vpack.c.b16 %v3202, %v3202
      %v3219 = vpack.c.b16 %v3203, %v3203
      %v3220 = vpack.c.b16 %v3204, %v3204
      %v3221 = vpack.c.b16 %v3205, %v3205
      %v3222 = vpack.c.b16 %v3206, %v3206
      %v3223 = vpack.c.b16 %v3207, %v3207
      %v3224 = vpack.c.b16 %v3208, %v3208
      %v3225 = vpack.c.b16 %v3209, %v3209
      %3242 = vst [vmem:[%s260] sm:$0xf] %v3210
      %3243 = vst [vmem:[%s260 + $0x4] sm:$0xf] %v3211
      %3244 = vst [vmem:[%s260 + $0x8] sm:$0xf] %v3212
      %3245 = vst [vmem:[%s260 + $0xc] sm:$0xf] %v3213
      %3246 = vst [vmem:[%s260 + $0x10] sm:$0xf] %v3214
      %3247 = vst [vmem:[%s260 + $0x14] sm:$0xf] %v3215
      %3248 = vst [vmem:[%s260 + $0x18] sm:$0xf] %v3216
      %3249 = vst [vmem:[%s260 + $0x1c] sm:$0xf] %v3217
      %3250 = vst [vmem:[%s260 + $0x20] sm:$0xf] %v3218
      %3251 = vst [vmem:[%s260 + $0x24] sm:$0xf] %v3219
      %3252 = vst [vmem:[%s260 + $0x28] sm:$0xf] %v3220
      %3253 = vst [vmem:[%s260 + $0x2c] sm:$0xf] %v3221
      %3254 = vst [vmem:[%s260 + $0x30] sm:$0xf] %v3222
      %3255 = vst [vmem:[%s260 + $0x34] sm:$0xf] %v3223
      %3256 = vst [vmem:[%s260 + $0x38] sm:$0xf] %v3224
      %3257 = vst [vmem:[%s260 + $0x3c] sm:$0xf] %v3225
      %s3258 = smul.u32 8, %s20
      %p3259 = scmp.lt.s32.totalorder %s19, 1
      %s3260 = scalar_select %p3259, %s19, 1
      %p3261 = scmp.lt.s32.totalorder %s3258, 15
      %s3262 = scalar_select %p3261, %s3258, 15
      %s3263 = smul.addr %s3262, 2
      %s3264 = smul.addr %s3260, 32
      %s3265 = sadd.s32 %s3263, %s3264
      %s3266 = smul.addr %s3265, 4
      %s3267 = scalar_lea.vmem %s4, %s3266
      // Predicated region
      $region37: #{net.5} parent=35 // pred_check
        %p3268 = pneg %p143
      $region38: #{net.5} parent=35 // pred_check_branch
        %3270 = sbr.rel (%p3268) target = $region40
      $region39: #{net.5} parent=35 // pred_region
        %s3271 = smul.u32 8, %s20
      $region40: #{net.5} parent=35 // pred_fallthru
        _
    $region36: #{net.5} parent=5 // pred_fallthru
      _
    %p3272 = scmp.le.s32.totalorder 2, %s10
    // Predicated region
    $region41: #{net.5} parent=5 // pred_check
      %p3273 = pneg %p3272
    $region42: #{net.5} parent=5 // pred_check_branch
      %3275 = sbr.rel (%p3273) target = $region44
    $region43: #{net.5} parent=5 // pred_region
      %s3276 = ssub.s32 %s10, 2
      // Predicated region
      $region45: #{net.5} parent=43 // pred_check
        %p3277 = pneg %p149
      $region46: #{net.5} parent=43 // pred_check_branch
        %3279 = sbr.rel (%p3277) target = $region48
      $region47: #{net.5} parent=43 // pred_region
        %s3280 = smul.u32 8, %s22
        %p3281 = scmp.lt.s32.totalorder %s21, 1
        %s3282 = scalar_select %p3281, %s21, 1
        %p3283 = scmp.lt.s32.totalorder %s3280, 15
        %s3284 = scalar_select %p3283, %s3280, 15
        %s3285 = smul.addr %s3284, 2
        %s3286 = smul.addr %s3282, 32
        %s3287 = sadd.s32 %s3285, %s3286
        %s3288 = smul.addr %s3287, 4
        %s3289 = scalar_lea.vmem %s4, %s3288
      $region48: #{net.5} parent=43 // pred_fallthru
        _
    $region44: #{net.5} parent=5 // pred_fallthru
      _
  $region6: #{net.5} parent=0 // loop_footer
    %s14 = sadd.s32 1, %s10
  $region7: #{net.5} parent=0 // loop_footer_branch
    %9 = sbr.rel target = $region3
  $region8: #{net.5} parent=0 // loop_exit
    _

// kernel: net.7
$region0: #{net.7}
  #allocation0 [shape = 'u32[]', space=smem, size = 0x4, offset = 0x4, fixed_abs, tag = 'smem constant byte address 0x4 - core index']
  #allocation1 [shape = 'u32[144,128]{1,0:T(1,128)}', space=vmem, size = 0x12000, scoped, tag = 'internal scratch']
  %s0 = inlined_call_operand.vmem [shape: bf16[2,10,10,128], index: 0, kind: input, shape index: {}]
  %s1 = inlined_call_operand.vmem [shape: bf16[9,128,128], index: 1, kind: input, shape index: {}]
  %s2 = inlined_call_operand.vmem [shape: f32[1,128], index: 2, kind: input, shape index: {}]
  %s3 = inlined_call_operand.vmem [shape: bf16[2,8,8,128], index: 3, kind: input, shape index: {}]
  %s4 = inlined_call_operand.vmem [shape: bf16[2,8,8,128], index: 4, kind: output, shape index: {}]
  %s5 = sld [smem:[#allocation0]]
  $region49: #{net.7} parent=0
    _
  %s7 = ssub.s32 1, %s5
  %s8 = scalar_select 0, %s7, %s5
  loop: start=0, step=1, limit=6
  $region2: #{net.7} parent=0 // loop_pre_header
    _
  $region3: #{net.7} parent=0 // loop_header
    %s10 = sphi 0, %s14
    %p11 = scmp.ge.s32.totalorder %s10, 6
    %s17 = sphi 0, %s29
    %s18 = sphi 0, %s25
    %s19 = sphi 0, %s17
    %s20 = sphi 0, %s18
    %s21 = sphi 0, %s19
    %s22 = sphi 0, %s20
    %s32 = sphi 0, %s34
    %s35 = sphi 0, %s32
    %s36 = sphi 0, %s35
    %s52 = sphi 0, %s36
    %s56 = sphi 0, %s56
    %s58 = sphi 0, %s56
    %s59 = sphi 0, %s58
    %s73 = sphi 0, %s59
    %s77 = sphi 0, %s77
    %s79 = sphi 0, %s77
    %s80 = sphi 0, %s79
    %s94 = sphi 0, %s80
    %s102 = sphi 0, %s104
    %s105 = sphi 0, %s102
    %s106 = sphi 0, %s105
    %s122 = sphi 0, %s106
    %s130 = sphi 0, %s132
    %s133 = sphi 0, %s130
    %s134 = sphi 0, %s133
    %s150 = sphi 0, %s134
  $region4: #{net.7} parent=0 // loop_header_branch
    %13 = sbr.rel (%p11) target = $region8
  $region5: #{net.7} parent=0 // loop_body
    %s15 = ssub.s32 %s10, 1
    %s16 = ssub.s32 %s10, 2
    %s23 = sadd.s32 1, %s18
    %p24 = scmp.ge.s32.totalorder %s23, 2
    %s25 = scalar_select %p24, 0, %s23
    %s26 = sadd.s32 1, %s17
    %s27 = scalar_select %p24, %s26, %s17
    %p28 = scmp.ge.s32.totalorder %s27, 2
    %s29 = scalar_select %p28, 0, %s27
    %s30 = ssub.s32 %s17, %s29
    %p31 = scmp.eq.s32.totalorder %s30, 0
    %s33 = sadd.s32 %s32, 1
    %s34 = scalar_select %p31, %s32, %s33
    %p37 = pneg %p31
    %p38 = scmp.eq.s32.totalorder %s10, 3
    %p39 = por %p37, %p38
    %p40 = scmp.ne.s32.totalorder %s32, %s35
    %p41 = scmp.eq.s32.totalorder %s10, 0
    %p42 = por %p40, %p41
    %p43 = scmp.ne.s32.totalorder %s32, %s35
    %p44 = scmp.eq.s32.totalorder %s15, 3
    %p45 = por %p43, %p44
    %p46 = scmp.ne.s32.totalorder %s35, %s36
    %p47 = scmp.eq.s32.totalorder %s15, 0
    %p48 = por %p46, %p47
    %p49 = scmp.ne.s32.totalorder %s35, %s36
    %p50 = scmp.eq.s32.totalorder %s16, 3
    %p51 = por %p49, %p50
    %p53 = scmp.ne.s32.totalorder %s36, %s52
    %p54 = scmp.eq.s32.totalorder %s16, 0
    %p55 = por %p53, %p54
    %s57 = sadd.s32 %s56, 1
    %p60 = scmp.eq.s32.totalorder %s10, 3
    %p61 = scmp.ne.s32.totalorder %s56, %s58
    %p62 = scmp.eq.s32.totalorder %s10, 0
    %p63 = por %p61, %p62
    %p64 = scmp.ne.s32.totalorder %s56, %s58
    %p65 = scmp.eq.s32.totalorder %s15, 3
    %p66 = por %p64, %p65
    %p67 = scmp.ne.s32.totalorder %s58, %s59
    %p68 = scmp.eq.s32.totalorder %s15, 0
    %p69 = por %p67, %p68
    %p70 = scmp.ne.s32.totalorder %s58, %s59
    %p71 = scmp.eq.s32.totalorder %s16, 3
    %p72 = por %p70, %p71
    %p74 = scmp.ne.s32.totalorder %s59, %s73
    %p75 = scmp.eq.s32.totalorder %s16, 0
    %p76 = por %p74, %p75
    %s78 = sadd.s32 %s77, 1
    %p81 = scmp.eq.s32.totalorder %s10, 3
    %p82 = scmp.ne.s32.totalorder %s77, %s79
    %p83 = scmp.eq.s32.totalorder %s10, 0
    %p84 = por %p82, %p83
    %p85 = scmp.ne.s32.totalorder %s77, %s79
    %p86 = scmp.eq.s32.totalorder %s15, 3
    %p87 = por %p85, %p86
    %p88 = scmp.ne.s32.totalorder %s79, %s80
    %p89 = scmp.eq.s32.totalorder %s15, 0
    %p90 = por %p88, %p89
    %p91 = scmp.ne.s32.totalorder %s79, %s80
    %p92 = scmp.eq.s32.totalorder %s16, 3
    %p93 = por %p91, %p92
    %p95 = scmp.ne.s32.totalorder %s80, %s94
    %p96 = scmp.eq.s32.totalorder %s16, 0
    %p97 = por %p95, %p96
    %s98 = ssub.s32 %s17, %s29
    %s99 = ssub.s32 %s18, %s25
    %s100 = sor.u32 %s98, %s99
    %p101 = scmp.eq.s32.totalorder %s100, 0
    %s103 = sadd.s32 %s102, 1
    %s104 = scalar_select %p101, %s102, %s103
    %p107 = pneg %p101
    %p108 = scmp.eq.s32.totalorder %s10, 3
    %p109 = por %p107, %p108
    %p110 = scmp.ne.s32.totalorder %s102, %s105
    %p111 = scmp.eq.s32.totalorder %s10, 0
    %p112 = por %p110, %p111
    %p113 = scmp.ne.s32.totalorder %s102, %s105
    %p114 = scmp.eq.s32.totalorder %s15, 3
    %p115 = por %p113, %p114
    %p116 = scmp.ne.s32.totalorder %s105, %s106
    %p117 = scmp.eq.s32.totalorder %s15, 0
    %p118 = por %p116, %p117
    %p119 = scmp.ne.s32.totalorder %s105, %s106
    %p120 = scmp.eq.s32.totalorder %s16, 3
    %p121 = por %p119, %p120
    %p123 = scmp.ne.s32.totalorder %s106, %s122
    %p124 = scmp.eq.s32.totalorder %s16, 0
    %p125 = por %p123, %p124
    %s126 = ssub.s32 %s17, %s29
    %s127 = ssub.s32 %s18, %s25
    %s128 = sor.u32 %s126, %s127
    %p129 = scmp.eq.s32.totalorder %s128, 0
    %s131 = sadd.s32 %s130, 1
    %s132 = scalar_select %p129, %s130, %s131
    %p135 = pneg %p129
    %p136 = scmp.eq.s32.totalorder %s10, 3
    %p137 = por %p135, %p136
    %p138 = scmp.ne.s32.totalorder %s130, %s133
    %p139 = scmp.eq.s32.totalorder %s10, 0
    %p140 = por %p138, %p139
    %p141 = scmp.ne.s32.totalorder %s130, %s133
    %p142 = scmp.eq.s32.totalorder %s15, 3
    %p143 = por %p141, %p142
    %p144 = scmp.ne.s32.totalorder %s133, %s134
    %p145 = scmp.eq.s32.totalorder %s15, 0
    %p146 = por %p144, %p145
    %p147 = scmp.ne.s32.totalorder %s133, %s134
    %p148 = scmp.eq.s32.totalorder %s16, 3
    %p149 = por %p147, %p148
    %p151 = scmp.ne.s32.totalorder %s134, %s150
    %p152 = scmp.eq.s32.totalorder %s16, 0
    %p153 = por %p151, %p152
    %p154 = scmp.le.s32.totalorder 1, %s10
    %p155 = scmp.lt.s32.totalorder %s10, 5
    %p156 = pnand %p154, %p155
    %p157 = pneg %p156
    // Predicated region
    $region9: #{net.7} parent=5 // pred_check
      _
    $region10: #{net.7} parent=5 // pred_check_branch
      %159 = sbr.rel (%p156) target = $region12
    $region11: #{net.7} parent=5 // pred_region
      %s160 = ssub.s32 %s10, 1
      // Predicated region
      $region13: #{net.7} parent=11 // pred_check
        %p161 = pneg %p69
      $region14: #{net.7} parent=11 // pred_check_branch
        %163 = sbr.rel (%p161) target = $region16
      $region15: #{net.7} parent=11 // pred_region
        _
      $region16: #{net.7} parent=11 // pred_fallthru
        _
      // Predicated region
      $region17: #{net.7} parent=11 // pred_check
        %p164 = pneg %p90
      $region18: #{net.7} parent=11 // pred_check_branch
        %166 = sbr.rel (%p164) target = $region20
      $region19: #{net.7} parent=11 // pred_region
        _
      $region20: #{net.7} parent=11 // pred_fallthru
        _
    $region12: #{net.7} parent=5 // pred_fallthru
      _
    %p167 = scmp.lt.s32.totalorder %s10, 4
    // Predicated region
    $region21: #{net.7} parent=5 // pred_check
      %p168 = pneg %p167
    $region22: #{net.7} parent=5 // pred_check_branch
      %170 = sbr.rel (%p168) target = $region24
    $region23: #{net.7} parent=5 // pred_region
      // Predicated region
      $region25: #{net.7} parent=23 // pred_check
        %p171 = pneg %p42
      $region26: #{net.7} parent=23 // pred_check_branch
        %173 = sbr.rel (%p171) target = $region28
      $region27: #{net.7} parent=23 // pred_region
        %p174 = scmp.lt.s32.totalorder %s17, 1
        %s175 = scalar_select %p174, %s17, 1
        %s176 = smul.addr %s175, 20
        %s177 = smul.addr %s176, 4
        %s178 = scalar_lea.vmem %s0, %s177
      $region28: #{net.7} parent=23 // pred_fallthru
        _
      // Predicated region
      $region29: #{net.7} parent=23 // pred_check
        %p179 = pneg %p112
      $region30: #{net.7} parent=23 // pred_check_branch
        %181 = sbr.rel (%p179) target = $region32
      $region31: #{net.7} parent=23 // pred_region
        %s182 = smul.u32 4, %s18
        %p183 = scmp.lt.s32.totalorder %s17, 1
        %s184 = scalar_select %p183, %s17, 1
        %p185 = scmp.lt.s32.totalorder %s182, 7
        %s186 = scalar_select %p185, %s182, 7
        %s187 = smul.addr %s184, 8
        %s188 = sadd.s32 %s186, %s187
        %s189 = smul.addr %s188, 4
        %s190 = scalar_lea.vmem %s3, %s189
        %s191 = smul.u32 4, %s18
      $region32: #{net.7} parent=23 // pred_fallthru
        _
    $region24: #{net.7} parent=5 // pred_fallthru
      _
    %p192 = scmp.le.s32.totalorder 1, %s10
    %p193 = scmp.lt.s32.totalorder %s10, 5
    %p194 = pnand %p192, %p193
    %p195 = pneg %p194
    // Predicated region
    $region33: #{net.7} parent=5 // pred_check
      _
    $region34: #{net.7} parent=5 // pred_check_branch
      %197 = sbr.rel (%p194) target = $region36
    $region35: #{net.7} parent=5 // pred_region
      %s198 = ssub.s32 %s10, 1
      %p199 = scmp.lt.s32.totalorder %s19, 1
      %s200 = scalar_select %p199, %s19, 1
      %s201 = smul.addr %s200, 20
      %s202 = smul.addr %s201, 4
      %s203 = scalar_lea.vmem %s0, %s202
      %p204 = pneg %p48
      %p205 = pneg %p45
      %p206 = pneg %p69
      %p207 = pneg %p66
      %p208 = pneg %p90
      %p209 = pneg %p87
      %s210 = smul.u32 4, %s20
      %p211 = scmp.lt.s32.totalorder %s19, 1
      %s212 = scalar_select %p211, %s19, 1
      %p213 = scmp.lt.s32.totalorder %s210, 7
      %s214 = scalar_select %p213, %s210, 7
      %s215 = smul.addr %s212, 8
      %s216 = sadd.s32 %s214, %s215
      %s217 = smul.addr %s216, 4
      %s218 = scalar_lea.vmem %s3, %s217
      %p219 = pneg %p118
      %p220 = pneg %p115
      %p221 = pneg %p146
      %p222 = pneg %p143
      %s223 = smul.u32 4, %s20
      %p224 = scmp.lt.s32.totalorder %s19, 1
      %s225 = scalar_select %p224, %s19, 1
      %p226 = scmp.lt.s32.totalorder %s223, 7
      %s227 = scalar_select %p226, %s223, 7
      %s228 = smul.addr %s225, 8
      %s229 = sadd.s32 %s227, %s228
      %s230 = smul.addr %s229, 4
      %s231 = scalar_lea.vmem %s4, %s230
      %p232 = scmp.lt.s32.totalorder %s19, 1
      %s233 = scalar_select %p232, %s19, 1
      %s234 = smul.addr %s233, 20
      %s235 = smul.addr %s234, 4
      %s236 = scalar_lea.vmem %s0, %s235
      %s237 = smul.u32 4, %s20
      %p238 = scmp.lt.s32.totalorder %s19, 1
      %s239 = scalar_select %p238, %s19, 1
      %p240 = scmp.lt.s32.totalorder %s237, 7
      %s241 = scalar_select %p240, %s237, 7
      %s242 = smul.addr %s239, 8
      %s243 = sadd.s32 %s241, %s242
      %s244 = smul.addr %s243, 4
      %s245 = scalar_lea.vmem %s3, %s244
      %s246 = smul.u32 4, %s20
      %s247 = smul.u32 4, %s20
      %p248 = scmp.lt.s32.totalorder %s19, 1
      %s249 = scalar_select %p248, %s19, 1
      %p250 = scmp.lt.s32.totalorder %s247, 7
      %s251 = scalar_select %p250, %s247, 7
      %s252 = smul.addr %s249, 8
      %s253 = sadd.s32 %s251, %s252
      %s254 = smul.addr %s253, 4
      %s255 = scalar_lea.vmem %s4, %s254
      %s256 = smul.u32 4, %s20
      %s258 = smul.u32 %s20, 4
      %s259 = smul.u32 %s258, 2
      %s260 = smul.addr %s259, 4
      %s261 = scalar_lea.vmem %s236, %s260
      %v262 = vld [vmem:[%s261] sm:$0xf]
      %v263 = vld [vmem:[%s261 + $0x8] sm:$0xf]
      %v264 = vld [vmem:[%s261 + $0x10] sm:$0xf]
      %v265 = vld [vmem:[%s261 + $0x18] sm:$0xf]
      %v266 = vld [vmem:[%s261 + $0x4] sm:$0x1]
      %v267 = vld [vmem:[%s261 + $0xc] sm:$0x1]
      %v268 = vld [vmem:[%s261 + $0x14] sm:$0x1]
      %v269 = vld [vmem:[%s261 + $0x1c] sm:$0x1]
      %vm270 = vsmask.f32 3328
      %vm271 = vsmask.f32 7440
      %vm272 = vmor %vm270, %vm271
      %v274 = vshrl.u32 %v262, 16
      %v276 = vrot.slane %v274, 4
      %v277 = vshll.u32 %v262, 16
      %v279 = vrot.slane %v277, 5
      %v280 = vor.u32 %v276, %v279
      %v281 = vrot.slane %v280, 4
      %v283 = vshll.u32 %v266, 16
      %v285 = vrot.slane %v283, 5
      %v286 = vsel %vm272, %v281, %v285
      %v288 = vshrl.u32 %v263, 16
      %v290 = vrot.slane %v288, 4
      %v291 = vshll.u32 %v263, 16
      %v293 = vrot.slane %v291, 5
      %v294 = vor.u32 %v290, %v293
      %v295 = vrot.slane %v294, 4
      %v297 = vshll.u32 %v267, 16
      %v299 = vrot.slane %v297, 5
      %v300 = vsel %vm272, %v295, %v299
      %v302 = vshrl.u32 %v264, 16
      %v304 = vrot.slane %v302, 4
      %v305 = vshll.u32 %v264, 16
      %v307 = vrot.slane %v305, 5
      %v308 = vor.u32 %v304, %v307
      %v309 = vrot.slane %v308, 4
      %v311 = vshll.u32 %v268, 16
      %v313 = vrot.slane %v311, 5
      %v314 = vsel %vm272, %v309, %v313
      %v316 = vshrl.u32 %v265, 16
      %v318 = vrot.slane %v316, 4
      %v319 = vshll.u32 %v265, 16
      %v321 = vrot.slane %v319, 5
      %v322 = vor.u32 %v318, %v321
      %v323 = vrot.slane %v322, 4
      %v325 = vshll.u32 %v269, 16
      %v327 = vrot.slane %v325, 5
      %v328 = vsel %vm272, %v323, %v327
      %v329 = vld [vmem:[%s261] sm:$0xe]
      %v330 = vld [vmem:[%s261 + $0x8] sm:$0xe]
      %v331 = vld [vmem:[%s261 + $0x10] sm:$0xe]
      %v332 = vld [vmem:[%s261 + $0x18] sm:$0xe]
      %vm341 = vcmask 1042432
      %vm342 = vcmask 1046532
      %vm343 = vmor %vm341, %vm342
      %v344 = vrot.slane %v329, 5
      %v345 = vrot.slane %v344, 4
      %v346 = vrot.slane %v266, 5
      %v347 = vsel %vm343, %v345, %v346
      %v348 = vrot.slane %v330, 5
      %v349 = vrot.slane %v348, 4
      %v350 = vrot.slane %v267, 5
      %v351 = vsel %vm343, %v349, %v350
      %v352 = vrot.slane %v331, 5
      %v353 = vrot.slane %v352, 4
      %v354 = vrot.slane %v268, 5
      %v355 = vsel %vm343, %v353, %v354
      %v356 = vrot.slane %v332, 5
      %v357 = vrot.slane %v356, 4
      %v358 = vrot.slane %v269, 5
      %v359 = vsel %vm343, %v357, %v358
      %s360 = sadd.s32 %s258, 1
      %s361 = smul.u32 %s360, 2
      %s362 = smul.addr %s361, 4
      %s363 = scalar_lea.vmem %s236, %s362
      %v364 = vld [vmem:[%s363] sm:$0xf]
      %v365 = vld [vmem:[%s363 + $0x8] sm:$0xf]
      %v366 = vld [vmem:[%s363 + $0x10] sm:$0xf]
      %v367 = vld [vmem:[%s363 + $0x18] sm:$0xf]
      %v368 = vld [vmem:[%s363 + $0x4] sm:$0x1]
      %v369 = vld [vmem:[%s363 + $0xc] sm:$0x1]
      %v370 = vld [vmem:[%s363 + $0x14] sm:$0x1]
      %v371 = vld [vmem:[%s363 + $0x1c] sm:$0x1]
      %v373 = vshrl.u32 %v364, 16
      %v375 = vrot.slane %v373, 4
      %v376 = vshll.u32 %v364, 16
      %v378 = vrot.slane %v376, 5
      %v379 = vor.u32 %v375, %v378
      %v380 = vrot.slane %v379, 4
      %v382 = vshll.u32 %v368, 16
      %v384 = vrot.slane %v382, 5
      %v385 = vsel %vm272, %v380, %v384
      %v387 = vshrl.u32 %v365, 16
      %v389 = vrot.slane %v387, 4
      %v390 = vshll.u32 %v365, 16
      %v392 = vrot.slane %v390, 5
      %v393 = vor.u32 %v389, %v392
      %v394 = vrot.slane %v393, 4
      %v396 = vshll.u32 %v369, 16
      %v398 = vrot.slane %v396, 5
      %v399 = vsel %vm272, %v394, %v398
      %v401 = vshrl.u32 %v366, 16
      %v403 = vrot.slane %v401, 4
      %v404 = vshll.u32 %v366, 16
      %v406 = vrot.slane %v404, 5
      %v407 = vor.u32 %v403, %v406
      %v408 = vrot.slane %v407, 4
      %v410 = vshll.u32 %v370, 16
      %v412 = vrot.slane %v410, 5
      %v413 = vsel %vm272, %v408, %v412
      %v415 = vshrl.u32 %v367, 16
      %v417 = vrot.slane %v415, 4
      %v418 = vshll.u32 %v367, 16
      %v420 = vrot.slane %v418, 5
      %v421 = vor.u32 %v417, %v420
      %v422 = vrot.slane %v421, 4
      %v424 = vshll.u32 %v371, 16
      %v426 = vrot.slane %v424, 5
      %v427 = vsel %vm272, %v422, %v426
      %v428 = vld [vmem:[%s363] sm:$0xe]
      %v429 = vld [vmem:[%s363 + $0x8] sm:$0xe]
      %v430 = vld [vmem:[%s363 + $0x10] sm:$0xe]
      %v431 = vld [vmem:[%s363 + $0x18] sm:$0xe]
      %v440 = vrot.slane %v428, 5
      %v441 = vrot.slane %v440, 4
      %v442 = vrot.slane %v368, 5
      %v443 = vsel %vm343, %v441, %v442
      %v444 = vrot.slane %v429, 5
      %v445 = vrot.slane %v444, 4
      %v446 = vrot.slane %v369, 5
      %v447 = vsel %vm343, %v445, %v446
      %v448 = vrot.slane %v430, 5
      %v449 = vrot.slane %v448, 4
      %v450 = vrot.slane %v370, 5
      %v451 = vsel %vm343, %v449, %v450
      %v452 = vrot.slane %v431, 5
      %v453 = vrot.slane %v452, 4
      %v454 = vrot.slane %v371, 5
      %v455 = vsel %vm343, %v453, %v454
      %s456 = sadd.s32 %s258, 2
      %s457 = smul.u32 %s456, 2
      %s458 = smul.addr %s457, 4
      %s459 = scalar_lea.vmem %s236, %s458
      %v460 = vld [vmem:[%s459] sm:$0xf]
      %v461 = vld [vmem:[%s459 + $0x8] sm:$0xf]
      %v462 = vld [vmem:[%s459 + $0x10] sm:$0xf]
      %v463 = vld [vmem:[%s459 + $0x18] sm:$0xf]
      %v464 = vld [vmem:[%s459 + $0x4] sm:$0x1]
      %v465 = vld [vmem:[%s459 + $0xc] sm:$0x1]
      %v466 = vld [vmem:[%s459 + $0x14] sm:$0x1]
      %v467 = vld [vmem:[%s459 + $0x1c] sm:$0x1]
      %v469 = vshrl.u32 %v460, 16
      %v471 = vrot.slane %v469, 4
      %v472 = vshll.u32 %v460, 16
      %v474 = vrot.slane %v472, 5
      %v475 = vor.u32 %v471, %v474
      %v476 = vrot.slane %v475, 4
      %v478 = vshll.u32 %v464, 16
      %v480 = vrot.slane %v478, 5
      %v481 = vsel %vm272, %v476, %v480
      %v483 = vshrl.u32 %v461, 16
      %v485 = vrot.slane %v483, 4
      %v486 = vshll.u32 %v461, 16
      %v488 = vrot.slane %v486, 5
      %v489 = vor.u32 %v485, %v488
      %v490 = vrot.slane %v489, 4
      %v492 = vshll.u32 %v465, 16
      %v494 = vrot.slane %v492, 5
      %v495 = vsel %vm272, %v490, %v494
      %v497 = vshrl.u32 %v462, 16
      %v499 = vrot.slane %v497, 4
      %v500 = vshll.u32 %v462, 16
      %v502 = vrot.slane %v500, 5
      %v503 = vor.u32 %v499, %v502
      %v504 = vrot.slane %v503, 4
      %v506 = vshll.u32 %v466, 16
      %v508 = vrot.slane %v506, 5
      %v509 = vsel %vm272, %v504, %v508
      %v511 = vshrl.u32 %v463, 16
      %v513 = vrot.slane %v511, 4
      %v514 = vshll.u32 %v463, 16
      %v516 = vrot.slane %v514, 5
      %v517 = vor.u32 %v513, %v516
      %v518 = vrot.slane %v517, 4
      %v520 = vshll.u32 %v467, 16
      %v522 = vrot.slane %v520, 5
      %v523 = vsel %vm272, %v518, %v522
      %v524 = vld [vmem:[%s459] sm:$0xe]
      %v525 = vld [vmem:[%s459 + $0x8] sm:$0xe]
      %v526 = vld [vmem:[%s459 + $0x10] sm:$0xe]
      %v527 = vld [vmem:[%s459 + $0x18] sm:$0xe]
      %v536 = vrot.slane %v524, 5
      %v537 = vrot.slane %v536, 4
      %v538 = vrot.slane %v464, 5
      %v539 = vsel %vm343, %v537, %v538
      %v540 = vrot.slane %v525, 5
      %v541 = vrot.slane %v540, 4
      %v542 = vrot.slane %v465, 5
      %v543 = vsel %vm343, %v541, %v542
      %v544 = vrot.slane %v526, 5
      %v545 = vrot.slane %v544, 4
      %v546 = vrot.slane %v466, 5
      %v547 = vsel %vm343, %v545, %v546
      %v548 = vrot.slane %v527, 5
      %v549 = vrot.slane %v548, 4
      %v550 = vrot.slane %v467, 5
      %v551 = vsel %vm343, %v549, %v550
      %v552 = vld [vmem:[%s1] sm:$0xf]
      %v553 = vld [vmem:[%s1 + $0x4] sm:$0xf]
      %v554 = vld [vmem:[%s1 + $0x8] sm:$0xf]
      %v555 = vld [vmem:[%s1 + $0xc] sm:$0xf]
      %v556 = vld [vmem:[%s1 + $0x10] sm:$0xf]
      %v557 = vld [vmem:[%s1 + $0x14] sm:$0xf]
      %v558 = vld [vmem:[%s1 + $0x18] sm:$0xf]
      %v559 = vld [vmem:[%s1 + $0x1c] sm:$0xf]
      %v560 = vld [vmem:[%s1 + $0x20] sm:$0xf]
      %v561 = vld [vmem:[%s1 + $0x24] sm:$0xf]
      %v562 = vld [vmem:[%s1 + $0x28] sm:$0xf]
      %v563 = vld [vmem:[%s1 + $0x2c] sm:$0xf]
      %v564 = vld [vmem:[%s1 + $0x30] sm:$0xf]
      %v565 = vld [vmem:[%s1 + $0x34] sm:$0xf]
      %v566 = vld [vmem:[%s1 + $0x38] sm:$0xf]
      %v567 = vld [vmem:[%s1 + $0x3c] sm:$0xf]
      %s568 = scalar_lea.vmem %s1, 64
      %v569 = vld [vmem:[%s568] sm:$0xf]
      %v570 = vld [vmem:[%s568 + $0x4] sm:$0xf]
      %v571 = vld [vmem:[%s568 + $0x8] sm:$0xf]
      %v572 = vld [vmem:[%s568 + $0xc] sm:$0xf]
      %v573 = vld [vmem:[%s568 + $0x10] sm:$0xf]
      %v574 = vld [vmem:[%s568 + $0x14] sm:$0xf]
      %v575 = vld [vmem:[%s568 + $0x18] sm:$0xf]
      %v576 = vld [vmem:[%s568 + $0x1c] sm:$0xf]
      %v577 = vld [vmem:[%s568 + $0x20] sm:$0xf]
      %v578 = vld [vmem:[%s568 + $0x24] sm:$0xf]
      %v579 = vld [vmem:[%s568 + $0x28] sm:$0xf]
      %v580 = vld [vmem:[%s568 + $0x2c] sm:$0xf]
      %v581 = vld [vmem:[%s568 + $0x30] sm:$0xf]
      %v582 = vld [vmem:[%s568 + $0x34] sm:$0xf]
      %v583 = vld [vmem:[%s568 + $0x38] sm:$0xf]
      %v584 = vld [vmem:[%s568 + $0x3c] sm:$0xf]
      %v585 = vunpack.c.l.b16 %v286
      %v586 = vunpack.c.l.b16 %v300
      %v587 = vunpack.c.l.b16 %v314
      %v588 = vunpack.c.l.b16 %v328
      %v589 = vpack.c.b16 %v586, %v585
      %v590 = vpack.c.b16 %v588, %v587
      %v609 = vunpack.c.l.b16 %v569
      %v610 = vunpack.c.l.b16 %v570
      %v611 = vunpack.c.l.b16 %v571
      %v612 = vunpack.c.l.b16 %v572
      %v613 = vunpack.c.l.b16 %v573
      %v614 = vunpack.c.l.b16 %v574
      %v615 = vunpack.c.l.b16 %v575
      %v616 = vunpack.c.l.b16 %v576
      %v617 = vunpack.c.l.b16 %v577
      %v618 = vunpack.c.l.b16 %v578
      %v619 = vunpack.c.l.b16 %v579
      %v620 = vunpack.c.l.b16 %v580
      %v621 = vunpack.c.l.b16 %v581
      %v622 = vunpack.c.l.b16 %v582
      %v623 = vunpack.c.l.b16 %v583
      %v624 = vunpack.c.l.b16 %v584
      %v625 = vpack.c.b16 %v610, %v609
      %v626 = vpack.c.b16 %v612, %v611
      %v627 = vpack.c.b16 %v614, %v613
      %v628 = vpack.c.b16 %v616, %v615
      %v629 = vpack.c.b16 %v618, %v617
      %v630 = vpack.c.b16 %v620, %v619
      %v631 = vpack.c.b16 %v622, %v621
      %v632 = vpack.c.b16 %v624, %v623
      %641 = vmatprep.subr.bf16.mxu0 0
      %642 = vmatpush1.bf16.msra.mxu0 %v625
      %643 = vmatprep.subr.bf16.mxu0 0
      %644 = vmatpush1.bf16.msra.mxu0 %v626
      %645 = vmatprep.subr.bf16.mxu0 0
      %646 = vmatpush1.bf16.msra.mxu0 %v627
      %647 = vmatprep.subr.bf16.mxu0 0
      %648 = vmatpush1.bf16.msra.mxu0 %v628
      %649 = vmatprep.subr.bf16.mxu0 0
      %650 = vmatpush1.bf16.msra.mxu0 %v629
      %651 = vmatprep.subr.bf16.mxu0 0
      %652 = vmatpush1.bf16.msra.mxu0 %v630
      %653 = vmatprep.subr.bf16.mxu0 0
      %654 = vmatpush1.bf16.msra.mxu0 %v631
      %655 = vmatprep.subr.bf16.mxu0 0
      %656 = vmatpush1.bf16.msra.mxu0 %v632
      %657 = vmatprep.subr.bf16.mxu0 0
      %658 = vmatpush1.bf16.msra.mxu0 0
      %659 = vmatprep.subr.bf16.mxu0 0
      %660 = vmatpush1.bf16.msra.mxu0 0
      %661 = vmatprep.subr.bf16.mxu0 0
      %662 = vmatpush1.bf16.msra.mxu0 0
      %663 = vmatprep.subr.bf16.mxu0 0
      %664 = vmatpush1.bf16.msra.mxu0 0
      %665 = vmatprep.subr.bf16.mxu0 0
      %666 = vmatpush1.bf16.msra.mxu0 0
      %667 = vmatprep.subr.bf16.mxu0 0
      %668 = vmatpush1.bf16.msra.mxu0 0
      %669 = vmatprep.subr.bf16.mxu0 0
      %670 = vmatpush1.bf16.msra.mxu0 0
      %671 = vmatprep.subr.bf16.mxu0 0
      %672 = vmatpush1.bf16.msra.mxu0 0
      %673 = vmatprep.mubr.bf16.mxu0 0
      %674 = vmatmul.mubr.bf16.gmra.mrb[0].mxu0 %v589
      %v675 = vpop.f32.mrb[0].mxu0
      %v676 = vadd.f32 0.0, %v675
      %v677 = vpop.f32.mrb[0].mxu0
      %v678 = vpop.f32.mrb[0].mxu0
      %v679 = vadd.f32 0.0, %v678
      %v680 = vpop.f32.mrb[0].mxu0
      %681 = vmatprep.mubr.bf16.mxu0 0
      %682 = vmatmul.mubr.bf16.gmra.mrb[0].mxu0 %v590
      %v683 = vpop.f32.mrb[0].mxu0
      %v684 = vadd.f32 0.0, %v683
      %v685 = vpop.f32.mrb[0].mxu0
      %v686 = vpop.f32.mrb[0].mxu0
      %v687 = vadd.f32 0.0, %v686
      %v688 = vpop.f32.mrb[0].mxu0
      %689 = vdwg.mxu0
      %v694 = vunpack.c.l.b16 %v262
      %v695 = vunpack.c.l.b16 %v263
      %v696 = vunpack.c.l.b16 %v264
      %v697 = vunpack.c.l.b16 %v265
      %v698 = vpack.c.b16 %v695, %v694
      %v699 = vpack.c.b16 %v697, %v696
      %v718 = vunpack.c.l.b16 %v552
      %v719 = vunpack.c.l.b16 %v553
      %v720 = vunpack.c.l.b16 %v554
      %v721 = vunpack.c.l.b16 %v555
      %v722 = vunpack.c.l.b16 %v556
      %v723 = vunpack.c.l.b16 %v557
      %v724 = vunpack.c.l.b16 %v558
      %v725 = vunpack.c.l.b16 %v559
      %v726 = vunpack.c.l.b16 %v560
      %v727 = vunpack.c.l.b16 %v561
      %v728 = vunpack.c.l.b16 %v562
      %v729 = vunpack.c.l.b16 %v563
      %v730 = vunpack.c.l.b16 %v564
      %v731 = vunpack.c.l.b16 %v565
      %v732 = vunpack.c.l.b16 %v566
      %v733 = vunpack.c.l.b16 %v567
      %v734 = vpack.c.b16 %v719, %v718
      %v735 = vpack.c.b16 %v721, %v720
      %v736 = vpack.c.b16 %v723, %v722
      %v737 = vpack.c.b16 %v725, %v724
      %v738 = vpack.c.b16 %v727, %v726
      %v739 = vpack.c.b16 %v729, %v728
      %v740 = vpack.c.b16 %v731, %v730
      %v741 = vpack.c.b16 %v733, %v732
      %750 = vmatprep.subr.bf16.mxu0 0
      %751 = vmatpush1.bf16.msra.mxu0 %v734
      %752 = vmatprep.subr.bf16.mxu0 0
      %753 = vmatpush1.bf16.msra.mxu0 %v735
      %754 = vmatprep.subr.bf16.mxu0 0
      %755 = vmatpush1.bf16.msra.mxu0 %v736
      %756 = vmatprep.subr.bf16.mxu0 0
      %757 = vmatpush1.bf16.msra.mxu0 %v737
      %758 = vmatprep.subr.bf16.mxu0 0
      %759 = vmatpush1.bf16.msra.mxu0 %v738
      %760 = vmatprep.subr.bf16.mxu0 0
      %761 = vmatpush1.bf16.msra.mxu0 %v739
      %762 = vmatprep.subr.bf16.mxu0 0
      %763 = vmatpush1.bf16.msra.mxu0 %v740
      %764 = vmatprep.subr.bf16.mxu0 0
      %765 = vmatpush1.bf16.msra.mxu0 %v741
      %766 = vmatprep.subr.bf16.mxu0 0
      %767 = vmatpush1.bf16.msra.mxu0 0
      %768 = vmatprep.subr.bf16.mxu0 0
      %769 = vmatpush1.bf16.msra.mxu0 0
      %770 = vmatprep.subr.bf16.mxu0 0
      %771 = vmatpush1.bf16.msra.mxu0 0
      %772 = vmatprep.subr.bf16.mxu0 0
      %773 = vmatpush1.bf16.msra.mxu0 0
      %774 = vmatprep.subr.bf16.mxu0 0
      %775 = vmatpush1.bf16.msra.mxu0 0
      %776 = vmatprep.subr.bf16.mxu0 0
      %777 = vmatpush1.bf16.msra.mxu0 0
      %778 = vmatprep.subr.bf16.mxu0 0
      %779 = vmatpush1.bf16.msra.mxu0 0
      %780 = vmatprep.subr.bf16.mxu0 0
      %781 = vmatpush1.bf16.msra.mxu0 0
      %782 = vmatprep.mubr.bf16.mxu0 0
      %783 = vmatmul.mubr.bf16.gmra.mrb[0].mxu0 %v698
      %v784 = vpop.f32.mrb[0].mxu0
      %v785 = vadd.f32 %v676, %v784
      %v786 = vpop.f32.mrb[0].mxu0
      %v787 = vpop.f32.mrb[0].mxu0
      %v788 = vadd.f32 %v679, %v787
      %v789 = vpop.f32.mrb[0].mxu0
      %790 = vmatprep.mubr.bf16.mxu0 0
      %791 = vmatmul.mubr.bf16.gmra.mrb[0].mxu0 %v699
      %v792 = vpop.f32.mrb[0].mxu0
      %v793 = vadd.f32 %v684, %v792
      %v794 = vpop.f32.mrb[0].mxu0
      %v795 = vpop.f32.mrb[0].mxu0
      %v796 = vadd.f32 %v687, %v795
      %v797 = vpop.f32.mrb[0].mxu0
      %798 = vdwg.mxu0
      %s799 = scalar_lea.vmem %s1, 128
      %v800 = vld [vmem:[%s799] sm:$0xf]
      %v801 = vld [vmem:[%s799 + $0x4] sm:$0xf]
      %v802 = vld [vmem:[%s799 + $0x8] sm:$0xf]
      %v803 = vld [vmem:[%s799 + $0xc] sm:$0xf]
      %v804 = vld [vmem:[%s799 + $0x10] sm:$0xf]
      %v805 = vld [vmem:[%s799 + $0x14] sm:$0xf]
      %v806 = vld [vmem:[%s799 + $0x18] sm:$0xf]
      %v807 = vld [vmem:[%s799 + $0x1c] sm:$0xf]
      %v808 = vld [vmem:[%s799 + $0x20] sm:$0xf]
      %v809 = vld [vmem:[%s799 + $0x24] sm:$0xf]
      %v810 = vld [vmem:[%s799 + $0x28] sm:$0xf]
      %v811 = vld [vmem:[%s799 + $0x2c] sm:$0xf]
      %v812 = vld [vmem:[%s799 + $0x30] sm:$0xf]
      %v813 = vld [vmem:[%s799 + $0x34] sm:$0xf]
      %v814 = vld [vmem:[%s799 + $0x38] sm:$0xf]
      %v815 = vld [vmem:[%s799 + $0x3c] sm:$0xf]
      %v816 = vunpack.c.l.b16 %v347
      %v817 = vunpack.c.l.b16 %v351
      %v818 = vunpack.c.l.b16 %v355
      %v819 = vunpack.c.l.b16 %v359
      %v820 = vpack.c.b16 %v817, %v816
      %v821 = vpack.c.b16 %v819, %v818
      %v840 = vunpack.c.l.b16 %v800
      %v841 = vunpack.c.l.b16 %v801
      %v842 = vunpack.c.l.b16 %v802
      %v843 = vunpack.c.l.b16 %v803
      %v844 = vunpack.c.l.b16 %v804
      %v845 = vunpack.c.l.b16 %v805
      %v846 = vunpack.c.l.b16 %v806
      %v847 = vunpack.c.l.b16 %v807
      %v848 = vunpack.c.l.b16 %v808
      %v849 = vunpack.c.l.b16 %v809
      %v850 = vunpack.c.l.b16 %v810
      %v851 = vunpack.c.l.b16 %v811
      %v852 = vunpack.c.l.b16 %v812
      %v853 = vunpack.c.l.b16 %v813
      %v854 = vunpack.c.l.b16 %v814
      %v855 = vunpack.c.l.b16 %v815
      %v856 = vpack.c.b16 %v841, %v840
      %v857 = vpack.c.b16 %v843, %v842
      %v858 = vpack.c.b16 %v845, %v844
      %v859 = vpack.c.b16 %v847, %v846
      %v860 = vpack.c.b16 %v849, %v848
      %v861 = vpack.c.b16 %v851, %v850
      %v862 = vpack.c.b16 %v853, %v852
      %v863 = vpack.c.b16 %v855, %v854
      %872 = vmatprep.subr.bf16.mxu0 0
      %873 = vmatpush1.bf16.msra.mxu0 %v856
      %874 = vmatprep.subr.bf16.mxu0 0
      %875 = vmatpush1.bf16.msra.mxu0 %v857
      %876 = vmatprep.subr.bf16.mxu0 0
      %877 = vmatpush1.bf16.msra.mxu0 %v858
      %878 = vmatprep.subr.bf16.mxu0 0
      %879 = vmatpush1.bf16.msra.mxu0 %v859
      %880 = vmatprep.subr.bf16.mxu0 0
      %881 = vmatpush1.bf16.msra.mxu0 %v860
      %882 = vmatprep.subr.bf16.mxu0 0
      %883 = vmatpush1.bf16.msra.mxu0 %v861
      %884 = vmatprep.subr.bf16.mxu0 0
      %885 = vmatpush1.bf16.msra.mxu0 %v862
      %886 = vmatprep.subr.bf16.mxu0 0
      %887 = vmatpush1.bf16.msra.mxu0 %v863
      %888 = vmatprep.subr.bf16.mxu0 0
      %889 = vmatpush1.bf16.msra.mxu0 0
      %890 = vmatprep.subr.bf16.mxu0 0
      %891 = vmatpush1.bf16.msra.mxu0 0
      %892 = vmatprep.subr.bf16.mxu0 0
      %893 = vmatpush1.bf16.msra.mxu0 0
      %894 = vmatprep.subr.bf16.mxu0 0
      %895 = vmatpush1.bf16.msra.mxu0 0
      %896 = vmatprep.subr.bf16.mxu0 0
      %897 = vmatpush1.bf16.msra.mxu0 0
      %898 = vmatprep.subr.bf16.mxu0 0
      %899 = vmatpush1.bf16.msra.mxu0 0
      %900 = vmatprep.subr.bf16.mxu0 0
      %901 = vmatpush1.bf16.msra.mxu0 0
      %902 = vmatprep.subr.bf16.mxu0 0
      %903 = vmatpush1.bf16.msra.mxu0 0
      %904 = vmatprep.mubr.bf16.mxu0 0
      %905 = vmatmul.mubr.bf16.gmra.mrb[0].mxu0 %v820
      %v906 = vpop.f32.mrb[0].mxu0
      %v907 = vadd.f32 0.0, %v906
      %v908 = vpop.f32.mrb[0].mxu0
      %v909 = vpop.f32.mrb[0].mxu0
      %v910 = vadd.f32 0.0, %v909
      %v911 = vpop.f32.mrb[0].mxu0
      %912 = vmatprep.mubr.bf16.mxu0 0
      %913 = vmatmul.mubr.bf16.gmra.mrb[0].mxu0 %v821
      %v914 = vpop.f32.mrb[0].mxu0
      %v915 = vadd.f32 0.0, %v914
      %v916 = vpop.f32.mrb[0].mxu0
      %v917 = vpop.f32.mrb[0].mxu0
      %v918 = vadd.f32 0.0, %v917
      %v919 = vpop.f32.mrb[0].mxu0
      %920 = vdwg.mxu0
      %v921 = vadd.f32 %v785, %v907
      %v922 = vadd.f32 %v788, %v910
      %v923 = vadd.f32 %v793, %v915
      %v924 = vadd.f32 %v796, %v918
      %s925 = scalar_lea.vmem %s1, 192
      %v926 = vld [vmem:[%s925] sm:$0xf]
      %v927 = vld [vmem:[%s925 + $0x4] sm:$0xf]
      %v928 = vld [vmem:[%s925 + $0x8] sm:$0xf]
      %v929 = vld [vmem:[%s925 + $0xc] sm:$0xf]
      %v930 = vld [vmem:[%s925 + $0x10] sm:$0xf]
      %v931 = vld [vmem:[%s925 + $0x14] sm:$0xf]
      %v932 = vld [vmem:[%s925 + $0x18] sm:$0xf]
      %v933 = vld [vmem:[%s925 + $0x1c] sm:$0xf]
      %v934 = vld [vmem:[%s925 + $0x20] sm:$0xf]
      %v935 = vld [vmem:[%s925 + $0x24] sm:$0xf]
      %v936 = vld [vmem:[%s925 + $0x28] sm:$0xf]
      %v937 = vld [vmem:[%s925 + $0x2c] sm:$0xf]
      %v938 = vld [vmem:[%s925 + $0x30] sm:$0xf]
      %v939 = vld [vmem:[%s925 + $0x34] sm:$0xf]
      %v940 = vld [vmem:[%s925 + $0x38] sm:$0xf]
      %v941 = vld [vmem:[%s925 + $0x3c] sm:$0xf]
      %v946 = vunpack.c.l.b16 %v364
      %v947 = vunpack.c.l.b16 %v365
      %v948 = vunpack.c.l.b16 %v366
      %v949 = vunpack.c.l.b16 %v367
      %v950 = vpack.c.b16 %v947, %v946
      %v951 = vpack.c.b16 %v949, %v948
      %v970 = vunpack.c.l.b16 %v926
      %v971 = vunpack.c.l.b16 %v927
      %v972 = vunpack.c.l.b16 %v928
      %v973 = vunpack.c.l.b16 %v929
      %v974 = vunpack.c.l.b16 %v930
      %v975 = vunpack.c.l.b16 %v931
      %v976 = vunpack.c.l.b16 %v932
      %v977 = vunpack.c.l.b16 %v933
      %v978 = vunpack.c.l.b16 %v934
      %v979 = vunpack.c.l.b16 %v935
      %v980 = vunpack.c.l.b16 %v936
      %v981 = vunpack.c.l.b16 %v937
      %v982 = vunpack.c.l.b16 %v938
      %v983 = vunpack.c.l.b16 %v939
      %v984 = vunpack.c.l.b16 %v940
      %v985 = vunpack.c.l.b16 %v941
      %v986 = vpack.c.b16 %v971, %v970
      %v987 = vpack.c.b16 %v973, %v972
      %v988 = vpack.c.b16 %v975, %v974
      %v989 = vpack.c.b16 %v977, %v976
      %v990 = vpack.c.b16 %v979, %v978
      %v991 = vpack.c.b16 %v981, %v980
      %v992 = vpack.c.b16 %v983, %v982
      %v993 = vpack.c.b16 %v985, %v984
      %1002 = vmatprep.subr.bf16.mxu0 0
      %1003 = vmatpush1.bf16.msra.mxu0 %v986
      %1004 = vmatprep.subr.bf16.mxu0 0
      %1005 = vmatpush1.bf16.msra.mxu0 %v987
      %1006 = vmatprep.subr.bf16.mxu0 0
      %1007 = vmatpush1.bf16.msra.mxu0 %v988
      %1008 = vmatprep.subr.bf16.mxu0 0
      %1009 = vmatpush1.bf16.msra.mxu0 %v989
      %1010 = vmatprep.subr.bf16.mxu0 0
      %1011 = vmatpush1.bf16.msra.mxu0 %v990
      %1012 = vmatprep.subr.bf16.mxu0 0
      %1013 = vmatpush1.bf16.msra.mxu0 %v991
      %1014 = vmatprep.subr.bf16.mxu0 0
      %1015 = vmatpush1.bf16.msra.mxu0 %v992
      %1016 = vmatprep.subr.bf16.mxu0 0
      %1017 = vmatpush1.bf16.msra.mxu0 %v993
      %1018 = vmatprep.subr.bf16.mxu0 0
      %1019 = vmatpush1.bf16.msra.mxu0 0
      %1020 = vmatprep.subr.bf16.mxu0 0
      %1021 = vmatpush1.bf16.msra.mxu0 0
      %1022 = vmatprep.subr.bf16.mxu0 0
      %1023 = vmatpush1.bf16.msra.mxu0 0
      %1024 = vmatprep.subr.bf16.mxu0 0
      %1025 = vmatpush1.bf16.msra.mxu0 0
      %1026 = vmatprep.subr.bf16.mxu0 0
      %1027 = vmatpush1.bf16.msra.mxu0 0
      %1028 = vmatprep.subr.bf16.mxu0 0
      %1029 = vmatpush1.bf16.msra.mxu0 0
      %1030 = vmatprep.subr.bf16.mxu0 0
      %1031 = vmatpush1.bf16.msra.mxu0 0
      %1032 = vmatprep.subr.bf16.mxu0 0
      %1033 = vmatpush1.bf16.msra.mxu0 0
      %1034 = vmatprep.mubr.bf16.mxu0 0
      %1035 = vmatmul.mubr.bf16.gmra.mrb[0].mxu0 %v950
      %v1036 = vpop.f32.mrb[0].mxu0
      %v1037 = vadd.f32 0.0, %v1036
      %v1038 = vpop.f32.mrb[0].mxu0
      %v1039 = vpop.f32.mrb[0].mxu0
      %v1040 = vadd.f32 0.0, %v1039
      %v1041 = vpop.f32.mrb[0].mxu0
      %1042 = vmatprep.mubr.bf16.mxu0 0
      %1043 = vmatmul.mubr.bf16.gmra.mrb[0].mxu0 %v951
      %v1044 = vpop.f32.mrb[0].mxu0
      %v1045 = vadd.f32 0.0, %v1044
      %v1046 = vpop.f32.mrb[0].mxu0
      %v1047 = vpop.f32.mrb[0].mxu0
      %v1048 = vadd.f32 0.0, %v1047
      %v1049 = vpop.f32.mrb[0].mxu0
      %1050 = vdwg.mxu0
      %v1051 = vadd.f32 %v921, %v1037
      %v1052 = vadd.f32 %v922, %v1040
      %v1053 = vadd.f32 %v923, %v1045
      %v1054 = vadd.f32 %v924, %v1048
      %s1055 = scalar_lea.vmem %s1, 256
      %v1056 = vld [vmem:[%s1055] sm:$0xf]
      %v1057 = vld [vmem:[%s1055 + $0x4] sm:$0xf]
      %v1058 = vld [vmem:[%s1055 + $0x8] sm:$0xf]
      %v1059 = vld [vmem:[%s1055 + $0xc] sm:$0xf]
      %v1060 = vld [vmem:[%s1055 + $0x10] sm:$0xf]
      %v1061 = vld [vmem:[%s1055 + $0x14] sm:$0xf]
      %v1062 = vld [vmem:[%s1055 + $0x18] sm:$0xf]
      %v1063 = vld [vmem:[%s1055 + $0x1c] sm:$0xf]
      %v1064 = vld [vmem:[%s1055 + $0x20] sm:$0xf]
      %v1065 = vld [vmem:[%s1055 + $0x24] sm:$0xf]
      %v1066 = vld [vmem:[%s1055 + $0x28] sm:$0xf]
      %v1067 = vld [vmem:[%s1055 + $0x2c] sm:$0xf]
      %v1068 = vld [vmem:[%s1055 + $0x30] sm:$0xf]
      %v1069 = vld [vmem:[%s1055 + $0x34] sm:$0xf]
      %v1070 = vld [vmem:[%s1055 + $0x38] sm:$0xf]
      %v1071 = vld [vmem:[%s1055 + $0x3c] sm:$0xf]
      %v1072 = vunpack.c.l.b16 %v385
      %v1073 = vunpack.c.l.b16 %v399
      %v1074 = vunpack.c.l.b16 %v413
      %v1075 = vunpack.c.l.b16 %v427
      %v1076 = vpack.c.b16 %v1073, %v1072
      %v1077 = vpack.c.b16 %v1075, %v1074
      %v1096 = vunpack.c.l.b16 %v1056
      %v1097 = vunpack.c.l.b16 %v1057
      %v1098 = vunpack.c.l.b16 %v1058
      %v1099 = vunpack.c.l.b16 %v1059
      %v1100 = vunpack.c.l.b16 %v1060
      %v1101 = vunpack.c.l.b16 %v1061
      %v1102 = vunpack.c.l.b16 %v1062
      %v1103 = vunpack.c.l.b16 %v1063
      %v1104 = vunpack.c.l.b16 %v1064
      %v1105 = vunpack.c.l.b16 %v1065
      %v1106 = vunpack.c.l.b16 %v1066
      %v1107 = vunpack.c.l.b16 %v1067
      %v1108 = vunpack.c.l.b16 %v1068
      %v1109 = vunpack.c.l.b16 %v1069
      %v1110 = vunpack.c.l.b16 %v1070
      %v1111 = vunpack.c.l.b16 %v1071
      %v1112 = vpack.c.b16 %v1097, %v1096
      %v1113 = vpack.c.b16 %v1099, %v1098
      %v1114 = vpack.c.b16 %v1101, %v1100
      %v1115 = vpack.c.b16 %v1103, %v1102
      %v1116 = vpack.c.b16 %v1105, %v1104
      %v1117 = vpack.c.b16 %v1107, %v1106
      %v1118 = vpack.c.b16 %v1109, %v1108
      %v1119 = vpack.c.b16 %v1111, %v1110
      %1128 = vmatprep.subr.bf16.mxu0 0
      %1129 = vmatpush1.bf16.msra.mxu0 %v1112
      %1130 = vmatprep.subr.bf16.mxu0 0
      %1131 = vmatpush1.bf16.msra.mxu0 %v1113
      %1132 = vmatprep.subr.bf16.mxu0 0
      %1133 = vmatpush1.bf16.msra.mxu0 %v1114
      %1134 = vmatprep.subr.bf16.mxu0 0
      %1135 = vmatpush1.bf16.msra.mxu0 %v1115
      %1136 = vmatprep.subr.bf16.mxu0 0
      %1137 = vmatpush1.bf16.msra.mxu0 %v1116
      %1138 = vmatprep.subr.bf16.mxu0 0
      %1139 = vmatpush1.bf16.msra.mxu0 %v1117
      %1140 = vmatprep.subr.bf16.mxu0 0
      %1141 = vmatpush1.bf16.msra.mxu0 %v1118
      %1142 = vmatprep.subr.bf16.mxu0 0
      %1143 = vmatpush1.bf16.msra.mxu0 %v1119
      %1144 = vmatprep.subr.bf16.mxu0 0
      %1145 = vmatpush1.bf16.msra.mxu0 0
      %1146 = vmatprep.subr.bf16.mxu0 0
      %1147 = vmatpush1.bf16.msra.mxu0 0
      %1148 = vmatprep.subr.bf16.mxu0 0
      %1149 = vmatpush1.bf16.msra.mxu0 0
      %1150 = vmatprep.subr.bf16.mxu0 0
      %1151 = vmatpush1.bf16.msra.mxu0 0
      %1152 = vmatprep.subr.bf16.mxu0 0
      %1153 = vmatpush1.bf16.msra.mxu0 0
      %1154 = vmatprep.subr.bf16.mxu0 0
      %1155 = vmatpush1.bf16.msra.mxu0 0
      %1156 = vmatprep.subr.bf16.mxu0 0
      %1157 = vmatpush1.bf16.msra.mxu0 0
      %1158 = vmatprep.subr.bf16.mxu0 0
      %1159 = vmatpush1.bf16.msra.mxu0 0
      %1160 = vmatprep.mubr.bf16.mxu0 0
      %1161 = vmatmul.mubr.bf16.gmra.mrb[0].mxu0 %v1076
      %v1162 = vpop.f32.mrb[0].mxu0
      %v1163 = vadd.f32 0.0, %v1162
      %v1164 = vpop.f32.mrb[0].mxu0
      %v1165 = vpop.f32.mrb[0].mxu0
      %v1166 = vadd.f32 0.0, %v1165
      %v1167 = vpop.f32.mrb[0].mxu0
      %1168 = vmatprep.mubr.bf16.mxu0 0
      %1169 = vmatmul.mubr.bf16.gmra.mrb[0].mxu0 %v1077
      %v1170 = vpop.f32.mrb[0].mxu0
      %v1171 = vadd.f32 0.0, %v1170
      %v1172 = vpop.f32.mrb[0].mxu0
      %v1173 = vpop.f32.mrb[0].mxu0
      %v1174 = vadd.f32 0.0, %v1173
      %v1175 = vpop.f32.mrb[0].mxu0
      %1176 = vdwg.mxu0
      %v1177 = vadd.f32 %v1051, %v1163
      %v1178 = vadd.f32 %v1052, %v1166
      %v1179 = vadd.f32 %v1053, %v1171
      %v1180 = vadd.f32 %v1054, %v1174
      %s1181 = scalar_lea.vmem %s1, 320
      %v1182 = vld [vmem:[%s1181] sm:$0xf]
      %v1183 = vld [vmem:[%s1181 + $0x4] sm:$0xf]
      %v1184 = vld [vmem:[%s1181 + $0x8] sm:$0xf]
      %v1185 = vld [vmem:[%s1181 + $0xc] sm:$0xf]
      %v1186 = vld [vmem:[%s1181 + $0x10] sm:$0xf]
      %v1187 = vld [vmem:[%s1181 + $0x14] sm:$0xf]
      %v1188 = vld [vmem:[%s1181 + $0x18] sm:$0xf]
      %v1189 = vld [vmem:[%s1181 + $0x1c] sm:$0xf]
      %v1190 = vld [vmem:[%s1181 + $0x20] sm:$0xf]
      %v1191 = vld [vmem:[%s1181 + $0x24] sm:$0xf]
      %v1192 = vld [vmem:[%s1181 + $0x28] sm:$0xf]
      %v1193 = vld [vmem:[%s1181 + $0x2c] sm:$0xf]
      %v1194 = vld [vmem:[%s1181 + $0x30] sm:$0xf]
      %v1195 = vld [vmem:[%s1181 + $0x34] sm:$0xf]
      %v1196 = vld [vmem:[%s1181 + $0x38] sm:$0xf]
      %v1197 = vld [vmem:[%s1181 + $0x3c] sm:$0xf]
      %v1198 = vunpack.c.l.b16 %v443
      %v1199 = vunpack.c.l.b16 %v447
      %v1200 = vunpack.c.l.b16 %v451
      %v1201 = vunpack.c.l.b16 %v455
      %v1202 = vpack.c.b16 %v1199, %v1198
      %v1203 = vpack.c.b16 %v1201, %v1200
      %v1222 = vunpack.c.l.b16 %v1182
      %v1223 = vunpack.c.l.b16 %v1183
      %v1224 = vunpack.c.l.b16 %v1184
      %v1225 = vunpack.c.l.b16 %v1185
      %v1226 = vunpack.c.l.b16 %v1186
      %v1227 = vunpack.c.l.b16 %v1187
      %v1228 = vunpack.c.l.b16 %v1188
      %v1229 = vunpack.c.l.b16 %v1189
      %v1230 = vunpack.c.l.b16 %v1190
      %v1231 = vunpack.c.l.b16 %v1191
      %v1232 = vunpack.c.l.b16 %v1192
      %v1233 = vunpack.c.l.b16 %v1193
      %v1234 = vunpack.c.l.b16 %v1194
      %v1235 = vunpack.c.l.b16 %v1195
      %v1236 = vunpack.c.l.b16 %v1196
      %v1237 = vunpack.c.l.b16 %v1197
      %v1238 = vpack.c.b16 %v1223, %v1222
      %v1239 = vpack.c.b16 %v1225, %v1224
      %v1240 = vpack.c.b16 %v1227, %v1226
      %v1241 = vpack.c.b16 %v1229, %v1228
      %v1242 = vpack.c.b16 %v1231, %v1230
      %v1243 = vpack.c.b16 %v1233, %v1232
      %v1244 = vpack.c.b16 %v1235, %v1234
      %v1245 = vpack.c.b16 %v1237, %v1236
      %1254 = vmatprep.subr.bf16.mxu0 0
      %1255 = vmatpush1.bf16.msra.mxu0 %v1238
      %1256 = vmatprep.subr.bf16.mxu0 0
      %1257 = vmatpush1.bf16.msra.mxu0 %v1239
      %1258 = vmatprep.subr.bf16.mxu0 0
      %1259 = vmatpush1.bf16.msra.mxu0 %v1240
      %1260 = vmatprep.subr.bf16.mxu0 0
      %1261 = vmatpush1.bf16.msra.mxu0 %v1241
      %1262 = vmatprep.subr.bf16.mxu0 0
      %1263 = vmatpush1.bf16.msra.mxu0 %v1242
      %1264 = vmatprep.subr.bf16.mxu0 0
      %1265 = vmatpush1.bf16.msra.mxu0 %v1243
      %1266 = vmatprep.subr.bf16.mxu0 0
      %1267 = vmatpush1.bf16.msra.mxu0 %v1244
      %1268 = vmatprep.subr.bf16.mxu0 0
      %1269 = vmatpush1.bf16.msra.mxu0 %v1245
      %1270 = vmatprep.subr.bf16.mxu0 0
      %1271 = vmatpush1.bf16.msra.mxu0 0
      %1272 = vmatprep.subr.bf16.mxu0 0
      %1273 = vmatpush1.bf16.msra.mxu0 0
      %1274 = vmatprep.subr.bf16.mxu0 0
      %1275 = vmatpush1.bf16.msra.mxu0 0
      %1276 = vmatprep.subr.bf16.mxu0 0
      %1277 = vmatpush1.bf16.msra.mxu0 0
      %1278 = vmatprep.subr.bf16.mxu0 0
      %1279 = vmatpush1.bf16.msra.mxu0 0
      %1280 = vmatprep.subr.bf16.mxu0 0
      %1281 = vmatpush1.bf16.msra.mxu0 0
      %1282 = vmatprep.subr.bf16.mxu0 0
      %1283 = vmatpush1.bf16.msra.mxu0 0
      %1284 = vmatprep.subr.bf16.mxu0 0
      %1285 = vmatpush1.bf16.msra.mxu0 0
      %1286 = vmatprep.mubr.bf16.mxu0 0
      %1287 = vmatmul.mubr.bf16.gmra.mrb[0].mxu0 %v1202
      %v1288 = vpop.f32.mrb[0].mxu0
      %v1289 = vadd.f32 0.0, %v1288
      %v1290 = vpop.f32.mrb[0].mxu0
      %v1291 = vpop.f32.mrb[0].mxu0
      %v1292 = vadd.f32 0.0, %v1291
      %v1293 = vpop.f32.mrb[0].mxu0
      %1294 = vmatprep.mubr.bf16.mxu0 0
      %1295 = vmatmul.mubr.bf16.gmra.mrb[0].mxu0 %v1203
      %v1296 = vpop.f32.mrb[0].mxu0
      %v1297 = vadd.f32 0.0, %v1296
      %v1298 = vpop.f32.mrb[0].mxu0
      %v1299 = vpop.f32.mrb[0].mxu0
      %v1300 = vadd.f32 0.0, %v1299
      %v1301 = vpop.f32.mrb[0].mxu0
      %1302 = vdwg.mxu0
      %v1303 = vadd.f32 %v1177, %v1289
      %v1304 = vadd.f32 %v1178, %v1292
      %v1305 = vadd.f32 %v1179, %v1297
      %v1306 = vadd.f32 %v1180, %v1300
      %s1307 = scalar_lea.vmem %s1, 384
      %v1308 = vld [vmem:[%s1307] sm:$0xf]
      %v1309 = vld [vmem:[%s1307 + $0x4] sm:$0xf]
      %v1310 = vld [vmem:[%s1307 + $0x8] sm:$0xf]
      %v1311 = vld [vmem:[%s1307 + $0xc] sm:$0xf]
      %v1312 = vld [vmem:[%s1307 + $0x10] sm:$0xf]
      %v1313 = vld [vmem:[%s1307 + $0x14] sm:$0xf]
      %v1314 = vld [vmem:[%s1307 + $0x18] sm:$0xf]
      %v1315 = vld [vmem:[%s1307 + $0x1c] sm:$0xf]
      %v1316 = vld [vmem:[%s1307 + $0x20] sm:$0xf]
      %v1317 = vld [vmem:[%s1307 + $0x24] sm:$0xf]
      %v1318 = vld [vmem:[%s1307 + $0x28] sm:$0xf]
      %v1319 = vld [vmem:[%s1307 + $0x2c] sm:$0xf]
      %v1320 = vld [vmem:[%s1307 + $0x30] sm:$0xf]
      %v1321 = vld [vmem:[%s1307 + $0x34] sm:$0xf]
      %v1322 = vld [vmem:[%s1307 + $0x38] sm:$0xf]
      %v1323 = vld [vmem:[%s1307 + $0x3c] sm:$0xf]
      %v1328 = vunpack.c.l.b16 %v460
      %v1329 = vunpack.c.l.b16 %v461
      %v1330 = vunpack.c.l.b16 %v462
      %v1331 = vunpack.c.l.b16 %v463
      %v1332 = vpack.c.b16 %v1329, %v1328
      %v1333 = vpack.c.b16 %v1331, %v1330
      %v1352 = vunpack.c.l.b16 %v1308
      %v1353 = vunpack.c.l.b16 %v1309
      %v1354 = vunpack.c.l.b16 %v1310
      %v1355 = vunpack.c.l.b16 %v1311
      %v1356 = vunpack.c.l.b16 %v1312
      %v1357 = vunpack.c.l.b16 %v1313
      %v1358 = vunpack.c.l.b16 %v1314
      %v1359 = vunpack.c.l.b16 %v1315
      %v1360 = vunpack.c.l.b16 %v1316
      %v1361 = vunpack.c.l.b16 %v1317
      %v1362 = vunpack.c.l.b16 %v1318
      %v1363 = vunpack.c.l.b16 %v1319
      %v1364 = vunpack.c.l.b16 %v1320
      %v1365 = vunpack.c.l.b16 %v1321
      %v1366 = vunpack.c.l.b16 %v1322
      %v1367 = vunpack.c.l.b16 %v1323
      %v1368 = vpack.c.b16 %v1353, %v1352
      %v1369 = vpack.c.b16 %v1355, %v1354
      %v1370 = vpack.c.b16 %v1357, %v1356
      %v1371 = vpack.c.b16 %v1359, %v1358
      %v1372 = vpack.c.b16 %v1361, %v1360
      %v1373 = vpack.c.b16 %v1363, %v1362
      %v1374 = vpack.c.b16 %v1365, %v1364
      %v1375 = vpack.c.b16 %v1367, %v1366
      %1384 = vmatprep.subr.bf16.mxu0 0
      %1385 = vmatpush1.bf16.msra.mxu0 %v1368
      %1386 = vmatprep.subr.bf16.mxu0 0
      %1387 = vmatpush1.bf16.msra.mxu0 %v1369
      %1388 = vmatprep.subr.bf16.mxu0 0
      %1389 = vmatpush1.bf16.msra.mxu0 %v1370
      %1390 = vmatprep.subr.bf16.mxu0 0
      %1391 = vmatpush1.bf16.msra.mxu0 %v1371
      %1392 = vmatprep.subr.bf16.mxu0 0
      %1393 = vmatpush1.bf16.msra.mxu0 %v1372
      %1394 = vmatprep.subr.bf16.mxu0 0
      %1395 = vmatpush1.bf16.msra.mxu0 %v1373
      %1396 = vmatprep.subr.bf16.mxu0 0
      %1397 = vmatpush1.bf16.msra.mxu0 %v1374
      %1398 = vmatprep.subr.bf16.mxu0 0
      %1399 = vmatpush1.bf16.msra.mxu0 %v1375
      %1400 = vmatprep.subr.bf16.mxu0 0
      %1401 = vmatpush1.bf16.msra.mxu0 0
      %1402 = vmatprep.subr.bf16.mxu0 0
      %1403 = vmatpush1.bf16.msra.mxu0 0
      %1404 = vmatprep.subr.bf16.mxu0 0
      %1405 = vmatpush1.bf16.msra.mxu0 0
      %1406 = vmatprep.subr.bf16.mxu0 0
      %1407 = vmatpush1.bf16.msra.mxu0 0
      %1408 = vmatprep.subr.bf16.mxu0 0
      %1409 = vmatpush1.bf16.msra.mxu0 0
      %1410 = vmatprep.subr.bf16.mxu0 0
      %1411 = vmatpush1.bf16.msra.mxu0 0
      %1412 = vmatprep.subr.bf16.mxu0 0
      %1413 = vmatpush1.bf16.msra.mxu0 0
      %1414 = vmatprep.subr.bf16.mxu0 0
      %1415 = vmatpush1.bf16.msra.mxu0 0
      %1416 = vmatprep.mubr.bf16.mxu0 0
      %1417 = vmatmul.mubr.bf16.gmra.mrb[0].mxu0 %v1332
      %v1418 = vpop.f32.mrb[0].mxu0
      %v1419 = vadd.f32 0.0, %v1418
      %v1420 = vpop.f32.mrb[0].mxu0
      %v1421 = vpop.f32.mrb[0].mxu0
      %v1422 = vadd.f32 0.0, %v1421
      %v1423 = vpop.f32.mrb[0].mxu0
      %1424 = vmatprep.mubr.bf16.mxu0 0
      %1425 = vmatmul.mubr.bf16.gmra.mrb[0].mxu0 %v1333
      %v1426 = vpop.f32.mrb[0].mxu0
      %v1427 = vadd.f32 0.0, %v1426
      %v1428 = vpop.f32.mrb[0].mxu0
      %v1429 = vpop.f32.mrb[0].mxu0
      %v1430 = vadd.f32 0.0, %v1429
      %v1431 = vpop.f32.mrb[0].mxu0
      %1432 = vdwg.mxu0
      %v1433 = vadd.f32 %v1303, %v1419
      %v1434 = vadd.f32 %v1304, %v1422
      %v1435 = vadd.f32 %v1305, %v1427
      %v1436 = vadd.f32 %v1306, %v1430
      %s1437 = scalar_lea.vmem %s1, 448
      %v1438 = vld [vmem:[%s1437] sm:$0xf]
      %v1439 = vld [vmem:[%s1437 + $0x4] sm:$0xf]
      %v1440 = vld [vmem:[%s1437 + $0x8] sm:$0xf]
      %v1441 = vld [vmem:[%s1437 + $0xc] sm:$0xf]
      %v1442 = vld [vmem:[%s1437 + $0x10] sm:$0xf]
      %v1443 = vld [vmem:[%s1437 + $0x14] sm:$0xf]
      %v1444 = vld [vmem:[%s1437 + $0x18] sm:$0xf]
      %v1445 = vld [vmem:[%s1437 + $0x1c] sm:$0xf]
      %v1446 = vld [vmem:[%s1437 + $0x20] sm:$0xf]
      %v1447 = vld [vmem:[%s1437 + $0x24] sm:$0xf]
      %v1448 = vld [vmem:[%s1437 + $0x28] sm:$0xf]
      %v1449 = vld [vmem:[%s1437 + $0x2c] sm:$0xf]
      %v1450 = vld [vmem:[%s1437 + $0x30] sm:$0xf]
      %v1451 = vld [vmem:[%s1437 + $0x34] sm:$0xf]
      %v1452 = vld [vmem:[%s1437 + $0x38] sm:$0xf]
      %v1453 = vld [vmem:[%s1437 + $0x3c] sm:$0xf]
      %v1454 = vunpack.c.l.b16 %v481
      %v1455 = vunpack.c.l.b16 %v495
      %v1456 = vunpack.c.l.b16 %v509
      %v1457 = vunpack.c.l.b16 %v523
      %v1458 = vpack.c.b16 %v1455, %v1454
      %v1459 = vpack.c.b16 %v1457, %v1456
      %v1478 = vunpack.c.l.b16 %v1438
      %v1479 = vunpack.c.l.b16 %v1439
      %v1480 = vunpack.c.l.b16 %v1440
      %v1481 = vunpack.c.l.b16 %v1441
      %v1482 = vunpack.c.l.b16 %v1442
      %v1483 = vunpack.c.l.b16 %v1443
      %v1484 = vunpack.c.l.b16 %v1444
      %v1485 = vunpack.c.l.b16 %v1445
      %v1486 = vunpack.c.l.b16 %v1446
      %v1487 = vunpack.c.l.b16 %v1447
      %v1488 = vunpack.c.l.b16 %v1448
      %v1489 = vunpack.c.l.b16 %v1449
      %v1490 = vunpack.c.l.b16 %v1450
      %v1491 = vunpack.c.l.b16 %v1451
      %v1492 = vunpack.c.l.b16 %v1452
      %v1493 = vunpack.c.l.b16 %v1453
      %v1494 = vpack.c.b16 %v1479, %v1478
      %v1495 = vpack.c.b16 %v1481, %v1480
      %v1496 = vpack.c.b16 %v1483, %v1482
      %v1497 = vpack.c.b16 %v1485, %v1484
      %v1498 = vpack.c.b16 %v1487, %v1486
      %v1499 = vpack.c.b16 %v1489, %v1488
      %v1500 = vpack.c.b16 %v1491, %v1490
      %v1501 = vpack.c.b16 %v1493, %v1492
      %1510 = vmatprep.subr.bf16.mxu0 0
      %1511 = vmatpush1.bf16.msra.mxu0 %v1494
      %1512 = vmatprep.subr.bf16.mxu0 0
      %1513 = vmatpush1.bf16.msra.mxu0 %v1495
      %1514 = vmatprep.subr.bf16.mxu0 0
      %1515 = vmatpush1.bf16.msra.mxu0 %v1496
      %1516 = vmatprep.subr.bf16.mxu0 0
      %1517 = vmatpush1.bf16.msra.mxu0 %v1497
      %1518 = vmatprep.subr.bf16.mxu0 0
      %1519 = vmatpush1.bf16.msra.mxu0 %v1498
      %1520 = vmatprep.subr.bf16.mxu0 0
      %1521 = vmatpush1.bf16.msra.mxu0 %v1499
      %1522 = vmatprep.subr.bf16.mxu0 0
      %1523 = vmatpush1.bf16.msra.mxu0 %v1500
      %1524 = vmatprep.subr.bf16.mxu0 0
      %1525 = vmatpush1.bf16.msra.mxu0 %v1501
      %1526 = vmatprep.subr.bf16.mxu0 0
      %1527 = vmatpush1.bf16.msra.mxu0 0
      %1528 = vmatprep.subr.bf16.mxu0 0
      %1529 = vmatpush1.bf16.msra.mxu0 0
      %1530 = vmatprep.subr.bf16.mxu0 0
      %1531 = vmatpush1.bf16.msra.mxu0 0
      %1532 = vmatprep.subr.bf16.mxu0 0
      %1533 = vmatpush1.bf16.msra.mxu0 0
      %1534 = vmatprep.subr.bf16.mxu0 0
      %1535 = vmatpush1.bf16.msra.mxu0 0
      %1536 = vmatprep.subr.bf16.mxu0 0
      %1537 = vmatpush1.bf16.msra.mxu0 0
      %1538 = vmatprep.subr.bf16.mxu0 0
      %1539 = vmatpush1.bf16.msra.mxu0 0
      %1540 = vmatprep.subr.bf16.mxu0 0
      %1541 = vmatpush1.bf16.msra.mxu0 0
      %1542 = vmatprep.mubr.bf16.mxu0 0
      %1543 = vmatmul.mubr.bf16.gmra.mrb[0].mxu0 %v1458
      %v1544 = vpop.f32.mrb[0].mxu0
      %v1545 = vadd.f32 0.0, %v1544
      %v1546 = vpop.f32.mrb[0].mxu0
      %v1547 = vpop.f32.mrb[0].mxu0
      %v1548 = vadd.f32 0.0, %v1547
      %v1549 = vpop.f32.mrb[0].mxu0
      %1550 = vmatprep.mubr.bf16.mxu0 0
      %1551 = vmatmul.mubr.bf16.gmra.mrb[0].mxu0 %v1459
      %v1552 = vpop.f32.mrb[0].mxu0
      %v1553 = vadd.f32 0.0, %v1552
      %v1554 = vpop.f32.mrb[0].mxu0
      %v1555 = vpop.f32.mrb[0].mxu0
      %v1556 = vadd.f32 0.0, %v1555
      %v1557 = vpop.f32.mrb[0].mxu0
      %1558 = vdwg.mxu0
      %v1559 = vadd.f32 %v1433, %v1545
      %v1560 = vadd.f32 %v1434, %v1548
      %v1561 = vadd.f32 %v1435, %v1553
      %v1562 = vadd.f32 %v1436, %v1556
      %s1563 = scalar_lea.vmem %s1, 512
      %v1564 = vld [vmem:[%s1563] sm:$0xf]
      %v1565 = vld [vmem:[%s1563 + $0x4] sm:$0xf]
      %v1566 = vld [vmem:[%s1563 + $0x8] sm:$0xf]
      %v1567 = vld [vmem:[%s1563 + $0xc] sm:$0xf]
      %v1568 = vld [vmem:[%s1563 + $0x10] sm:$0xf]
      %v1569 = vld [vmem:[%s1563 + $0x14] sm:$0xf]
      %v1570 = vld [vmem:[%s1563 + $0x18] sm:$0xf]
      %v1571 = vld [vmem:[%s1563 + $0x1c] sm:$0xf]
      %v1572 = vld [vmem:[%s1563 + $0x20] sm:$0xf]
      %v1573 = vld [vmem:[%s1563 + $0x24] sm:$0xf]
      %v1574 = vld [vmem:[%s1563 + $0x28] sm:$0xf]
      %v1575 = vld [vmem:[%s1563 + $0x2c] sm:$0xf]
      %v1576 = vld [vmem:[%s1563 + $0x30] sm:$0xf]
      %v1577 = vld [vmem:[%s1563 + $0x34] sm:$0xf]
      %v1578 = vld [vmem:[%s1563 + $0x38] sm:$0xf]
      %v1579 = vld [vmem:[%s1563 + $0x3c] sm:$0xf]
      %v1580 = vunpack.c.l.b16 %v539
      %v1581 = vunpack.c.l.b16 %v543
      %v1582 = vunpack.c.l.b16 %v547
      %v1583 = vunpack.c.l.b16 %v551
      %v1584 = vpack.c.b16 %v1581, %v1580
      %v1585 = vpack.c.b16 %v1583, %v1582
      %v1604 = vunpack.c.l.b16 %v1564
      %v1605 = vunpack.c.l.b16 %v1565
      %v1606 = vunpack.c.l.b16 %v1566
      %v1607 = vunpack.c.l.b16 %v1567
      %v1608 = vunpack.c.l.b16 %v1568
      %v1609 = vunpack.c.l.b16 %v1569
      %v1610 = vunpack.c.l.b16 %v1570
      %v1611 = vunpack.c.l.b16 %v1571
      %v1612 = vunpack.c.l.b16 %v1572
      %v1613 = vunpack.c.l.b16 %v1573
      %v1614 = vunpack.c.l.b16 %v1574
      %v1615 = vunpack.c.l.b16 %v1575
      %v1616 = vunpack.c.l.b16 %v1576
      %v1617 = vunpack.c.l.b16 %v1577
      %v1618 = vunpack.c.l.b16 %v1578
      %v1619 = vunpack.c.l.b16 %v1579
      %v1620 = vpack.c.b16 %v1605, %v1604
      %v1621 = vpack.c.b16 %v1607, %v1606
      %v1622 = vpack.c.b16 %v1609, %v1608
      %v1623 = vpack.c.b16 %v1611, %v1610
      %v1624 = vpack.c.b16 %v1613, %v1612
      %v1625 = vpack.c.b16 %v1615, %v1614
      %v1626 = vpack.c.b16 %v1617, %v1616
      %v1627 = vpack.c.b16 %v1619, %v1618
      %1636 = vmatprep.subr.bf16.mxu0 0
      %1637 = vmatpush1.bf16.msra.mxu0 %v1620
      %1638 = vmatprep.subr.bf16.mxu0 0
      %1639 = vmatpush1.bf16.msra.mxu0 %v1621
      %1640 = vmatprep.subr.bf16.mxu0 0
      %1641 = vmatpush1.bf16.msra.mxu0 %v1622
      %1642 = vmatprep.subr.bf16.mxu0 0
      %1643 = vmatpush1.bf16.msra.mxu0 %v1623
      %1644 = vmatprep.subr.bf16.mxu0 0
      %1645 = vmatpush1.bf16.msra.mxu0 %v1624
      %1646 = vmatprep.subr.bf16.mxu0 0
      %1647 = vmatpush1.bf16.msra.mxu0 %v1625
      %1648 = vmatprep.subr.bf16.mxu0 0
      %1649 = vmatpush1.bf16.msra.mxu0 %v1626
      %1650 = vmatprep.subr.bf16.mxu0 0
      %1651 = vmatpush1.bf16.msra.mxu0 %v1627
      %1652 = vmatprep.subr.bf16.mxu0 0
      %1653 = vmatpush1.bf16.msra.mxu0 0
      %1654 = vmatprep.subr.bf16.mxu0 0
      %1655 = vmatpush1.bf16.msra.mxu0 0
      %1656 = vmatprep.subr.bf16.mxu0 0
      %1657 = vmatpush1.bf16.msra.mxu0 0
      %1658 = vmatprep.subr.bf16.mxu0 0
      %1659 = vmatpush1.bf16.msra.mxu0 0
      %1660 = vmatprep.subr.bf16.mxu0 0
      %1661 = vmatpush1.bf16.msra.mxu0 0
      %1662 = vmatprep.subr.bf16.mxu0 0
      %1663 = vmatpush1.bf16.msra.mxu0 0
      %1664 = vmatprep.subr.bf16.mxu0 0
      %1665 = vmatpush1.bf16.msra.mxu0 0
      %1666 = vmatprep.subr.bf16.mxu0 0
      %1667 = vmatpush1.bf16.msra.mxu0 0
      %1668 = vmatprep.mubr.bf16.mxu0 0
      %1669 = vmatmul.mubr.bf16.gmra.mrb[0].mxu0 %v1584
      %v1670 = vpop.f32.mrb[0].mxu0
      %v1671 = vadd.f32 0.0, %v1670
      %v1672 = vpop.f32.mrb[0].mxu0
      %v1673 = vpop.f32.mrb[0].mxu0
      %v1674 = vadd.f32 0.0, %v1673
      %v1675 = vpop.f32.mrb[0].mxu0
      %1676 = vmatprep.mubr.bf16.mxu0 0
      %1677 = vmatmul.mubr.bf16.gmra.mrb[0].mxu0 %v1585
      %v1678 = vpop.f32.mrb[0].mxu0
      %v1679 = vadd.f32 0.0, %v1678
      %v1680 = vpop.f32.mrb[0].mxu0
      %v1681 = vpop.f32.mrb[0].mxu0
      %v1682 = vadd.f32 0.0, %v1681
      %v1683 = vpop.f32.mrb[0].mxu0
      %1684 = vdwg.mxu0
      %v1685 = vadd.f32 %v1559, %v1671
      %v1686 = vadd.f32 %v1560, %v1674
      %v1687 = vadd.f32 %v1561, %v1679
      %v1688 = vadd.f32 %v1562, %v1682
      %v1689 = vld [vmem:[%s2] sm:$0x1]
      %v1691 = vlaneseq
      %v1692 = vshrl.u32 %v1691, 7
      %v1693 = vsub.s32 0, %v1692
      %v1694 = vrot.slane %v1689, %v1693
      %v1696 = vadd.f32 %v1685, %v1694
      %v1697 = vadd.f32 %v1686, %v1694
      %v1698 = vadd.f32 %v1687, %v1694
      %v1699 = vadd.f32 %v1688, %v1694
      %v1700 = vld [vmem:[%s245] sm:$0xf]
      %v1701 = vld [vmem:[%s245 + $0x4] sm:$0xf]
      %v1702 = vld [vmem:[%s245 + $0x8] sm:$0xf]
      %v1703 = vld [vmem:[%s245 + $0xc] sm:$0xf]
      %v1704 = vunpack.c.l.bf16 %v1700
      %v1705 = vunpack.c.l.bf16 %v1701
      %v1706 = vunpack.c.l.bf16 %v1702
      %v1707 = vunpack.c.l.bf16 %v1703
      %v1708 = vadd.f32 %v1696, %v1704
      %v1709 = vadd.f32 %v1697, %v1705
      %v1710 = vadd.f32 %v1698, %v1706
      %v1711 = vadd.f32 %v1699, %v1707
      %v1712 = vmax.f32 %v1708, 0.0
      %v1713 = vmax.f32 %v1709, 0.0
      %v1714 = vmax.f32 %v1710, 0.0
      %v1715 = vmax.f32 %v1711, 0.0
      %v1716 = vpack.c.bf16 %v1712, %v1712
      %v1717 = vpack.c.bf16 %v1713, %v1713
      %v1718 = vpack.c.bf16 %v1714, %v1714
      %v1719 = vpack.c.bf16 %v1715, %v1715
      %1720 = vst [vmem:[%s255] sm:$0xf] %v1716
      %1721 = vst [vmem:[%s255 + $0x4] sm:$0xf] %v1717
      %1722 = vst [vmem:[%s255 + $0x8] sm:$0xf] %v1718
      %1723 = vst [vmem:[%s255 + $0xc] sm:$0xf] %v1719
      %s1724 = smul.u32 4, %s20
      %p1725 = scmp.lt.s32.totalorder %s19, 1
      %s1726 = scalar_select %p1725, %s19, 1
      %p1727 = scmp.lt.s32.totalorder %s1724, 7
      %s1728 = scalar_select %p1727, %s1724, 7
      %s1729 = smul.addr %s1726, 8
      %s1730 = sadd.s32 %s1728, %s1729
      %s1731 = smul.addr %s1730, 4
      %s1732 = scalar_lea.vmem %s4, %s1731
      // Predicated region
      $region37: #{net.7} parent=35 // pred_check
        %p1733 = pneg %p143
      $region38: #{net.7} parent=35 // pred_check_branch
        %1735 = sbr.rel (%p1733) target = $region40
      $region39: #{net.7} parent=35 // pred_region
        %s1736 = smul.u32 4, %s20
      $region40: #{net.7} parent=35 // pred_fallthru
        _
    $region36: #{net.7} parent=5 // pred_fallthru
      _
    %p1737 = scmp.le.s32.totalorder 2, %s10
    // Predicated region
    $region41: #{net.7} parent=5 // pred_check
      %p1738 = pneg %p1737
    $region42: #{net.7} parent=5 // pred_check_branch
      %1740 = sbr.rel (%p1738) target = $region44
    $region43: #{net.7} parent=5 // pred_region
      %s1741 = ssub.s32 %s10, 2
      // Predicated region
      $region45: #{net.7} parent=43 // pred_check
        %p1742 = pneg %p149
      $region46: #{net.7} parent=43 // pred_check_branch
        %1744 = sbr.rel (%p1742) target = $region48
      $region47: #{net.7} parent=43 // pred_region
        %s1745 = smul.u32 4, %s22
        %p1746 = scmp.lt.s32.totalorder %s21, 1
        %s1747 = scalar_select %p1746, %s21, 1
        %p1748 = scmp.lt.s32.totalorder %s1745, 7
        %s1749 = scalar_select %p1748, %s1745, 7
        %s1750 = smul.addr %s1747, 8
        %s1751 = sadd.s32 %s1749, %s1750
        %s1752 = smul.addr %s1751, 4
        %s1753 = scalar_lea.vmem %s4, %s1752
      $region48: #{net.7} parent=43 // pred_fallthru
        _
    $region44: #{net.7} parent=5 // pred_fallthru
      _
  $region6: #{net.7} parent=0 // loop_footer
    %s14 = sadd.s32 1, %s10
  $region7: #{net.7} parent=0 // loop_footer_branch
    %9 = sbr.rel target = $region3
  $region8: #{net.7} parent=0 // loop_exit
    _

</llo_original>
